<compile_context>
chip_gen: v6e
topology: v6e:2x2x1
jax: 0.10.0
libtpu: 0.0.40
codegen_flags: <defaults>
</compile_context>

<pallas_src>
import functools

import jax
import jax.numpy as jnp
from jax import lax
from jax.experimental import pallas as pl
from jax.experimental.pallas import tpu as pltpu


# ---------------------------- static configuration --------------------------

# layer1..layer4 channel/stride signature (strides are STATIC python ints; they
# must not live inside the jitted params pytree -> fixes TracerBoolConversion).
STAGE_DEFS = ((64, 256, 1), (256, 512, 2), (512, 1024, 2), (1024, 2048, 2))

K_STEM = 256          # stem im2col K = 49*3 = 147, zero-padded to lane-friendly 256
N_HEAD_PAD = 128      # folded fc6@fc10 output N = 2, zero-padded to lane-dense 128
VMEM_LIMIT = 32 * 1024 * 1024   # explicit scoped-VMEM budget (safe on v5e/v6e/v7x)


def _pick_tile(dim, candidates):
    for c in candidates:
        if dim % c == 0:
            return c
    return dim          # fall back to the full (un-tiled) extent


# ----------------------------- Pallas kernels ------------------------------

def _fused_matmul_kernel(x_ref, w_ref, b_ref, o_ref, *, relu):
    # blocks: x (1, tm, K), w (1, K, tn), b (1, 1, tn), out (1, tm, tn)
    acc = lax.dot_general(x_ref[0], w_ref[0],
                          dimension_numbers=(((1,), (0,)), ((), ())),
                          preferred_element_type=jnp.float32)
    acc = acc + b_ref[0]
    if relu:
        acc = jnp.maximum(acc, 0.0)
    o_ref[0] = acc.astype(o_ref.dtype)


def fused_matmul(x, w, b, relu=False, out_dtype=jnp.bfloat16):
    """y[g] = x[g] @ w[g] + b[g] (+ optional ReLU), tiled over (G, M, N).

    x: (M, K) or (G, M, K); w: (K, N) or (G, K, N); b: (N,) or (G, N).
    Operands run in bf16, accumulation in f32 on the MXU.
    """
    squeeze = (x.ndim == 2)
    if squeeze:
        x, w, b = x[None], w[None], b[None]
    G, M, K = x.shape
    _, _, N = w.shape
    b3 = b.reshape(G, 1, N).astype(jnp.float32)
    tm = _pick_tile(M, (1024, 512, 256, 128, 64, 32, 16, 8))
    tn = _pick_tile(N, (512, 256, 128))
    out = pl.pallas_call(
        functools.partial(_fused_matmul_kernel, relu=relu),
        out_shape=jax.ShapeDtypeStruct((G, M, N), out_dtype),
        grid_spec=pltpu.PrefetchScalarGridSpec(
            num_scalar_prefetch=0,
            grid=(G, M // tm, N // tn),
            in_specs=[
                pl.BlockSpec((1, tm, K), lambda g, i, j: (g, i, 0)),
                pl.BlockSpec((1, K, tn), lambda g, i, j: (g, 0, j)),
                pl.BlockSpec((1, 1, tn), lambda g, i, j: (g, 0, j)),
            ],
            out_specs=pl.BlockSpec((1, tm, tn), lambda g, i, j: (g, i, j)),
        ),
        compiler_params=pltpu.CompilerParams(
            dimension_semantics=("parallel", "parallel", "parallel"),
            vmem_limit_bytes=VMEM_LIMIT),
    )(x.astype(jnp.bfloat16), w.astype(jnp.bfloat16), b3)
    return out[0] if squeeze else out


def _maxpool_kernel(xe_ref, xo_ref, o_ref, *, oh, ow):
    # blocks: xe/xo (1, 2*oh+2, ow+1, C)  (even / odd padded columns), out (1, oh, ow, C)
    xe = xe_ref[0]
    xo = xo_ref[0]
    # column (W) direction: window cols {2j, 2j+1, 2j+2} == {xe[j], xo[j], xe[j+1]}
    cmax = jnp.maximum(jnp.maximum(xe[:, :ow, :], xo[:, :ow, :]), xe[:, 1:ow + 1, :])
    # row (H) direction: window rows {2i, 2i+1, 2i+2}; pairwise reshape on a
    # non-minor axis keeps everything unit-stride on the (sublane, lane) tile.
    c = cmax.shape[-1]
    a = cmax[0:2 * oh].reshape(oh, 2, ow, c)
    b = cmax[2:2 * oh + 2].reshape(oh, 2, ow, c)
    out = jnp.maximum(jnp.maximum(a[:, 0], a[:, 1]), b[:, 0])
    o_ref[0] = out.astype(o_ref.dtype)


def maxpool_3x3_s2_p1(x):
    """MaxPool2d(kernel=3, stride=2, padding=1) on NHWC x:(B, H, W, C)."""
    B, H, W, C = x.shape
    OH, OW = (H - 1) // 2 + 1, (W - 1) // 2 + 1
    # pad to exactly (2*OH+2, 2*OW+2) with -inf (PyTorch pads max-pool with -inf)
    xp = jnp.pad(x, ((0, 0), (1, 2 * OH + 1 - H), (1, 2 * OW + 1 - W), (0, 0)),
                 constant_values=-jnp.inf)
    # de-interleave columns by parity once in XLA (~2x traffic instead of the
    # previous 9x tap materialization); the kernel then needs only unit strides.
    xe = xp[:, :, 0::2, :]                       # (B, 2*OH+2, OW+1, C)
    xo = xp[:, :, 1::2, :]                       # (B, 2*OH+2, OW+1, C)
    return pl.pallas_call(
        functools.partial(_maxpool_kernel, oh=OH, ow=OW),
        out_shape=jax.ShapeDtypeStruct((B, OH, OW, C), x.dtype),
        grid_spec=pltpu.PrefetchScalarGridSpec(
            num_scalar_prefetch=0,
            grid=(B,),
            in_specs=[
                pl.BlockSpec((1, 2 * OH + 2, OW + 1, C), lambda b: (b, 0, 0, 0)),
                pl.BlockSpec((1, 2 * OH + 2, OW + 1, C), lambda b: (b, 0, 0, 0)),
            ],
            out_specs=pl.BlockSpec((1, OH, OW, C), lambda b: (b, 0, 0, 0)),
        ),
        compiler_params=pltpu.CompilerParams(
            dimension_semantics=("parallel",),
            vmem_limit_bytes=VMEM_LIMIT),
    )(xe, xo)


def _avgpool_scale_kernel(x_ref, o_ref, *, s0, s1):
    # blocks: x (1, B, HW, C), out (1, B, C); grid axis 0 = branch
    scale = jnp.where(pl.program_id(0) == 0, s0, s1)
    x = x_ref[0].astype(jnp.float32)
    o_ref[0] = (jnp.mean(x, axis=1) * scale).astype(o_ref.dtype)


def global_avgpool_scale(x, s0, s1):
    """AdaptiveAvgPool2d(1) + per-branch scalar weighting.  x:(2, B, HW, C) -> (2, B, C)."""
    G, B, HW, C = x.shape
    return pl.pallas_call(
        functools.partial(_avgpool_scale_kernel, s0=s0, s1=s1),
        out_shape=jax.ShapeDtypeStruct((G, B, C), jnp.bfloat16),
        grid_spec=pltpu.PrefetchScalarGridSpec(
            num_scalar_prefetch=0,
            grid=(G,),
            in_specs=[pl.BlockSpec((1, B, HW, C), lambda g: (g, 0, 0, 0))],
            out_specs=pl.BlockSpec((1, B, C), lambda g: (g, 0, 0)),
        ),
        compiler_params=pltpu.CompilerParams(
            dimension_semantics=("parallel",),
            vmem_limit_bytes=VMEM_LIMIT),
    )(x)


# ------------------------------ JAX-side glue -------------------------------

def im2col_7x7_s2_p3(x, k_pad):
    """7x7 / stride-2 / pad-3 patches of NHWC x -> (B*OH*OW, k_pad) (K zero-padded)."""
    B, H, W, C = x.shape
    OH, OW = (H - 1) // 2 + 1, (W - 1) // 2 + 1
    xp = jnp.pad(x, ((0, 0), (3, 3), (3, 3), (0, 0)))
    pats = [xp[:, kh:kh + 2 * (OH - 1) + 1:2, kw:kw + 2 * (OW - 1) + 1:2, :]
            for kh in range(7) for kw in range(7)]
    cols = jnp.stack(pats, axis=3).reshape(B * OH * OW, 49 * C)   # (kh, kw, c) order
    if k_pad > 49 * C:
        cols = jnp.pad(cols, ((0, 0), (0, k_pad - 49 * C)))
    return cols


def fold_bn_into_conv(w_torch, gamma, beta, mean, var, eps=1e-5):
    """Fold BatchNorm into the conv's matmul weight.

    w_torch: (Cout, Cin, KH, KW) torch layout -> (KH*KW*Cin, Cout) matmul weight.
    """
    scale = gamma / jnp.sqrt(var + eps)
    w_mat = jnp.transpose(w_torch, (2, 3, 1, 0)).reshape(-1, w_torch.shape[0])
    return w_mat * scale[None, :], beta - mean * scale


def net_forward(x_nchw, prep):
    x = jnp.transpose(x_nchw, (0, 2, 3, 1)).astype(jnp.bfloat16)   # NCHW -> NHWC
    B, H, W, _ = x.shape
    OH1, OW1 = (H - 1) // 2 + 1, (W - 1) // 2 + 1

    # fused stem for BOTH branches: shared im2col patches, concatenated BN-folded
    # conv weights -> one lane-dense (K=256, N=128) matmul + ReLU.
    patches = im2col_7x7_s2_p3(x, K_STEM)
    stem = fused_matmul(patches, prep["stem_w"], prep["stem_b"], relu=True)
    stem = stem.reshape(B, OH1, OW1, 128)

    # maxpool 3x3 / stride 2 / pad 1 on the 128-channel concat (Pallas)
    pooled = maxpool_3x3_s2_p1(stem)                               # (B, OH2, OW2, 128)

    # split per-branch channels, stack on a leading branch axis: (2, B, h, w, 64)
    y = jnp.stack([pooled[..., :64], pooled[..., 64:]], axis=0)

    # TODO(synk): layer1..layer4 are external pretrained SE-ResNet50 / ResNet50
    # bottleneck stacks (not defined in ronghe2v.py); stood in for by one strided
    # 1x1-conv + ReLU per stage with the same channel/stride signature, run as a
    # single Pallas matmul per stage with a branch grid axis.
    for si, (cin, cout, stride) in enumerate(STAGE_DEFS):
        if stride > 1:                                              # static python int
            y = y[:, :, ::stride, ::stride, :]
        _, _, h_sp, w_sp, _ = y.shape
        y2 = y.reshape(2, B * h_sp * w_sp, cin)
        y2 = fused_matmul(y2, prep["stage_w"][si], prep["stage_b"][si], relu=True)
        y = y2.reshape(2, B, h_sp, w_sp, cout)

    # global average pool + branch weighting (0.5295 / 0.4705) in one Pallas call
    _, _, h_sp, w_sp, _ = y.shape
    feats = global_avgpool_scale(y.reshape(2, B, h_sp * w_sp, 2048), 0.5295, 0.4705)
    feat = jnp.transpose(feats, (1, 0, 2)).reshape(B, 4096)        # [se | r] concat

    # dropout4 / dropout8 (p=0.2) are identity at inference; fc6 and fc10 are
    # folded into a single (4096 x 128-padded) matmul at param-prep time.
    out = fused_matmul(feat, prep["head_w"], prep["head_b"],
                       relu=False, out_dtype=jnp.float32)
    return out[:, :2]                                               # (B, 2)


# --------------------------- deterministic params ---------------------------

def init_branch(key):
    ks = jax.random.split(key, 5 + 2 * len(STAGE_DEFS))
    w_conv = jax.random.normal(ks[0], (64, 3, 7, 7), jnp.float32) / jnp.sqrt(147.0)
    gamma = 1.0 + 0.01 * jax.random.normal(ks[1], (64,), jnp.float32)
    beta = 0.01 * jax.random.normal(ks[2], (64,), jnp.float32)
    mean = 0.01 * jax.random.normal(ks[3], (64,), jnp.float32)
    var = jnp.abs(1.0 + 0.01 * jax.random.normal(ks[4], (64,), jnp.float32))
    stages = []
    for i, (cin, cout, _) in enumerate(STAGE_DEFS):
        w = jax.random.normal(ks[5 + 2 * i], (cin, cout), jnp.float32) / jnp.sqrt(cin)
        b = 0.01 * jax.random.normal(ks[6 + 2 * i], (cout,), jnp.float32)
        stages.append((w, b))
    return {"conv_w": w_conv, "gamma": gamma, "beta": beta, "mean": mean,
            "var": var, "stages": stages}


def init_params(key):
    k_se, k_r, k6w, k6b, k10w, k10b = jax.random.split(key, 6)
    return {
        "se": init_branch(k_se),
        "r": init_branch(k_r),
        "fc6_w": jax.random.normal(k6w, (4096, 2048), jnp.float32) / jnp.sqrt(4096.0),
        "fc6_b": 0.01 * jax.random.normal(k6b, (2048,), jnp.float32),
        "fc10_w": jax.random.normal(k10w, (2048, 2), jnp.float32) / jnp.sqrt(2048.0),
        "fc10_b": 0.01 * jax.random.normal(k10b, (2,), jnp.float32),
    }


def prepare_params(raw):
    """Param-prep (outside jit): fold BN into the stems, concatenate the two
    branches' stem weights (N 64->128) and zero-pad K 147->256; stack per-branch
    stage weights on a leading axis; fold fc6@fc10 into one head matmul with the
    output N padded 2->128; store matmul weights in bf16 (biases in f32)."""
    stem_w, stem_b = [], []
    for br in ("se", "r"):
        p = raw[br]
        w, b = fold_bn_into_conv(p["conv_w"], p["gamma"], p["beta"], p["mean"], p["var"])
        stem_w.append(w)
        stem_b.append(b)
    stem_w = jnp.concatenate(stem_w, axis=1)                        # (147, 128)
    stem_w = jnp.pad(stem_w, ((0, K_STEM - stem_w.shape[0]), (0, 0)))
    stem_b = jnp.concatenate(stem_b, axis=0)                        # (128,)

    stage_w, stage_b = [], []
    for i in range(len(STAGE_DEFS)):
        w = jnp.stack([raw["se"]["stages"][i][0], raw["r"]["stages"][i][0]], axis=0)
        b = jnp.stack([raw["se"]["stages"][i][1], raw["r"]["stages"][i][1]], axis=0)
        stage_w.append(w.astype(jnp.bfloat16))                      # (2, cin, cout)
        stage_b.append(b.astype(jnp.float32))                       # (2, cout)

    # fc6 -> fc10 fold: valid because dropout is identity at inference and there
    # is no nonlinearity between fc6 and fc10 in the reference forward.
    head_w = raw["fc6_w"] @ raw["fc10_w"]                           # (4096, 2)
    head_b = raw["fc6_b"] @ raw["fc10_w"] + raw["fc10_b"]           # (2,)
    head_w = jnp.pad(head_w, ((0, 0), (0, N_HEAD_PAD - head_w.shape[1])))
    head_b = jnp.pad(head_b, ((0, N_HEAD_PAD - head_b.shape[0]),))

    return {
        "stem_w": stem_w.astype(jnp.bfloat16),
        "stem_b": stem_b.astype(jnp.float32),
        "stage_w": tuple(stage_w),
        "stage_b": tuple(stage_b),
        "head_w": head_w.astype(jnp.bfloat16),
        "head_b": head_b.astype(jnp.float32),
    }


# ----------------------------------- main ------------------------------------

if __name__ == "__main__":
    key = jax.random.PRNGKey(0)
    k_x, k_p = jax.random.split(key)
    x = jax.random.normal(k_x, (2, 3, 32, 32), jnp.float32)   # NCHW, like PyTorch
    prep = prepare_params(init_params(k_p))

    out = jax.jit(net_forward)(x, prep)
    out = jax.block_until_ready(out)
    assert out.shape == (2, 2), out.shape
    assert bool(jnp.all(jnp.isfinite(out)))
    print("KERNEL_OK")
</pallas_src>

<mosaic_0001>
module attributes {stable_mosaic.version = 11 : i64} {
  func.func @_fused_matmul_kernel(%arg0: i32, %arg1: i32, %arg2: i32, %arg3: memref<1x512x256xbf16, #tpu.memory_space<vmem>>, %arg4: memref<1x256x128xbf16, #tpu.memory_space<vmem>>, %arg5: memref<1x1x128xf32, #tpu.memory_space<vmem>>, %arg6: memref<1x512x128xbf16, #tpu.memory_space<vmem>>) attributes {dimension_semantics = [#tpu.dimension_semantics<parallel>, #tpu.dimension_semantics<parallel>, #tpu.dimension_semantics<parallel>], iteration_bounds = array<i64: 1, 1, 1>, scalar_prefetch = 0 : i64, scratch_operands = 0 : i64, tpu.core_type = #tpu.core_type<tc>, window_params = [{transform_indices = @transform_0, window_bounds = array<i64: 1, 512, 256>}, {transform_indices = @transform_1, window_bounds = array<i64: 1, 256, 128>}, {transform_indices = @transform_2, window_bounds = array<i64: 1, 1, 128>}, {transform_indices = @transform_3, window_bounds = array<i64: 1, 512, 128>}]} {
    %c0 = arith.constant 0 : index
    %c0_0 = arith.constant 0 : index
    %c0_1 = arith.constant 0 : index
    %0 = vector.load %arg3[%c0, %c0_0, %c0_1] : memref<1x512x256xbf16, #tpu.memory_space<vmem>>, vector<1x512x256xbf16>
    %1 = vector.shape_cast %0 : vector<1x512x256xbf16> to vector<512x256xbf16>
    %c0_2 = arith.constant 0 : index
    %c0_3 = arith.constant 0 : index
    %c0_4 = arith.constant 0 : index
    %2 = vector.load %arg4[%c0_2, %c0_3, %c0_4] : memref<1x256x128xbf16, #tpu.memory_space<vmem>>, vector<1x256x128xbf16>
    %3 = vector.shape_cast %2 : vector<1x256x128xbf16> to vector<256x128xbf16>
    %cst = arith.constant dense<0.000000e+00> : vector<512x128xf32>
    %4 = tpu.matmul %1, %3, %cst {dimension_numbers = #tpu.dot_dimension_numbers<[1], [0], [0], [1], [0, 0, 1, 1], [], []>} : vector<512x256xbf16>, vector<256x128xbf16>, vector<512x128xf32> -> vector<512x128xf32>
    %c0_5 = arith.constant 0 : index
    %c0_6 = arith.constant 0 : index
    %c0_7 = arith.constant 0 : index
    %5 = vector.load %arg5[%c0_5, %c0_6, %c0_7] : memref<1x1x128xf32, #tpu.memory_space<vmem>>, vector<1x1x128xf32>
    %6 = vector.shape_cast %5 : vector<1x1x128xf32> to vector<1x128xf32>
    %7 = vector.broadcast %6 : vector<1x128xf32> to vector<512x128xf32>
    %8 = arith.addf %4, %7 : vector<512x128xf32>
    %cst_8 = arith.constant 0.000000e+00 : f32
    %9 = vector.broadcast %cst_8 : f32 to vector<512x128xf32>
    %10 = arith.maximumf %8, %9 : vector<512x128xf32>
    %11 = arith.truncf %10 : vector<512x128xf32> to vector<512x128xbf16>
    %c0_9 = arith.constant 0 : index
    %c0_10 = arith.constant 0 : index
    %c0_11 = arith.constant 0 : index
    %12 = vector.load %arg6[%c0_9, %c0_10, %c0_11] : memref<1x512x128xbf16, #tpu.memory_space<vmem>>, vector<1x512x128xbf16>
    %13 = vector.shape_cast %12 : vector<1x512x128xbf16> to vector<512x128xbf16>
    %14 = vector.shape_cast %11 : vector<512x128xbf16> to vector<1x512x128xbf16>
    tpu.vector_store %arg6[%c0_9, %c0_10, %c0_11], %14 {strides = array<i32>} : memref<1x512x128xbf16, #tpu.memory_space<vmem>>, vector<1x512x128xbf16>,
    return
  }
  func.func @transform_0(%arg0: i32, %arg1: i32, %arg2: i32) -> (i32, i32, i32) {
    %c0_i32 = arith.constant 0 : i32
    %c0_i32_0 = arith.constant 0 : i32
    return %arg0, %arg1, %c0_i32 : i32, i32, i32
  }
  func.func @transform_1(%arg0: i32, %arg1: i32, %arg2: i32) -> (i32, i32, i32) {
    %c0_i32 = arith.constant 0 : i32
    %c0_i32_0 = arith.constant 0 : i32
    return %arg0, %c0_i32, %arg2 : i32, i32, i32
  }
  func.func @transform_2(%arg0: i32, %arg1: i32, %arg2: i32) -> (i32, i32, i32) {
    %c0_i32 = arith.constant 0 : i32
    %c0_i32_0 = arith.constant 0 : i32
    return %arg0, %c0_i32, %arg2 : i32, i32, i32
  }
  func.func @transform_3(%arg0: i32, %arg1: i32, %arg2: i32) -> (i32, i32, i32) {
    %c0_i32 = arith.constant 0 : i32
    return %arg0, %arg1, %arg2 : i32, i32, i32
  }
}

module attributes {stable_mosaic.version = 11 : i64} {
  func.func @_maxpool_kernel(%arg0: i32, %arg1: memref<1x18x9x128xbf16, #tpu.memory_space<vmem>>, %arg2: memref<1x18x9x128xbf16, #tpu.memory_space<vmem>>, %arg3: memref<1x8x8x128xbf16, #tpu.memory_space<vmem>>) attributes {dimension_semantics = [#tpu.dimension_semantics<parallel>], iteration_bounds = array<i64: 2>, scalar_prefetch = 0 : i64, scratch_operands = 0 : i64, tpu.core_type = #tpu.core_type<tc>, window_params = [{transform_indices = @transform_0, window_bounds = array<i64: 1, 18, 9, 128>}, {transform_indices = @transform_1, window_bounds = array<i64: 1, 18, 9, 128>}, {transform_indices = @transform_2, window_bounds = array<i64: 1, 8, 8, 128>}]} {
    %c0 = arith.constant 0 : index
    %c0_0 = arith.constant 0 : index
    %c0_1 = arith.constant 0 : index
    %c0_2 = arith.constant 0 : index
    %0 = vector.load %arg1[%c0, %c0_0, %c0_1, %c0_2] : memref<1x18x9x128xbf16, #tpu.memory_space<vmem>>, vector<1x18x9x128xbf16>
    %1 = vector.shape_cast %0 : vector<1x18x9x128xbf16> to vector<18x9x128xbf16>
    %c0_3 = arith.constant 0 : index
    %c0_4 = arith.constant 0 : index
    %c0_5 = arith.constant 0 : index
    %c0_6 = arith.constant 0 : index
    %2 = vector.load %arg2[%c0_3, %c0_4, %c0_5, %c0_6] : memref<1x18x9x128xbf16, #tpu.memory_space<vmem>>, vector<1x18x9x128xbf16>
    %3 = vector.shape_cast %2 : vector<1x18x9x128xbf16> to vector<18x9x128xbf16>
    %4 = vector.extract_strided_slice %1 {offsets = [0, 0, 0], sizes = [18, 8, 128], strides = [1, 1, 1]} : vector<18x9x128xbf16> to vector<18x8x128xbf16>
    %5 = vector.extract_strided_slice %3 {offsets = [0, 0, 0], sizes = [18, 8, 128], strides = [1, 1, 1]} : vector<18x9x128xbf16> to vector<18x8x128xbf16>
    %6 = arith.maximumf %4, %5 : vector<18x8x128xbf16>
    %7 = vector.extract_strided_slice %1 {offsets = [0, 1, 0], sizes = [18, 8, 128], strides = [1, 1, 1]} : vector<18x9x128xbf16> to vector<18x8x128xbf16>
    %8 = arith.maximumf %6, %7 : vector<18x8x128xbf16>
    %9 = vector.extract_strided_slice %8 {offsets = [0, 0, 0], sizes = [16, 8, 128], strides = [1, 1, 1]} : vector<18x8x128xbf16> to vector<16x8x128xbf16>
    %10 = vector.shape_cast %9 : vector<16x8x128xbf16> to vector<8x2x8x128xbf16>
    %11 = vector.extract_strided_slice %8 {offsets = [2, 0, 0], sizes = [16, 8, 128], strides = [1, 1, 1]} : vector<18x8x128xbf16> to vector<16x8x128xbf16>
    %12 = vector.shape_cast %11 : vector<16x8x128xbf16> to vector<8x2x8x128xbf16>
    %13 = vector.extract_strided_slice %10 {offsets = [0, 0, 0, 0], sizes = [8, 1, 8, 128], strides = [1, 1, 1, 1]} : vector<8x2x8x128xbf16> to vector<8x1x8x128xbf16>
    %14 = vector.shape_cast %13 : vector<8x1x8x128xbf16> to vector<8x8x128xbf16>
    %15 = vector.extract_strided_slice %10 {offsets = [0, 1, 0, 0], sizes = [8, 1, 8, 128], strides = [1, 1, 1, 1]} : vector<8x2x8x128xbf16> to vector<8x1x8x128xbf16>
    %16 = vector.shape_cast %15 : vector<8x1x8x128xbf16> to vector<8x8x128xbf16>
    %17 = arith.maximumf %14, %16 : vector<8x8x128xbf16>
    %18 = vector.extract_strided_slice %12 {offsets = [0, 0, 0, 0], sizes = [8, 1, 8, 128], strides = [1, 1, 1, 1]} : vector<8x2x8x128xbf16> to vector<8x1x8x128xbf16>
    %19 = vector.shape_cast %18 : vector<8x1x8x128xbf16> to vector<8x8x128xbf16>
    %20 = arith.maximumf %17, %19 : vector<8x8x128xbf16>
    %c0_7 = arith.constant 0 : index
    %c0_8 = arith.constant 0 : index
    %c0_9 = arith.constant 0 : index
    %c0_10 = arith.constant 0 : index
    %21 = vector.load %arg3[%c0_7, %c0_8, %c0_9, %c0_10] : memref<1x8x8x128xbf16, #tpu.memory_space<vmem>>, vector<1x8x8x128xbf16>
    %22 = vector.shape_cast %21 : vector<1x8x8x128xbf16> to vector<8x8x128xbf16>
    %23 = vector.shape_cast %20 : vector<8x8x128xbf16> to vector<1x8x8x128xbf16>
    tpu.vector_store %arg3[%c0_7, %c0_8, %c0_9, %c0_10], %23 {strides = array<i32>} : memref<1x8x8x128xbf16, #tpu.memory_space<vmem>>, vector<1x8x8x128xbf16>,
    return
  }
  func.func @transform_0(%arg0: i32) -> (i32, i32, i32, i32) {
    %c0_i32 = arith.constant 0 : i32
    %c0_i32_0 = arith.constant 0 : i32
    %c0_i32_1 = arith.constant 0 : i32
    %c0_i32_2 = arith.constant 0 : i32
    return %arg0, %c0_i32, %c0_i32_0, %c0_i32_1 : i32, i32, i32, i32
  }
  func.func @transform_1(%arg0: i32) -> (i32, i32, i32, i32) {
    %c0_i32 = arith.constant 0 : i32
    %c0_i32_0 = arith.constant 0 : i32
    %c0_i32_1 = arith.constant 0 : i32
    %c0_i32_2 = arith.constant 0 : i32
    return %arg0, %c0_i32, %c0_i32_0, %c0_i32_1 : i32, i32, i32, i32
  }
  func.func @transform_2(%arg0: i32) -> (i32, i32, i32, i32) {
    %c0_i32 = arith.constant 0 : i32
    %c0_i32_0 = arith.constant 0 : i32
    %c0_i32_1 = arith.constant 0 : i32
    %c0_i32_2 = arith.constant 0 : i32
    return %arg0, %c0_i32, %c0_i32_0, %c0_i32_1 : i32, i32, i32, i32
  }
}

module attributes {stable_mosaic.version = 11 : i64} {
  func.func @_fused_matmul_kernel(%arg0: i32, %arg1: i32, %arg2: i32, %arg3: memref<1x128x64xbf16, #tpu.memory_space<vmem>>, %arg4: memref<1x64x256xbf16, #tpu.memory_space<vmem>>, %arg5: memref<1x1x256xf32, #tpu.memory_space<vmem>>, %arg6: memref<1x128x256xbf16, #tpu.memory_space<vmem>>) attributes {dimension_semantics = [#tpu.dimension_semantics<parallel>, #tpu.dimension_semantics<parallel>, #tpu.dimension_semantics<parallel>], iteration_bounds = array<i64: 2, 1, 1>, scalar_prefetch = 0 : i64, scratch_operands = 0 : i64, tpu.core_type = #tpu.core_type<tc>, window_params = [{transform_indices = @transform_0, window_bounds = array<i64: 1, 128, 64>}, {transform_indices = @transform_1, window_bounds = array<i64: 1, 64, 256>}, {transform_indices = @transform_2, window_bounds = array<i64: 1, 1, 256>}, {transform_indices = @transform_3, window_bounds = array<i64: 1, 128, 256>}]} {
    %c0 = arith.constant 0 : index
    %c0_0 = arith.constant 0 : index
    %c0_1 = arith.constant 0 : index
    %0 = vector.load %arg3[%c0, %c0_0, %c0_1] : memref<1x128x64xbf16, #tpu.memory_space<vmem>>, vector<1x128x64xbf16>
    %1 = vector.shape_cast %0 : vector<1x128x64xbf16> to vector<128x64xbf16>
    %c0_2 = arith.constant 0 : index
    %c0_3 = arith.constant 0 : index
    %c0_4 = arith.constant 0 : index
    %2 = vector.load %arg4[%c0_2, %c0_3, %c0_4] : memref<1x64x256xbf16, #tpu.memory_space<vmem>>, vector<1x64x256xbf16>
    %3 = vector.shape_cast %2 : vector<1x64x256xbf16> to vector<64x256xbf16>
    %cst = arith.constant dense<0.000000e+00> : vector<128x256xf32>
    %4 = tpu.matmul %1, %3, %cst {dimension_numbers = #tpu.dot_dimension_numbers<[1], [0], [0], [1], [0, 0, 1, 1], [], []>} : vector<128x64xbf16>, vector<64x256xbf16>, vector<128x256xf32> -> vector<128x256xf32>
    %c0_5 = arith.constant 0 : index
    %c0_6 = arith.constant 0 : index
    %c0_7 = arith.constant 0 : index
    %5 = vector.load %arg5[%c0_5, %c0_6, %c0_7] : memref<1x1x256xf32, #tpu.memory_space<vmem>>, vector<1x1x256xf32>
    %6 = vector.shape_cast %5 : vector<1x1x256xf32> to vector<1x256xf32>
    %7 = vector.broadcast %6 : vector<1x256xf32> to vector<128x256xf32>
    %8 = arith.addf %4, %7 : vector<128x256xf32>
    %cst_8 = arith.constant 0.000000e+00 : f32
    %9 = vector.broadcast %cst_8 : f32 to vector<128x256xf32>
    %10 = arith.maximumf %8, %9 : vector<128x256xf32>
    %11 = arith.truncf %10 : vector<128x256xf32> to vector<128x256xbf16>
    %c0_9 = arith.constant 0 : index
    %c0_10 = arith.constant 0 : index
    %c0_11 = arith.constant 0 : index
    %12 = vector.load %arg6[%c0_9, %c0_10, %c0_11] : memref<1x128x256xbf16, #tpu.memory_space<vmem>>, vector<1x128x256xbf16>
    %13 = vector.shape_cast %12 : vector<1x128x256xbf16> to vector<128x256xbf16>
    %14 = vector.shape_cast %11 : vector<128x256xbf16> to vector<1x128x256xbf16>
    tpu.vector_store %arg6[%c0_9, %c0_10, %c0_11], %14 {strides = array<i32>} : memref<1x128x256xbf16, #tpu.memory_space<vmem>>, vector<1x128x256xbf16>,
    return
  }
  func.func @transform_0(%arg0: i32, %arg1: i32, %arg2: i32) -> (i32, i32, i32) {
    %c0_i32 = arith.constant 0 : i32
    %c0_i32_0 = arith.constant 0 : i32
    return %arg0, %arg1, %c0_i32 : i32, i32, i32
  }
  func.func @transform_1(%arg0: i32, %arg1: i32, %arg2: i32) -> (i32, i32, i32) {
    %c0_i32 = arith.constant 0 : i32
    %c0_i32_0 = arith.constant 0 : i32
    return %arg0, %c0_i32, %arg2 : i32, i32, i32
  }
  func.func @transform_2(%arg0: i32, %arg1: i32, %arg2: i32) -> (i32, i32, i32) {
    %c0_i32 = arith.constant 0 : i32
    %c0_i32_0 = arith.constant 0 : i32
    return %arg0, %c0_i32, %arg2 : i32, i32, i32
  }
  func.func @transform_3(%arg0: i32, %arg1: i32, %arg2: i32) -> (i32, i32, i32) {
    %c0_i32 = arith.constant 0 : i32
    return %arg0, %arg1, %arg2 : i32, i32, i32
  }
}

module attributes {stable_mosaic.version = 11 : i64} {
  func.func @_fused_matmul_kernel(%arg0: i32, %arg1: i32, %arg2: i32, %arg3: memref<1x32x256xbf16, #tpu.memory_space<vmem>>, %arg4: memref<1x256x512xbf16, #tpu.memory_space<vmem>>, %arg5: memref<1x1x512xf32, #tpu.memory_space<vmem>>, %arg6: memref<1x32x512xbf16, #tpu.memory_space<vmem>>) attributes {dimension_semantics = [#tpu.dimension_semantics<parallel>, #tpu.dimension_semantics<parallel>, #tpu.dimension_semantics<parallel>], iteration_bounds = array<i64: 2, 1, 1>, scalar_prefetch = 0 : i64, scratch_operands = 0 : i64, tpu.core_type = #tpu.core_type<tc>, window_params = [{transform_indices = @transform_0, window_bounds = array<i64: 1, 32, 256>}, {transform_indices = @transform_1, window_bounds = array<i64: 1, 256, 512>}, {transform_indices = @transform_2, window_bounds = array<i64: 1, 1, 512>}, {transform_indices = @transform_3, window_bounds = array<i64: 1, 32, 512>}]} {
    %c0 = arith.constant 0 : index
    %c0_0 = arith.constant 0 : index
    %c0_1 = arith.constant 0 : index
    %0 = vector.load %arg3[%c0, %c0_0, %c0_1] : memref<1x32x256xbf16, #tpu.memory_space<vmem>>, vector<1x32x256xbf16>
    %1 = vector.shape_cast %0 : vector<1x32x256xbf16> to vector<32x256xbf16>
    %c0_2 = arith.constant 0 : index
    %c0_3 = arith.constant 0 : index
    %c0_4 = arith.constant 0 : index
    %2 = vector.load %arg4[%c0_2, %c0_3, %c0_4] : memref<1x256x512xbf16, #tpu.memory_space<vmem>>, vector<1x256x512xbf16>
    %3 = vector.shape_cast %2 : vector<1x256x512xbf16> to vector<256x512xbf16>
    %cst = arith.constant dense<0.000000e+00> : vector<32x512xf32>
    %4 = tpu.matmul %1, %3, %cst {dimension_numbers = #tpu.dot_dimension_numbers<[1], [0], [0], [1], [0, 0, 1, 1], [], []>} : vector<32x256xbf16>, vector<256x512xbf16>, vector<32x512xf32> -> vector<32x512xf32>
    %c0_5 = arith.constant 0 : index
    %c0_6 = arith.constant 0 : index
    %c0_7 = arith.constant 0 : index
    %5 = vector.load %arg5[%c0_5, %c0_6, %c0_7] : memref<1x1x512xf32, #tpu.memory_space<vmem>>, vector<1x1x512xf32>
    %6 = vector.shape_cast %5 : vector<1x1x512xf32> to vector<1x512xf32>
    %7 = vector.broadcast %6 : vector<1x512xf32> to vector<32x512xf32>
    %8 = arith.addf %4, %7 : vector<32x512xf32>
    %cst_8 = arith.constant 0.000000e+00 : f32
    %9 = vector.broadcast %cst_8 : f32 to vector<32x512xf32>
    %10 = arith.maximumf %8, %9 : vector<32x512xf32>
    %11 = arith.truncf %10 : vector<32x512xf32> to vector<32x512xbf16>
    %c0_9 = arith.constant 0 : index
    %c0_10 = arith.constant 0 : index
    %c0_11 = arith.constant 0 : index
    %12 = vector.load %arg6[%c0_9, %c0_10, %c0_11] : memref<1x32x512xbf16, #tpu.memory_space<vmem>>, vector<1x32x512xbf16>
    %13 = vector.shape_cast %12 : vector<1x32x512xbf16> to vector<32x512xbf16>
    %14 = vector.shape_cast %11 : vector<32x512xbf16> to vector<1x32x512xbf16>
    tpu.vector_store %arg6[%c0_9, %c0_10, %c0_11], %14 {strides = array<i32>} : memref<1x32x512xbf16, #tpu.memory_space<vmem>>, vector<1x32x512xbf16>,
    return
  }
  func.func @transform_0(%arg0: i32, %arg1: i32, %arg2: i32) -> (i32, i32, i32) {
    %c0_i32 = arith.constant 0 : i32
    %c0_i32_0 = arith.constant 0 : i32
    return %arg0, %arg1, %c0_i32 : i32, i32, i32
  }
  func.func @transform_1(%arg0: i32, %arg1: i32, %arg2: i32) -> (i32, i32, i32) {
    %c0_i32 = arith.constant 0 : i32
    %c0_i32_0 = arith.constant 0 : i32
    return %arg0, %c0_i32, %arg2 : i32, i32, i32
  }
  func.func @transform_2(%arg0: i32, %arg1: i32, %arg2: i32) -> (i32, i32, i32) {
    %c0_i32 = arith.constant 0 : i32
    %c0_i32_0 = arith.constant 0 : i32
    return %arg0, %c0_i32, %arg2 : i32, i32, i32
  }
  func.func @transform_3(%arg0: i32, %arg1: i32, %arg2: i32) -> (i32, i32, i32) {
    %c0_i32 = arith.constant 0 : i32
    return %arg0, %arg1, %arg2 : i32, i32, i32
  }
}

module attributes {stable_mosaic.version = 11 : i64} {
  func.func @_fused_matmul_kernel(%arg0: i32, %arg1: i32, %arg2: i32, %arg3: memref<1x8x512xbf16, #tpu.memory_space<vmem>>, %arg4: memref<1x512x512xbf16, #tpu.memory_space<vmem>>, %arg5: memref<1x1x512xf32, #tpu.memory_space<vmem>>, %arg6: memref<1x8x512xbf16, #tpu.memory_space<vmem>>) attributes {dimension_semantics = [#tpu.dimension_semantics<parallel>, #tpu.dimension_semantics<parallel>, #tpu.dimension_semantics<parallel>], iteration_bounds = array<i64: 2, 1, 2>, scalar_prefetch = 0 : i64, scratch_operands = 0 : i64, tpu.core_type = #tpu.core_type<tc>, window_params = [{transform_indices = @transform_0, window_bounds = array<i64: 1, 8, 512>}, {transform_indices = @transform_1, window_bounds = array<i64: 1, 512, 512>}, {transform_indices = @transform_2, window_bounds = array<i64: 1, 1, 512>}, {transform_indices = @transform_3, window_bounds = array<i64: 1, 8, 512>}]} {
    %c0 = arith.constant 0 : index
    %c0_0 = arith.constant 0 : index
    %c0_1 = arith.constant 0 : index
    %0 = vector.load %arg3[%c0, %c0_0, %c0_1] : memref<1x8x512xbf16, #tpu.memory_space<vmem>>, vector<1x8x512xbf16>
    %1 = vector.shape_cast %0 : vector<1x8x512xbf16> to vector<8x512xbf16>
    %c0_2 = arith.constant 0 : index
    %c0_3 = arith.constant 0 : index
    %c0_4 = arith.constant 0 : index
    %2 = vector.load %arg4[%c0_2, %c0_3, %c0_4] : memref<1x512x512xbf16, #tpu.memory_space<vmem>>, vector<1x512x512xbf16>
    %3 = vector.shape_cast %2 : vector<1x512x512xbf16> to vector<512x512xbf16>
    %cst = arith.constant dense<0.000000e+00> : vector<8x512xf32>
    %4 = tpu.matmul %1, %3, %cst {dimension_numbers = #tpu.dot_dimension_numbers<[1], [0], [0], [1], [0, 0, 1, 1], [], []>} : vector<8x512xbf16>, vector<512x512xbf16>, vector<8x512xf32> -> vector<8x512xf32>
    %c0_5 = arith.constant 0 : index
    %c0_6 = arith.constant 0 : index
    %c0_7 = arith.constant 0 : index
    %5 = vector.load %arg5[%c0_5, %c0_6, %c0_7] : memref<1x1x512xf32, #tpu.memory_space<vmem>>, vector<1x1x512xf32>
    %6 = vector.shape_cast %5 : vector<1x1x512xf32> to vector<1x512xf32>
    %7 = vector.broadcast %6 : vector<1x512xf32> to vector<8x512xf32>
    %8 = arith.addf %4, %7 : vector<8x512xf32>
    %cst_8 = arith.constant 0.000000e+00 : f32
    %9 = vector.broadcast %cst_8 : f32 to vector<8x512xf32>
    %10 = arith.maximumf %8, %9 : vector<8x512xf32>
    %11 = arith.truncf %10 : vector<8x512xf32> to vector<8x512xbf16>
    %c0_9 = arith.constant 0 : index
    %c0_10 = arith.constant 0 : index
    %c0_11 = arith.constant 0 : index
    %12 = vector.load %arg6[%c0_9, %c0_10, %c0_11] : memref<1x8x512xbf16, #tpu.memory_space<vmem>>, vector<1x8x512xbf16>
    %13 = vector.shape_cast %12 : vector<1x8x512xbf16> to vector<8x512xbf16>
    %14 = vector.shape_cast %11 : vector<8x512xbf16> to vector<1x8x512xbf16>
    tpu.vector_store %arg6[%c0_9, %c0_10, %c0_11], %14 {strides = array<i32>} : memref<1x8x512xbf16, #tpu.memory_space<vmem>>, vector<1x8x512xbf16>,
    return
  }
  func.func @transform_0(%arg0: i32, %arg1: i32, %arg2: i32) -> (i32, i32, i32) {
    %c0_i32 = arith.constant 0 : i32
    %c0_i32_0 = arith.constant 0 : i32
    return %arg0, %arg1, %c0_i32 : i32, i32, i32
  }
  func.func @transform_1(%arg0: i32, %arg1: i32, %arg2: i32) -> (i32, i32, i32) {
    %c0_i32 = arith.constant 0 : i32
    %c0_i32_0 = arith.constant 0 : i32
    return %arg0, %c0_i32, %arg2 : i32, i32, i32
  }
  func.func @transform_2(%arg0: i32, %arg1: i32, %arg2: i32) -> (i32, i32, i32) {
    %c0_i32 = arith.constant 0 : i32
    %c0_i32_0 = arith.constant 0 : i32
    return %arg0, %c0_i32, %arg2 : i32, i32, i32
  }
  func.func @transform_3(%arg0: i32, %arg1: i32, %arg2: i32) -> (i32, i32, i32) {
    %c0_i32 = arith.constant 0 : i32
    return %arg0, %arg1, %arg2 : i32, i32, i32
  }
}

module attributes {stable_mosaic.version = 11 : i64} {
  func.func @_fused_matmul_kernel(%arg0: i32, %arg1: i32, %arg2: i32, %arg3: memref<1x2x1024xbf16, #tpu.memory_space<vmem>>, %arg4: memref<1x1024x512xbf16, #tpu.memory_space<vmem>>, %arg5: memref<1x1x512xf32, #tpu.memory_space<vmem>>, %arg6: memref<1x2x512xbf16, #tpu.memory_space<vmem>>) attributes {dimension_semantics = [#tpu.dimension_semantics<parallel>, #tpu.dimension_semantics<parallel>, #tpu.dimension_semantics<parallel>], iteration_bounds = array<i64: 2, 1, 4>, scalar_prefetch = 0 : i64, scratch_operands = 0 : i64, tpu.core_type = #tpu.core_type<tc>, window_params = [{transform_indices = @transform_0, window_bounds = array<i64: 1, 2, 1024>}, {transform_indices = @transform_1, window_bounds = array<i64: 1, 1024, 512>}, {transform_indices = @transform_2, window_bounds = array<i64: 1, 1, 512>}, {transform_indices = @transform_3, window_bounds = array<i64: 1, 2, 512>}]} {
    %c0 = arith.constant 0 : index
    %c0_0 = arith.constant 0 : index
    %c0_1 = arith.constant 0 : index
    %0 = vector.load %arg3[%c0, %c0_0, %c0_1] : memref<1x2x1024xbf16, #tpu.memory_space<vmem>>, vector<1x2x1024xbf16>
    %1 = vector.shape_cast %0 : vector<1x2x1024xbf16> to vector<2x1024xbf16>
    %c0_2 = arith.constant 0 : index
    %c0_3 = arith.constant 0 : index
    %c0_4 = arith.constant 0 : index
    %2 = vector.load %arg4[%c0_2, %c0_3, %c0_4] : memref<1x1024x512xbf16, #tpu.memory_space<vmem>>, vector<1x1024x512xbf16>
    %3 = vector.shape_cast %2 : vector<1x1024x512xbf16> to vector<1024x512xbf16>
    %cst = arith.constant dense<0.000000e+00> : vector<2x512xf32>
    %4 = tpu.matmul %1, %3, %cst {dimension_numbers = #tpu.dot_dimension_numbers<[1], [0], [0], [1], [0, 0, 1, 1], [], []>} : vector<2x1024xbf16>, vector<1024x512xbf16>, vector<2x512xf32> -> vector<2x512xf32>
    %c0_5 = arith.constant 0 : index
    %c0_6 = arith.constant 0 : index
    %c0_7 = arith.constant 0 : index
    %5 = vector.load %arg5[%c0_5, %c0_6, %c0_7] : memref<1x1x512xf32, #tpu.memory_space<vmem>>, vector<1x1x512xf32>
    %6 = vector.shape_cast %5 : vector<1x1x512xf32> to vector<1x512xf32>
    %7 = vector.broadcast %6 : vector<1x512xf32> to vector<2x512xf32>
    %8 = arith.addf %4, %7 : vector<2x512xf32>
    %cst_8 = arith.constant 0.000000e+00 : f32
    %9 = vector.broadcast %cst_8 : f32 to vector<2x512xf32>
    %10 = arith.maximumf %8, %9 : vector<2x512xf32>
    %11 = arith.truncf %10 : vector<2x512xf32> to vector<2x512xbf16>
    %c0_9 = arith.constant 0 : index
    %c0_10 = arith.constant 0 : index
    %c0_11 = arith.constant 0 : index
    %12 = vector.load %arg6[%c0_9, %c0_10, %c0_11] : memref<1x2x512xbf16, #tpu.memory_space<vmem>>, vector<1x2x512xbf16>
    %13 = vector.shape_cast %12 : vector<1x2x512xbf16> to vector<2x512xbf16>
    %14 = vector.shape_cast %11 : vector<2x512xbf16> to vector<1x2x512xbf16>
    tpu.vector_store %arg6[%c0_9, %c0_10, %c0_11], %14 {strides = array<i32>} : memref<1x2x512xbf16, #tpu.memory_space<vmem>>, vector<1x2x512xbf16>,
    return
  }
  func.func @transform_0(%arg0: i32, %arg1: i32, %arg2: i32) -> (i32, i32, i32) {
    %c0_i32 = arith.constant 0 : i32
    %c0_i32_0 = arith.constant 0 : i32
    return %arg0, %arg1, %c0_i32 : i32, i32, i32
  }
  func.func @transform_1(%arg0: i32, %arg1: i32, %arg2: i32) -> (i32, i32, i32) {
    %c0_i32 = arith.constant 0 : i32
    %c0_i32_0 = arith.constant 0 : i32
    return %arg0, %c0_i32, %arg2 : i32, i32, i32
  }
  func.func @transform_2(%arg0: i32, %arg1: i32, %arg2: i32) -> (i32, i32, i32) {
    %c0_i32 = arith.constant 0 : i32
    %c0_i32_0 = arith.constant 0 : i32
    return %arg0, %c0_i32, %arg2 : i32, i32, i32
  }
  func.func @transform_3(%arg0: i32, %arg1: i32, %arg2: i32) -> (i32, i32, i32) {
    %c0_i32 = arith.constant 0 : i32
    return %arg0, %arg1, %arg2 : i32, i32, i32
  }
}

module attributes {stable_mosaic.version = 11 : i64} {
  func.func @_avgpool_scale_kernel(%arg0: i32, %arg1: memref<1x2x1x2048xbf16, #tpu.memory_space<vmem>>, %arg2: memref<1x2x2048xbf16, #tpu.memory_space<vmem>>) attributes {dimension_semantics = [#tpu.dimension_semantics<parallel>], iteration_bounds = array<i64: 2>, scalar_prefetch = 0 : i64, scratch_operands = 0 : i64, tpu.core_type = #tpu.core_type<tc>, window_params = [{transform_indices = @transform_0, window_bounds = array<i64: 1, 2, 1, 2048>}, {transform_indices = @transform_1, window_bounds = array<i64: 1, 2, 2048>}]} {
    %c0_i32 = arith.constant 0 : i32
    %0 = arith.cmpi eq, %arg0, %c0_i32 : i32
    %cst = arith.constant 5.295000e-01 : f32
    %cst_0 = arith.constant 4.705000e-01 : f32
    %1 = arith.select %0, %cst, %cst_0 : f32
    %c0 = arith.constant 0 : index
    %c0_1 = arith.constant 0 : index
    %c0_2 = arith.constant 0 : index
    %c0_3 = arith.constant 0 : index
    %2 = vector.load %arg1[%c0, %c0_1, %c0_2, %c0_3] : memref<1x2x1x2048xbf16, #tpu.memory_space<vmem>>, vector<1x2x1x2048xbf16>
    %3 = vector.shape_cast %2 : vector<1x2x1x2048xbf16> to vector<2x1x2048xbf16>
    %4 = arith.extf %3 : vector<2x1x2048xbf16> to vector<2x1x2048xf32>
    %cst_4 = arith.constant dense<0.000000e+00> : vector<2x2048xf32>
    %5 = vector.multi_reduction <add>, %4, %cst_4 [1] : vector<2x1x2048xf32> to vector<2x2048xf32>
    %cst_5 = arith.constant 1.000000e+00 : f32
    %6 = vector.broadcast %cst_5 : f32 to vector<2x2048xf32>
    %7 = arith.divf %5, %6 : vector<2x2048xf32>
    %8 = vector.broadcast %1 : f32 to vector<2x2048xf32>
    %9 = arith.mulf %7, %8 : vector<2x2048xf32>
    %10 = arith.truncf %9 : vector<2x2048xf32> to vector<2x2048xbf16>
    %c0_6 = arith.constant 0 : index
    %c0_7 = arith.constant 0 : index
    %c0_8 = arith.constant 0 : index
    %11 = vector.load %arg2[%c0_6, %c0_7, %c0_8] : memref<1x2x2048xbf16, #tpu.memory_space<vmem>>, vector<1x2x2048xbf16>
    %12 = vector.shape_cast %11 : vector<1x2x2048xbf16> to vector<2x2048xbf16>
    %13 = vector.shape_cast %10 : vector<2x2048xbf16> to vector<1x2x2048xbf16>
    tpu.vector_store %arg2[%c0_6, %c0_7, %c0_8], %13 {strides = array<i32>} : memref<1x2x2048xbf16, #tpu.memory_space<vmem>>, vector<1x2x2048xbf16>,
    return
  }
  func.func @transform_0(%arg0: i32) -> (i32, i32, i32, i32) {
    %c0_i32 = arith.constant 0 : i32
    %c0_i32_0 = arith.constant 0 : i32
    %c0_i32_1 = arith.constant 0 : i32
    %c0_i32_2 = arith.constant 0 : i32
    return %arg0, %c0_i32, %c0_i32_0, %c0_i32_1 : i32, i32, i32, i32
  }
  func.func @transform_1(%arg0: i32) -> (i32, i32, i32) {
    %c0_i32 = arith.constant 0 : i32
    %c0_i32_0 = arith.constant 0 : i32
    %c0_i32_1 = arith.constant 0 : i32
    return %arg0, %c0_i32, %c0_i32_0 : i32, i32, i32
  }
}

module attributes {stable_mosaic.version = 11 : i64} {
  func.func @_fused_matmul_kernel(%arg0: i32, %arg1: i32, %arg2: i32, %arg3: memref<1x2x4096xbf16, #tpu.memory_space<vmem>>, %arg4: memref<1x4096x128xbf16, #tpu.memory_space<vmem>>, %arg5: memref<1x1x128xf32, #tpu.memory_space<vmem>>, %arg6: memref<1x2x128xf32, #tpu.memory_space<vmem>>) attributes {dimension_semantics = [#tpu.dimension_semantics<parallel>, #tpu.dimension_semantics<parallel>, #tpu.dimension_semantics<parallel>], iteration_bounds = array<i64: 1, 1, 1>, scalar_prefetch = 0 : i64, scratch_operands = 0 : i64, tpu.core_type = #tpu.core_type<tc>, window_params = [{transform_indices = @transform_0, window_bounds = array<i64: 1, 2, 4096>}, {transform_indices = @transform_1, window_bounds = array<i64: 1, 4096, 128>}, {transform_indices = @transform_2, window_bounds = array<i64: 1, 1, 128>}, {transform_indices = @transform_3, window_bounds = array<i64: 1, 2, 128>}]} {
    %c0 = arith.constant 0 : index
    %c0_0 = arith.constant 0 : index
    %c0_1 = arith.constant 0 : index
    %0 = vector.load %arg3[%c0, %c0_0, %c0_1] : memref<1x2x4096xbf16, #tpu.memory_space<vmem>>, vector<1x2x4096xbf16>
    %1 = vector.shape_cast %0 : vector<1x2x4096xbf16> to vector<2x4096xbf16>
    %c0_2 = arith.constant 0 : index
    %c0_3 = arith.constant 0 : index
    %c0_4 = arith.constant 0 : index
    %2 = vector.load %arg4[%c0_2, %c0_3, %c0_4] : memref<1x4096x128xbf16, #tpu.memory_space<vmem>>, vector<1x4096x128xbf16>
    %3 = vector.shape_cast %2 : vector<1x4096x128xbf16> to vector<4096x128xbf16>
    %cst = arith.constant dense<0.000000e+00> : vector<2x128xf32>
    %4 = tpu.matmul %1, %3, %cst {dimension_numbers = #tpu.dot_dimension_numbers<[1], [0], [0], [1], [0, 0, 1, 1], [], []>} : vector<2x4096xbf16>, vector<4096x128xbf16>, vector<2x128xf32> -> vector<2x128xf32>
    %c0_5 = arith.constant 0 : index
    %c0_6 = arith.constant 0 : index
    %c0_7 = arith.constant 0 : index
    %5 = vector.load %arg5[%c0_5, %c0_6, %c0_7] : memref<1x1x128xf32, #tpu.memory_space<vmem>>, vector<1x1x128xf32>
    %6 = vector.shape_cast %5 : vector<1x1x128xf32> to vector<1x128xf32>
    %7 = vector.broadcast %6 : vector<1x128xf32> to vector<2x128xf32>
    %8 = arith.addf %4, %7 : vector<2x128xf32>
    %c0_8 = arith.constant 0 : index
    %c0_9 = arith.constant 0 : index
    %c0_10 = arith.constant 0 : index
    %9 = vector.load %arg6[%c0_8, %c0_9, %c0_10] : memref<1x2x128xf32, #tpu.memory_space<vmem>>, vector<1x2x128xf32>
    %10 = vector.shape_cast %9 : vector<1x2x128xf32> to vector<2x128xf32>
    %11 = vector.shape_cast %8 : vector<2x128xf32> to vector<1x2x128xf32>
    tpu.vector_store %arg6[%c0_8, %c0_9, %c0_10], %11 {strides = array<i32>} : memref<1x2x128xf32, #tpu.memory_space<vmem>>, vector<1x2x128xf32>,
    return
  }
  func.func @transform_0(%arg0: i32, %arg1: i32, %arg2: i32) -> (i32, i32, i32) {
    %c0_i32 = arith.constant 0 : i32
    %c0_i32_0 = arith.constant 0 : i32
    return %arg0, %arg1, %c0_i32 : i32, i32, i32
  }
  func.func @transform_1(%arg0: i32, %arg1: i32, %arg2: i32) -> (i32, i32, i32) {
    %c0_i32 = arith.constant 0 : i32
    %c0_i32_0 = arith.constant 0 : i32
    return %arg0, %c0_i32, %arg2 : i32, i32, i32
  }
  func.func @transform_2(%arg0: i32, %arg1: i32, %arg2: i32) -> (i32, i32, i32) {
    %c0_i32 = arith.constant 0 : i32
    %c0_i32_0 = arith.constant 0 : i32
    return %arg0, %c0_i32, %arg2 : i32, i32, i32
  }
  func.func @transform_3(%arg0: i32, %arg1: i32, %arg2: i32) -> (i32, i32, i32) {
    %c0_i32 = arith.constant 0 : i32
    return %arg0, %arg1, %arg2 : i32, i32, i32
  }
}

</mosaic_0001>

<llo_original>
// kernel: net_forward.9
$region0: #{net_forward.9}
  #allocation0 [shape = 'u32[]', space=smem, size = 0x4, offset = 0x4, fixed_abs, tag = 'smem constant byte address 0x4 - core index']
  #allocation1 [shape = 'u32[144,128]{1,0:T(1,128)}', space=vmem, size = 0x12000, scoped, tag = 'internal scratch']
  %s0 = inlined_call_operand.vmem [shape: bf16[2,18,9,128], index: 0, kind: input, shape index: {}]
  %s1 = inlined_call_operand.vmem [shape: bf16[2,18,9,128], index: 1, kind: input, shape index: {}]
  %s2 = inlined_call_operand.vmem [shape: bf16[2,8,8,128], index: 2, kind: output, shape index: {}]
  %s3 = sld [smem:[#allocation0]]
  $region41: #{net_forward.9} parent=0
    _
  %s5 = ssub.s32 1, %s3
  %s6 = scalar_select 0, %s5, %s3
  loop: start=0, step=1, limit=4
  $region2: #{net_forward.9} parent=0 // loop_pre_header
    _
  $region3: #{net_forward.9} parent=0 // loop_header
    %s8 = sphi 0, %s12
    %p9 = scmp.ge.s32.totalorder %s8, 4
    %s18 = sphi 0, %s20
    %s21 = sphi 0, %s18
    %s22 = sphi 0, %s21
    %s38 = sphi 0, %s22
    %s44 = sphi 0, %s46
    %s47 = sphi 0, %s44
    %s48 = sphi 0, %s47
    %s64 = sphi 0, %s48
    %s70 = sphi 0, %s72
    %s73 = sphi 0, %s70
    %s74 = sphi 0, %s73
    %s90 = sphi 0, %s74
  $region4: #{net_forward.9} parent=0 // loop_header_branch
    %11 = sbr.rel (%p9) target = $region8
  $region5: #{net_forward.9} parent=0 // loop_body
    %s13 = ssub.s32 %s8, 1
    %s14 = ssub.s32 %s8, 2
    %s15 = sadd.s32 %s8, 1
    %s16 = ssub.s32 %s8, %s15
    %p17 = scmp.eq.s32.totalorder %s16, 0
    %s19 = sadd.s32 %s18, 1
    %s20 = scalar_select %p17, %s18, %s19
    %p23 = pneg %p17
    %p24 = scmp.eq.s32.totalorder %s8, 1
    %p25 = por %p23, %p24
    %p26 = scmp.ne.s32.totalorder %s18, %s21
    %p27 = scmp.eq.s32.totalorder %s8, 0
    %p28 = por %p26, %p27
    %p29 = scmp.ne.s32.totalorder %s18, %s21
    %p30 = scmp.eq.s32.totalorder %s13, 1
    %p31 = por %p29, %p30
    %p32 = scmp.ne.s32.totalorder %s21, %s22
    %p33 = scmp.eq.s32.totalorder %s13, 0
    %p34 = por %p32, %p33
    %p35 = scmp.ne.s32.totalorder %s21, %s22
    %p36 = scmp.eq.s32.totalorder %s14, 1
    %p37 = por %p35, %p36
    %p39 = scmp.ne.s32.totalorder %s22, %s38
    %p40 = scmp.eq.s32.totalorder %s14, 0
    %p41 = por %p39, %p40
    %s42 = ssub.s32 %s8, %s15
    %p43 = scmp.eq.s32.totalorder %s42, 0
    %s45 = sadd.s32 %s44, 1
    %s46 = scalar_select %p43, %s44, %s45
    %p49 = pneg %p43
    %p50 = scmp.eq.s32.totalorder %s8, 1
    %p51 = por %p49, %p50
    %p52 = scmp.ne.s32.totalorder %s44, %s47
    %p53 = scmp.eq.s32.totalorder %s8, 0
    %p54 = por %p52, %p53
    %p55 = scmp.ne.s32.totalorder %s44, %s47
    %p56 = scmp.eq.s32.totalorder %s13, 1
    %p57 = por %p55, %p56
    %p58 = scmp.ne.s32.totalorder %s47, %s48
    %p59 = scmp.eq.s32.totalorder %s13, 0
    %p60 = por %p58, %p59
    %p61 = scmp.ne.s32.totalorder %s47, %s48
    %p62 = scmp.eq.s32.totalorder %s14, 1
    %p63 = por %p61, %p62
    %p65 = scmp.ne.s32.totalorder %s48, %s64
    %p66 = scmp.eq.s32.totalorder %s14, 0
    %p67 = por %p65, %p66
    %s68 = ssub.s32 %s8, %s15
    %p69 = scmp.eq.s32.totalorder %s68, 0
    %s71 = sadd.s32 %s70, 1
    %s72 = scalar_select %p69, %s70, %s71
    %p75 = pneg %p69
    %p76 = scmp.eq.s32.totalorder %s8, 1
    %p77 = por %p75, %p76
    %p78 = scmp.ne.s32.totalorder %s70, %s73
    %p79 = scmp.eq.s32.totalorder %s8, 0
    %p80 = por %p78, %p79
    %p81 = scmp.ne.s32.totalorder %s70, %s73
    %p82 = scmp.eq.s32.totalorder %s13, 1
    %p83 = por %p81, %p82
    %p84 = scmp.ne.s32.totalorder %s73, %s74
    %p85 = scmp.eq.s32.totalorder %s13, 0
    %p86 = por %p84, %p85
    %p87 = scmp.ne.s32.totalorder %s73, %s74
    %p88 = scmp.eq.s32.totalorder %s14, 1
    %p89 = por %p87, %p88
    %p91 = scmp.ne.s32.totalorder %s74, %s90
    %p92 = scmp.eq.s32.totalorder %s14, 0
    %p93 = por %p91, %p92
    %p94 = scmp.le.s32.totalorder 1, %s8
    %p95 = scmp.lt.s32.totalorder %s8, 3
    %p96 = pnand %p94, %p95
    %p97 = pneg %p96
    // Predicated region
    $region9: #{net_forward.9} parent=5 // pred_check
      _
    $region10: #{net_forward.9} parent=5 // pred_check_branch
      %99 = sbr.rel (%p96) target = $region12
    $region11: #{net_forward.9} parent=5 // pred_region
      %s100 = ssub.s32 %s8, 1
    $region12: #{net_forward.9} parent=5 // pred_fallthru
      _
    %p101 = scmp.lt.s32.totalorder %s8, 2
    // Predicated region
    $region13: #{net_forward.9} parent=5 // pred_check
      %p102 = pneg %p101
    $region14: #{net_forward.9} parent=5 // pred_check_branch
      %104 = sbr.rel (%p102) target = $region16
    $region15: #{net_forward.9} parent=5 // pred_region
      // Predicated region
      $region17: #{net_forward.9} parent=15 // pred_check
        %p105 = pneg %p28
      $region18: #{net_forward.9} parent=15 // pred_check_branch
        %107 = sbr.rel (%p105) target = $region20
      $region19: #{net_forward.9} parent=15 // pred_region
        %p108 = scmp.lt.s32.totalorder %s8, 1
        %s109 = scalar_select %p108, %s8, 1
        %s110 = smul.addr %s109, 36
        %s111 = smul.addr %s110, 4
        %s112 = scalar_lea.vmem %s0, %s111
      $region20: #{net_forward.9} parent=15 // pred_fallthru
        _
      // Predicated region
      $region21: #{net_forward.9} parent=15 // pred_check
        %p113 = pneg %p54
      $region22: #{net_forward.9} parent=15 // pred_check_branch
        %115 = sbr.rel (%p113) target = $region24
      $region23: #{net_forward.9} parent=15 // pred_region
        %p116 = scmp.lt.s32.totalorder %s8, 1
        %s117 = scalar_select %p116, %s8, 1
        %s118 = smul.addr %s117, 36
        %s119 = smul.addr %s118, 4
        %s120 = scalar_lea.vmem %s1, %s119
      $region24: #{net_forward.9} parent=15 // pred_fallthru
        _
    $region16: #{net_forward.9} parent=5 // pred_fallthru
      _
    %p121 = scmp.le.s32.totalorder 1, %s8
    %p122 = scmp.lt.s32.totalorder %s8, 3
    %p123 = pnand %p121, %p122
    %p124 = pneg %p123
    // Predicated region
    $region25: #{net_forward.9} parent=5 // pred_check
      _
    $region26: #{net_forward.9} parent=5 // pred_check_branch
      %126 = sbr.rel (%p123) target = $region28
    $region27: #{net_forward.9} parent=5 // pred_region
      %s127 = ssub.s32 %s8, 1
      %p128 = scmp.lt.s32.totalorder %s13, 1
      %s129 = scalar_select %p128, %s13, 1
      %s130 = smul.addr %s129, 36
      %s131 = smul.addr %s130, 4
      %s132 = scalar_lea.vmem %s0, %s131
      %p133 = pneg %p34
      %p134 = pneg %p31
      %p135 = scmp.lt.s32.totalorder %s13, 1
      %s136 = scalar_select %p135, %s13, 1
      %s137 = smul.addr %s136, 36
      %s138 = smul.addr %s137, 4
      %s139 = scalar_lea.vmem %s1, %s138
      %p140 = pneg %p60
      %p141 = pneg %p57
      %p142 = pneg %p86
      %p143 = pneg %p83
      %p144 = scmp.lt.s32.totalorder %s13, 1
      %s145 = scalar_select %p144, %s13, 1
      %s146 = smul.addr %s145, 8
      %s147 = smul.addr %s146, 4
      %s148 = scalar_lea.vmem %s2, %s147
      %p149 = scmp.lt.s32.totalorder %s13, 1
      %s150 = scalar_select %p149, %s13, 1
      %s151 = smul.addr %s150, 36
      %s152 = smul.addr %s151, 4
      %s153 = scalar_lea.vmem %s0, %s152
      %p154 = scmp.lt.s32.totalorder %s13, 1
      %s155 = scalar_select %p154, %s13, 1
      %s156 = smul.addr %s155, 36
      %s157 = smul.addr %s156, 4
      %s158 = scalar_lea.vmem %s1, %s157
      %p159 = scmp.lt.s32.totalorder %s13, 1
      %s160 = scalar_select %p159, %s13, 1
      %s161 = smul.addr %s160, 8
      %s162 = smul.addr %s161, 4
      %s163 = scalar_lea.vmem %s2, %s162
      %v164 = vld [vmem:[%s153] sm:$0xf]
      %v165 = vld [vmem:[%s153 + $0x4] sm:$0x1]
      %v166 = vld [vmem:[%s153 + $0x8] sm:$0xf]
      %v167 = vld [vmem:[%s153 + $0xc] sm:$0x1]
      %v168 = vld [vmem:[%s153 + $0x10] sm:$0xf]
      %v169 = vld [vmem:[%s153 + $0x14] sm:$0x1]
      %v170 = vld [vmem:[%s153 + $0x18] sm:$0xf]
      %v171 = vld [vmem:[%s153 + $0x1c] sm:$0x1]
      %v172 = vld [vmem:[%s153 + $0x20] sm:$0xf]
      %v173 = vld [vmem:[%s153 + $0x24] sm:$0x1]
      %v174 = vld [vmem:[%s153 + $0x28] sm:$0xf]
      %v175 = vld [vmem:[%s153 + $0x2c] sm:$0x1]
      %v176 = vld [vmem:[%s153 + $0x30] sm:$0xf]
      %v177 = vld [vmem:[%s153 + $0x34] sm:$0x1]
      %v178 = vld [vmem:[%s153 + $0x38] sm:$0xf]
      %v179 = vld [vmem:[%s153 + $0x3c] sm:$0x1]
      %v180 = vld [vmem:[%s153 + $0x40] sm:$0xf]
      %v181 = vld [vmem:[%s153 + $0x44] sm:$0x1]
      %v182 = vld [vmem:[%s153 + $0x48] sm:$0xf]
      %v183 = vld [vmem:[%s153 + $0x4c] sm:$0x1]
      %v184 = vld [vmem:[%s153 + $0x50] sm:$0xf]
      %v185 = vld [vmem:[%s153 + $0x54] sm:$0x1]
      %v186 = vld [vmem:[%s153 + $0x58] sm:$0xf]
      %v187 = vld [vmem:[%s153 + $0x5c] sm:$0x1]
      %v188 = vld [vmem:[%s153 + $0x60] sm:$0xf]
      %v189 = vld [vmem:[%s153 + $0x64] sm:$0x1]
      %v190 = vld [vmem:[%s153 + $0x68] sm:$0xf]
      %v191 = vld [vmem:[%s153 + $0x6c] sm:$0x1]
      %v192 = vld [vmem:[%s153 + $0x70] sm:$0xf]
      %v193 = vld [vmem:[%s153 + $0x74] sm:$0x1]
      %v194 = vld [vmem:[%s153 + $0x78] sm:$0xf]
      %v195 = vld [vmem:[%s153 + $0x7c] sm:$0x1]
      %v196 = vld [vmem:[%s153 + $0x80] sm:$0xf]
      %v197 = vld [vmem:[%s153 + $0x84] sm:$0x1]
      %v198 = vld [vmem:[%s158] sm:$0xf]
      %v199 = vld [vmem:[%s158 + $0x8] sm:$0xf]
      %v200 = vld [vmem:[%s158 + $0x10] sm:$0xf]
      %v201 = vld [vmem:[%s158 + $0x18] sm:$0xf]
      %v202 = vld [vmem:[%s158 + $0x20] sm:$0xf]
      %v203 = vld [vmem:[%s158 + $0x28] sm:$0xf]
      %v204 = vld [vmem:[%s158 + $0x30] sm:$0xf]
      %v205 = vld [vmem:[%s158 + $0x38] sm:$0xf]
      %v206 = vld [vmem:[%s158 + $0x40] sm:$0xf]
      %v207 = vld [vmem:[%s158 + $0x48] sm:$0xf]
      %v208 = vld [vmem:[%s158 + $0x50] sm:$0xf]
      %v209 = vld [vmem:[%s158 + $0x58] sm:$0xf]
      %v210 = vld [vmem:[%s158 + $0x60] sm:$0xf]
      %v211 = vld [vmem:[%s158 + $0x68] sm:$0xf]
      %v212 = vld [vmem:[%s158 + $0x70] sm:$0xf]
      %v213 = vld [vmem:[%s158 + $0x78] sm:$0xf]
      %v214 = vld [vmem:[%s158 + $0x80] sm:$0xf]
      %v215 = vmax.bf16 %v164, %v198
      %v216 = vmax.bf16 %v166, %v199
      %v217 = vmax.bf16 %v168, %v200
      %v218 = vmax.bf16 %v170, %v201
      %v219 = vmax.bf16 %v172, %v202
      %v220 = vmax.bf16 %v174, %v203
      %v221 = vmax.bf16 %v176, %v204
      %v222 = vmax.bf16 %v178, %v205
      %v223 = vmax.bf16 %v180, %v206
      %v224 = vmax.bf16 %v182, %v207
      %v225 = vmax.bf16 %v184, %v208
      %v226 = vmax.bf16 %v186, %v209
      %v227 = vmax.bf16 %v188, %v210
      %v228 = vmax.bf16 %v190, %v211
      %v229 = vmax.bf16 %v192, %v212
      %v230 = vmax.bf16 %v194, %v213
      %v231 = vmax.bf16 %v196, %v214
      %vm232 = vsmask.f32 3328
      %vm233 = vsmask.f32 7440
      %vm234 = vmor %vm232, %vm233
      %v236 = vshrl.u32 %v164, 16
      %v238 = vrot.slane %v236, 4
      %v239 = vshll.u32 %v164, 16
      %v241 = vrot.slane %v239, 5
      %v242 = vor.u32 %v238, %v241
      %v243 = vrot.slane %v242, 4
      %v245 = vshll.u32 %v165, 16
      %v247 = vrot.slane %v245, 5
      %v248 = vsel %vm234, %v243, %v247
      %v250 = vshrl.u32 %v166, 16
      %v252 = vrot.slane %v250, 4
      %v253 = vshll.u32 %v166, 16
      %v255 = vrot.slane %v253, 5
      %v256 = vor.u32 %v252, %v255
      %v257 = vrot.slane %v256, 4
      %v259 = vshll.u32 %v167, 16
      %v261 = vrot.slane %v259, 5
      %v262 = vsel %vm234, %v257, %v261
      %v264 = vshrl.u32 %v168, 16
      %v266 = vrot.slane %v264, 4
      %v267 = vshll.u32 %v168, 16
      %v269 = vrot.slane %v267, 5
      %v270 = vor.u32 %v266, %v269
      %v271 = vrot.slane %v270, 4
      %v273 = vshll.u32 %v169, 16
      %v275 = vrot.slane %v273, 5
      %v276 = vsel %vm234, %v271, %v275
      %v278 = vshrl.u32 %v170, 16
      %v280 = vrot.slane %v278, 4
      %v281 = vshll.u32 %v170, 16
      %v283 = vrot.slane %v281, 5
      %v284 = vor.u32 %v280, %v283
      %v285 = vrot.slane %v284, 4
      %v287 = vshll.u32 %v171, 16
      %v289 = vrot.slane %v287, 5
      %v290 = vsel %vm234, %v285, %v289
      %v292 = vshrl.u32 %v172, 16
      %v294 = vrot.slane %v292, 4
      %v295 = vshll.u32 %v172, 16
      %v297 = vrot.slane %v295, 5
      %v298 = vor.u32 %v294, %v297
      %v299 = vrot.slane %v298, 4
      %v301 = vshll.u32 %v173, 16
      %v303 = vrot.slane %v301, 5
      %v304 = vsel %vm234, %v299, %v303
      %v306 = vshrl.u32 %v174, 16
      %v308 = vrot.slane %v306, 4
      %v309 = vshll.u32 %v174, 16
      %v311 = vrot.slane %v309, 5
      %v312 = vor.u32 %v308, %v311
      %v313 = vrot.slane %v312, 4
      %v315 = vshll.u32 %v175, 16
      %v317 = vrot.slane %v315, 5
      %v318 = vsel %vm234, %v313, %v317
      %v320 = vshrl.u32 %v176, 16
      %v322 = vrot.slane %v320, 4
      %v323 = vshll.u32 %v176, 16
      %v325 = vrot.slane %v323, 5
      %v326 = vor.u32 %v322, %v325
      %v327 = vrot.slane %v326, 4
      %v329 = vshll.u32 %v177, 16
      %v331 = vrot.slane %v329, 5
      %v332 = vsel %vm234, %v327, %v331
      %v334 = vshrl.u32 %v178, 16
      %v336 = vrot.slane %v334, 4
      %v337 = vshll.u32 %v178, 16
      %v339 = vrot.slane %v337, 5
      %v340 = vor.u32 %v336, %v339
      %v341 = vrot.slane %v340, 4
      %v343 = vshll.u32 %v179, 16
      %v345 = vrot.slane %v343, 5
      %v346 = vsel %vm234, %v341, %v345
      %v348 = vshrl.u32 %v180, 16
      %v350 = vrot.slane %v348, 4
      %v351 = vshll.u32 %v180, 16
      %v353 = vrot.slane %v351, 5
      %v354 = vor.u32 %v350, %v353
      %v355 = vrot.slane %v354, 4
      %v357 = vshll.u32 %v181, 16
      %v359 = vrot.slane %v357, 5
      %v360 = vsel %vm234, %v355, %v359
      %v362 = vshrl.u32 %v182, 16
      %v364 = vrot.slane %v362, 4
      %v365 = vshll.u32 %v182, 16
      %v367 = vrot.slane %v365, 5
      %v368 = vor.u32 %v364, %v367
      %v369 = vrot.slane %v368, 4
      %v371 = vshll.u32 %v183, 16
      %v373 = vrot.slane %v371, 5
      %v374 = vsel %vm234, %v369, %v373
      %v376 = vshrl.u32 %v184, 16
      %v378 = vrot.slane %v376, 4
      %v379 = vshll.u32 %v184, 16
      %v381 = vrot.slane %v379, 5
      %v382 = vor.u32 %v378, %v381
      %v383 = vrot.slane %v382, 4
      %v385 = vshll.u32 %v185, 16
      %v387 = vrot.slane %v385, 5
      %v388 = vsel %vm234, %v383, %v387
      %v390 = vshrl.u32 %v186, 16
      %v392 = vrot.slane %v390, 4
      %v393 = vshll.u32 %v186, 16
      %v395 = vrot.slane %v393, 5
      %v396 = vor.u32 %v392, %v395
      %v397 = vrot.slane %v396, 4
      %v399 = vshll.u32 %v187, 16
      %v401 = vrot.slane %v399, 5
      %v402 = vsel %vm234, %v397, %v401
      %v404 = vshrl.u32 %v188, 16
      %v406 = vrot.slane %v404, 4
      %v407 = vshll.u32 %v188, 16
      %v409 = vrot.slane %v407, 5
      %v410 = vor.u32 %v406, %v409
      %v411 = vrot.slane %v410, 4
      %v413 = vshll.u32 %v189, 16
      %v415 = vrot.slane %v413, 5
      %v416 = vsel %vm234, %v411, %v415
      %v418 = vshrl.u32 %v190, 16
      %v420 = vrot.slane %v418, 4
      %v421 = vshll.u32 %v190, 16
      %v423 = vrot.slane %v421, 5
      %v424 = vor.u32 %v420, %v423
      %v425 = vrot.slane %v424, 4
      %v427 = vshll.u32 %v191, 16
      %v429 = vrot.slane %v427, 5
      %v430 = vsel %vm234, %v425, %v429
      %v432 = vshrl.u32 %v192, 16
      %v434 = vrot.slane %v432, 4
      %v435 = vshll.u32 %v192, 16
      %v437 = vrot.slane %v435, 5
      %v438 = vor.u32 %v434, %v437
      %v439 = vrot.slane %v438, 4
      %v441 = vshll.u32 %v193, 16
      %v443 = vrot.slane %v441, 5
      %v444 = vsel %vm234, %v439, %v443
      %v446 = vshrl.u32 %v194, 16
      %v448 = vrot.slane %v446, 4
      %v449 = vshll.u32 %v194, 16
      %v451 = vrot.slane %v449, 5
      %v452 = vor.u32 %v448, %v451
      %v453 = vrot.slane %v452, 4
      %v455 = vshll.u32 %v195, 16
      %v457 = vrot.slane %v455, 5
      %v458 = vsel %vm234, %v453, %v457
      %v460 = vshrl.u32 %v196, 16
      %v462 = vrot.slane %v460, 4
      %v463 = vshll.u32 %v196, 16
      %v465 = vrot.slane %v463, 5
      %v466 = vor.u32 %v462, %v465
      %v467 = vrot.slane %v466, 4
      %v469 = vshll.u32 %v197, 16
      %v471 = vrot.slane %v469, 5
      %v472 = vsel %vm234, %v467, %v471
      %v490 = vmax.bf16 %v215, %v248
      %v491 = vmax.bf16 %v216, %v262
      %v492 = vmax.bf16 %v217, %v276
      %v493 = vmax.bf16 %v218, %v290
      %v494 = vmax.bf16 %v219, %v304
      %v495 = vmax.bf16 %v220, %v318
      %v496 = vmax.bf16 %v221, %v332
      %v497 = vmax.bf16 %v222, %v346
      %v498 = vmax.bf16 %v223, %v360
      %v499 = vmax.bf16 %v224, %v374
      %v500 = vmax.bf16 %v225, %v388
      %v501 = vmax.bf16 %v226, %v402
      %v502 = vmax.bf16 %v227, %v416
      %v503 = vmax.bf16 %v228, %v430
      %v504 = vmax.bf16 %v229, %v444
      %v505 = vmax.bf16 %v230, %v458
      %v506 = vmax.bf16 %v231, %v472
      %v507 = vmax.bf16 %v490, %v491
      %v508 = vmax.bf16 %v492, %v493
      %v509 = vmax.bf16 %v494, %v495
      %v510 = vmax.bf16 %v496, %v497
      %v511 = vmax.bf16 %v498, %v499
      %v512 = vmax.bf16 %v500, %v501
      %v513 = vmax.bf16 %v502, %v503
      %v514 = vmax.bf16 %v504, %v505
      %v515 = vmax.bf16 %v507, %v492
      %v516 = vmax.bf16 %v508, %v494
      %v517 = vmax.bf16 %v509, %v496
      %v518 = vmax.bf16 %v510, %v498
      %v519 = vmax.bf16 %v511, %v500
      %v520 = vmax.bf16 %v512, %v502
      %v521 = vmax.bf16 %v513, %v504
      %v522 = vmax.bf16 %v514, %v506
      %523 = vst [vmem:[%s163] sm:$0xf] %v515
      %524 = vst [vmem:[%s163 + $0x4] sm:$0xf] %v516
      %525 = vst [vmem:[%s163 + $0x8] sm:$0xf] %v517
      %526 = vst [vmem:[%s163 + $0xc] sm:$0xf] %v518
      %527 = vst [vmem:[%s163 + $0x10] sm:$0xf] %v519
      %528 = vst [vmem:[%s163 + $0x14] sm:$0xf] %v520
      %529 = vst [vmem:[%s163 + $0x18] sm:$0xf] %v521
      %530 = vst [vmem:[%s163 + $0x1c] sm:$0xf] %v522
      %p531 = scmp.lt.s32.totalorder %s13, 1
      %s532 = scalar_select %p531, %s13, 1
      %s533 = smul.addr %s532, 8
      %s534 = smul.addr %s533, 4
      %s535 = scalar_lea.vmem %s2, %s534
      // Predicated region
      $region29: #{net_forward.9} parent=27 // pred_check
        %p536 = pneg %p83
      $region30: #{net_forward.9} parent=27 // pred_check_branch
        %538 = sbr.rel (%p536) target = $region32
      $region31: #{net_forward.9} parent=27 // pred_region
        _
      $region32: #{net_forward.9} parent=27 // pred_fallthru
        _
    $region28: #{net_forward.9} parent=5 // pred_fallthru
      _
    %p539 = scmp.le.s32.totalorder 2, %s8
    // Predicated region
    $region33: #{net_forward.9} parent=5 // pred_check
      %p540 = pneg %p539
    $region34: #{net_forward.9} parent=5 // pred_check_branch
      %542 = sbr.rel (%p540) target = $region36
    $region35: #{net_forward.9} parent=5 // pred_region
      %s543 = ssub.s32 %s8, 2
      // Predicated region
      $region37: #{net_forward.9} parent=35 // pred_check
        %p544 = pneg %p89
      $region38: #{net_forward.9} parent=35 // pred_check_branch
        %546 = sbr.rel (%p544) target = $region40
      $region39: #{net_forward.9} parent=35 // pred_region
        %p547 = scmp.lt.s32.totalorder %s14, 1
        %s548 = scalar_select %p547, %s14, 1
        %s549 = smul.addr %s548, 8
        %s550 = smul.addr %s549, 4
        %s551 = scalar_lea.vmem %s2, %s550
      $region40: #{net_forward.9} parent=35 // pred_fallthru
        _
    $region36: #{net_forward.9} parent=5 // pred_fallthru
      _
  $region6: #{net_forward.9} parent=0 // loop_footer
    %s12 = sadd.s32 1, %s8
  $region7: #{net_forward.9} parent=0 // loop_footer_branch
    %7 = sbr.rel target = $region3
  $region8: #{net_forward.9} parent=0 // loop_exit
    _

// kernel: net_forward.8
$region0: #{net_forward.8}
  #allocation0 [shape = 'u32[]', space=smem, size = 0x4, offset = 0x4, fixed_abs, tag = 'smem constant byte address 0x4 - core index']
  #allocation1 [shape = 'u32[144,128]{1,0:T(1,128)}', space=vmem, size = 0x12000, scoped, tag = 'internal scratch']
  %s0 = inlined_call_operand.vmem [shape: bf16[1,512,256], index: 0, kind: input, shape index: {}]
  %s1 = inlined_call_operand.vmem [shape: bf16[1,256,128], index: 1, kind: input, shape index: {}]
  %s2 = inlined_call_operand.vmem [shape: f32[1,1,128], index: 2, kind: input, shape index: {}]
  %s3 = inlined_call_operand.vmem [shape: bf16[1,512,128], index: 3, kind: output, shape index: {}]
  %s4 = sld [smem:[#allocation0]]
  $region22: #{net_forward.8} parent=0
    _
  %s6 = ssub.s32 1, %s4
  %s7 = scalar_select 0, %s6, %s4
  // Predicated region
  $region2: #{net_forward.8} parent=0 // pred_check
    _
  $region3: #{net_forward.8} parent=0 // pred_check_branch
    %9 = sbr.rel (0) target = $region5
  $region4: #{net_forward.8} parent=0 // pred_region
    _
  $region5: #{net_forward.8} parent=0 // pred_fallthru
    _
  // Predicated region
  $region6: #{net_forward.8} parent=0 // pred_check
    _
  $region7: #{net_forward.8} parent=0 // pred_check_branch
    %11 = sbr.rel (0) target = $region9
  $region8: #{net_forward.8} parent=0 // pred_region
    _
  $region9: #{net_forward.8} parent=0 // pred_fallthru
    _
  // Predicated region
  $region10: #{net_forward.8} parent=0 // pred_check
    _
  $region11: #{net_forward.8} parent=0 // pred_check_branch
    %13 = sbr.rel (0) target = $region13
  $region12: #{net_forward.8} parent=0 // pred_region
    _
  $region13: #{net_forward.8} parent=0 // pred_fallthru
    _
  %v15 = vld [vmem:[%s0] sm:$0xff]
  %v16 = vld [vmem:[%s0 + $0x8] sm:$0xff]
  %v17 = vld [vmem:[%s0 + $0x10] sm:$0xff]
  %v18 = vld [vmem:[%s0 + $0x18] sm:$0xff]
  %v19 = vld [vmem:[%s0 + $0x20] sm:$0xff]
  %v20 = vld [vmem:[%s0 + $0x28] sm:$0xff]
  %v21 = vld [vmem:[%s0 + $0x30] sm:$0xff]
  %v22 = vld [vmem:[%s0 + $0x38] sm:$0xff]
  %v23 = vld [vmem:[%s0 + $0x40] sm:$0xff]
  %v24 = vld [vmem:[%s0 + $0x48] sm:$0xff]
  %v25 = vld [vmem:[%s0 + $0x50] sm:$0xff]
  %v26 = vld [vmem:[%s0 + $0x58] sm:$0xff]
  %v27 = vld [vmem:[%s0 + $0x60] sm:$0xff]
  %v28 = vld [vmem:[%s0 + $0x68] sm:$0xff]
  %v29 = vld [vmem:[%s0 + $0x70] sm:$0xff]
  %v30 = vld [vmem:[%s0 + $0x78] sm:$0xff]
  %v31 = vld [vmem:[%s0 + $0x80] sm:$0xff]
  %v32 = vld [vmem:[%s0 + $0x88] sm:$0xff]
  %v33 = vld [vmem:[%s0 + $0x90] sm:$0xff]
  %v34 = vld [vmem:[%s0 + $0x98] sm:$0xff]
  %v35 = vld [vmem:[%s0 + $0xa0] sm:$0xff]
  %v36 = vld [vmem:[%s0 + $0xa8] sm:$0xff]
  %v37 = vld [vmem:[%s0 + $0xb0] sm:$0xff]
  %v38 = vld [vmem:[%s0 + $0xb8] sm:$0xff]
  %v39 = vld [vmem:[%s0 + $0xc0] sm:$0xff]
  %v40 = vld [vmem:[%s0 + $0xc8] sm:$0xff]
  %v41 = vld [vmem:[%s0 + $0xd0] sm:$0xff]
  %v42 = vld [vmem:[%s0 + $0xd8] sm:$0xff]
  %v43 = vld [vmem:[%s0 + $0xe0] sm:$0xff]
  %v44 = vld [vmem:[%s0 + $0xe8] sm:$0xff]
  %v45 = vld [vmem:[%s0 + $0xf0] sm:$0xff]
  %v46 = vld [vmem:[%s0 + $0xf8] sm:$0xff]
  %v47 = vld [vmem:[%s0 + $0x100] sm:$0xff]
  %v48 = vld [vmem:[%s0 + $0x108] sm:$0xff]
  %v49 = vld [vmem:[%s0 + $0x110] sm:$0xff]
  %v50 = vld [vmem:[%s0 + $0x118] sm:$0xff]
  %v51 = vld [vmem:[%s0 + $0x120] sm:$0xff]
  %v52 = vld [vmem:[%s0 + $0x128] sm:$0xff]
  %v53 = vld [vmem:[%s0 + $0x130] sm:$0xff]
  %v54 = vld [vmem:[%s0 + $0x138] sm:$0xff]
  %v55 = vld [vmem:[%s0 + $0x140] sm:$0xff]
  %v56 = vld [vmem:[%s0 + $0x148] sm:$0xff]
  %v57 = vld [vmem:[%s0 + $0x150] sm:$0xff]
  %v58 = vld [vmem:[%s0 + $0x158] sm:$0xff]
  %v59 = vld [vmem:[%s0 + $0x160] sm:$0xff]
  %v60 = vld [vmem:[%s0 + $0x168] sm:$0xff]
  %v61 = vld [vmem:[%s0 + $0x170] sm:$0xff]
  %v62 = vld [vmem:[%s0 + $0x178] sm:$0xff]
  %v63 = vld [vmem:[%s0 + $0x180] sm:$0xff]
  %v64 = vld [vmem:[%s0 + $0x188] sm:$0xff]
  %v65 = vld [vmem:[%s0 + $0x190] sm:$0xff]
  %v66 = vld [vmem:[%s0 + $0x198] sm:$0xff]
  %v67 = vld [vmem:[%s0 + $0x1a0] sm:$0xff]
  %v68 = vld [vmem:[%s0 + $0x1a8] sm:$0xff]
  %v69 = vld [vmem:[%s0 + $0x1b0] sm:$0xff]
  %v70 = vld [vmem:[%s0 + $0x1b8] sm:$0xff]
  %v71 = vld [vmem:[%s0 + $0x1c0] sm:$0xff]
  %v72 = vld [vmem:[%s0 + $0x1c8] sm:$0xff]
  %v73 = vld [vmem:[%s0 + $0x1d0] sm:$0xff]
  %v74 = vld [vmem:[%s0 + $0x1d8] sm:$0xff]
  %v75 = vld [vmem:[%s0 + $0x1e0] sm:$0xff]
  %v76 = vld [vmem:[%s0 + $0x1e8] sm:$0xff]
  %v77 = vld [vmem:[%s0 + $0x1f0] sm:$0xff]
  %v78 = vld [vmem:[%s0 + $0x1f8] sm:$0xff]
  %v79 = vld [vmem:[%s1] sm:$0xf]
  %v80 = vld [vmem:[%s1 + $0x4] sm:$0xf]
  %v81 = vld [vmem:[%s1 + $0x8] sm:$0xf]
  %v82 = vld [vmem:[%s1 + $0xc] sm:$0xf]
  %v83 = vld [vmem:[%s1 + $0x10] sm:$0xf]
  %v84 = vld [vmem:[%s1 + $0x14] sm:$0xf]
  %v85 = vld [vmem:[%s1 + $0x18] sm:$0xf]
  %v86 = vld [vmem:[%s1 + $0x1c] sm:$0xf]
  %v87 = vld [vmem:[%s1 + $0x20] sm:$0xf]
  %v88 = vld [vmem:[%s1 + $0x24] sm:$0xf]
  %v89 = vld [vmem:[%s1 + $0x28] sm:$0xf]
  %v90 = vld [vmem:[%s1 + $0x2c] sm:$0xf]
  %v91 = vld [vmem:[%s1 + $0x30] sm:$0xf]
  %v92 = vld [vmem:[%s1 + $0x34] sm:$0xf]
  %v93 = vld [vmem:[%s1 + $0x38] sm:$0xf]
  %v94 = vld [vmem:[%s1 + $0x3c] sm:$0xf]
  %v95 = vld [vmem:[%s1 + $0x40] sm:$0xf]
  %v96 = vld [vmem:[%s1 + $0x44] sm:$0xf]
  %v97 = vld [vmem:[%s1 + $0x48] sm:$0xf]
  %v98 = vld [vmem:[%s1 + $0x4c] sm:$0xf]
  %v99 = vld [vmem:[%s1 + $0x50] sm:$0xf]
  %v100 = vld [vmem:[%s1 + $0x54] sm:$0xf]
  %v101 = vld [vmem:[%s1 + $0x58] sm:$0xf]
  %v102 = vld [vmem:[%s1 + $0x5c] sm:$0xf]
  %v103 = vld [vmem:[%s1 + $0x60] sm:$0xf]
  %v104 = vld [vmem:[%s1 + $0x64] sm:$0xf]
  %v105 = vld [vmem:[%s1 + $0x68] sm:$0xf]
  %v106 = vld [vmem:[%s1 + $0x6c] sm:$0xf]
  %v107 = vld [vmem:[%s1 + $0x70] sm:$0xf]
  %v108 = vld [vmem:[%s1 + $0x74] sm:$0xf]
  %v109 = vld [vmem:[%s1 + $0x78] sm:$0xf]
  %v110 = vld [vmem:[%s1 + $0x7c] sm:$0xf]
  %v111 = vld [vmem:[%s2] sm:$0x1]
  %v113 = vlaneseq
  %v114 = vshrl.u32 %v113, 7
  %v115 = vsub.s32 0, %v114
  %v116 = vrot.slane %v111, %v115
  %v182 = vunpack.c.l.b16 %v15
  %v183 = vunpack.c.h.b16 %v15
  %v184 = vunpack.c.l.b16 %v16
  %v185 = vunpack.c.h.b16 %v16
  %v186 = vunpack.c.l.b16 %v17
  %v187 = vunpack.c.h.b16 %v17
  %v188 = vunpack.c.l.b16 %v18
  %v189 = vunpack.c.h.b16 %v18
  %v190 = vunpack.c.l.b16 %v19
  %v191 = vunpack.c.h.b16 %v19
  %v192 = vunpack.c.l.b16 %v20
  %v193 = vunpack.c.h.b16 %v20
  %v194 = vunpack.c.l.b16 %v21
  %v195 = vunpack.c.h.b16 %v21
  %v196 = vunpack.c.l.b16 %v22
  %v197 = vunpack.c.h.b16 %v22
  %v198 = vunpack.c.l.b16 %v23
  %v199 = vunpack.c.h.b16 %v23
  %v200 = vunpack.c.l.b16 %v24
  %v201 = vunpack.c.h.b16 %v24
  %v202 = vunpack.c.l.b16 %v25
  %v203 = vunpack.c.h.b16 %v25
  %v204 = vunpack.c.l.b16 %v26
  %v205 = vunpack.c.h.b16 %v26
  %v206 = vunpack.c.l.b16 %v27
  %v207 = vunpack.c.h.b16 %v27
  %v208 = vunpack.c.l.b16 %v28
  %v209 = vunpack.c.h.b16 %v28
  %v210 = vunpack.c.l.b16 %v29
  %v211 = vunpack.c.h.b16 %v29
  %v212 = vunpack.c.l.b16 %v30
  %v213 = vunpack.c.h.b16 %v30
  %v214 = vunpack.c.l.b16 %v31
  %v215 = vunpack.c.h.b16 %v31
  %v216 = vunpack.c.l.b16 %v32
  %v217 = vunpack.c.h.b16 %v32
  %v218 = vunpack.c.l.b16 %v33
  %v219 = vunpack.c.h.b16 %v33
  %v220 = vunpack.c.l.b16 %v34
  %v221 = vunpack.c.h.b16 %v34
  %v222 = vunpack.c.l.b16 %v35
  %v223 = vunpack.c.h.b16 %v35
  %v224 = vunpack.c.l.b16 %v36
  %v225 = vunpack.c.h.b16 %v36
  %v226 = vunpack.c.l.b16 %v37
  %v227 = vunpack.c.h.b16 %v37
  %v228 = vunpack.c.l.b16 %v38
  %v229 = vunpack.c.h.b16 %v38
  %v230 = vunpack.c.l.b16 %v39
  %v231 = vunpack.c.h.b16 %v39
  %v232 = vunpack.c.l.b16 %v40
  %v233 = vunpack.c.h.b16 %v40
  %v234 = vunpack.c.l.b16 %v41
  %v235 = vunpack.c.h.b16 %v41
  %v236 = vunpack.c.l.b16 %v42
  %v237 = vunpack.c.h.b16 %v42
  %v238 = vunpack.c.l.b16 %v43
  %v239 = vunpack.c.h.b16 %v43
  %v240 = vunpack.c.l.b16 %v44
  %v241 = vunpack.c.h.b16 %v44
  %v242 = vunpack.c.l.b16 %v45
  %v243 = vunpack.c.h.b16 %v45
  %v244 = vunpack.c.l.b16 %v46
  %v245 = vunpack.c.h.b16 %v46
  %v246 = vunpack.c.l.b16 %v47
  %v247 = vunpack.c.h.b16 %v47
  %v248 = vunpack.c.l.b16 %v48
  %v249 = vunpack.c.h.b16 %v48
  %v250 = vunpack.c.l.b16 %v49
  %v251 = vunpack.c.h.b16 %v49
  %v252 = vunpack.c.l.b16 %v50
  %v253 = vunpack.c.h.b16 %v50
  %v254 = vunpack.c.l.b16 %v51
  %v255 = vunpack.c.h.b16 %v51
  %v256 = vunpack.c.l.b16 %v52
  %v257 = vunpack.c.h.b16 %v52
  %v258 = vunpack.c.l.b16 %v53
  %v259 = vunpack.c.h.b16 %v53
  %v260 = vunpack.c.l.b16 %v54
  %v261 = vunpack.c.h.b16 %v54
  %v262 = vunpack.c.l.b16 %v55
  %v263 = vunpack.c.h.b16 %v55
  %v264 = vunpack.c.l.b16 %v56
  %v265 = vunpack.c.h.b16 %v56
  %v266 = vunpack.c.l.b16 %v57
  %v267 = vunpack.c.h.b16 %v57
  %v268 = vunpack.c.l.b16 %v58
  %v269 = vunpack.c.h.b16 %v58
  %v270 = vunpack.c.l.b16 %v59
  %v271 = vunpack.c.h.b16 %v59
  %v272 = vunpack.c.l.b16 %v60
  %v273 = vunpack.c.h.b16 %v60
  %v274 = vunpack.c.l.b16 %v61
  %v275 = vunpack.c.h.b16 %v61
  %v276 = vunpack.c.l.b16 %v62
  %v277 = vunpack.c.h.b16 %v62
  %v278 = vunpack.c.l.b16 %v63
  %v279 = vunpack.c.h.b16 %v63
  %v280 = vunpack.c.l.b16 %v64
  %v281 = vunpack.c.h.b16 %v64
  %v282 = vunpack.c.l.b16 %v65
  %v283 = vunpack.c.h.b16 %v65
  %v284 = vunpack.c.l.b16 %v66
  %v285 = vunpack.c.h.b16 %v66
  %v286 = vunpack.c.l.b16 %v67
  %v287 = vunpack.c.h.b16 %v67
  %v288 = vunpack.c.l.b16 %v68
  %v289 = vunpack.c.h.b16 %v68
  %v290 = vunpack.c.l.b16 %v69
  %v291 = vunpack.c.h.b16 %v69
  %v292 = vunpack.c.l.b16 %v70
  %v293 = vunpack.c.h.b16 %v70
  %v294 = vunpack.c.l.b16 %v71
  %v295 = vunpack.c.h.b16 %v71
  %v296 = vunpack.c.l.b16 %v72
  %v297 = vunpack.c.h.b16 %v72
  %v298 = vunpack.c.l.b16 %v73
  %v299 = vunpack.c.h.b16 %v73
  %v300 = vunpack.c.l.b16 %v74
  %v301 = vunpack.c.h.b16 %v74
  %v302 = vunpack.c.l.b16 %v75
  %v303 = vunpack.c.h.b16 %v75
  %v304 = vunpack.c.l.b16 %v76
  %v305 = vunpack.c.h.b16 %v76
  %v306 = vunpack.c.l.b16 %v77
  %v307 = vunpack.c.h.b16 %v77
  %v308 = vunpack.c.l.b16 %v78
  %v309 = vunpack.c.h.b16 %v78
  %v310 = vpack.c.b16 %v184, %v182
  %v311 = vpack.c.b16 %v185, %v183
  %v312 = vpack.c.b16 %v188, %v186
  %v313 = vpack.c.b16 %v189, %v187
  %v314 = vpack.c.b16 %v192, %v190
  %v315 = vpack.c.b16 %v193, %v191
  %v316 = vpack.c.b16 %v196, %v194
  %v317 = vpack.c.b16 %v197, %v195
  %v318 = vpack.c.b16 %v200, %v198
  %v319 = vpack.c.b16 %v201, %v199
  %v320 = vpack.c.b16 %v204, %v202
  %v321 = vpack.c.b16 %v205, %v203
  %v322 = vpack.c.b16 %v208, %v206
  %v323 = vpack.c.b16 %v209, %v207
  %v324 = vpack.c.b16 %v212, %v210
  %v325 = vpack.c.b16 %v213, %v211
  %v326 = vpack.c.b16 %v216, %v214
  %v327 = vpack.c.b16 %v217, %v215
  %v328 = vpack.c.b16 %v220, %v218
  %v329 = vpack.c.b16 %v221, %v219
  %v330 = vpack.c.b16 %v224, %v222
  %v331 = vpack.c.b16 %v225, %v223
  %v332 = vpack.c.b16 %v228, %v226
  %v333 = vpack.c.b16 %v229, %v227
  %v334 = vpack.c.b16 %v232, %v230
  %v335 = vpack.c.b16 %v233, %v231
  %v336 = vpack.c.b16 %v236, %v234
  %v337 = vpack.c.b16 %v237, %v235
  %v338 = vpack.c.b16 %v240, %v238
  %v339 = vpack.c.b16 %v241, %v239
  %v340 = vpack.c.b16 %v244, %v242
  %v341 = vpack.c.b16 %v245, %v243
  %v342 = vpack.c.b16 %v248, %v246
  %v343 = vpack.c.b16 %v249, %v247
  %v344 = vpack.c.b16 %v252, %v250
  %v345 = vpack.c.b16 %v253, %v251
  %v346 = vpack.c.b16 %v256, %v254
  %v347 = vpack.c.b16 %v257, %v255
  %v348 = vpack.c.b16 %v260, %v258
  %v349 = vpack.c.b16 %v261, %v259
  %v350 = vpack.c.b16 %v264, %v262
  %v351 = vpack.c.b16 %v265, %v263
  %v352 = vpack.c.b16 %v268, %v266
  %v353 = vpack.c.b16 %v269, %v267
  %v354 = vpack.c.b16 %v272, %v270
  %v355 = vpack.c.b16 %v273, %v271
  %v356 = vpack.c.b16 %v276, %v274
  %v357 = vpack.c.b16 %v277, %v275
  %v358 = vpack.c.b16 %v280, %v278
  %v359 = vpack.c.b16 %v281, %v279
  %v360 = vpack.c.b16 %v284, %v282
  %v361 = vpack.c.b16 %v285, %v283
  %v362 = vpack.c.b16 %v288, %v286
  %v363 = vpack.c.b16 %v289, %v287
  %v364 = vpack.c.b16 %v292, %v290
  %v365 = vpack.c.b16 %v293, %v291
  %v366 = vpack.c.b16 %v296, %v294
  %v367 = vpack.c.b16 %v297, %v295
  %v368 = vpack.c.b16 %v300, %v298
  %v369 = vpack.c.b16 %v301, %v299
  %v370 = vpack.c.b16 %v304, %v302
  %v371 = vpack.c.b16 %v305, %v303
  %v372 = vpack.c.b16 %v308, %v306
  %v373 = vpack.c.b16 %v309, %v307
  %v470 = vunpack.c.l.b16 %v79
  %v471 = vunpack.c.l.b16 %v80
  %v472 = vunpack.c.l.b16 %v81
  %v473 = vunpack.c.l.b16 %v82
  %v474 = vunpack.c.l.b16 %v83
  %v475 = vunpack.c.l.b16 %v84
  %v476 = vunpack.c.l.b16 %v85
  %v477 = vunpack.c.l.b16 %v86
  %v478 = vunpack.c.l.b16 %v87
  %v479 = vunpack.c.l.b16 %v88
  %v480 = vunpack.c.l.b16 %v89
  %v481 = vunpack.c.l.b16 %v90
  %v482 = vunpack.c.l.b16 %v91
  %v483 = vunpack.c.l.b16 %v92
  %v484 = vunpack.c.l.b16 %v93
  %v485 = vunpack.c.l.b16 %v94
  %v486 = vunpack.c.l.b16 %v95
  %v487 = vunpack.c.l.b16 %v96
  %v488 = vunpack.c.l.b16 %v97
  %v489 = vunpack.c.l.b16 %v98
  %v490 = vunpack.c.l.b16 %v99
  %v491 = vunpack.c.l.b16 %v100
  %v492 = vunpack.c.l.b16 %v101
  %v493 = vunpack.c.l.b16 %v102
  %v494 = vunpack.c.l.b16 %v103
  %v495 = vunpack.c.l.b16 %v104
  %v496 = vunpack.c.l.b16 %v105
  %v497 = vunpack.c.l.b16 %v106
  %v498 = vunpack.c.l.b16 %v107
  %v499 = vunpack.c.l.b16 %v108
  %v500 = vunpack.c.l.b16 %v109
  %v501 = vunpack.c.l.b16 %v110
  %v502 = vpack.c.b16 %v471, %v470
  %v503 = vpack.c.b16 %v473, %v472
  %v504 = vpack.c.b16 %v475, %v474
  %v505 = vpack.c.b16 %v477, %v476
  %v506 = vpack.c.b16 %v479, %v478
  %v507 = vpack.c.b16 %v481, %v480
  %v508 = vpack.c.b16 %v483, %v482
  %v509 = vpack.c.b16 %v485, %v484
  %v510 = vpack.c.b16 %v487, %v486
  %v511 = vpack.c.b16 %v489, %v488
  %v512 = vpack.c.b16 %v491, %v490
  %v513 = vpack.c.b16 %v493, %v492
  %v514 = vpack.c.b16 %v495, %v494
  %v515 = vpack.c.b16 %v497, %v496
  %v516 = vpack.c.b16 %v499, %v498
  %v517 = vpack.c.b16 %v501, %v500
  %534 = vmatprep.subr.bf16.mxu0 0
  %535 = vmatpush1.bf16.msra.mxu0 %v509
  %536 = vmatprep.subr.bf16.mxu0 0
  %537 = vmatpush1.bf16.msra.mxu0 %v508
  %538 = vmatprep.subr.bf16.mxu0 0
  %539 = vmatpush1.bf16.msra.mxu0 %v507
  %540 = vmatprep.subr.bf16.mxu0 0
  %541 = vmatpush1.bf16.msra.mxu0 %v506
  %542 = vmatprep.subr.bf16.mxu0 0
  %543 = vmatpush1.bf16.msra.mxu0 %v505
  %544 = vmatprep.subr.bf16.mxu0 0
  %545 = vmatpush1.bf16.msra.mxu0 %v504
  %546 = vmatprep.subr.bf16.mxu0 0
  %547 = vmatpush1.bf16.msra.mxu0 %v503
  %548 = vmatprep.subr.bf16.mxu0 0
  %549 = vmatpush1.bf16.msra.mxu0 %v502
  %550 = vmatprep.subr.bf16.mxu0 0
  %551 = vmatpush2.bf16.msra.mxu0 %v517
  %552 = vmatprep.subr.bf16.mxu0 0
  %553 = vmatpush2.bf16.msra.mxu0 %v516
  %554 = vmatprep.subr.bf16.mxu0 0
  %555 = vmatpush2.bf16.msra.mxu0 %v515
  %556 = vmatprep.subr.bf16.mxu0 0
  %557 = vmatpush2.bf16.msra.mxu0 %v514
  %558 = vmatprep.subr.bf16.mxu0 0
  %559 = vmatpush2.bf16.msra.mxu0 %v513
  %560 = vmatprep.subr.bf16.mxu0 0
  %561 = vmatpush2.bf16.msra.mxu0 %v512
  %562 = vmatprep.subr.bf16.mxu0 0
  %563 = vmatpush2.bf16.msra.mxu0 %v511
  %564 = vmatprep.subr.bf16.mxu0 0
  %565 = vmatpush2.bf16.msra.mxu0 %v510
  %566 = vmatprep.mubr.bf16.mxu0 %v311
  %567 = vmatmul.mubr.bf16.gmra.mxu0 %v310
  %v568 = vpop.f32.mrf.mxu0
  %v569 = vadd.f32 %v116, %v568
  %v570 = vpop.f32.mrf.mxu0
  %v571 = vpop.f32.mrf.mxu0
  %v572 = vadd.f32 %v116, %v571
  %v573 = vpop.f32.mrf.mxu0
  %574 = vmatprep.mubr.bf16.mxu0 %v313
  %575 = vmatmul.mubr.bf16.gmra.mxu0 %v312
  %v576 = vpop.f32.mrf.mxu0
  %v577 = vadd.f32 %v116, %v576
  %v578 = vpop.f32.mrf.mxu0
  %v579 = vpop.f32.mrf.mxu0
  %v580 = vadd.f32 %v116, %v579
  %v581 = vpop.f32.mrf.mxu0
  %582 = vmatprep.mubr.bf16.mxu0 %v315
  %583 = vmatmul.mubr.bf16.gmra.mxu0 %v314
  %v584 = vpop.f32.mrf.mxu0
  %v585 = vadd.f32 %v116, %v584
  %v586 = vpop.f32.mrf.mxu0
  %v587 = vpop.f32.mrf.mxu0
  %v588 = vadd.f32 %v116, %v587
  %v589 = vpop.f32.mrf.mxu0
  %590 = vmatprep.mubr.bf16.mxu0 %v317
  %591 = vmatmul.mubr.bf16.gmra.mxu0 %v316
  %v592 = vpop.f32.mrf.mxu0
  %v593 = vadd.f32 %v116, %v592
  %v594 = vpop.f32.mrf.mxu0
  %v595 = vpop.f32.mrf.mxu0
  %v596 = vadd.f32 %v116, %v595
  %v597 = vpop.f32.mrf.mxu0
  %598 = vmatprep.mubr.bf16.mxu0 %v319
  %599 = vmatmul.mubr.bf16.gmra.mxu0 %v318
  %v600 = vpop.f32.mrf.mxu0
  %v601 = vadd.f32 %v116, %v600
  %v602 = vpop.f32.mrf.mxu0
  %v603 = vpop.f32.mrf.mxu0
  %v604 = vadd.f32 %v116, %v603
  %v605 = vpop.f32.mrf.mxu0
  %606 = vmatprep.mubr.bf16.mxu0 %v321
  %607 = vmatmul.mubr.bf16.gmra.mxu0 %v320
  %v608 = vpop.f32.mrf.mxu0
  %v609 = vadd.f32 %v116, %v608
  %v610 = vpop.f32.mrf.mxu0
  %v611 = vpop.f32.mrf.mxu0
  %v612 = vadd.f32 %v116, %v611
  %v613 = vpop.f32.mrf.mxu0
  %614 = vmatprep.mubr.bf16.mxu0 %v323
  %615 = vmatmul.mubr.bf16.gmra.mxu0 %v322
  %v616 = vpop.f32.mrf.mxu0
  %v617 = vadd.f32 %v116, %v616
  %v618 = vpop.f32.mrf.mxu0
  %v619 = vpop.f32.mrf.mxu0
  %v620 = vadd.f32 %v116, %v619
  %v621 = vpop.f32.mrf.mxu0
  %622 = vmatprep.mubr.bf16.mxu0 %v325
  %623 = vmatmul.mubr.bf16.gmra.mxu0 %v324
  %v624 = vpop.f32.mrf.mxu0
  %v625 = vadd.f32 %v116, %v624
  %v626 = vpop.f32.mrf.mxu0
  %v627 = vpop.f32.mrf.mxu0
  %v628 = vadd.f32 %v116, %v627
  %v629 = vpop.f32.mrf.mxu0
  %630 = vmatprep.mubr.bf16.mxu0 %v327
  %631 = vmatmul.mubr.bf16.gmra.mxu0 %v326
  %v632 = vpop.f32.mrf.mxu0
  %v633 = vadd.f32 %v116, %v632
  %v634 = vpop.f32.mrf.mxu0
  %v635 = vpop.f32.mrf.mxu0
  %v636 = vadd.f32 %v116, %v635
  %v637 = vpop.f32.mrf.mxu0
  %638 = vmatprep.mubr.bf16.mxu0 %v329
  %639 = vmatmul.mubr.bf16.gmra.mxu0 %v328
  %v640 = vpop.f32.mrf.mxu0
  %v641 = vadd.f32 %v116, %v640
  %v642 = vpop.f32.mrf.mxu0
  %v643 = vpop.f32.mrf.mxu0
  %v644 = vadd.f32 %v116, %v643
  %v645 = vpop.f32.mrf.mxu0
  %646 = vmatprep.mubr.bf16.mxu0 %v331
  %647 = vmatmul.mubr.bf16.gmra.mxu0 %v330
  %v648 = vpop.f32.mrf.mxu0
  %v649 = vadd.f32 %v116, %v648
  %v650 = vpop.f32.mrf.mxu0
  %v651 = vpop.f32.mrf.mxu0
  %v652 = vadd.f32 %v116, %v651
  %v653 = vpop.f32.mrf.mxu0
  %654 = vmatprep.mubr.bf16.mxu0 %v333
  %655 = vmatmul.mubr.bf16.gmra.mxu0 %v332
  %v656 = vpop.f32.mrf.mxu0
  %v657 = vadd.f32 %v116, %v656
  %v658 = vpop.f32.mrf.mxu0
  %v659 = vpop.f32.mrf.mxu0
  %v660 = vadd.f32 %v116, %v659
  %v661 = vpop.f32.mrf.mxu0
  %662 = vmatprep.mubr.bf16.mxu0 %v335
  %663 = vmatmul.mubr.bf16.gmra.mxu0 %v334
  %v664 = vpop.f32.mrf.mxu0
  %v665 = vadd.f32 %v116, %v664
  %v666 = vpop.f32.mrf.mxu0
  %v667 = vpop.f32.mrf.mxu0
  %v668 = vadd.f32 %v116, %v667
  %v669 = vpop.f32.mrf.mxu0
  %670 = vmatprep.mubr.bf16.mxu0 %v337
  %671 = vmatmul.mubr.bf16.gmra.mxu0 %v336
  %v672 = vpop.f32.mrf.mxu0
  %v673 = vadd.f32 %v116, %v672
  %v674 = vpop.f32.mrf.mxu0
  %v675 = vpop.f32.mrf.mxu0
  %v676 = vadd.f32 %v116, %v675
  %v677 = vpop.f32.mrf.mxu0
  %678 = vmatprep.mubr.bf16.mxu0 %v339
  %679 = vmatmul.mubr.bf16.gmra.mxu0 %v338
  %v680 = vpop.f32.mrf.mxu0
  %v681 = vadd.f32 %v116, %v680
  %v682 = vpop.f32.mrf.mxu0
  %v683 = vpop.f32.mrf.mxu0
  %v684 = vadd.f32 %v116, %v683
  %v685 = vpop.f32.mrf.mxu0
  %686 = vmatprep.mubr.bf16.mxu0 %v341
  %687 = vmatmul.mubr.bf16.gmra.mxu0 %v340
  %v688 = vpop.f32.mrf.mxu0
  %v689 = vadd.f32 %v116, %v688
  %v690 = vpop.f32.mrf.mxu0
  %v691 = vpop.f32.mrf.mxu0
  %v692 = vadd.f32 %v116, %v691
  %v693 = vpop.f32.mrf.mxu0
  %694 = vmatprep.mubr.bf16.mxu0 %v343
  %695 = vmatmul.mubr.bf16.gmra.mxu0 %v342
  %v696 = vpop.f32.mrf.mxu0
  %v697 = vadd.f32 %v116, %v696
  %v698 = vpop.f32.mrf.mxu0
  %v699 = vpop.f32.mrf.mxu0
  %v700 = vadd.f32 %v116, %v699
  %v701 = vpop.f32.mrf.mxu0
  %702 = vmatprep.mubr.bf16.mxu0 %v345
  %703 = vmatmul.mubr.bf16.gmra.mxu0 %v344
  %v704 = vpop.f32.mrf.mxu0
  %v705 = vadd.f32 %v116, %v704
  %v706 = vpop.f32.mrf.mxu0
  %v707 = vpop.f32.mrf.mxu0
  %v708 = vadd.f32 %v116, %v707
  %v709 = vpop.f32.mrf.mxu0
  %710 = vmatprep.mubr.bf16.mxu0 %v347
  %711 = vmatmul.mubr.bf16.gmra.mxu0 %v346
  %v712 = vpop.f32.mrf.mxu0
  %v713 = vadd.f32 %v116, %v712
  %v714 = vpop.f32.mrf.mxu0
  %v715 = vpop.f32.mrf.mxu0
  %v716 = vadd.f32 %v116, %v715
  %v717 = vpop.f32.mrf.mxu0
  %718 = vmatprep.mubr.bf16.mxu0 %v349
  %719 = vmatmul.mubr.bf16.gmra.mxu0 %v348
  %v720 = vpop.f32.mrf.mxu0
  %v721 = vadd.f32 %v116, %v720
  %v722 = vpop.f32.mrf.mxu0
  %v723 = vpop.f32.mrf.mxu0
  %v724 = vadd.f32 %v116, %v723
  %v725 = vpop.f32.mrf.mxu0
  %726 = vmatprep.mubr.bf16.mxu0 %v351
  %727 = vmatmul.mubr.bf16.gmra.mxu0 %v350
  %v728 = vpop.f32.mrf.mxu0
  %v729 = vadd.f32 %v116, %v728
  %v730 = vpop.f32.mrf.mxu0
  %v731 = vpop.f32.mrf.mxu0
  %v732 = vadd.f32 %v116, %v731
  %v733 = vpop.f32.mrf.mxu0
  %734 = vmatprep.mubr.bf16.mxu0 %v353
  %735 = vmatmul.mubr.bf16.gmra.mxu0 %v352
  %v736 = vpop.f32.mrf.mxu0
  %v737 = vadd.f32 %v116, %v736
  %v738 = vpop.f32.mrf.mxu0
  %v739 = vpop.f32.mrf.mxu0
  %v740 = vadd.f32 %v116, %v739
  %v741 = vpop.f32.mrf.mxu0
  %742 = vmatprep.mubr.bf16.mxu0 %v355
  %743 = vmatmul.mubr.bf16.gmra.mxu0 %v354
  %v744 = vpop.f32.mrf.mxu0
  %v745 = vadd.f32 %v116, %v744
  %v746 = vpop.f32.mrf.mxu0
  %v747 = vpop.f32.mrf.mxu0
  %v748 = vadd.f32 %v116, %v747
  %v749 = vpop.f32.mrf.mxu0
  %750 = vmatprep.mubr.bf16.mxu0 %v357
  %751 = vmatmul.mubr.bf16.gmra.mxu0 %v356
  %v752 = vpop.f32.mrf.mxu0
  %v753 = vadd.f32 %v116, %v752
  %v754 = vpop.f32.mrf.mxu0
  %v755 = vpop.f32.mrf.mxu0
  %v756 = vadd.f32 %v116, %v755
  %v757 = vpop.f32.mrf.mxu0
  %758 = vmatprep.mubr.bf16.mxu0 %v359
  %759 = vmatmul.mubr.bf16.gmra.mxu0 %v358
  %v760 = vpop.f32.mrf.mxu0
  %v761 = vadd.f32 %v116, %v760
  %v762 = vpop.f32.mrf.mxu0
  %v763 = vpop.f32.mrf.mxu0
  %v764 = vadd.f32 %v116, %v763
  %v765 = vpop.f32.mrf.mxu0
  %766 = vmatprep.mubr.bf16.mxu0 %v361
  %767 = vmatmul.mubr.bf16.gmra.mxu0 %v360
  %v768 = vpop.f32.mrf.mxu0
  %v769 = vadd.f32 %v116, %v768
  %v770 = vpop.f32.mrf.mxu0
  %v771 = vpop.f32.mrf.mxu0
  %v772 = vadd.f32 %v116, %v771
  %v773 = vpop.f32.mrf.mxu0
  %774 = vmatprep.mubr.bf16.mxu0 %v363
  %775 = vmatmul.mubr.bf16.gmra.mxu0 %v362
  %v776 = vpop.f32.mrf.mxu0
  %v777 = vadd.f32 %v116, %v776
  %v778 = vpop.f32.mrf.mxu0
  %v779 = vpop.f32.mrf.mxu0
  %v780 = vadd.f32 %v116, %v779
  %v781 = vpop.f32.mrf.mxu0
  %782 = vmatprep.mubr.bf16.mxu0 %v365
  %783 = vmatmul.mubr.bf16.gmra.mxu0 %v364
  %v784 = vpop.f32.mrf.mxu0
  %v785 = vadd.f32 %v116, %v784
  %v786 = vpop.f32.mrf.mxu0
  %v787 = vpop.f32.mrf.mxu0
  %v788 = vadd.f32 %v116, %v787
  %v789 = vpop.f32.mrf.mxu0
  %790 = vmatprep.mubr.bf16.mxu0 %v367
  %791 = vmatmul.mubr.bf16.gmra.mxu0 %v366
  %v792 = vpop.f32.mrf.mxu0
  %v793 = vadd.f32 %v116, %v792
  %v794 = vpop.f32.mrf.mxu0
  %v795 = vpop.f32.mrf.mxu0
  %v796 = vadd.f32 %v116, %v795
  %v797 = vpop.f32.mrf.mxu0
  %798 = vmatprep.mubr.bf16.mxu0 %v369
  %799 = vmatmul.mubr.bf16.gmra.mxu0 %v368
  %v800 = vpop.f32.mrf.mxu0
  %v801 = vadd.f32 %v116, %v800
  %v802 = vpop.f32.mrf.mxu0
  %v803 = vpop.f32.mrf.mxu0
  %v804 = vadd.f32 %v116, %v803
  %v805 = vpop.f32.mrf.mxu0
  %806 = vmatprep.mubr.bf16.mxu0 %v371
  %807 = vmatmul.mubr.bf16.gmra.mxu0 %v370
  %v808 = vpop.f32.mrf.mxu0
  %v809 = vadd.f32 %v116, %v808
  %v810 = vpop.f32.mrf.mxu0
  %v811 = vpop.f32.mrf.mxu0
  %v812 = vadd.f32 %v116, %v811
  %v813 = vpop.f32.mrf.mxu0
  %814 = vmatprep.mubr.bf16.mxu0 %v373
  %815 = vmatmul.mubr.bf16.gmra.mxu0 %v372
  %v816 = vpop.f32.mrf.mxu0
  %v817 = vadd.f32 %v116, %v816
  %v818 = vpop.f32.mrf.mxu0
  %v819 = vpop.f32.mrf.mxu0
  %v820 = vadd.f32 %v116, %v819
  %v821 = vpop.f32.mrf.mxu0
  %822 = vdwg.mxu0
  %v823 = vmax.f32 %v569, 0.0
  %v824 = vmax.f32 %v572, 0.0
  %v825 = vmax.f32 %v577, 0.0
  %v826 = vmax.f32 %v580, 0.0
  %v827 = vmax.f32 %v585, 0.0
  %v828 = vmax.f32 %v588, 0.0
  %v829 = vmax.f32 %v593, 0.0
  %v830 = vmax.f32 %v596, 0.0
  %v831 = vmax.f32 %v601, 0.0
  %v832 = vmax.f32 %v604, 0.0
  %v833 = vmax.f32 %v609, 0.0
  %v834 = vmax.f32 %v612, 0.0
  %v835 = vmax.f32 %v617, 0.0
  %v836 = vmax.f32 %v620, 0.0
  %v837 = vmax.f32 %v625, 0.0
  %v838 = vmax.f32 %v628, 0.0
  %v839 = vmax.f32 %v633, 0.0
  %v840 = vmax.f32 %v636, 0.0
  %v841 = vmax.f32 %v641, 0.0
  %v842 = vmax.f32 %v644, 0.0
  %v843 = vmax.f32 %v649, 0.0
  %v844 = vmax.f32 %v652, 0.0
  %v845 = vmax.f32 %v657, 0.0
  %v846 = vmax.f32 %v660, 0.0
  %v847 = vmax.f32 %v665, 0.0
  %v848 = vmax.f32 %v668, 0.0
  %v849 = vmax.f32 %v673, 0.0
  %v850 = vmax.f32 %v676, 0.0
  %v851 = vmax.f32 %v681, 0.0
  %v852 = vmax.f32 %v684, 0.0
  %v853 = vmax.f32 %v689, 0.0
  %v854 = vmax.f32 %v692, 0.0
  %v855 = vmax.f32 %v697, 0.0
  %v856 = vmax.f32 %v700, 0.0
  %v857 = vmax.f32 %v705, 0.0
  %v858 = vmax.f32 %v708, 0.0
  %v859 = vmax.f32 %v713, 0.0
  %v860 = vmax.f32 %v716, 0.0
  %v861 = vmax.f32 %v721, 0.0
  %v862 = vmax.f32 %v724, 0.0
  %v863 = vmax.f32 %v729, 0.0
  %v864 = vmax.f32 %v732, 0.0
  %v865 = vmax.f32 %v737, 0.0
  %v866 = vmax.f32 %v740, 0.0
  %v867 = vmax.f32 %v745, 0.0
  %v868 = vmax.f32 %v748, 0.0
  %v869 = vmax.f32 %v753, 0.0
  %v870 = vmax.f32 %v756, 0.0
  %v871 = vmax.f32 %v761, 0.0
  %v872 = vmax.f32 %v764, 0.0
  %v873 = vmax.f32 %v769, 0.0
  %v874 = vmax.f32 %v772, 0.0
  %v875 = vmax.f32 %v777, 0.0
  %v876 = vmax.f32 %v780, 0.0
  %v877 = vmax.f32 %v785, 0.0
  %v878 = vmax.f32 %v788, 0.0
  %v879 = vmax.f32 %v793, 0.0
  %v880 = vmax.f32 %v796, 0.0
  %v881 = vmax.f32 %v801, 0.0
  %v882 = vmax.f32 %v804, 0.0
  %v883 = vmax.f32 %v809, 0.0
  %v884 = vmax.f32 %v812, 0.0
  %v885 = vmax.f32 %v817, 0.0
  %v886 = vmax.f32 %v820, 0.0
  %v887 = vpack.c.bf16 %v824, %v823
  %v888 = vpack.c.bf16 %v826, %v825
  %v889 = vpack.c.bf16 %v828, %v827
  %v890 = vpack.c.bf16 %v830, %v829
  %v891 = vpack.c.bf16 %v832, %v831
  %v892 = vpack.c.bf16 %v834, %v833
  %v893 = vpack.c.bf16 %v836, %v835
  %v894 = vpack.c.bf16 %v838, %v837
  %v895 = vpack.c.bf16 %v840, %v839
  %v896 = vpack.c.bf16 %v842, %v841
  %v897 = vpack.c.bf16 %v844, %v843
  %v898 = vpack.c.bf16 %v846, %v845
  %v899 = vpack.c.bf16 %v848, %v847
  %v900 = vpack.c.bf16 %v850, %v849
  %v901 = vpack.c.bf16 %v852, %v851
  %v902 = vpack.c.bf16 %v854, %v853
  %v903 = vpack.c.bf16 %v856, %v855
  %v904 = vpack.c.bf16 %v858, %v857
  %v905 = vpack.c.bf16 %v860, %v859
  %v906 = vpack.c.bf16 %v862, %v861
  %v907 = vpack.c.bf16 %v864, %v863
  %v908 = vpack.c.bf16 %v866, %v865
  %v909 = vpack.c.bf16 %v868, %v867
  %v910 = vpack.c.bf16 %v870, %v869
  %v911 = vpack.c.bf16 %v872, %v871
  %v912 = vpack.c.bf16 %v874, %v873
  %v913 = vpack.c.bf16 %v876, %v875
  %v914 = vpack.c.bf16 %v878, %v877
  %v915 = vpack.c.bf16 %v880, %v879
  %v916 = vpack.c.bf16 %v882, %v881
  %v917 = vpack.c.bf16 %v884, %v883
  %v918 = vpack.c.bf16 %v886, %v885
  %v951 = vunpack.c.l.b16 %v887
  %v952 = vunpack.c.h.b16 %v887
  %v953 = vunpack.c.l.b16 %v888
  %v954 = vunpack.c.h.b16 %v888
  %v955 = vunpack.c.l.b16 %v889
  %v956 = vunpack.c.h.b16 %v889
  %v957 = vunpack.c.l.b16 %v890
  %v958 = vunpack.c.h.b16 %v890
  %v959 = vunpack.c.l.b16 %v891
  %v960 = vunpack.c.h.b16 %v891
  %v961 = vunpack.c.l.b16 %v892
  %v962 = vunpack.c.h.b16 %v892
  %v963 = vunpack.c.l.b16 %v893
  %v964 = vunpack.c.h.b16 %v893
  %v965 = vunpack.c.l.b16 %v894
  %v966 = vunpack.c.h.b16 %v894
  %v967 = vunpack.c.l.b16 %v895
  %v968 = vunpack.c.h.b16 %v895
  %v969 = vunpack.c.l.b16 %v896
  %v970 = vunpack.c.h.b16 %v896
  %v971 = vunpack.c.l.b16 %v897
  %v972 = vunpack.c.h.b16 %v897
  %v973 = vunpack.c.l.b16 %v898
  %v974 = vunpack.c.h.b16 %v898
  %v975 = vunpack.c.l.b16 %v899
  %v976 = vunpack.c.h.b16 %v899
  %v977 = vunpack.c.l.b16 %v900
  %v978 = vunpack.c.h.b16 %v900
  %v979 = vunpack.c.l.b16 %v901
  %v980 = vunpack.c.h.b16 %v901
  %v981 = vunpack.c.l.b16 %v902
  %v982 = vunpack.c.h.b16 %v902
  %v983 = vunpack.c.l.b16 %v903
  %v984 = vunpack.c.h.b16 %v903
  %v985 = vunpack.c.l.b16 %v904
  %v986 = vunpack.c.h.b16 %v904
  %v987 = vunpack.c.l.b16 %v905
  %v988 = vunpack.c.h.b16 %v905
  %v989 = vunpack.c.l.b16 %v906
  %v990 = vunpack.c.h.b16 %v906
  %v991 = vunpack.c.l.b16 %v907
  %v992 = vunpack.c.h.b16 %v907
  %v993 = vunpack.c.l.b16 %v908
  %v994 = vunpack.c.h.b16 %v908
  %v995 = vunpack.c.l.b16 %v909
  %v996 = vunpack.c.h.b16 %v909
  %v997 = vunpack.c.l.b16 %v910
  %v998 = vunpack.c.h.b16 %v910
  %v999 = vunpack.c.l.b16 %v911
  %v1000 = vunpack.c.h.b16 %v911
  %v1001 = vunpack.c.l.b16 %v912
  %v1002 = vunpack.c.h.b16 %v912
  %v1003 = vunpack.c.l.b16 %v913
  %v1004 = vunpack.c.h.b16 %v913
  %v1005 = vunpack.c.l.b16 %v914
  %v1006 = vunpack.c.h.b16 %v914
  %v1007 = vunpack.c.l.b16 %v915
  %v1008 = vunpack.c.h.b16 %v915
  %v1009 = vunpack.c.l.b16 %v916
  %v1010 = vunpack.c.h.b16 %v916
  %v1011 = vunpack.c.l.b16 %v917
  %v1012 = vunpack.c.h.b16 %v917
  %v1013 = vunpack.c.l.b16 %v918
  %v1014 = vunpack.c.h.b16 %v918
  %v1015 = vpack.c.b16 %v951, %v951
  %v1016 = vpack.c.b16 %v952, %v952
  %v1017 = vpack.c.b16 %v953, %v953
  %v1018 = vpack.c.b16 %v954, %v954
  %v1019 = vpack.c.b16 %v955, %v955
  %v1020 = vpack.c.b16 %v956, %v956
  %v1021 = vpack.c.b16 %v957, %v957
  %v1022 = vpack.c.b16 %v958, %v958
  %v1023 = vpack.c.b16 %v959, %v959
  %v1024 = vpack.c.b16 %v960, %v960
  %v1025 = vpack.c.b16 %v961, %v961
  %v1026 = vpack.c.b16 %v962, %v962
  %v1027 = vpack.c.b16 %v963, %v963
  %v1028 = vpack.c.b16 %v964, %v964
  %v1029 = vpack.c.b16 %v965, %v965
  %v1030 = vpack.c.b16 %v966, %v966
  %v1031 = vpack.c.b16 %v967, %v967
  %v1032 = vpack.c.b16 %v968, %v968
  %v1033 = vpack.c.b16 %v969, %v969
  %v1034 = vpack.c.b16 %v970, %v970
  %v1035 = vpack.c.b16 %v971, %v971
  %v1036 = vpack.c.b16 %v972, %v972
  %v1037 = vpack.c.b16 %v973, %v973
  %v1038 = vpack.c.b16 %v974, %v974
  %v1039 = vpack.c.b16 %v975, %v975
  %v1040 = vpack.c.b16 %v976, %v976
  %v1041 = vpack.c.b16 %v977, %v977
  %v1042 = vpack.c.b16 %v978, %v978
  %v1043 = vpack.c.b16 %v979, %v979
  %v1044 = vpack.c.b16 %v980, %v980
  %v1045 = vpack.c.b16 %v981, %v981
  %v1046 = vpack.c.b16 %v982, %v982
  %v1047 = vpack.c.b16 %v983, %v983
  %v1048 = vpack.c.b16 %v984, %v984
  %v1049 = vpack.c.b16 %v985, %v985
  %v1050 = vpack.c.b16 %v986, %v986
  %v1051 = vpack.c.b16 %v987, %v987
  %v1052 = vpack.c.b16 %v988, %v988
  %v1053 = vpack.c.b16 %v989, %v989
  %v1054 = vpack.c.b16 %v990, %v990
  %v1055 = vpack.c.b16 %v991, %v991
  %v1056 = vpack.c.b16 %v992, %v992
  %v1057 = vpack.c.b16 %v993, %v993
  %v1058 = vpack.c.b16 %v994, %v994
  %v1059 = vpack.c.b16 %v995, %v995
  %v1060 = vpack.c.b16 %v996, %v996
  %v1061 = vpack.c.b16 %v997, %v997
  %v1062 = vpack.c.b16 %v998, %v998
  %v1063 = vpack.c.b16 %v999, %v999
  %v1064 = vpack.c.b16 %v1000, %v1000
  %v1065 = vpack.c.b16 %v1001, %v1001
  %v1066 = vpack.c.b16 %v1002, %v1002
  %v1067 = vpack.c.b16 %v1003, %v1003
  %v1068 = vpack.c.b16 %v1004, %v1004
  %v1069 = vpack.c.b16 %v1005, %v1005
  %v1070 = vpack.c.b16 %v1006, %v1006
  %v1071 = vpack.c.b16 %v1007, %v1007
  %v1072 = vpack.c.b16 %v1008, %v1008
  %v1073 = vpack.c.b16 %v1009, %v1009
  %v1074 = vpack.c.b16 %v1010, %v1010
  %v1075 = vpack.c.b16 %v1011, %v1011
  %v1076 = vpack.c.b16 %v1012, %v1012
  %v1077 = vpack.c.b16 %v1013, %v1013
  %v1078 = vpack.c.b16 %v1014, %v1014
  %1143 = vst [vmem:[%s3] sm:$0xf] %v1015
  %1144 = vst [vmem:[%s3 + $0x4] sm:$0xf] %v1016
  %1145 = vst [vmem:[%s3 + $0x8] sm:$0xf] %v1017
  %1146 = vst [vmem:[%s3 + $0xc] sm:$0xf] %v1018
  %1147 = vst [vmem:[%s3 + $0x10] sm:$0xf] %v1019
  %1148 = vst [vmem:[%s3 + $0x14] sm:$0xf] %v1020
  %1149 = vst [vmem:[%s3 + $0x18] sm:$0xf] %v1021
  %1150 = vst [vmem:[%s3 + $0x1c] sm:$0xf] %v1022
  %1151 = vst [vmem:[%s3 + $0x20] sm:$0xf] %v1023
  %1152 = vst [vmem:[%s3 + $0x24] sm:$0xf] %v1024
  %1153 = vst [vmem:[%s3 + $0x28] sm:$0xf] %v1025
  %1154 = vst [vmem:[%s3 + $0x2c] sm:$0xf] %v1026
  %1155 = vst [vmem:[%s3 + $0x30] sm:$0xf] %v1027
  %1156 = vst [vmem:[%s3 + $0x34] sm:$0xf] %v1028
  %1157 = vst [vmem:[%s3 + $0x38] sm:$0xf] %v1029
  %1158 = vst [vmem:[%s3 + $0x3c] sm:$0xf] %v1030
  %1159 = vst [vmem:[%s3 + $0x40] sm:$0xf] %v1031
  %1160 = vst [vmem:[%s3 + $0x44] sm:$0xf] %v1032
  %1161 = vst [vmem:[%s3 + $0x48] sm:$0xf] %v1033
  %1162 = vst [vmem:[%s3 + $0x4c] sm:$0xf] %v1034
  %1163 = vst [vmem:[%s3 + $0x50] sm:$0xf] %v1035
  %1164 = vst [vmem:[%s3 + $0x54] sm:$0xf] %v1036
  %1165 = vst [vmem:[%s3 + $0x58] sm:$0xf] %v1037
  %1166 = vst [vmem:[%s3 + $0x5c] sm:$0xf] %v1038
  %1167 = vst [vmem:[%s3 + $0x60] sm:$0xf] %v1039
  %1168 = vst [vmem:[%s3 + $0x64] sm:$0xf] %v1040
  %1169 = vst [vmem:[%s3 + $0x68] sm:$0xf] %v1041
  %1170 = vst [vmem:[%s3 + $0x6c] sm:$0xf] %v1042
  %1171 = vst [vmem:[%s3 + $0x70] sm:$0xf] %v1043
  %1172 = vst [vmem:[%s3 + $0x74] sm:$0xf] %v1044
  %1173 = vst [vmem:[%s3 + $0x78] sm:$0xf] %v1045
  %1174 = vst [vmem:[%s3 + $0x7c] sm:$0xf] %v1046
  %1175 = vst [vmem:[%s3 + $0x80] sm:$0xf] %v1047
  %1176 = vst [vmem:[%s3 + $0x84] sm:$0xf] %v1048
  %1177 = vst [vmem:[%s3 + $0x88] sm:$0xf] %v1049
  %1178 = vst [vmem:[%s3 + $0x8c] sm:$0xf] %v1050
  %1179 = vst [vmem:[%s3 + $0x90] sm:$0xf] %v1051
  %1180 = vst [vmem:[%s3 + $0x94] sm:$0xf] %v1052
  %1181 = vst [vmem:[%s3 + $0x98] sm:$0xf] %v1053
  %1182 = vst [vmem:[%s3 + $0x9c] sm:$0xf] %v1054
  %1183 = vst [vmem:[%s3 + $0xa0] sm:$0xf] %v1055
  %1184 = vst [vmem:[%s3 + $0xa4] sm:$0xf] %v1056
  %1185 = vst [vmem:[%s3 + $0xa8] sm:$0xf] %v1057
  %1186 = vst [vmem:[%s3 + $0xac] sm:$0xf] %v1058
  %1187 = vst [vmem:[%s3 + $0xb0] sm:$0xf] %v1059
  %1188 = vst [vmem:[%s3 + $0xb4] sm:$0xf] %v1060
  %1189 = vst [vmem:[%s3 + $0xb8] sm:$0xf] %v1061
  %1190 = vst [vmem:[%s3 + $0xbc] sm:$0xf] %v1062
  %1191 = vst [vmem:[%s3 + $0xc0] sm:$0xf] %v1063
  %1192 = vst [vmem:[%s3 + $0xc4] sm:$0xf] %v1064
  %1193 = vst [vmem:[%s3 + $0xc8] sm:$0xf] %v1065
  %1194 = vst [vmem:[%s3 + $0xcc] sm:$0xf] %v1066
  %1195 = vst [vmem:[%s3 + $0xd0] sm:$0xf] %v1067
  %1196 = vst [vmem:[%s3 + $0xd4] sm:$0xf] %v1068
  %1197 = vst [vmem:[%s3 + $0xd8] sm:$0xf] %v1069
  %1198 = vst [vmem:[%s3 + $0xdc] sm:$0xf] %v1070
  %1199 = vst [vmem:[%s3 + $0xe0] sm:$0xf] %v1071
  %1200 = vst [vmem:[%s3 + $0xe4] sm:$0xf] %v1072
  %1201 = vst [vmem:[%s3 + $0xe8] sm:$0xf] %v1073
  %1202 = vst [vmem:[%s3 + $0xec] sm:$0xf] %v1074
  %1203 = vst [vmem:[%s3 + $0xf0] sm:$0xf] %v1075
  %1204 = vst [vmem:[%s3 + $0xf4] sm:$0xf] %v1076
  %1205 = vst [vmem:[%s3 + $0xf8] sm:$0xf] %v1077
  %1206 = vst [vmem:[%s3 + $0xfc] sm:$0xf] %v1078
  // Predicated region
  $region14: #{net_forward.8} parent=0 // pred_check
    _
  $region15: #{net_forward.8} parent=0 // pred_check_branch
    %1208 = sbr.rel (0) target = $region17
  $region16: #{net_forward.8} parent=0 // pred_region
    _
  $region17: #{net_forward.8} parent=0 // pred_fallthru
    _
  // Predicated region
  $region18: #{net_forward.8} parent=0 // pred_check
    _
  $region19: #{net_forward.8} parent=0 // pred_check_branch
    %1210 = sbr.rel (0) target = $region21
  $region20: #{net_forward.8} parent=0 // pred_region
    _
  $region21: #{net_forward.8} parent=0 // pred_fallthru
    _

// kernel: net_forward.10
$region0: #{net_forward.10}
  #allocation0 [shape = 'u32[]', space=smem, size = 0x4, offset = 0x4, fixed_abs, tag = 'smem constant byte address 0x4 - core index']
  #allocation1 [shape = 'u32[144,128]{1,0:T(1,128)}', space=vmem, size = 0x12000, scoped, tag = 'internal scratch']
  %s0 = inlined_call_operand.vmem [shape: bf16[2,128,64], index: 0, kind: input, shape index: {}]
  %s1 = inlined_call_operand.vmem [shape: bf16[2,64,256], index: 1, kind: input, shape index: {}]
  %s2 = inlined_call_operand.vmem [shape: f32[2,1,256], index: 2, kind: input, shape index: {}]
  %s3 = inlined_call_operand.vmem [shape: bf16[2,128,256], index: 3, kind: output, shape index: {}]
  %s4 = sld [smem:[#allocation0]]
  $region45: #{net_forward.10} parent=0
    _
  %s6 = ssub.s32 1, %s4
  %s7 = scalar_select 0, %s6, %s4
  loop: start=0, step=1, limit=4
  $region2: #{net_forward.10} parent=0 // loop_pre_header
    _
  $region3: #{net_forward.10} parent=0 // loop_header
    %s9 = sphi 0, %s13
    %p10 = scmp.ge.s32.totalorder %s9, 4
    %s16 = sphi 0, %s35
    %s17 = sphi 0, %s31
    %s18 = sphi 0, %s27
    %s19 = sphi 0, %s16
    %s20 = sphi 0, %s17
    %s21 = sphi 0, %s18
    %s22 = sphi 0, %s19
    %s23 = sphi 0, %s20
    %s24 = sphi 0, %s21
    %s40 = sphi 0, %s42
    %s43 = sphi 0, %s40
    %s44 = sphi 0, %s43
    %s60 = sphi 0, %s44
    %s68 = sphi 0, %s70
    %s71 = sphi 0, %s68
    %s72 = sphi 0, %s71
    %s88 = sphi 0, %s72
    %s96 = sphi 0, %s98
    %s99 = sphi 0, %s96
    %s100 = sphi 0, %s99
    %s116 = sphi 0, %s100
    %s126 = sphi 0, %s128
    %s129 = sphi 0, %s126
    %s130 = sphi 0, %s129
    %s146 = sphi 0, %s130
  $region4: #{net_forward.10} parent=0 // loop_header_branch
    %12 = sbr.rel (%p10) target = $region8
  $region5: #{net_forward.10} parent=0 // loop_body
    %s14 = ssub.s32 %s9, 1
    %s15 = ssub.s32 %s9, 2
    %s25 = sadd.s32 1, %s18
    %p26 = scmp.ge.s32.totalorder %s25, 1
    %s27 = scalar_select %p26, 0, %s25
    %s28 = sadd.s32 1, %s17
    %s29 = scalar_select %p26, %s28, %s17
    %p30 = scmp.ge.s32.totalorder %s29, 1
    %s31 = scalar_select %p30, 0, %s29
    %s32 = sadd.s32 1, %s16
    %s33 = scalar_select %p30, %s32, %s16
    %p34 = scmp.ge.s32.totalorder %s33, 2
    %s35 = scalar_select %p34, 0, %s33
    %s36 = ssub.s32 %s16, %s35
    %s37 = ssub.s32 %s17, %s31
    %s38 = sor.u32 %s36, %s37
    %p39 = scmp.eq.s32.totalorder %s38, 0
    %s41 = sadd.s32 %s40, 1
    %s42 = scalar_select %p39, %s40, %s41
    %p45 = pneg %p39
    %p46 = scmp.eq.s32.totalorder %s9, 1
    %p47 = por %p45, %p46
    %p48 = scmp.ne.s32.totalorder %s40, %s43
    %p49 = scmp.eq.s32.totalorder %s9, 0
    %p50 = por %p48, %p49
    %p51 = scmp.ne.s32.totalorder %s40, %s43
    %p52 = scmp.eq.s32.totalorder %s14, 1
    %p53 = por %p51, %p52
    %p54 = scmp.ne.s32.totalorder %s43, %s44
    %p55 = scmp.eq.s32.totalorder %s14, 0
    %p56 = por %p54, %p55
    %p57 = scmp.ne.s32.totalorder %s43, %s44
    %p58 = scmp.eq.s32.totalorder %s15, 1
    %p59 = por %p57, %p58
    %p61 = scmp.ne.s32.totalorder %s44, %s60
    %p62 = scmp.eq.s32.totalorder %s15, 0
    %p63 = por %p61, %p62
    %s64 = ssub.s32 %s16, %s35
    %s65 = ssub.s32 %s18, %s27
    %s66 = sor.u32 %s64, %s65
    %p67 = scmp.eq.s32.totalorder %s66, 0
    %s69 = sadd.s32 %s68, 1
    %s70 = scalar_select %p67, %s68, %s69
    %p73 = pneg %p67
    %p74 = scmp.eq.s32.totalorder %s9, 1
    %p75 = por %p73, %p74
    %p76 = scmp.ne.s32.totalorder %s68, %s71
    %p77 = scmp.eq.s32.totalorder %s9, 0
    %p78 = por %p76, %p77
    %p79 = scmp.ne.s32.totalorder %s68, %s71
    %p80 = scmp.eq.s32.totalorder %s14, 1
    %p81 = por %p79, %p80
    %p82 = scmp.ne.s32.totalorder %s71, %s72
    %p83 = scmp.eq.s32.totalorder %s14, 0
    %p84 = por %p82, %p83
    %p85 = scmp.ne.s32.totalorder %s71, %s72
    %p86 = scmp.eq.s32.totalorder %s15, 1
    %p87 = por %p85, %p86
    %p89 = scmp.ne.s32.totalorder %s72, %s88
    %p90 = scmp.eq.s32.totalorder %s15, 0
    %p91 = por %p89, %p90
    %s92 = ssub.s32 %s16, %s35
    %s93 = ssub.s32 %s18, %s27
    %s94 = sor.u32 %s92, %s93
    %p95 = scmp.eq.s32.totalorder %s94, 0
    %s97 = sadd.s32 %s96, 1
    %s98 = scalar_select %p95, %s96, %s97
    %p101 = pneg %p95
    %p102 = scmp.eq.s32.totalorder %s9, 1
    %p103 = por %p101, %p102
    %p104 = scmp.ne.s32.totalorder %s96, %s99
    %p105 = scmp.eq.s32.totalorder %s9, 0
    %p106 = por %p104, %p105
    %p107 = scmp.ne.s32.totalorder %s96, %s99
    %p108 = scmp.eq.s32.totalorder %s14, 1
    %p109 = por %p107, %p108
    %p110 = scmp.ne.s32.totalorder %s99, %s100
    %p111 = scmp.eq.s32.totalorder %s14, 0
    %p112 = por %p110, %p111
    %p113 = scmp.ne.s32.totalorder %s99, %s100
    %p114 = scmp.eq.s32.totalorder %s15, 1
    %p115 = por %p113, %p114
    %p117 = scmp.ne.s32.totalorder %s100, %s116
    %p118 = scmp.eq.s32.totalorder %s15, 0
    %p119 = por %p117, %p118
    %s120 = ssub.s32 %s16, %s35
    %s121 = ssub.s32 %s17, %s31
    %s122 = sor.u32 %s120, %s121
    %s123 = ssub.s32 %s18, %s27
    %s124 = sor.u32 %s122, %s123
    %p125 = scmp.eq.s32.totalorder %s124, 0
    %s127 = sadd.s32 %s126, 1
    %s128 = scalar_select %p125, %s126, %s127
    %p131 = pneg %p125
    %p132 = scmp.eq.s32.totalorder %s9, 1
    %p133 = por %p131, %p132
    %p134 = scmp.ne.s32.totalorder %s126, %s129
    %p135 = scmp.eq.s32.totalorder %s9, 0
    %p136 = por %p134, %p135
    %p137 = scmp.ne.s32.totalorder %s126, %s129
    %p138 = scmp.eq.s32.totalorder %s14, 1
    %p139 = por %p137, %p138
    %p140 = scmp.ne.s32.totalorder %s129, %s130
    %p141 = scmp.eq.s32.totalorder %s14, 0
    %p142 = por %p140, %p141
    %p143 = scmp.ne.s32.totalorder %s129, %s130
    %p144 = scmp.eq.s32.totalorder %s15, 1
    %p145 = por %p143, %p144
    %p147 = scmp.ne.s32.totalorder %s130, %s146
    %p148 = scmp.eq.s32.totalorder %s15, 0
    %p149 = por %p147, %p148
    %p150 = scmp.le.s32.totalorder 1, %s9
    %p151 = scmp.lt.s32.totalorder %s9, 3
    %p152 = pnand %p150, %p151
    %p153 = pneg %p152
    // Predicated region
    $region9: #{net_forward.10} parent=5 // pred_check
      _
    $region10: #{net_forward.10} parent=5 // pred_check_branch
      %155 = sbr.rel (%p152) target = $region12
    $region11: #{net_forward.10} parent=5 // pred_region
      %s156 = ssub.s32 %s9, 1
    $region12: #{net_forward.10} parent=5 // pred_fallthru
      _
    %p157 = scmp.lt.s32.totalorder %s9, 2
    // Predicated region
    $region13: #{net_forward.10} parent=5 // pred_check
      %p158 = pneg %p157
    $region14: #{net_forward.10} parent=5 // pred_check_branch
      %160 = sbr.rel (%p158) target = $region16
    $region15: #{net_forward.10} parent=5 // pred_region
      // Predicated region
      $region17: #{net_forward.10} parent=15 // pred_check
        %p161 = pneg %p50
      $region18: #{net_forward.10} parent=15 // pred_check_branch
        %163 = sbr.rel (%p161) target = $region20
      $region19: #{net_forward.10} parent=15 // pred_region
        %s164 = smul.u32 16, %s17
        %p165 = scmp.lt.s32.totalorder %s16, 1
        %s166 = scalar_select %p165, %s16, 1
        %p167 = scmp.lt.s32.totalorder %s164, 15
        %s168 = scalar_select %p167, %s164, 15
        %s169 = smul.addr %s166, 16
        %s170 = sadd.s32 %s168, %s169
        %s171 = smul.addr %s170, 4
        %s172 = scalar_lea.vmem %s0, %s171
        %s173 = smul.u32 16, %s17
      $region20: #{net_forward.10} parent=15 // pred_fallthru
        _
      // Predicated region
      $region21: #{net_forward.10} parent=15 // pred_check
        %p174 = pneg %p78
      $region22: #{net_forward.10} parent=15 // pred_check_branch
        %176 = sbr.rel (%p174) target = $region24
      $region23: #{net_forward.10} parent=15 // pred_region
        %s177 = smul.u32 2, %s18
        %p178 = scmp.lt.s32.totalorder %s16, 1
        %s179 = scalar_select %p178, %s16, 1
        %p180 = scmp.lt.s32.totalorder %s177, 1
        %s181 = scalar_select %p180, %s177, 1
        %s182 = smul.addr %s179, 16
        %s183 = sadd.s32 %s181, %s182
        %s184 = smul.addr %s183, 4
        %s185 = scalar_lea.vmem %s1, %s184
        %s186 = smul.u32 2, %s18
      $region24: #{net_forward.10} parent=15 // pred_fallthru
        _
      // Predicated region
      $region25: #{net_forward.10} parent=15 // pred_check
        %p187 = pneg %p106
      $region26: #{net_forward.10} parent=15 // pred_check_branch
        %189 = sbr.rel (%p187) target = $region28
      $region27: #{net_forward.10} parent=15 // pred_region
        %s190 = smul.u32 2, %s18
        %p191 = scmp.lt.s32.totalorder %s16, 1
        %s192 = scalar_select %p191, %s16, 1
        %p193 = scmp.lt.s32.totalorder %s190, 1
        %s194 = scalar_select %p193, %s190, 1
        %s195 = smul.addr %s192, 2
        %s196 = sadd.s32 %s194, %s195
        %s197 = scalar_lea.vmem %s2, %s196
        %s198 = smul.u32 2, %s18
      $region28: #{net_forward.10} parent=15 // pred_fallthru
        _
    $region16: #{net_forward.10} parent=5 // pred_fallthru
      _
    %p199 = scmp.le.s32.totalorder 1, %s9
    %p200 = scmp.lt.s32.totalorder %s9, 3
    %p201 = pnand %p199, %p200
    %p202 = pneg %p201
    // Predicated region
    $region29: #{net_forward.10} parent=5 // pred_check
      _
    $region30: #{net_forward.10} parent=5 // pred_check_branch
      %204 = sbr.rel (%p201) target = $region32
    $region31: #{net_forward.10} parent=5 // pred_region
      %s205 = ssub.s32 %s9, 1
      %s206 = smul.u32 16, %s20
      %p207 = scmp.lt.s32.totalorder %s19, 1
      %s208 = scalar_select %p207, %s19, 1
      %p209 = scmp.lt.s32.totalorder %s206, 15
      %s210 = scalar_select %p209, %s206, 15
      %s211 = smul.addr %s208, 16
      %s212 = sadd.s32 %s210, %s211
      %s213 = smul.addr %s212, 4
      %s214 = scalar_lea.vmem %s0, %s213
      %p215 = pneg %p56
      %p216 = pneg %p53
      %s217 = smul.u32 2, %s21
      %p218 = scmp.lt.s32.totalorder %s19, 1
      %s219 = scalar_select %p218, %s19, 1
      %p220 = scmp.lt.s32.totalorder %s217, 1
      %s221 = scalar_select %p220, %s217, 1
      %s222 = smul.addr %s219, 16
      %s223 = sadd.s32 %s221, %s222
      %s224 = smul.addr %s223, 4
      %s225 = scalar_lea.vmem %s1, %s224
      %p226 = pneg %p84
      %p227 = pneg %p81
      %s228 = smul.u32 2, %s21
      %p229 = scmp.lt.s32.totalorder %s19, 1
      %s230 = scalar_select %p229, %s19, 1
      %p231 = scmp.lt.s32.totalorder %s228, 1
      %s232 = scalar_select %p231, %s228, 1
      %s233 = smul.addr %s230, 2
      %s234 = sadd.s32 %s232, %s233
      %s235 = scalar_lea.vmem %s2, %s234
      %p236 = pneg %p112
      %p237 = pneg %p109
      %p238 = pneg %p142
      %p239 = pneg %p139
      %s240 = smul.u32 16, %s20
      %s241 = smul.u32 2, %s21
      %p242 = scmp.lt.s32.totalorder %s19, 1
      %s243 = scalar_select %p242, %s19, 1
      %p244 = scmp.lt.s32.totalorder %s240, 15
      %s245 = scalar_select %p244, %s240, 15
      %p246 = scmp.lt.s32.totalorder %s241, 1
      %s247 = scalar_select %p246, %s241, 1
      %s248 = smul.addr %s245, 2
      %s249 = sadd.s32 %s247, %s248
      %s250 = smul.addr %s243, 32
      %s251 = sadd.s32 %s249, %s250
      %s252 = smul.addr %s251, 4
      %s253 = scalar_lea.vmem %s3, %s252
      %s254 = smul.u32 16, %s20
      %p255 = scmp.lt.s32.totalorder %s19, 1
      %s256 = scalar_select %p255, %s19, 1
      %p257 = scmp.lt.s32.totalorder %s254, 15
      %s258 = scalar_select %p257, %s254, 15
      %s259 = smul.addr %s256, 16
      %s260 = sadd.s32 %s258, %s259
      %s261 = smul.addr %s260, 4
      %s262 = scalar_lea.vmem %s0, %s261
      %s263 = smul.u32 16, %s20
      %s264 = smul.u32 2, %s21
      %p265 = scmp.lt.s32.totalorder %s19, 1
      %s266 = scalar_select %p265, %s19, 1
      %p267 = scmp.lt.s32.totalorder %s264, 1
      %s268 = scalar_select %p267, %s264, 1
      %s269 = smul.addr %s266, 16
      %s270 = sadd.s32 %s268, %s269
      %s271 = smul.addr %s270, 4
      %s272 = scalar_lea.vmem %s1, %s271
      %s273 = smul.u32 2, %s21
      %s274 = smul.u32 2, %s21
      %p275 = scmp.lt.s32.totalorder %s19, 1
      %s276 = scalar_select %p275, %s19, 1
      %p277 = scmp.lt.s32.totalorder %s274, 1
      %s278 = scalar_select %p277, %s274, 1
      %s279 = smul.addr %s276, 2
      %s280 = sadd.s32 %s278, %s279
      %s281 = scalar_lea.vmem %s2, %s280
      %s282 = smul.u32 2, %s21
      %s283 = smul.u32 16, %s20
      %s284 = smul.u32 2, %s21
      %p285 = scmp.lt.s32.totalorder %s19, 1
      %s286 = scalar_select %p285, %s19, 1
      %p287 = scmp.lt.s32.totalorder %s283, 15
      %s288 = scalar_select %p287, %s283, 15
      %p289 = scmp.lt.s32.totalorder %s284, 1
      %s290 = scalar_select %p289, %s284, 1
      %s291 = smul.addr %s288, 2
      %s292 = sadd.s32 %s290, %s291
      %s293 = smul.addr %s286, 32
      %s294 = sadd.s32 %s292, %s293
      %s295 = smul.addr %s294, 4
      %s296 = scalar_lea.vmem %s3, %s295
      %s297 = smul.u32 16, %s20
      %s298 = smul.u32 2, %s21
      %v300 = vld [vmem:[%s262] sm:$0xf]
      %v301 = vld [vmem:[%s262 + $0x4] sm:$0xf]
      %v302 = vld [vmem:[%s262 + $0x8] sm:$0xf]
      %v303 = vld [vmem:[%s262 + $0xc] sm:$0xf]
      %v304 = vld [vmem:[%s262 + $0x10] sm:$0xf]
      %v305 = vld [vmem:[%s262 + $0x14] sm:$0xf]
      %v306 = vld [vmem:[%s262 + $0x18] sm:$0xf]
      %v307 = vld [vmem:[%s262 + $0x1c] sm:$0xf]
      %v308 = vld [vmem:[%s262 + $0x20] sm:$0xf]
      %v309 = vld [vmem:[%s262 + $0x24] sm:$0xf]
      %v310 = vld [vmem:[%s262 + $0x28] sm:$0xf]
      %v311 = vld [vmem:[%s262 + $0x2c] sm:$0xf]
      %v312 = vld [vmem:[%s262 + $0x30] sm:$0xf]
      %v313 = vld [vmem:[%s262 + $0x34] sm:$0xf]
      %v314 = vld [vmem:[%s262 + $0x38] sm:$0xf]
      %v315 = vld [vmem:[%s262 + $0x3c] sm:$0xf]
      %v316 = vld [vmem:[%s272] sm:$0xff]
      %v317 = vld [vmem:[%s272 + $0x8] sm:$0xff]
      %v318 = vld [vmem:[%s272 + $0x10] sm:$0xff]
      %v319 = vld [vmem:[%s272 + $0x18] sm:$0xff]
      %v320 = vld [vmem:[%s272 + $0x20] sm:$0xff]
      %v321 = vld [vmem:[%s272 + $0x28] sm:$0xff]
      %v322 = vld [vmem:[%s272 + $0x30] sm:$0xff]
      %v323 = vld [vmem:[%s272 + $0x38] sm:$0xff]
      %v324 = vld [vmem:[%s281] sm:$0x3]
      %v326 = vlaneseq
      %v327 = vshrl.u32 %v326, 7
      %v328 = vsub.s32 0, %v327
      %v329 = vrot.slane %v324, %v328
      %v330 = vlaneseq
      %v331 = vshrl.u32 %v330, 7
      %v332 = vsub.s32 1, %v331
      %v333 = vrot.slane %v324, %v332
      %v352 = vunpack.c.l.b16 %v300
      %v353 = vunpack.c.l.b16 %v301
      %v354 = vunpack.c.l.b16 %v302
      %v355 = vunpack.c.l.b16 %v303
      %v356 = vunpack.c.l.b16 %v304
      %v357 = vunpack.c.l.b16 %v305
      %v358 = vunpack.c.l.b16 %v306
      %v359 = vunpack.c.l.b16 %v307
      %v360 = vunpack.c.l.b16 %v308
      %v361 = vunpack.c.l.b16 %v309
      %v362 = vunpack.c.l.b16 %v310
      %v363 = vunpack.c.l.b16 %v311
      %v364 = vunpack.c.l.b16 %v312
      %v365 = vunpack.c.l.b16 %v313
      %v366 = vunpack.c.l.b16 %v314
      %v367 = vunpack.c.l.b16 %v315
      %v368 = vpack.c.b16 %v353, %v352
      %v369 = vpack.c.b16 %v355, %v354
      %v370 = vpack.c.b16 %v357, %v356
      %v371 = vpack.c.b16 %v359, %v358
      %v372 = vpack.c.b16 %v361, %v360
      %v373 = vpack.c.b16 %v363, %v362
      %v374 = vpack.c.b16 %v365, %v364
      %v375 = vpack.c.b16 %v367, %v366
      %v384 = vunpack.c.l.b16 %v316
      %v385 = vunpack.c.h.b16 %v316
      %v386 = vunpack.c.l.b16 %v317
      %v387 = vunpack.c.h.b16 %v317
      %v388 = vunpack.c.l.b16 %v318
      %v389 = vunpack.c.h.b16 %v318
      %v390 = vunpack.c.l.b16 %v319
      %v391 = vunpack.c.h.b16 %v319
      %v392 = vunpack.c.l.b16 %v320
      %v393 = vunpack.c.h.b16 %v320
      %v394 = vunpack.c.l.b16 %v321
      %v395 = vunpack.c.h.b16 %v321
      %v396 = vunpack.c.l.b16 %v322
      %v397 = vunpack.c.h.b16 %v322
      %v398 = vunpack.c.l.b16 %v323
      %v399 = vunpack.c.h.b16 %v323
      %v400 = vpack.c.b16 %v386, %v384
      %v401 = vpack.c.b16 %v387, %v385
      %v402 = vpack.c.b16 %v390, %v388
      %v403 = vpack.c.b16 %v391, %v389
      %v404 = vpack.c.b16 %v394, %v392
      %v405 = vpack.c.b16 %v395, %v393
      %v406 = vpack.c.b16 %v398, %v396
      %v407 = vpack.c.b16 %v399, %v397
      %vm416 = vcmask 523264
      %v418 = vsel %vm416, %v368, 0
      %v421 = vsel %vm416, %v369, 0
      %v424 = vsel %vm416, %v370, 0
      %v427 = vsel %vm416, %v371, 0
      %v430 = vsel %vm416, %v372, 0
      %v433 = vsel %vm416, %v373, 0
      %v436 = vsel %vm416, %v374, 0
      %v439 = vsel %vm416, %v375, 0
      %441 = vmatprep.subr.bf16.mxu0 0
      %442 = vmatpush1.bf16.msra.mxu0 0
      %443 = vmatprep.subr.bf16.mxu0 0
      %444 = vmatpush1.bf16.msra.mxu0 0
      %445 = vmatprep.subr.bf16.mxu0 0
      %446 = vmatpush1.bf16.msra.mxu0 0
      %447 = vmatprep.subr.bf16.mxu0 0
      %448 = vmatpush1.bf16.msra.mxu0 0
      %449 = vmatprep.subr.bf16.mxu0 %v407
      %450 = vmatpush1.bf16.msra.mxu0 %v406
      %451 = vmatprep.subr.bf16.mxu0 %v405
      %452 = vmatpush1.bf16.msra.mxu0 %v404
      %453 = vmatprep.subr.bf16.mxu0 %v403
      %454 = vmatpush1.bf16.msra.mxu0 %v402
      %455 = vmatprep.subr.bf16.mxu0 %v401
      %456 = vmatpush1.bf16.msra.mxu0 %v400
      %457 = vmatprep.subr.bf16.mxu0 0
      %458 = vmatpush2.bf16.msra.mxu0 0
      %459 = vmatprep.subr.bf16.mxu0 0
      %460 = vmatpush2.bf16.msra.mxu0 0
      %461 = vmatprep.subr.bf16.mxu0 0
      %462 = vmatpush2.bf16.msra.mxu0 0
      %463 = vmatprep.subr.bf16.mxu0 0
      %464 = vmatpush2.bf16.msra.mxu0 0
      %465 = vmatprep.subr.bf16.mxu0 0
      %466 = vmatpush2.bf16.msra.mxu0 0
      %467 = vmatprep.subr.bf16.mxu0 0
      %468 = vmatpush2.bf16.msra.mxu0 0
      %469 = vmatprep.subr.bf16.mxu0 0
      %470 = vmatpush2.bf16.msra.mxu0 0
      %471 = vmatprep.subr.bf16.mxu0 0
      %472 = vmatpush2.bf16.msra.mxu0 0
      %473 = vmatprep.mubr.bf16.mxu0 0
      %474 = vmatmul.mubr.bf16.gmra.mxu0 %v418
      %v475 = vpop.f32.mrf.mxu0
      %v476 = vadd.f32 %v329, %v475
      %v477 = vpop.f32.mrf.mxu0
      %v478 = vadd.f32 %v333, %v477
      %v479 = vpop.f32.mrf.mxu0
      %v480 = vadd.f32 %v329, %v479
      %v481 = vpop.f32.mrf.mxu0
      %v482 = vadd.f32 %v333, %v481
      %483 = vmatprep.mubr.bf16.mxu0 0
      %484 = vmatmul.mubr.bf16.gmra.mxu0 %v421
      %v485 = vpop.f32.mrf.mxu0
      %v486 = vadd.f32 %v329, %v485
      %v487 = vpop.f32.mrf.mxu0
      %v488 = vadd.f32 %v333, %v487
      %v489 = vpop.f32.mrf.mxu0
      %v490 = vadd.f32 %v329, %v489
      %v491 = vpop.f32.mrf.mxu0
      %v492 = vadd.f32 %v333, %v491
      %493 = vmatprep.mubr.bf16.mxu0 0
      %494 = vmatmul.mubr.bf16.gmra.mxu0 %v424
      %v495 = vpop.f32.mrf.mxu0
      %v496 = vadd.f32 %v329, %v495
      %v497 = vpop.f32.mrf.mxu0
      %v498 = vadd.f32 %v333, %v497
      %v499 = vpop.f32.mrf.mxu0
      %v500 = vadd.f32 %v329, %v499
      %v501 = vpop.f32.mrf.mxu0
      %v502 = vadd.f32 %v333, %v501
      %503 = vmatprep.mubr.bf16.mxu0 0
      %504 = vmatmul.mubr.bf16.gmra.mxu0 %v427
      %v505 = vpop.f32.mrf.mxu0
      %v506 = vadd.f32 %v329, %v505
      %v507 = vpop.f32.mrf.mxu0
      %v508 = vadd.f32 %v333, %v507
      %v509 = vpop.f32.mrf.mxu0
      %v510 = vadd.f32 %v329, %v509
      %v511 = vpop.f32.mrf.mxu0
      %v512 = vadd.f32 %v333, %v511
      %513 = vmatprep.mubr.bf16.mxu0 0
      %514 = vmatmul.mubr.bf16.gmra.mxu0 %v430
      %v515 = vpop.f32.mrf.mxu0
      %v516 = vadd.f32 %v329, %v515
      %v517 = vpop.f32.mrf.mxu0
      %v518 = vadd.f32 %v333, %v517
      %v519 = vpop.f32.mrf.mxu0
      %v520 = vadd.f32 %v329, %v519
      %v521 = vpop.f32.mrf.mxu0
      %v522 = vadd.f32 %v333, %v521
      %523 = vmatprep.mubr.bf16.mxu0 0
      %524 = vmatmul.mubr.bf16.gmra.mxu0 %v433
      %v525 = vpop.f32.mrf.mxu0
      %v526 = vadd.f32 %v329, %v525
      %v527 = vpop.f32.mrf.mxu0
      %v528 = vadd.f32 %v333, %v527
      %v529 = vpop.f32.mrf.mxu0
      %v530 = vadd.f32 %v329, %v529
      %v531 = vpop.f32.mrf.mxu0
      %v532 = vadd.f32 %v333, %v531
      %533 = vmatprep.mubr.bf16.mxu0 0
      %534 = vmatmul.mubr.bf16.gmra.mxu0 %v436
      %v535 = vpop.f32.mrf.mxu0
      %v536 = vadd.f32 %v329, %v535
      %v537 = vpop.f32.mrf.mxu0
      %v538 = vadd.f32 %v333, %v537
      %v539 = vpop.f32.mrf.mxu0
      %v540 = vadd.f32 %v329, %v539
      %v541 = vpop.f32.mrf.mxu0
      %v542 = vadd.f32 %v333, %v541
      %543 = vmatprep.mubr.bf16.mxu0 0
      %544 = vmatmul.mubr.bf16.gmra.mxu0 %v439
      %v545 = vpop.f32.mrf.mxu0
      %v546 = vadd.f32 %v329, %v545
      %v547 = vpop.f32.mrf.mxu0
      %v548 = vadd.f32 %v333, %v547
      %v549 = vpop.f32.mrf.mxu0
      %v550 = vadd.f32 %v329, %v549
      %v551 = vpop.f32.mrf.mxu0
      %v552 = vadd.f32 %v333, %v551
      %553 = vdwg.mxu0
      %v554 = vmax.f32 %v476, 0.0
      %v555 = vmax.f32 %v478, 0.0
      %v556 = vmax.f32 %v480, 0.0
      %v557 = vmax.f32 %v482, 0.0
      %v558 = vmax.f32 %v486, 0.0
      %v559 = vmax.f32 %v488, 0.0
      %v560 = vmax.f32 %v490, 0.0
      %v561 = vmax.f32 %v492, 0.0
      %v562 = vmax.f32 %v496, 0.0
      %v563 = vmax.f32 %v498, 0.0
      %v564 = vmax.f32 %v500, 0.0
      %v565 = vmax.f32 %v502, 0.0
      %v566 = vmax.f32 %v506, 0.0
      %v567 = vmax.f32 %v508, 0.0
      %v568 = vmax.f32 %v510, 0.0
      %v569 = vmax.f32 %v512, 0.0
      %v570 = vmax.f32 %v516, 0.0
      %v571 = vmax.f32 %v518, 0.0
      %v572 = vmax.f32 %v520, 0.0
      %v573 = vmax.f32 %v522, 0.0
      %v574 = vmax.f32 %v526, 0.0
      %v575 = vmax.f32 %v528, 0.0
      %v576 = vmax.f32 %v530, 0.0
      %v577 = vmax.f32 %v532, 0.0
      %v578 = vmax.f32 %v536, 0.0
      %v579 = vmax.f32 %v538, 0.0
      %v580 = vmax.f32 %v540, 0.0
      %v581 = vmax.f32 %v542, 0.0
      %v582 = vmax.f32 %v546, 0.0
      %v583 = vmax.f32 %v548, 0.0
      %v584 = vmax.f32 %v550, 0.0
      %v585 = vmax.f32 %v552, 0.0
      %v586 = vpack.c.bf16 %v556, %v554
      %v587 = vpack.c.bf16 %v557, %v555
      %v588 = vpack.c.bf16 %v560, %v558
      %v589 = vpack.c.bf16 %v561, %v559
      %v590 = vpack.c.bf16 %v564, %v562
      %v591 = vpack.c.bf16 %v565, %v563
      %v592 = vpack.c.bf16 %v568, %v566
      %v593 = vpack.c.bf16 %v569, %v567
      %v594 = vpack.c.bf16 %v572, %v570
      %v595 = vpack.c.bf16 %v573, %v571
      %v596 = vpack.c.bf16 %v576, %v574
      %v597 = vpack.c.bf16 %v577, %v575
      %v598 = vpack.c.bf16 %v580, %v578
      %v599 = vpack.c.bf16 %v581, %v579
      %v600 = vpack.c.bf16 %v584, %v582
      %v601 = vpack.c.bf16 %v585, %v583
      %v618 = vunpack.c.l.b16 %v586
      %v619 = vunpack.c.l.b16 %v587
      %v620 = vunpack.c.h.b16 %v586
      %v621 = vunpack.c.h.b16 %v587
      %v622 = vunpack.c.l.b16 %v588
      %v623 = vunpack.c.l.b16 %v589
      %v624 = vunpack.c.h.b16 %v588
      %v625 = vunpack.c.h.b16 %v589
      %v626 = vunpack.c.l.b16 %v590
      %v627 = vunpack.c.l.b16 %v591
      %v628 = vunpack.c.h.b16 %v590
      %v629 = vunpack.c.h.b16 %v591
      %v630 = vunpack.c.l.b16 %v592
      %v631 = vunpack.c.l.b16 %v593
      %v632 = vunpack.c.h.b16 %v592
      %v633 = vunpack.c.h.b16 %v593
      %v634 = vunpack.c.l.b16 %v594
      %v635 = vunpack.c.l.b16 %v595
      %v636 = vunpack.c.h.b16 %v594
      %v637 = vunpack.c.h.b16 %v595
      %v638 = vunpack.c.l.b16 %v596
      %v639 = vunpack.c.l.b16 %v597
      %v640 = vunpack.c.h.b16 %v596
      %v641 = vunpack.c.h.b16 %v597
      %v642 = vunpack.c.l.b16 %v598
      %v643 = vunpack.c.l.b16 %v599
      %v644 = vunpack.c.h.b16 %v598
      %v645 = vunpack.c.h.b16 %v599
      %v646 = vunpack.c.l.b16 %v600
      %v647 = vunpack.c.l.b16 %v601
      %v648 = vunpack.c.h.b16 %v600
      %v649 = vunpack.c.h.b16 %v601
      %v650 = vpack.c.b16 %v619, %v618
      %v651 = vpack.c.b16 %v621, %v620
      %v652 = vpack.c.b16 %v623, %v622
      %v653 = vpack.c.b16 %v625, %v624
      %v654 = vpack.c.b16 %v627, %v626
      %v655 = vpack.c.b16 %v629, %v628
      %v656 = vpack.c.b16 %v631, %v630
      %v657 = vpack.c.b16 %v633, %v632
      %v658 = vpack.c.b16 %v635, %v634
      %v659 = vpack.c.b16 %v637, %v636
      %v660 = vpack.c.b16 %v639, %v638
      %v661 = vpack.c.b16 %v641, %v640
      %v662 = vpack.c.b16 %v643, %v642
      %v663 = vpack.c.b16 %v645, %v644
      %v664 = vpack.c.b16 %v647, %v646
      %v665 = vpack.c.b16 %v649, %v648
      %682 = vst [vmem:[%s296] sm:$0xff] %v650
      %683 = vst [vmem:[%s296 + $0x8] sm:$0xff] %v651
      %684 = vst [vmem:[%s296 + $0x10] sm:$0xff] %v652
      %685 = vst [vmem:[%s296 + $0x18] sm:$0xff] %v653
      %686 = vst [vmem:[%s296 + $0x20] sm:$0xff] %v654
      %687 = vst [vmem:[%s296 + $0x28] sm:$0xff] %v655
      %688 = vst [vmem:[%s296 + $0x30] sm:$0xff] %v656
      %689 = vst [vmem:[%s296 + $0x38] sm:$0xff] %v657
      %690 = vst [vmem:[%s296 + $0x40] sm:$0xff] %v658
      %691 = vst [vmem:[%s296 + $0x48] sm:$0xff] %v659
      %692 = vst [vmem:[%s296 + $0x50] sm:$0xff] %v660
      %693 = vst [vmem:[%s296 + $0x58] sm:$0xff] %v661
      %694 = vst [vmem:[%s296 + $0x60] sm:$0xff] %v662
      %695 = vst [vmem:[%s296 + $0x68] sm:$0xff] %v663
      %696 = vst [vmem:[%s296 + $0x70] sm:$0xff] %v664
      %697 = vst [vmem:[%s296 + $0x78] sm:$0xff] %v665
      %s698 = smul.u32 16, %s20
      %s699 = smul.u32 2, %s21
      %p700 = scmp.lt.s32.totalorder %s19, 1
      %s701 = scalar_select %p700, %s19, 1
      %p702 = scmp.lt.s32.totalorder %s698, 15
      %s703 = scalar_select %p702, %s698, 15
      %p704 = scmp.lt.s32.totalorder %s699, 1
      %s705 = scalar_select %p704, %s699, 1
      %s706 = smul.addr %s703, 2
      %s707 = sadd.s32 %s705, %s706
      %s708 = smul.addr %s701, 32
      %s709 = sadd.s32 %s707, %s708
      %s710 = smul.addr %s709, 4
      %s711 = scalar_lea.vmem %s3, %s710
      // Predicated region
      $region33: #{net_forward.10} parent=31 // pred_check
        %p712 = pneg %p139
      $region34: #{net_forward.10} parent=31 // pred_check_branch
        %714 = sbr.rel (%p712) target = $region36
      $region35: #{net_forward.10} parent=31 // pred_region
        %s715 = smul.u32 16, %s20
        %s716 = smul.u32 2, %s21
      $region36: #{net_forward.10} parent=31 // pred_fallthru
        _
    $region32: #{net_forward.10} parent=5 // pred_fallthru
      _
    %p717 = scmp.le.s32.totalorder 2, %s9
    // Predicated region
    $region37: #{net_forward.10} parent=5 // pred_check
      %p718 = pneg %p717
    $region38: #{net_forward.10} parent=5 // pred_check_branch
      %720 = sbr.rel (%p718) target = $region40
    $region39: #{net_forward.10} parent=5 // pred_region
      %s721 = ssub.s32 %s9, 2
      // Predicated region
      $region41: #{net_forward.10} parent=39 // pred_check
        %p722 = pneg %p145
      $region42: #{net_forward.10} parent=39 // pred_check_branch
        %724 = sbr.rel (%p722) target = $region44
      $region43: #{net_forward.10} parent=39 // pred_region
        %s725 = smul.u32 16, %s23
        %s726 = smul.u32 2, %s24
        %p727 = scmp.lt.s32.totalorder %s22, 1
        %s728 = scalar_select %p727, %s22, 1
        %p729 = scmp.lt.s32.totalorder %s725, 15
        %s730 = scalar_select %p729, %s725, 15
        %p731 = scmp.lt.s32.totalorder %s726, 1
        %s732 = scalar_select %p731, %s726, 1
        %s733 = smul.addr %s730, 2
        %s734 = sadd.s32 %s732, %s733
        %s735 = smul.addr %s728, 32
        %s736 = sadd.s32 %s734, %s735
        %s737 = smul.addr %s736, 4
        %s738 = scalar_lea.vmem %s3, %s737
      $region44: #{net_forward.10} parent=39 // pred_fallthru
        _
    $region40: #{net_forward.10} parent=5 // pred_fallthru
      _
  $region6: #{net_forward.10} parent=0 // loop_footer
    %s13 = sadd.s32 1, %s9
  $region7: #{net_forward.10} parent=0 // loop_footer_branch
    %8 = sbr.rel target = $region3
  $region8: #{net_forward.10} parent=0 // loop_exit
    _

// kernel: net_forward.11
$region0: #{net_forward.11}
  #allocation0 [shape = 'u32[]', space=smem, size = 0x4, offset = 0x4, fixed_abs, tag = 'smem constant byte address 0x4 - core index']
  #allocation1 [shape = 'u32[144,128]{1,0:T(1,128)}', space=vmem, size = 0x12000, scoped, tag = 'internal scratch']
  %s0 = inlined_call_operand.vmem [shape: bf16[2,32,256], index: 0, kind: input, shape index: {}]
  %s1 = inlined_call_operand.vmem [shape: bf16[2,256,512], index: 1, kind: input, shape index: {}]
  %s2 = inlined_call_operand.vmem [shape: f32[2,1,512], index: 2, kind: input, shape index: {}]
  %s3 = inlined_call_operand.vmem [shape: bf16[2,32,512], index: 3, kind: output, shape index: {}]
  %s4 = sld [smem:[#allocation0]]
  $region45: #{net_forward.11} parent=0
    _
  %s6 = ssub.s32 1, %s4
  %s7 = scalar_select 0, %s6, %s4
  loop: start=0, step=1, limit=4
  $region2: #{net_forward.11} parent=0 // loop_pre_header
    _
  $region3: #{net_forward.11} parent=0 // loop_header
    %s9 = sphi 0, %s13
    %p10 = scmp.ge.s32.totalorder %s9, 4
    %s16 = sphi 0, %s35
    %s17 = sphi 0, %s31
    %s18 = sphi 0, %s27
    %s19 = sphi 0, %s16
    %s20 = sphi 0, %s17
    %s21 = sphi 0, %s18
    %s22 = sphi 0, %s19
    %s23 = sphi 0, %s20
    %s24 = sphi 0, %s21
    %s40 = sphi 0, %s42
    %s43 = sphi 0, %s40
    %s44 = sphi 0, %s43
    %s60 = sphi 0, %s44
    %s68 = sphi 0, %s70
    %s71 = sphi 0, %s68
    %s72 = sphi 0, %s71
    %s88 = sphi 0, %s72
    %s96 = sphi 0, %s98
    %s99 = sphi 0, %s96
    %s100 = sphi 0, %s99
    %s116 = sphi 0, %s100
    %s126 = sphi 0, %s128
    %s129 = sphi 0, %s126
    %s130 = sphi 0, %s129
    %s146 = sphi 0, %s130
  $region4: #{net_forward.11} parent=0 // loop_header_branch
    %12 = sbr.rel (%p10) target = $region8
  $region5: #{net_forward.11} parent=0 // loop_body
    %s14 = ssub.s32 %s9, 1
    %s15 = ssub.s32 %s9, 2
    %s25 = sadd.s32 1, %s18
    %p26 = scmp.ge.s32.totalorder %s25, 1
    %s27 = scalar_select %p26, 0, %s25
    %s28 = sadd.s32 1, %s17
    %s29 = scalar_select %p26, %s28, %s17
    %p30 = scmp.ge.s32.totalorder %s29, 1
    %s31 = scalar_select %p30, 0, %s29
    %s32 = sadd.s32 1, %s16
    %s33 = scalar_select %p30, %s32, %s16
    %p34 = scmp.ge.s32.totalorder %s33, 2
    %s35 = scalar_select %p34, 0, %s33
    %s36 = ssub.s32 %s16, %s35
    %s37 = ssub.s32 %s17, %s31
    %s38 = sor.u32 %s36, %s37
    %p39 = scmp.eq.s32.totalorder %s38, 0
    %s41 = sadd.s32 %s40, 1
    %s42 = scalar_select %p39, %s40, %s41
    %p45 = pneg %p39
    %p46 = scmp.eq.s32.totalorder %s9, 1
    %p47 = por %p45, %p46
    %p48 = scmp.ne.s32.totalorder %s40, %s43
    %p49 = scmp.eq.s32.totalorder %s9, 0
    %p50 = por %p48, %p49
    %p51 = scmp.ne.s32.totalorder %s40, %s43
    %p52 = scmp.eq.s32.totalorder %s14, 1
    %p53 = por %p51, %p52
    %p54 = scmp.ne.s32.totalorder %s43, %s44
    %p55 = scmp.eq.s32.totalorder %s14, 0
    %p56 = por %p54, %p55
    %p57 = scmp.ne.s32.totalorder %s43, %s44
    %p58 = scmp.eq.s32.totalorder %s15, 1
    %p59 = por %p57, %p58
    %p61 = scmp.ne.s32.totalorder %s44, %s60
    %p62 = scmp.eq.s32.totalorder %s15, 0
    %p63 = por %p61, %p62
    %s64 = ssub.s32 %s16, %s35
    %s65 = ssub.s32 %s18, %s27
    %s66 = sor.u32 %s64, %s65
    %p67 = scmp.eq.s32.totalorder %s66, 0
    %s69 = sadd.s32 %s68, 1
    %s70 = scalar_select %p67, %s68, %s69
    %p73 = pneg %p67
    %p74 = scmp.eq.s32.totalorder %s9, 1
    %p75 = por %p73, %p74
    %p76 = scmp.ne.s32.totalorder %s68, %s71
    %p77 = scmp.eq.s32.totalorder %s9, 0
    %p78 = por %p76, %p77
    %p79 = scmp.ne.s32.totalorder %s68, %s71
    %p80 = scmp.eq.s32.totalorder %s14, 1
    %p81 = por %p79, %p80
    %p82 = scmp.ne.s32.totalorder %s71, %s72
    %p83 = scmp.eq.s32.totalorder %s14, 0
    %p84 = por %p82, %p83
    %p85 = scmp.ne.s32.totalorder %s71, %s72
    %p86 = scmp.eq.s32.totalorder %s15, 1
    %p87 = por %p85, %p86
    %p89 = scmp.ne.s32.totalorder %s72, %s88
    %p90 = scmp.eq.s32.totalorder %s15, 0
    %p91 = por %p89, %p90
    %s92 = ssub.s32 %s16, %s35
    %s93 = ssub.s32 %s18, %s27
    %s94 = sor.u32 %s92, %s93
    %p95 = scmp.eq.s32.totalorder %s94, 0
    %s97 = sadd.s32 %s96, 1
    %s98 = scalar_select %p95, %s96, %s97
    %p101 = pneg %p95
    %p102 = scmp.eq.s32.totalorder %s9, 1
    %p103 = por %p101, %p102
    %p104 = scmp.ne.s32.totalorder %s96, %s99
    %p105 = scmp.eq.s32.totalorder %s9, 0
    %p106 = por %p104, %p105
    %p107 = scmp.ne.s32.totalorder %s96, %s99
    %p108 = scmp.eq.s32.totalorder %s14, 1
    %p109 = por %p107, %p108
    %p110 = scmp.ne.s32.totalorder %s99, %s100
    %p111 = scmp.eq.s32.totalorder %s14, 0
    %p112 = por %p110, %p111
    %p113 = scmp.ne.s32.totalorder %s99, %s100
    %p114 = scmp.eq.s32.totalorder %s15, 1
    %p115 = por %p113, %p114
    %p117 = scmp.ne.s32.totalorder %s100, %s116
    %p118 = scmp.eq.s32.totalorder %s15, 0
    %p119 = por %p117, %p118
    %s120 = ssub.s32 %s16, %s35
    %s121 = ssub.s32 %s17, %s31
    %s122 = sor.u32 %s120, %s121
    %s123 = ssub.s32 %s18, %s27
    %s124 = sor.u32 %s122, %s123
    %p125 = scmp.eq.s32.totalorder %s124, 0
    %s127 = sadd.s32 %s126, 1
    %s128 = scalar_select %p125, %s126, %s127
    %p131 = pneg %p125
    %p132 = scmp.eq.s32.totalorder %s9, 1
    %p133 = por %p131, %p132
    %p134 = scmp.ne.s32.totalorder %s126, %s129
    %p135 = scmp.eq.s32.totalorder %s9, 0
    %p136 = por %p134, %p135
    %p137 = scmp.ne.s32.totalorder %s126, %s129
    %p138 = scmp.eq.s32.totalorder %s14, 1
    %p139 = por %p137, %p138
    %p140 = scmp.ne.s32.totalorder %s129, %s130
    %p141 = scmp.eq.s32.totalorder %s14, 0
    %p142 = por %p140, %p141
    %p143 = scmp.ne.s32.totalorder %s129, %s130
    %p144 = scmp.eq.s32.totalorder %s15, 1
    %p145 = por %p143, %p144
    %p147 = scmp.ne.s32.totalorder %s130, %s146
    %p148 = scmp.eq.s32.totalorder %s15, 0
    %p149 = por %p147, %p148
    %p150 = scmp.le.s32.totalorder 1, %s9
    %p151 = scmp.lt.s32.totalorder %s9, 3
    %p152 = pnand %p150, %p151
    %p153 = pneg %p152
    // Predicated region
    $region9: #{net_forward.11} parent=5 // pred_check
      _
    $region10: #{net_forward.11} parent=5 // pred_check_branch
      %155 = sbr.rel (%p152) target = $region12
    $region11: #{net_forward.11} parent=5 // pred_region
      %s156 = ssub.s32 %s9, 1
    $region12: #{net_forward.11} parent=5 // pred_fallthru
      _
    %p157 = scmp.lt.s32.totalorder %s9, 2
    // Predicated region
    $region13: #{net_forward.11} parent=5 // pred_check
      %p158 = pneg %p157
    $region14: #{net_forward.11} parent=5 // pred_check_branch
      %160 = sbr.rel (%p158) target = $region16
    $region15: #{net_forward.11} parent=5 // pred_region
      // Predicated region
      $region17: #{net_forward.11} parent=15 // pred_check
        %p161 = pneg %p50
      $region18: #{net_forward.11} parent=15 // pred_check_branch
        %163 = sbr.rel (%p161) target = $region20
      $region19: #{net_forward.11} parent=15 // pred_region
        %s164 = smul.u32 4, %s17
        %p165 = scmp.lt.s32.totalorder %s16, 1
        %s166 = scalar_select %p165, %s16, 1
        %p167 = scmp.lt.s32.totalorder %s164, 3
        %s168 = scalar_select %p167, %s164, 3
        %s169 = smul.addr %s168, 2
        %s170 = smul.addr %s166, 8
        %s171 = sadd.s32 %s169, %s170
        %s172 = smul.addr %s171, 4
        %s173 = scalar_lea.vmem %s0, %s172
        %s174 = smul.u32 4, %s17
      $region20: #{net_forward.11} parent=15 // pred_fallthru
        _
      // Predicated region
      $region21: #{net_forward.11} parent=15 // pred_check
        %p175 = pneg %p78
      $region22: #{net_forward.11} parent=15 // pred_check_branch
        %177 = sbr.rel (%p175) target = $region24
      $region23: #{net_forward.11} parent=15 // pred_region
        %s178 = smul.u32 4, %s18
        %p179 = scmp.lt.s32.totalorder %s16, 1
        %s180 = scalar_select %p179, %s16, 1
        %p181 = scmp.lt.s32.totalorder %s178, 3
        %s182 = scalar_select %p181, %s178, 3
        %s183 = smul.addr %s180, 128
        %s184 = sadd.s32 %s182, %s183
        %s185 = smul.addr %s184, 4
        %s186 = scalar_lea.vmem %s1, %s185
        %s187 = smul.u32 4, %s18
      $region24: #{net_forward.11} parent=15 // pred_fallthru
        _
      // Predicated region
      $region25: #{net_forward.11} parent=15 // pred_check
        %p188 = pneg %p106
      $region26: #{net_forward.11} parent=15 // pred_check_branch
        %190 = sbr.rel (%p188) target = $region28
      $region27: #{net_forward.11} parent=15 // pred_region
        %s191 = smul.u32 4, %s18
        %p192 = scmp.lt.s32.totalorder %s16, 1
        %s193 = scalar_select %p192, %s16, 1
        %p194 = scmp.lt.s32.totalorder %s191, 3
        %s195 = scalar_select %p194, %s191, 3
        %s196 = smul.addr %s193, 4
        %s197 = sadd.s32 %s195, %s196
        %s198 = scalar_lea.vmem %s2, %s197
        %s199 = smul.u32 4, %s18
      $region28: #{net_forward.11} parent=15 // pred_fallthru
        _
    $region16: #{net_forward.11} parent=5 // pred_fallthru
      _
    %p200 = scmp.le.s32.totalorder 1, %s9
    %p201 = scmp.lt.s32.totalorder %s9, 3
    %p202 = pnand %p200, %p201
    %p203 = pneg %p202
    // Predicated region
    $region29: #{net_forward.11} parent=5 // pred_check
      _
    $region30: #{net_forward.11} parent=5 // pred_check_branch
      %205 = sbr.rel (%p202) target = $region32
    $region31: #{net_forward.11} parent=5 // pred_region
      %s206 = ssub.s32 %s9, 1
      %s207 = smul.u32 4, %s20
      %p208 = scmp.lt.s32.totalorder %s19, 1
      %s209 = scalar_select %p208, %s19, 1
      %p210 = scmp.lt.s32.totalorder %s207, 3
      %s211 = scalar_select %p210, %s207, 3
      %s212 = smul.addr %s211, 2
      %s213 = smul.addr %s209, 8
      %s214 = sadd.s32 %s212, %s213
      %s215 = smul.addr %s214, 4
      %s216 = scalar_lea.vmem %s0, %s215
      %p217 = pneg %p56
      %p218 = pneg %p53
      %s219 = smul.u32 4, %s21
      %p220 = scmp.lt.s32.totalorder %s19, 1
      %s221 = scalar_select %p220, %s19, 1
      %p222 = scmp.lt.s32.totalorder %s219, 3
      %s223 = scalar_select %p222, %s219, 3
      %s224 = smul.addr %s221, 128
      %s225 = sadd.s32 %s223, %s224
      %s226 = smul.addr %s225, 4
      %s227 = scalar_lea.vmem %s1, %s226
      %p228 = pneg %p84
      %p229 = pneg %p81
      %s230 = smul.u32 4, %s21
      %p231 = scmp.lt.s32.totalorder %s19, 1
      %s232 = scalar_select %p231, %s19, 1
      %p233 = scmp.lt.s32.totalorder %s230, 3
      %s234 = scalar_select %p233, %s230, 3
      %s235 = smul.addr %s232, 4
      %s236 = sadd.s32 %s234, %s235
      %s237 = scalar_lea.vmem %s2, %s236
      %p238 = pneg %p112
      %p239 = pneg %p109
      %p240 = pneg %p142
      %p241 = pneg %p139
      %s242 = smul.u32 4, %s20
      %s243 = smul.u32 4, %s21
      %p244 = scmp.lt.s32.totalorder %s19, 1
      %s245 = scalar_select %p244, %s19, 1
      %p246 = scmp.lt.s32.totalorder %s242, 3
      %s247 = scalar_select %p246, %s242, 3
      %p248 = scmp.lt.s32.totalorder %s243, 3
      %s249 = scalar_select %p248, %s243, 3
      %s250 = smul.addr %s247, 4
      %s251 = sadd.s32 %s249, %s250
      %s252 = smul.addr %s245, 16
      %s253 = sadd.s32 %s251, %s252
      %s254 = smul.addr %s253, 4
      %s255 = scalar_lea.vmem %s3, %s254
      %s256 = smul.u32 4, %s20
      %p257 = scmp.lt.s32.totalorder %s19, 1
      %s258 = scalar_select %p257, %s19, 1
      %p259 = scmp.lt.s32.totalorder %s256, 3
      %s260 = scalar_select %p259, %s256, 3
      %s261 = smul.addr %s260, 2
      %s262 = smul.addr %s258, 8
      %s263 = sadd.s32 %s261, %s262
      %s264 = smul.addr %s263, 4
      %s265 = scalar_lea.vmem %s0, %s264
      %s266 = smul.u32 4, %s20
      %s267 = smul.u32 4, %s21
      %p268 = scmp.lt.s32.totalorder %s19, 1
      %s269 = scalar_select %p268, %s19, 1
      %p270 = scmp.lt.s32.totalorder %s267, 3
      %s271 = scalar_select %p270, %s267, 3
      %s272 = smul.addr %s269, 128
      %s273 = sadd.s32 %s271, %s272
      %s274 = smul.addr %s273, 4
      %s275 = scalar_lea.vmem %s1, %s274
      %s276 = smul.u32 4, %s21
      %s277 = smul.u32 4, %s21
      %p278 = scmp.lt.s32.totalorder %s19, 1
      %s279 = scalar_select %p278, %s19, 1
      %p280 = scmp.lt.s32.totalorder %s277, 3
      %s281 = scalar_select %p280, %s277, 3
      %s282 = smul.addr %s279, 4
      %s283 = sadd.s32 %s281, %s282
      %s284 = scalar_lea.vmem %s2, %s283
      %s285 = smul.u32 4, %s21
      %s286 = smul.u32 4, %s20
      %s287 = smul.u32 4, %s21
      %p288 = scmp.lt.s32.totalorder %s19, 1
      %s289 = scalar_select %p288, %s19, 1
      %p290 = scmp.lt.s32.totalorder %s286, 3
      %s291 = scalar_select %p290, %s286, 3
      %p292 = scmp.lt.s32.totalorder %s287, 3
      %s293 = scalar_select %p292, %s287, 3
      %s294 = smul.addr %s291, 4
      %s295 = sadd.s32 %s293, %s294
      %s296 = smul.addr %s289, 16
      %s297 = sadd.s32 %s295, %s296
      %s298 = smul.addr %s297, 4
      %s299 = scalar_lea.vmem %s3, %s298
      %s300 = smul.u32 4, %s20
      %s301 = smul.u32 4, %s21
      %v302 = vld [vmem:[%s265] sm:$0xff]
      %v303 = vld [vmem:[%s265 + $0x8] sm:$0xff]
      %v304 = vld [vmem:[%s265 + $0x10] sm:$0xff]
      %v305 = vld [vmem:[%s265 + $0x18] sm:$0xff]
      %v306 = vld [vmem:[%s275] sm:$0xff]
      %v307 = vld [vmem:[%s275 + $0x8] sm:$0xff]
      %v308 = vld [vmem:[%s275 + $0x10] sm:$0xff]
      %v309 = vld [vmem:[%s275 + $0x18] sm:$0xff]
      %v310 = vld [vmem:[%s275 + $0x20] sm:$0xff]
      %v311 = vld [vmem:[%s275 + $0x28] sm:$0xff]
      %v312 = vld [vmem:[%s275 + $0x30] sm:$0xff]
      %v313 = vld [vmem:[%s275 + $0x38] sm:$0xff]
      %v314 = vld [vmem:[%s275 + $0x40] sm:$0xff]
      %v315 = vld [vmem:[%s275 + $0x48] sm:$0xff]
      %v316 = vld [vmem:[%s275 + $0x50] sm:$0xff]
      %v317 = vld [vmem:[%s275 + $0x58] sm:$0xff]
      %v318 = vld [vmem:[%s275 + $0x60] sm:$0xff]
      %v319 = vld [vmem:[%s275 + $0x68] sm:$0xff]
      %v320 = vld [vmem:[%s275 + $0x70] sm:$0xff]
      %v321 = vld [vmem:[%s275 + $0x78] sm:$0xff]
      %v322 = vld [vmem:[%s275 + $0x80] sm:$0xff]
      %v323 = vld [vmem:[%s275 + $0x88] sm:$0xff]
      %v324 = vld [vmem:[%s275 + $0x90] sm:$0xff]
      %v325 = vld [vmem:[%s275 + $0x98] sm:$0xff]
      %v326 = vld [vmem:[%s275 + $0xa0] sm:$0xff]
      %v327 = vld [vmem:[%s275 + $0xa8] sm:$0xff]
      %v328 = vld [vmem:[%s275 + $0xb0] sm:$0xff]
      %v329 = vld [vmem:[%s275 + $0xb8] sm:$0xff]
      %v330 = vld [vmem:[%s275 + $0xc0] sm:$0xff]
      %v331 = vld [vmem:[%s275 + $0xc8] sm:$0xff]
      %v332 = vld [vmem:[%s275 + $0xd0] sm:$0xff]
      %v333 = vld [vmem:[%s275 + $0xd8] sm:$0xff]
      %v334 = vld [vmem:[%s275 + $0xe0] sm:$0xff]
      %v335 = vld [vmem:[%s275 + $0xe8] sm:$0xff]
      %v336 = vld [vmem:[%s275 + $0xf0] sm:$0xff]
      %v337 = vld [vmem:[%s275 + $0xf8] sm:$0xff]
      %v338 = vld [vmem:[%s275 + $0x100] sm:$0xff]
      %v339 = vld [vmem:[%s275 + $0x108] sm:$0xff]
      %v340 = vld [vmem:[%s275 + $0x110] sm:$0xff]
      %v341 = vld [vmem:[%s275 + $0x118] sm:$0xff]
      %v342 = vld [vmem:[%s275 + $0x120] sm:$0xff]
      %v343 = vld [vmem:[%s275 + $0x128] sm:$0xff]
      %v344 = vld [vmem:[%s275 + $0x130] sm:$0xff]
      %v345 = vld [vmem:[%s275 + $0x138] sm:$0xff]
      %v346 = vld [vmem:[%s275 + $0x140] sm:$0xff]
      %v347 = vld [vmem:[%s275 + $0x148] sm:$0xff]
      %v348 = vld [vmem:[%s275 + $0x150] sm:$0xff]
      %v349 = vld [vmem:[%s275 + $0x158] sm:$0xff]
      %v350 = vld [vmem:[%s275 + $0x160] sm:$0xff]
      %v351 = vld [vmem:[%s275 + $0x168] sm:$0xff]
      %v352 = vld [vmem:[%s275 + $0x170] sm:$0xff]
      %v353 = vld [vmem:[%s275 + $0x178] sm:$0xff]
      %v354 = vld [vmem:[%s275 + $0x180] sm:$0xff]
      %v355 = vld [vmem:[%s275 + $0x188] sm:$0xff]
      %v356 = vld [vmem:[%s275 + $0x190] sm:$0xff]
      %v357 = vld [vmem:[%s275 + $0x198] sm:$0xff]
      %v358 = vld [vmem:[%s275 + $0x1a0] sm:$0xff]
      %v359 = vld [vmem:[%s275 + $0x1a8] sm:$0xff]
      %v360 = vld [vmem:[%s275 + $0x1b0] sm:$0xff]
      %v361 = vld [vmem:[%s275 + $0x1b8] sm:$0xff]
      %v362 = vld [vmem:[%s275 + $0x1c0] sm:$0xff]
      %v363 = vld [vmem:[%s275 + $0x1c8] sm:$0xff]
      %v364 = vld [vmem:[%s275 + $0x1d0] sm:$0xff]
      %v365 = vld [vmem:[%s275 + $0x1d8] sm:$0xff]
      %v366 = vld [vmem:[%s275 + $0x1e0] sm:$0xff]
      %v367 = vld [vmem:[%s275 + $0x1e8] sm:$0xff]
      %v368 = vld [vmem:[%s275 + $0x1f0] sm:$0xff]
      %v369 = vld [vmem:[%s275 + $0x1f8] sm:$0xff]
      %v370 = vld [vmem:[%s284] sm:$0xf]
      %v372 = vlaneseq
      %v373 = vshrl.u32 %v372, 7
      %v374 = vsub.s32 0, %v373
      %v375 = vrot.slane %v370, %v374
      %v376 = vlaneseq
      %v377 = vshrl.u32 %v376, 7
      %v378 = vsub.s32 1, %v377
      %v379 = vrot.slane %v370, %v378
      %v380 = vlaneseq
      %v381 = vshrl.u32 %v380, 7
      %v382 = vsub.s32 2, %v381
      %v383 = vrot.slane %v370, %v382
      %v384 = vlaneseq
      %v385 = vshrl.u32 %v384, 7
      %v386 = vsub.s32 3, %v385
      %v387 = vrot.slane %v370, %v386
      %v396 = vunpack.c.l.b16 %v302
      %v397 = vunpack.c.h.b16 %v302
      %v398 = vunpack.c.l.b16 %v303
      %v399 = vunpack.c.h.b16 %v303
      %v400 = vunpack.c.l.b16 %v304
      %v401 = vunpack.c.h.b16 %v304
      %v402 = vunpack.c.l.b16 %v305
      %v403 = vunpack.c.h.b16 %v305
      %v404 = vpack.c.b16 %v398, %v396
      %v405 = vpack.c.b16 %v399, %v397
      %v406 = vpack.c.b16 %v402, %v400
      %v407 = vpack.c.b16 %v403, %v401
      %v476 = vunpack.c.l.b16 %v306
      %v477 = vunpack.c.h.b16 %v306
      %v478 = vunpack.c.l.b16 %v307
      %v479 = vunpack.c.h.b16 %v307
      %v480 = vunpack.c.l.b16 %v308
      %v481 = vunpack.c.h.b16 %v308
      %v482 = vunpack.c.l.b16 %v309
      %v483 = vunpack.c.h.b16 %v309
      %v484 = vunpack.c.l.b16 %v310
      %v485 = vunpack.c.h.b16 %v310
      %v486 = vunpack.c.l.b16 %v311
      %v487 = vunpack.c.h.b16 %v311
      %v488 = vunpack.c.l.b16 %v312
      %v489 = vunpack.c.h.b16 %v312
      %v490 = vunpack.c.l.b16 %v313
      %v491 = vunpack.c.h.b16 %v313
      %v492 = vunpack.c.l.b16 %v314
      %v493 = vunpack.c.h.b16 %v314
      %v494 = vunpack.c.l.b16 %v315
      %v495 = vunpack.c.h.b16 %v315
      %v496 = vunpack.c.l.b16 %v316
      %v497 = vunpack.c.h.b16 %v316
      %v498 = vunpack.c.l.b16 %v317
      %v499 = vunpack.c.h.b16 %v317
      %v500 = vunpack.c.l.b16 %v318
      %v501 = vunpack.c.h.b16 %v318
      %v502 = vunpack.c.l.b16 %v319
      %v503 = vunpack.c.h.b16 %v319
      %v504 = vunpack.c.l.b16 %v320
      %v505 = vunpack.c.h.b16 %v320
      %v506 = vunpack.c.l.b16 %v321
      %v507 = vunpack.c.h.b16 %v321
      %v508 = vunpack.c.l.b16 %v322
      %v509 = vunpack.c.h.b16 %v322
      %v510 = vunpack.c.l.b16 %v323
      %v511 = vunpack.c.h.b16 %v323
      %v512 = vunpack.c.l.b16 %v324
      %v513 = vunpack.c.h.b16 %v324
      %v514 = vunpack.c.l.b16 %v325
      %v515 = vunpack.c.h.b16 %v325
      %v516 = vunpack.c.l.b16 %v326
      %v517 = vunpack.c.h.b16 %v326
      %v518 = vunpack.c.l.b16 %v327
      %v519 = vunpack.c.h.b16 %v327
      %v520 = vunpack.c.l.b16 %v328
      %v521 = vunpack.c.h.b16 %v328
      %v522 = vunpack.c.l.b16 %v329
      %v523 = vunpack.c.h.b16 %v329
      %v524 = vunpack.c.l.b16 %v330
      %v525 = vunpack.c.h.b16 %v330
      %v526 = vunpack.c.l.b16 %v331
      %v527 = vunpack.c.h.b16 %v331
      %v528 = vunpack.c.l.b16 %v332
      %v529 = vunpack.c.h.b16 %v332
      %v530 = vunpack.c.l.b16 %v333
      %v531 = vunpack.c.h.b16 %v333
      %v532 = vunpack.c.l.b16 %v334
      %v533 = vunpack.c.h.b16 %v334
      %v534 = vunpack.c.l.b16 %v335
      %v535 = vunpack.c.h.b16 %v335
      %v536 = vunpack.c.l.b16 %v336
      %v537 = vunpack.c.h.b16 %v336
      %v538 = vunpack.c.l.b16 %v337
      %v539 = vunpack.c.h.b16 %v337
      %v540 = vunpack.c.l.b16 %v338
      %v541 = vunpack.c.h.b16 %v338
      %v542 = vunpack.c.l.b16 %v339
      %v543 = vunpack.c.h.b16 %v339
      %v544 = vunpack.c.l.b16 %v340
      %v545 = vunpack.c.h.b16 %v340
      %v546 = vunpack.c.l.b16 %v341
      %v547 = vunpack.c.h.b16 %v341
      %v548 = vunpack.c.l.b16 %v342
      %v549 = vunpack.c.h.b16 %v342
      %v550 = vunpack.c.l.b16 %v343
      %v551 = vunpack.c.h.b16 %v343
      %v552 = vunpack.c.l.b16 %v344
      %v553 = vunpack.c.h.b16 %v344
      %v554 = vunpack.c.l.b16 %v345
      %v555 = vunpack.c.h.b16 %v345
      %v556 = vunpack.c.l.b16 %v346
      %v557 = vunpack.c.h.b16 %v346
      %v558 = vunpack.c.l.b16 %v347
      %v559 = vunpack.c.h.b16 %v347
      %v560 = vunpack.c.l.b16 %v348
      %v561 = vunpack.c.h.b16 %v348
      %v562 = vunpack.c.l.b16 %v349
      %v563 = vunpack.c.h.b16 %v349
      %v564 = vunpack.c.l.b16 %v350
      %v565 = vunpack.c.h.b16 %v350
      %v566 = vunpack.c.l.b16 %v351
      %v567 = vunpack.c.h.b16 %v351
      %v568 = vunpack.c.l.b16 %v352
      %v569 = vunpack.c.h.b16 %v352
      %v570 = vunpack.c.l.b16 %v353
      %v571 = vunpack.c.h.b16 %v353
      %v572 = vunpack.c.l.b16 %v354
      %v573 = vunpack.c.h.b16 %v354
      %v574 = vunpack.c.l.b16 %v355
      %v575 = vunpack.c.h.b16 %v355
      %v576 = vunpack.c.l.b16 %v356
      %v577 = vunpack.c.h.b16 %v356
      %v578 = vunpack.c.l.b16 %v357
      %v579 = vunpack.c.h.b16 %v357
      %v580 = vunpack.c.l.b16 %v358
      %v581 = vunpack.c.h.b16 %v358
      %v582 = vunpack.c.l.b16 %v359
      %v583 = vunpack.c.h.b16 %v359
      %v584 = vunpack.c.l.b16 %v360
      %v585 = vunpack.c.h.b16 %v360
      %v586 = vunpack.c.l.b16 %v361
      %v587 = vunpack.c.h.b16 %v361
      %v588 = vunpack.c.l.b16 %v362
      %v589 = vunpack.c.h.b16 %v362
      %v590 = vunpack.c.l.b16 %v363
      %v591 = vunpack.c.h.b16 %v363
      %v592 = vunpack.c.l.b16 %v364
      %v593 = vunpack.c.h.b16 %v364
      %v594 = vunpack.c.l.b16 %v365
      %v595 = vunpack.c.h.b16 %v365
      %v596 = vunpack.c.l.b16 %v366
      %v597 = vunpack.c.h.b16 %v366
      %v598 = vunpack.c.l.b16 %v367
      %v599 = vunpack.c.h.b16 %v367
      %v600 = vunpack.c.l.b16 %v368
      %v601 = vunpack.c.h.b16 %v368
      %v602 = vunpack.c.l.b16 %v369
      %v603 = vunpack.c.h.b16 %v369
      %v604 = vpack.c.b16 %v480, %v476
      %v605 = vpack.c.b16 %v481, %v477
      %v606 = vpack.c.b16 %v482, %v478
      %v607 = vpack.c.b16 %v483, %v479
      %v608 = vpack.c.b16 %v488, %v484
      %v609 = vpack.c.b16 %v489, %v485
      %v610 = vpack.c.b16 %v490, %v486
      %v611 = vpack.c.b16 %v491, %v487
      %v612 = vpack.c.b16 %v496, %v492
      %v613 = vpack.c.b16 %v497, %v493
      %v614 = vpack.c.b16 %v498, %v494
      %v615 = vpack.c.b16 %v499, %v495
      %v616 = vpack.c.b16 %v504, %v500
      %v617 = vpack.c.b16 %v505, %v501
      %v618 = vpack.c.b16 %v506, %v502
      %v619 = vpack.c.b16 %v507, %v503
      %v620 = vpack.c.b16 %v512, %v508
      %v621 = vpack.c.b16 %v513, %v509
      %v622 = vpack.c.b16 %v514, %v510
      %v623 = vpack.c.b16 %v515, %v511
      %v624 = vpack.c.b16 %v520, %v516
      %v625 = vpack.c.b16 %v521, %v517
      %v626 = vpack.c.b16 %v522, %v518
      %v627 = vpack.c.b16 %v523, %v519
      %v628 = vpack.c.b16 %v528, %v524
      %v629 = vpack.c.b16 %v529, %v525
      %v630 = vpack.c.b16 %v530, %v526
      %v631 = vpack.c.b16 %v531, %v527
      %v632 = vpack.c.b16 %v536, %v532
      %v633 = vpack.c.b16 %v537, %v533
      %v634 = vpack.c.b16 %v538, %v534
      %v635 = vpack.c.b16 %v539, %v535
      %v636 = vpack.c.b16 %v544, %v540
      %v637 = vpack.c.b16 %v545, %v541
      %v638 = vpack.c.b16 %v546, %v542
      %v639 = vpack.c.b16 %v547, %v543
      %v640 = vpack.c.b16 %v552, %v548
      %v641 = vpack.c.b16 %v553, %v549
      %v642 = vpack.c.b16 %v554, %v550
      %v643 = vpack.c.b16 %v555, %v551
      %v644 = vpack.c.b16 %v560, %v556
      %v645 = vpack.c.b16 %v561, %v557
      %v646 = vpack.c.b16 %v562, %v558
      %v647 = vpack.c.b16 %v563, %v559
      %v648 = vpack.c.b16 %v568, %v564
      %v649 = vpack.c.b16 %v569, %v565
      %v650 = vpack.c.b16 %v570, %v566
      %v651 = vpack.c.b16 %v571, %v567
      %v652 = vpack.c.b16 %v576, %v572
      %v653 = vpack.c.b16 %v577, %v573
      %v654 = vpack.c.b16 %v578, %v574
      %v655 = vpack.c.b16 %v579, %v575
      %v656 = vpack.c.b16 %v584, %v580
      %v657 = vpack.c.b16 %v585, %v581
      %v658 = vpack.c.b16 %v586, %v582
      %v659 = vpack.c.b16 %v587, %v583
      %v660 = vpack.c.b16 %v592, %v588
      %v661 = vpack.c.b16 %v593, %v589
      %v662 = vpack.c.b16 %v594, %v590
      %v663 = vpack.c.b16 %v595, %v591
      %v664 = vpack.c.b16 %v600, %v596
      %v665 = vpack.c.b16 %v601, %v597
      %v666 = vpack.c.b16 %v602, %v598
      %v667 = vpack.c.b16 %v603, %v599
      %732 = vmatprep.subr.bf16.mxu0 %v633
      %733 = vmatpush1.bf16.msra.mxu0 %v632
      %734 = vmatprep.subr.bf16.mxu0 %v629
      %735 = vmatpush1.bf16.msra.mxu0 %v628
      %736 = vmatprep.subr.bf16.mxu0 %v625
      %737 = vmatpush1.bf16.msra.mxu0 %v624
      %738 = vmatprep.subr.bf16.mxu0 %v621
      %739 = vmatpush1.bf16.msra.mxu0 %v620
      %740 = vmatprep.subr.bf16.mxu0 %v617
      %741 = vmatpush1.bf16.msra.mxu0 %v616
      %742 = vmatprep.subr.bf16.mxu0 %v613
      %743 = vmatpush1.bf16.msra.mxu0 %v612
      %744 = vmatprep.subr.bf16.mxu0 %v609
      %745 = vmatpush1.bf16.msra.mxu0 %v608
      %746 = vmatprep.subr.bf16.mxu0 %v605
      %747 = vmatpush1.bf16.msra.mxu0 %v604
      %748 = vmatprep.subr.bf16.mxu0 %v665
      %749 = vmatpush2.bf16.msra.mxu0 %v664
      %750 = vmatprep.subr.bf16.mxu0 %v661
      %751 = vmatpush2.bf16.msra.mxu0 %v660
      %752 = vmatprep.subr.bf16.mxu0 %v657
      %753 = vmatpush2.bf16.msra.mxu0 %v656
      %754 = vmatprep.subr.bf16.mxu0 %v653
      %755 = vmatpush2.bf16.msra.mxu0 %v652
      %756 = vmatprep.subr.bf16.mxu0 %v649
      %757 = vmatpush2.bf16.msra.mxu0 %v648
      %758 = vmatprep.subr.bf16.mxu0 %v645
      %759 = vmatpush2.bf16.msra.mxu0 %v644
      %760 = vmatprep.subr.bf16.mxu0 %v641
      %761 = vmatpush2.bf16.msra.mxu0 %v640
      %762 = vmatprep.subr.bf16.mxu0 %v637
      %763 = vmatpush2.bf16.msra.mxu0 %v636
      %764 = vmatprep.mubr.bf16.mxu0 %v405
      %765 = vmatmul.mubr.bf16.gmra.mxu0 %v404
      %v766 = vpop.f32.mrf.mxu0
      %v767 = vadd.f32 %v375, %v766
      %v768 = vpop.f32.mrf.mxu0
      %v769 = vadd.f32 %v379, %v768
      %v770 = vpop.f32.mrf.mxu0
      %v771 = vadd.f32 %v375, %v770
      %v772 = vpop.f32.mrf.mxu0
      %v773 = vadd.f32 %v379, %v772
      %774 = vmatprep.mubr.bf16.mxu0 %v407
      %775 = vmatmul.mubr.bf16.gmra.mxu0 %v406
      %v776 = vpop.f32.mrf.mxu0
      %v777 = vadd.f32 %v375, %v776
      %v778 = vpop.f32.mrf.mxu0
      %v779 = vadd.f32 %v379, %v778
      %v780 = vpop.f32.mrf.mxu0
      %v781 = vadd.f32 %v375, %v780
      %v782 = vpop.f32.mrf.mxu0
      %v783 = vadd.f32 %v379, %v782
      %784 = vdwg.mxu0
      %785 = vmatprep.subr.bf16.mxu0 %v635
      %786 = vmatpush1.bf16.msra.mxu0 %v634
      %787 = vmatprep.subr.bf16.mxu0 %v631
      %788 = vmatpush1.bf16.msra.mxu0 %v630
      %789 = vmatprep.subr.bf16.mxu0 %v627
      %790 = vmatpush1.bf16.msra.mxu0 %v626
      %791 = vmatprep.subr.bf16.mxu0 %v623
      %792 = vmatpush1.bf16.msra.mxu0 %v622
      %793 = vmatprep.subr.bf16.mxu0 %v619
      %794 = vmatpush1.bf16.msra.mxu0 %v618
      %795 = vmatprep.subr.bf16.mxu0 %v615
      %796 = vmatpush1.bf16.msra.mxu0 %v614
      %797 = vmatprep.subr.bf16.mxu0 %v611
      %798 = vmatpush1.bf16.msra.mxu0 %v610
      %799 = vmatprep.subr.bf16.mxu0 %v607
      %800 = vmatpush1.bf16.msra.mxu0 %v606
      %801 = vmatprep.subr.bf16.mxu0 %v667
      %802 = vmatpush2.bf16.msra.mxu0 %v666
      %803 = vmatprep.subr.bf16.mxu0 %v663
      %804 = vmatpush2.bf16.msra.mxu0 %v662
      %805 = vmatprep.subr.bf16.mxu0 %v659
      %806 = vmatpush2.bf16.msra.mxu0 %v658
      %807 = vmatprep.subr.bf16.mxu0 %v655
      %808 = vmatpush2.bf16.msra.mxu0 %v654
      %809 = vmatprep.subr.bf16.mxu0 %v651
      %810 = vmatpush2.bf16.msra.mxu0 %v650
      %811 = vmatprep.subr.bf16.mxu0 %v647
      %812 = vmatpush2.bf16.msra.mxu0 %v646
      %813 = vmatprep.subr.bf16.mxu0 %v643
      %814 = vmatpush2.bf16.msra.mxu0 %v642
      %815 = vmatprep.subr.bf16.mxu0 %v639
      %816 = vmatpush2.bf16.msra.mxu0 %v638
      %817 = vmatprep.mubr.bf16.mxu0 %v405
      %818 = vmatmul.mubr.bf16.gmra.mxu0 %v404
      %v819 = vpop.f32.mrf.mxu0
      %v820 = vadd.f32 %v383, %v819
      %v821 = vpop.f32.mrf.mxu0
      %v822 = vadd.f32 %v387, %v821
      %v823 = vpop.f32.mrf.mxu0
      %v824 = vadd.f32 %v383, %v823
      %v825 = vpop.f32.mrf.mxu0
      %v826 = vadd.f32 %v387, %v825
      %827 = vmatprep.mubr.bf16.mxu0 %v407
      %828 = vmatmul.mubr.bf16.gmra.mxu0 %v406
      %v829 = vpop.f32.mrf.mxu0
      %v830 = vadd.f32 %v383, %v829
      %v831 = vpop.f32.mrf.mxu0
      %v832 = vadd.f32 %v387, %v831
      %v833 = vpop.f32.mrf.mxu0
      %v834 = vadd.f32 %v383, %v833
      %v835 = vpop.f32.mrf.mxu0
      %v836 = vadd.f32 %v387, %v835
      %837 = vdwg.mxu0
      %v838 = vmax.f32 %v767, 0.0
      %v839 = vmax.f32 %v769, 0.0
      %v840 = vmax.f32 %v820, 0.0
      %v841 = vmax.f32 %v822, 0.0
      %v842 = vmax.f32 %v771, 0.0
      %v843 = vmax.f32 %v773, 0.0
      %v844 = vmax.f32 %v824, 0.0
      %v845 = vmax.f32 %v826, 0.0
      %v846 = vmax.f32 %v777, 0.0
      %v847 = vmax.f32 %v779, 0.0
      %v848 = vmax.f32 %v830, 0.0
      %v849 = vmax.f32 %v832, 0.0
      %v850 = vmax.f32 %v781, 0.0
      %v851 = vmax.f32 %v783, 0.0
      %v852 = vmax.f32 %v834, 0.0
      %v853 = vmax.f32 %v836, 0.0
      %v854 = vpack.c.bf16 %v842, %v838
      %v855 = vpack.c.bf16 %v843, %v839
      %v856 = vpack.c.bf16 %v844, %v840
      %v857 = vpack.c.bf16 %v845, %v841
      %v858 = vpack.c.bf16 %v850, %v846
      %v859 = vpack.c.bf16 %v851, %v847
      %v860 = vpack.c.bf16 %v852, %v848
      %v861 = vpack.c.bf16 %v853, %v849
      %v870 = vunpack.c.l.b16 %v854
      %v871 = vunpack.c.l.b16 %v855
      %v872 = vunpack.c.l.b16 %v856
      %v873 = vunpack.c.l.b16 %v857
      %v874 = vunpack.c.h.b16 %v854
      %v875 = vunpack.c.h.b16 %v855
      %v876 = vunpack.c.h.b16 %v856
      %v877 = vunpack.c.h.b16 %v857
      %v878 = vunpack.c.l.b16 %v858
      %v879 = vunpack.c.l.b16 %v859
      %v880 = vunpack.c.l.b16 %v860
      %v881 = vunpack.c.l.b16 %v861
      %v882 = vunpack.c.h.b16 %v858
      %v883 = vunpack.c.h.b16 %v859
      %v884 = vunpack.c.h.b16 %v860
      %v885 = vunpack.c.h.b16 %v861
      %v886 = vpack.c.b16 %v871, %v870
      %v887 = vpack.c.b16 %v873, %v872
      %v888 = vpack.c.b16 %v875, %v874
      %v889 = vpack.c.b16 %v877, %v876
      %v890 = vpack.c.b16 %v879, %v878
      %v891 = vpack.c.b16 %v881, %v880
      %v892 = vpack.c.b16 %v883, %v882
      %v893 = vpack.c.b16 %v885, %v884
      %902 = vst [vmem:[%s299] sm:$0xff] %v886
      %903 = vst [vmem:[%s299 + $0x8] sm:$0xff] %v887
      %904 = vst [vmem:[%s299 + $0x10] sm:$0xff] %v888
      %905 = vst [vmem:[%s299 + $0x18] sm:$0xff] %v889
      %906 = vst [vmem:[%s299 + $0x20] sm:$0xff] %v890
      %907 = vst [vmem:[%s299 + $0x28] sm:$0xff] %v891
      %908 = vst [vmem:[%s299 + $0x30] sm:$0xff] %v892
      %909 = vst [vmem:[%s299 + $0x38] sm:$0xff] %v893
      %s910 = smul.u32 4, %s20
      %s911 = smul.u32 4, %s21
      %p912 = scmp.lt.s32.totalorder %s19, 1
      %s913 = scalar_select %p912, %s19, 1
      %p914 = scmp.lt.s32.totalorder %s910, 3
      %s915 = scalar_select %p914, %s910, 3
      %p916 = scmp.lt.s32.totalorder %s911, 3
      %s917 = scalar_select %p916, %s911, 3
      %s918 = smul.addr %s915, 4
      %s919 = sadd.s32 %s917, %s918
      %s920 = smul.addr %s913, 16
      %s921 = sadd.s32 %s919, %s920
      %s922 = smul.addr %s921, 4
      %s923 = scalar_lea.vmem %s3, %s922
      // Predicated region
      $region33: #{net_forward.11} parent=31 // pred_check
        %p924 = pneg %p139
      $region34: #{net_forward.11} parent=31 // pred_check_branch
        %926 = sbr.rel (%p924) target = $region36
      $region35: #{net_forward.11} parent=31 // pred_region
        %s927 = smul.u32 4, %s20
        %s928 = smul.u32 4, %s21
      $region36: #{net_forward.11} parent=31 // pred_fallthru
        _
    $region32: #{net_forward.11} parent=5 // pred_fallthru
      _
    %p929 = scmp.le.s32.totalorder 2, %s9
    // Predicated region
    $region37: #{net_forward.11} parent=5 // pred_check
      %p930 = pneg %p929
    $region38: #{net_forward.11} parent=5 // pred_check_branch
      %932 = sbr.rel (%p930) target = $region40
    $region39: #{net_forward.11} parent=5 // pred_region
      %s933 = ssub.s32 %s9, 2
      // Predicated region
      $region41: #{net_forward.11} parent=39 // pred_check
        %p934 = pneg %p145
      $region42: #{net_forward.11} parent=39 // pred_check_branch
        %936 = sbr.rel (%p934) target = $region44
      $region43: #{net_forward.11} parent=39 // pred_region
        %s937 = smul.u32 4, %s23
        %s938 = smul.u32 4, %s24
        %p939 = scmp.lt.s32.totalorder %s22, 1
        %s940 = scalar_select %p939, %s22, 1
        %p941 = scmp.lt.s32.totalorder %s937, 3
        %s942 = scalar_select %p941, %s937, 3
        %p943 = scmp.lt.s32.totalorder %s938, 3
        %s944 = scalar_select %p943, %s938, 3
        %s945 = smul.addr %s942, 4
        %s946 = sadd.s32 %s944, %s945
        %s947 = smul.addr %s940, 16
        %s948 = sadd.s32 %s946, %s947
        %s949 = smul.addr %s948, 4
        %s950 = scalar_lea.vmem %s3, %s949
      $region44: #{net_forward.11} parent=39 // pred_fallthru
        _
    $region40: #{net_forward.11} parent=5 // pred_fallthru
      _
  $region6: #{net_forward.11} parent=0 // loop_footer
    %s13 = sadd.s32 1, %s9
  $region7: #{net_forward.11} parent=0 // loop_footer_branch
    %8 = sbr.rel target = $region3
  $region8: #{net_forward.11} parent=0 // loop_exit
    _

// kernel: net_forward.12
$region0: #{net_forward.12}
  #allocation0 [shape = 'u32[]', space=smem, size = 0x4, offset = 0x4, fixed_abs, tag = 'smem constant byte address 0x4 - core index']
  #allocation1 [shape = 'u32[144,128]{1,0:T(1,128)}', space=vmem, size = 0x12000, scoped, tag = 'internal scratch']
  %s0 = inlined_call_operand.vmem [shape: bf16[2,8,512], index: 0, kind: input, shape index: {}]
  %s1 = inlined_call_operand.vmem [shape: bf16[2,512,1024], index: 1, kind: input, shape index: {}]
  %s2 = inlined_call_operand.vmem [shape: f32[2,1,1024], index: 2, kind: input, shape index: {}]
  %s3 = inlined_call_operand.vmem [shape: bf16[2,8,1024], index: 3, kind: output, shape index: {}]
  %s4 = sld [smem:[#allocation0]]
  $region68: #{net_forward.12} parent=0
    _
  %s6 = ssub.s32 1, %s4
  %s7 = scalar_select 0, %s6, %s4
  $region1: #{net_forward.12} parent=0
    #allocation2 [shape = 'u8[1048576]{0}', space=vmem, size = 0x100000, scoped, tag = 'input window, operand 1']
    loop: start=0, step=1, limit=6
    $region2: #{net_forward.12} parent=1 // loop_pre_header
      _
    $region3: #{net_forward.12} parent=1 // loop_header
      %s9 = sphi 0, %s13
      %p10 = scmp.ge.s32.totalorder %s9, 6
      %s16 = sphi 0, %s35
      %s17 = sphi 0, %s31
      %s18 = sphi 0, %s27
      %s19 = sphi 0, %s16
      %s20 = sphi 0, %s17
      %s21 = sphi 0, %s18
      %s22 = sphi 0, %s19
      %s23 = sphi 0, %s20
      %s24 = sphi 0, %s21
      %s40 = sphi 0, %s42
      %s43 = sphi 0, %s40
      %s44 = sphi 0, %s43
      %s60 = sphi 0, %s44
      %s68 = sphi 0, %s70
      %s71 = sphi 0, %s68
      %s72 = sphi 0, %s71
      %s88 = sphi 0, %s72
      %s96 = sphi 0, %s98
      %s99 = sphi 0, %s96
      %s100 = sphi 0, %s99
      %s116 = sphi 0, %s100
      %s126 = sphi 0, %s128
      %s129 = sphi 0, %s126
      %s130 = sphi 0, %s129
      %s146 = sphi 0, %s130
    $region4: #{net_forward.12} parent=1 // loop_header_branch
      %12 = sbr.rel (%p10) target = $region8
    $region5: #{net_forward.12} parent=1 // loop_body
      %s14 = ssub.s32 %s9, 1
      %s15 = ssub.s32 %s9, 2
      %s25 = sadd.s32 1, %s18
      %p26 = scmp.ge.s32.totalorder %s25, 2
      %s27 = scalar_select %p26, 0, %s25
      %s28 = sadd.s32 1, %s17
      %s29 = scalar_select %p26, %s28, %s17
      %p30 = scmp.ge.s32.totalorder %s29, 1
      %s31 = scalar_select %p30, 0, %s29
      %s32 = sadd.s32 1, %s16
      %s33 = scalar_select %p30, %s32, %s16
      %p34 = scmp.ge.s32.totalorder %s33, 2
      %s35 = scalar_select %p34, 0, %s33
      %s36 = ssub.s32 %s16, %s35
      %s37 = ssub.s32 %s17, %s31
      %s38 = sor.u32 %s36, %s37
      %p39 = scmp.eq.s32.totalorder %s38, 0
      %s41 = sadd.s32 %s40, 1
      %s42 = scalar_select %p39, %s40, %s41
      %p45 = pneg %p39
      %p46 = scmp.eq.s32.totalorder %s9, 3
      %p47 = por %p45, %p46
      %p48 = scmp.ne.s32.totalorder %s40, %s43
      %p49 = scmp.eq.s32.totalorder %s9, 0
      %p50 = por %p48, %p49
      %p51 = scmp.ne.s32.totalorder %s40, %s43
      %p52 = scmp.eq.s32.totalorder %s14, 3
      %p53 = por %p51, %p52
      %p54 = scmp.ne.s32.totalorder %s43, %s44
      %p55 = scmp.eq.s32.totalorder %s14, 0
      %p56 = por %p54, %p55
      %p57 = scmp.ne.s32.totalorder %s43, %s44
      %p58 = scmp.eq.s32.totalorder %s15, 3
      %p59 = por %p57, %p58
      %p61 = scmp.ne.s32.totalorder %s44, %s60
      %p62 = scmp.eq.s32.totalorder %s15, 0
      %p63 = por %p61, %p62
      %s64 = ssub.s32 %s16, %s35
      %s65 = ssub.s32 %s18, %s27
      %s66 = sor.u32 %s64, %s65
      %p67 = scmp.eq.s32.totalorder %s66, 0
      %s69 = sadd.s32 %s68, 1
      %s70 = scalar_select %p67, %s68, %s69
      %p73 = pneg %p67
      %p74 = scmp.eq.s32.totalorder %s9, 3
      %p75 = por %p73, %p74
      %p76 = scmp.ne.s32.totalorder %s68, %s71
      %p77 = scmp.eq.s32.totalorder %s9, 0
      %p78 = por %p76, %p77
      %p79 = scmp.ne.s32.totalorder %s68, %s71
      %p80 = scmp.eq.s32.totalorder %s14, 3
      %p81 = por %p79, %p80
      %p82 = scmp.ne.s32.totalorder %s71, %s72
      %p83 = scmp.eq.s32.totalorder %s14, 0
      %p84 = por %p82, %p83
      %p85 = scmp.ne.s32.totalorder %s71, %s72
      %p86 = scmp.eq.s32.totalorder %s15, 3
      %p87 = por %p85, %p86
      %p89 = scmp.ne.s32.totalorder %s72, %s88
      %p90 = scmp.eq.s32.totalorder %s15, 0
      %p91 = por %p89, %p90
      %s92 = ssub.s32 %s16, %s35
      %s93 = ssub.s32 %s18, %s27
      %s94 = sor.u32 %s92, %s93
      %p95 = scmp.eq.s32.totalorder %s94, 0
      %s97 = sadd.s32 %s96, 1
      %s98 = scalar_select %p95, %s96, %s97
      %p101 = pneg %p95
      %p102 = scmp.eq.s32.totalorder %s9, 3
      %p103 = por %p101, %p102
      %p104 = scmp.ne.s32.totalorder %s96, %s99
      %p105 = scmp.eq.s32.totalorder %s9, 0
      %p106 = por %p104, %p105
      %p107 = scmp.ne.s32.totalorder %s96, %s99
      %p108 = scmp.eq.s32.totalorder %s14, 3
      %p109 = por %p107, %p108
      %p110 = scmp.ne.s32.totalorder %s99, %s100
      %p111 = scmp.eq.s32.totalorder %s14, 0
      %p112 = por %p110, %p111
      %p113 = scmp.ne.s32.totalorder %s99, %s100
      %p114 = scmp.eq.s32.totalorder %s15, 3
      %p115 = por %p113, %p114
      %p117 = scmp.ne.s32.totalorder %s100, %s116
      %p118 = scmp.eq.s32.totalorder %s15, 0
      %p119 = por %p117, %p118
      %s120 = ssub.s32 %s16, %s35
      %s121 = ssub.s32 %s17, %s31
      %s122 = sor.u32 %s120, %s121
      %s123 = ssub.s32 %s18, %s27
      %s124 = sor.u32 %s122, %s123
      %p125 = scmp.eq.s32.totalorder %s124, 0
      %s127 = sadd.s32 %s126, 1
      %s128 = scalar_select %p125, %s126, %s127
      %p131 = pneg %p125
      %p132 = scmp.eq.s32.totalorder %s9, 3
      %p133 = por %p131, %p132
      %p134 = scmp.ne.s32.totalorder %s126, %s129
      %p135 = scmp.eq.s32.totalorder %s9, 0
      %p136 = por %p134, %p135
      %p137 = scmp.ne.s32.totalorder %s126, %s129
      %p138 = scmp.eq.s32.totalorder %s14, 3
      %p139 = por %p137, %p138
      %p140 = scmp.ne.s32.totalorder %s129, %s130
      %p141 = scmp.eq.s32.totalorder %s14, 0
      %p142 = por %p140, %p141
      %p143 = scmp.ne.s32.totalorder %s129, %s130
      %p144 = scmp.eq.s32.totalorder %s15, 3
      %p145 = por %p143, %p144
      %p147 = scmp.ne.s32.totalorder %s130, %s146
      %p148 = scmp.eq.s32.totalorder %s15, 0
      %p149 = por %p147, %p148
      %p150 = scmp.le.s32.totalorder 1, %s9
      %p151 = scmp.lt.s32.totalorder %s9, 5
      %p152 = pnand %p150, %p151
      %p153 = pneg %p152
      // Predicated region
      $region9: #{net_forward.12} parent=5 // pred_check
        _
      $region10: #{net_forward.12} parent=5 // pred_check_branch
        %155 = sbr.rel (%p152) target = $region12
      $region11: #{net_forward.12} parent=5 // pred_region
        %s156 = ssub.s32 %s9, 1
      $region12: #{net_forward.12} parent=5 // pred_fallthru
        _
      %p157 = scmp.lt.s32.totalorder %s9, 4
      // Predicated region
      $region13: #{net_forward.12} parent=5 // pred_check
        %p158 = pneg %p157
      $region14: #{net_forward.12} parent=5 // pred_check_branch
        %160 = sbr.rel (%p158) target = $region16
      $region15: #{net_forward.12} parent=5 // pred_region
        // Predicated region
        $region17: #{net_forward.12} parent=15 // pred_check
          %p161 = pneg %p50
        $region18: #{net_forward.12} parent=15 // pred_check_branch
          %163 = sbr.rel (%p161) target = $region20
        $region19: #{net_forward.12} parent=15 // pred_region
          %p164 = scmp.lt.s32.totalorder %s16, 1
          %s165 = scalar_select %p164, %s16, 1
          %p166 = scmp.lt.s32.totalorder %s17, 0
          %s167 = scalar_select %p166, %s17, 0
          %s168 = smul.addr %s167, 4
          %s169 = smul.addr %s165, 4
          %s170 = sadd.s32 %s168, %s169
          %s171 = smul.addr %s170, 4
          %s172 = scalar_lea.vmem %s0, %s171
        $region20: #{net_forward.12} parent=15 // pred_fallthru
          _
        // Predicated region
        $region21: #{net_forward.12} parent=15 // pred_check
          %p173 = pneg %p78
        $region22: #{net_forward.12} parent=15 // pred_check_branch
          %175 = sbr.rel (%p173) target = $region24
        $region23: #{net_forward.12} parent=15 // pred_region
          %s176 = sand.u32 %s68, 1
          %s177 = sand.u32 %s68, 1
          %s178 = smul.addr %s177, 1024
          %s179 = scalar_lea.vmem [#allocation2], %s178
          %s180 = smul.u32 4, %s18
          %s181 = smul.addr %s16, 512
          %s182 = sadd.s32 %s180, %s181
          %s183 = smul.addr %s182, 4
          %s184 = scalar_lea.vmem %s1, %s183
          // Predicated region
          $region25: #{net_forward.12} parent=23 // pred_check
            _
          $region26: #{net_forward.12} parent=23 // pred_check_branch
            %186 = sbr.rel (0) target = $region28
          $region27: #{net_forward.12} parent=23 // pred_region
            // Predicated region
            $region29: #{net_forward.12} parent=27 // pred_check
              _
            $region30: #{net_forward.12} parent=27 // pred_check_branch
              %188 = sbr.rel (0) target = $region32
            $region31: #{net_forward.12} parent=27 // pred_region
              loop: start=0, step=1, limit=1
              $region33: #{net_forward.12} parent=31 // loop_pre_header
                _
              $region34: #{net_forward.12} parent=31 // loop_header
                %s190 = sphi 0, %s194
                %p191 = scmp.ge.s32.totalorder %s190, 1
                %s195 = sphi %s184, %s184
                %s196 = sphi %s179, %s179
              $region35: #{net_forward.12} parent=31 // loop_header_branch
                %193 = sbr.rel (%p191) target = $region39
              $region36: #{net_forward.12} parent=31 // loop_body
                %v197 = vld [vmem:[%s195] sm:$0xff]
                %198 = vst [vmem:[%s196] sm:$0xff] %v197
                %v199 = vld [vmem:[%s195 + $0x8] sm:$0xff]
                %200 = vst [vmem:[%s196 + $0x8] sm:$0xff] %v199
                %v201 = vld [vmem:[%s195 + $0x20] sm:$0xff]
                %202 = vst [vmem:[%s196 + $0x10] sm:$0xff] %v201
                %v203 = vld [vmem:[%s195 + $0x28] sm:$0xff]
                %204 = vst [vmem:[%s196 + $0x18] sm:$0xff] %v203
                %v205 = vld [vmem:[%s195 + $0x40] sm:$0xff]
                %206 = vst [vmem:[%s196 + $0x20] sm:$0xff] %v205
                %v207 = vld [vmem:[%s195 + $0x48] sm:$0xff]
                %208 = vst [vmem:[%s196 + $0x28] sm:$0xff] %v207
                %v209 = vld [vmem:[%s195 + $0x60] sm:$0xff]
                %210 = vst [vmem:[%s196 + $0x30] sm:$0xff] %v209
                %v211 = vld [vmem:[%s195 + $0x68] sm:$0xff]
                %212 = vst [vmem:[%s196 + $0x38] sm:$0xff] %v211
                %v213 = vld [vmem:[%s195 + $0x80] sm:$0xff]
                %214 = vst [vmem:[%s196 + $0x40] sm:$0xff] %v213
                %v215 = vld [vmem:[%s195 + $0x88] sm:$0xff]
                %216 = vst [vmem:[%s196 + $0x48] sm:$0xff] %v215
                %v217 = vld [vmem:[%s195 + $0xa0] sm:$0xff]
                %218 = vst [vmem:[%s196 + $0x50] sm:$0xff] %v217
                %v219 = vld [vmem:[%s195 + $0xa8] sm:$0xff]
                %220 = vst [vmem:[%s196 + $0x58] sm:$0xff] %v219
                %v221 = vld [vmem:[%s195 + $0xc0] sm:$0xff]
                %222 = vst [vmem:[%s196 + $0x60] sm:$0xff] %v221
                %v223 = vld [vmem:[%s195 + $0xc8] sm:$0xff]
                %224 = vst [vmem:[%s196 + $0x68] sm:$0xff] %v223
                %v225 = vld [vmem:[%s195 + $0xe0] sm:$0xff]
                %226 = vst [vmem:[%s196 + $0x70] sm:$0xff] %v225
                %v227 = vld [vmem:[%s195 + $0xe8] sm:$0xff]
                %228 = vst [vmem:[%s196 + $0x78] sm:$0xff] %v227
                %v229 = vld [vmem:[%s195 + $0x100] sm:$0xff]
                %230 = vst [vmem:[%s196 + $0x80] sm:$0xff] %v229
                %v231 = vld [vmem:[%s195 + $0x108] sm:$0xff]
                %232 = vst [vmem:[%s196 + $0x88] sm:$0xff] %v231
                %v233 = vld [vmem:[%s195 + $0x120] sm:$0xff]
                %234 = vst [vmem:[%s196 + $0x90] sm:$0xff] %v233
                %v235 = vld [vmem:[%s195 + $0x128] sm:$0xff]
                %236 = vst [vmem:[%s196 + $0x98] sm:$0xff] %v235
                %v237 = vld [vmem:[%s195 + $0x140] sm:$0xff]
                %238 = vst [vmem:[%s196 + $0xa0] sm:$0xff] %v237
                %v239 = vld [vmem:[%s195 + $0x148] sm:$0xff]
                %240 = vst [vmem:[%s196 + $0xa8] sm:$0xff] %v239
                %v241 = vld [vmem:[%s195 + $0x160] sm:$0xff]
                %242 = vst [vmem:[%s196 + $0xb0] sm:$0xff] %v241
                %v243 = vld [vmem:[%s195 + $0x168] sm:$0xff]
                %244 = vst [vmem:[%s196 + $0xb8] sm:$0xff] %v243
                %v245 = vld [vmem:[%s195 + $0x180] sm:$0xff]
                %246 = vst [vmem:[%s196 + $0xc0] sm:$0xff] %v245
                %v247 = vld [vmem:[%s195 + $0x188] sm:$0xff]
                %248 = vst [vmem:[%s196 + $0xc8] sm:$0xff] %v247
                %v249 = vld [vmem:[%s195 + $0x1a0] sm:$0xff]
                %250 = vst [vmem:[%s196 + $0xd0] sm:$0xff] %v249
                %v251 = vld [vmem:[%s195 + $0x1a8] sm:$0xff]
                %252 = vst [vmem:[%s196 + $0xd8] sm:$0xff] %v251
                %v253 = vld [vmem:[%s195 + $0x1c0] sm:$0xff]
                %254 = vst [vmem:[%s196 + $0xe0] sm:$0xff] %v253
                %v255 = vld [vmem:[%s195 + $0x1c8] sm:$0xff]
                %256 = vst [vmem:[%s196 + $0xe8] sm:$0xff] %v255
                %v257 = vld [vmem:[%s195 + $0x1e0] sm:$0xff]
                %258 = vst [vmem:[%s196 + $0xf0] sm:$0xff] %v257
                %v259 = vld [vmem:[%s195 + $0x1e8] sm:$0xff]
                %260 = vst [vmem:[%s196 + $0xf8] sm:$0xff] %v259
                %v261 = vld [vmem:[%s195 + $0x200] sm:$0xff]
                %262 = vst [vmem:[%s196 + $0x100] sm:$0xff] %v261
                %v263 = vld [vmem:[%s195 + $0x208] sm:$0xff]
                %264 = vst [vmem:[%s196 + $0x108] sm:$0xff] %v263
                %v265 = vld [vmem:[%s195 + $0x220] sm:$0xff]
                %266 = vst [vmem:[%s196 + $0x110] sm:$0xff] %v265
                %v267 = vld [vmem:[%s195 + $0x228] sm:$0xff]
                %268 = vst [vmem:[%s196 + $0x118] sm:$0xff] %v267
                %v269 = vld [vmem:[%s195 + $0x240] sm:$0xff]
                %270 = vst [vmem:[%s196 + $0x120] sm:$0xff] %v269
                %v271 = vld [vmem:[%s195 + $0x248] sm:$0xff]
                %272 = vst [vmem:[%s196 + $0x128] sm:$0xff] %v271
                %v273 = vld [vmem:[%s195 + $0x260] sm:$0xff]
                %274 = vst [vmem:[%s196 + $0x130] sm:$0xff] %v273
                %v275 = vld [vmem:[%s195 + $0x268] sm:$0xff]
                %276 = vst [vmem:[%s196 + $0x138] sm:$0xff] %v275
                %v277 = vld [vmem:[%s195 + $0x280] sm:$0xff]
                %278 = vst [vmem:[%s196 + $0x140] sm:$0xff] %v277
                %v279 = vld [vmem:[%s195 + $0x288] sm:$0xff]
                %280 = vst [vmem:[%s196 + $0x148] sm:$0xff] %v279
                %v281 = vld [vmem:[%s195 + $0x2a0] sm:$0xff]
                %282 = vst [vmem:[%s196 + $0x150] sm:$0xff] %v281
                %v283 = vld [vmem:[%s195 + $0x2a8] sm:$0xff]
                %284 = vst [vmem:[%s196 + $0x158] sm:$0xff] %v283
                %v285 = vld [vmem:[%s195 + $0x2c0] sm:$0xff]
                %286 = vst [vmem:[%s196 + $0x160] sm:$0xff] %v285
                %v287 = vld [vmem:[%s195 + $0x2c8] sm:$0xff]
                %288 = vst [vmem:[%s196 + $0x168] sm:$0xff] %v287
                %v289 = vld [vmem:[%s195 + $0x2e0] sm:$0xff]
                %290 = vst [vmem:[%s196 + $0x170] sm:$0xff] %v289
                %v291 = vld [vmem:[%s195 + $0x2e8] sm:$0xff]
                %292 = vst [vmem:[%s196 + $0x178] sm:$0xff] %v291
                %v293 = vld [vmem:[%s195 + $0x300] sm:$0xff]
                %294 = vst [vmem:[%s196 + $0x180] sm:$0xff] %v293
                %v295 = vld [vmem:[%s195 + $0x308] sm:$0xff]
                %296 = vst [vmem:[%s196 + $0x188] sm:$0xff] %v295
                %v297 = vld [vmem:[%s195 + $0x320] sm:$0xff]
                %298 = vst [vmem:[%s196 + $0x190] sm:$0xff] %v297
                %v299 = vld [vmem:[%s195 + $0x328] sm:$0xff]
                %300 = vst [vmem:[%s196 + $0x198] sm:$0xff] %v299
                %v301 = vld [vmem:[%s195 + $0x340] sm:$0xff]
                %302 = vst [vmem:[%s196 + $0x1a0] sm:$0xff] %v301
                %v303 = vld [vmem:[%s195 + $0x348] sm:$0xff]
                %304 = vst [vmem:[%s196 + $0x1a8] sm:$0xff] %v303
                %v305 = vld [vmem:[%s195 + $0x360] sm:$0xff]
                %306 = vst [vmem:[%s196 + $0x1b0] sm:$0xff] %v305
                %v307 = vld [vmem:[%s195 + $0x368] sm:$0xff]
                %308 = vst [vmem:[%s196 + $0x1b8] sm:$0xff] %v307
                %v309 = vld [vmem:[%s195 + $0x380] sm:$0xff]
                %310 = vst [vmem:[%s196 + $0x1c0] sm:$0xff] %v309
                %v311 = vld [vmem:[%s195 + $0x388] sm:$0xff]
                %312 = vst [vmem:[%s196 + $0x1c8] sm:$0xff] %v311
                %v313 = vld [vmem:[%s195 + $0x3a0] sm:$0xff]
                %314 = vst [vmem:[%s196 + $0x1d0] sm:$0xff] %v313
                %v315 = vld [vmem:[%s195 + $0x3a8] sm:$0xff]
                %316 = vst [vmem:[%s196 + $0x1d8] sm:$0xff] %v315
                %v317 = vld [vmem:[%s195 + $0x3c0] sm:$0xff]
                %318 = vst [vmem:[%s196 + $0x1e0] sm:$0xff] %v317
                %v319 = vld [vmem:[%s195 + $0x3c8] sm:$0xff]
                %320 = vst [vmem:[%s196 + $0x1e8] sm:$0xff] %v319
                %v321 = vld [vmem:[%s195 + $0x3e0] sm:$0xff]
                %322 = vst [vmem:[%s196 + $0x1f0] sm:$0xff] %v321
                %v323 = vld [vmem:[%s195 + $0x3e8] sm:$0xff]
                %324 = vst [vmem:[%s196 + $0x1f8] sm:$0xff] %v323
                %v325 = vld [vmem:[%s195 + $0x400] sm:$0xff]
                %326 = vst [vmem:[%s196 + $0x200] sm:$0xff] %v325
                %v327 = vld [vmem:[%s195 + $0x408] sm:$0xff]
                %328 = vst [vmem:[%s196 + $0x208] sm:$0xff] %v327
                %v329 = vld [vmem:[%s195 + $0x420] sm:$0xff]
                %330 = vst [vmem:[%s196 + $0x210] sm:$0xff] %v329
                %v331 = vld [vmem:[%s195 + $0x428] sm:$0xff]
                %332 = vst [vmem:[%s196 + $0x218] sm:$0xff] %v331
                %v333 = vld [vmem:[%s195 + $0x440] sm:$0xff]
                %334 = vst [vmem:[%s196 + $0x220] sm:$0xff] %v333
                %v335 = vld [vmem:[%s195 + $0x448] sm:$0xff]
                %336 = vst [vmem:[%s196 + $0x228] sm:$0xff] %v335
                %v337 = vld [vmem:[%s195 + $0x460] sm:$0xff]
                %338 = vst [vmem:[%s196 + $0x230] sm:$0xff] %v337
                %v339 = vld [vmem:[%s195 + $0x468] sm:$0xff]
                %340 = vst [vmem:[%s196 + $0x238] sm:$0xff] %v339
                %v341 = vld [vmem:[%s195 + $0x480] sm:$0xff]
                %342 = vst [vmem:[%s196 + $0x240] sm:$0xff] %v341
                %v343 = vld [vmem:[%s195 + $0x488] sm:$0xff]
                %344 = vst [vmem:[%s196 + $0x248] sm:$0xff] %v343
                %v345 = vld [vmem:[%s195 + $0x4a0] sm:$0xff]
                %346 = vst [vmem:[%s196 + $0x250] sm:$0xff] %v345
                %v347 = vld [vmem:[%s195 + $0x4a8] sm:$0xff]
                %348 = vst [vmem:[%s196 + $0x258] sm:$0xff] %v347
                %v349 = vld [vmem:[%s195 + $0x4c0] sm:$0xff]
                %350 = vst [vmem:[%s196 + $0x260] sm:$0xff] %v349
                %v351 = vld [vmem:[%s195 + $0x4c8] sm:$0xff]
                %352 = vst [vmem:[%s196 + $0x268] sm:$0xff] %v351
                %v353 = vld [vmem:[%s195 + $0x4e0] sm:$0xff]
                %354 = vst [vmem:[%s196 + $0x270] sm:$0xff] %v353
                %v355 = vld [vmem:[%s195 + $0x4e8] sm:$0xff]
                %356 = vst [vmem:[%s196 + $0x278] sm:$0xff] %v355
                %v357 = vld [vmem:[%s195 + $0x500] sm:$0xff]
                %358 = vst [vmem:[%s196 + $0x280] sm:$0xff] %v357
                %v359 = vld [vmem:[%s195 + $0x508] sm:$0xff]
                %360 = vst [vmem:[%s196 + $0x288] sm:$0xff] %v359
                %v361 = vld [vmem:[%s195 + $0x520] sm:$0xff]
                %362 = vst [vmem:[%s196 + $0x290] sm:$0xff] %v361
                %v363 = vld [vmem:[%s195 + $0x528] sm:$0xff]
                %364 = vst [vmem:[%s196 + $0x298] sm:$0xff] %v363
                %v365 = vld [vmem:[%s195 + $0x540] sm:$0xff]
                %366 = vst [vmem:[%s196 + $0x2a0] sm:$0xff] %v365
                %v367 = vld [vmem:[%s195 + $0x548] sm:$0xff]
                %368 = vst [vmem:[%s196 + $0x2a8] sm:$0xff] %v367
                %v369 = vld [vmem:[%s195 + $0x560] sm:$0xff]
                %370 = vst [vmem:[%s196 + $0x2b0] sm:$0xff] %v369
                %v371 = vld [vmem:[%s195 + $0x568] sm:$0xff]
                %372 = vst [vmem:[%s196 + $0x2b8] sm:$0xff] %v371
                %v373 = vld [vmem:[%s195 + $0x580] sm:$0xff]
                %374 = vst [vmem:[%s196 + $0x2c0] sm:$0xff] %v373
                %v375 = vld [vmem:[%s195 + $0x588] sm:$0xff]
                %376 = vst [vmem:[%s196 + $0x2c8] sm:$0xff] %v375
                %v377 = vld [vmem:[%s195 + $0x5a0] sm:$0xff]
                %378 = vst [vmem:[%s196 + $0x2d0] sm:$0xff] %v377
                %v379 = vld [vmem:[%s195 + $0x5a8] sm:$0xff]
                %380 = vst [vmem:[%s196 + $0x2d8] sm:$0xff] %v379
                %v381 = vld [vmem:[%s195 + $0x5c0] sm:$0xff]
                %382 = vst [vmem:[%s196 + $0x2e0] sm:$0xff] %v381
                %v383 = vld [vmem:[%s195 + $0x5c8] sm:$0xff]
                %384 = vst [vmem:[%s196 + $0x2e8] sm:$0xff] %v383
                %v385 = vld [vmem:[%s195 + $0x5e0] sm:$0xff]
                %386 = vst [vmem:[%s196 + $0x2f0] sm:$0xff] %v385
                %v387 = vld [vmem:[%s195 + $0x5e8] sm:$0xff]
                %388 = vst [vmem:[%s196 + $0x2f8] sm:$0xff] %v387
                %v389 = vld [vmem:[%s195 + $0x600] sm:$0xff]
                %390 = vst [vmem:[%s196 + $0x300] sm:$0xff] %v389
                %v391 = vld [vmem:[%s195 + $0x608] sm:$0xff]
                %392 = vst [vmem:[%s196 + $0x308] sm:$0xff] %v391
                %v393 = vld [vmem:[%s195 + $0x620] sm:$0xff]
                %394 = vst [vmem:[%s196 + $0x310] sm:$0xff] %v393
                %v395 = vld [vmem:[%s195 + $0x628] sm:$0xff]
                %396 = vst [vmem:[%s196 + $0x318] sm:$0xff] %v395
                %v397 = vld [vmem:[%s195 + $0x640] sm:$0xff]
                %398 = vst [vmem:[%s196 + $0x320] sm:$0xff] %v397
                %v399 = vld [vmem:[%s195 + $0x648] sm:$0xff]
                %400 = vst [vmem:[%s196 + $0x328] sm:$0xff] %v399
                %v401 = vld [vmem:[%s195 + $0x660] sm:$0xff]
                %402 = vst [vmem:[%s196 + $0x330] sm:$0xff] %v401
                %v403 = vld [vmem:[%s195 + $0x668] sm:$0xff]
                %404 = vst [vmem:[%s196 + $0x338] sm:$0xff] %v403
                %v405 = vld [vmem:[%s195 + $0x680] sm:$0xff]
                %406 = vst [vmem:[%s196 + $0x340] sm:$0xff] %v405
                %v407 = vld [vmem:[%s195 + $0x688] sm:$0xff]
                %408 = vst [vmem:[%s196 + $0x348] sm:$0xff] %v407
                %v409 = vld [vmem:[%s195 + $0x6a0] sm:$0xff]
                %410 = vst [vmem:[%s196 + $0x350] sm:$0xff] %v409
                %v411 = vld [vmem:[%s195 + $0x6a8] sm:$0xff]
                %412 = vst [vmem:[%s196 + $0x358] sm:$0xff] %v411
                %v413 = vld [vmem:[%s195 + $0x6c0] sm:$0xff]
                %414 = vst [vmem:[%s196 + $0x360] sm:$0xff] %v413
                %v415 = vld [vmem:[%s195 + $0x6c8] sm:$0xff]
                %416 = vst [vmem:[%s196 + $0x368] sm:$0xff] %v415
                %v417 = vld [vmem:[%s195 + $0x6e0] sm:$0xff]
                %418 = vst [vmem:[%s196 + $0x370] sm:$0xff] %v417
                %v419 = vld [vmem:[%s195 + $0x6e8] sm:$0xff]
                %420 = vst [vmem:[%s196 + $0x378] sm:$0xff] %v419
                %v421 = vld [vmem:[%s195 + $0x700] sm:$0xff]
                %422 = vst [vmem:[%s196 + $0x380] sm:$0xff] %v421
                %v423 = vld [vmem:[%s195 + $0x708] sm:$0xff]
                %424 = vst [vmem:[%s196 + $0x388] sm:$0xff] %v423
                %v425 = vld [vmem:[%s195 + $0x720] sm:$0xff]
                %426 = vst [vmem:[%s196 + $0x390] sm:$0xff] %v425
                %v427 = vld [vmem:[%s195 + $0x728] sm:$0xff]
                %428 = vst [vmem:[%s196 + $0x398] sm:$0xff] %v427
                %v429 = vld [vmem:[%s195 + $0x740] sm:$0xff]
                %430 = vst [vmem:[%s196 + $0x3a0] sm:$0xff] %v429
                %v431 = vld [vmem:[%s195 + $0x748] sm:$0xff]
                %432 = vst [vmem:[%s196 + $0x3a8] sm:$0xff] %v431
                %v433 = vld [vmem:[%s195 + $0x760] sm:$0xff]
                %434 = vst [vmem:[%s196 + $0x3b0] sm:$0xff] %v433
                %v435 = vld [vmem:[%s195 + $0x768] sm:$0xff]
                %436 = vst [vmem:[%s196 + $0x3b8] sm:$0xff] %v435
                %v437 = vld [vmem:[%s195 + $0x780] sm:$0xff]
                %438 = vst [vmem:[%s196 + $0x3c0] sm:$0xff] %v437
                %v439 = vld [vmem:[%s195 + $0x788] sm:$0xff]
                %440 = vst [vmem:[%s196 + $0x3c8] sm:$0xff] %v439
                %v441 = vld [vmem:[%s195 + $0x7a0] sm:$0xff]
                %442 = vst [vmem:[%s196 + $0x3d0] sm:$0xff] %v441
                %v443 = vld [vmem:[%s195 + $0x7a8] sm:$0xff]
                %444 = vst [vmem:[%s196 + $0x3d8] sm:$0xff] %v443
                %v445 = vld [vmem:[%s195 + $0x7c0] sm:$0xff]
                %446 = vst [vmem:[%s196 + $0x3e0] sm:$0xff] %v445
                %v447 = vld [vmem:[%s195 + $0x7c8] sm:$0xff]
                %448 = vst [vmem:[%s196 + $0x3e8] sm:$0xff] %v447
                %v449 = vld [vmem:[%s195 + $0x7e0] sm:$0xff]
                %450 = vst [vmem:[%s196 + $0x3f0] sm:$0xff] %v449
                %v451 = vld [vmem:[%s195 + $0x7e8] sm:$0xff]
                %452 = vst [vmem:[%s196 + $0x3f8] sm:$0xff] %v451
              $region37: #{net_forward.12} parent=31 // loop_footer
                %s194 = sadd.s32 1, %s190
              $region38: #{net_forward.12} parent=31 // loop_footer_branch
                %189 = sbr.rel target = $region34
              $region39: #{net_forward.12} parent=31 // loop_exit
                _
            $region32: #{net_forward.12} parent=27 // pred_fallthru
              _
            // Predicated region
            $region40: #{net_forward.12} parent=27 // pred_check
              _
            $region41: #{net_forward.12} parent=27 // pred_check_branch
              %454 = sbr.rel target = $region43
            $region42: #{net_forward.12} parent=27 // pred_region
              _
            $region43: #{net_forward.12} parent=27 // pred_fallthru
              _
          $region28: #{net_forward.12} parent=23 // pred_fallthru
            _
          %455 = vnop
        $region24: #{net_forward.12} parent=15 // pred_fallthru
          _
        // Predicated region
        $region44: #{net_forward.12} parent=15 // pred_check
          %p456 = pneg %p106
        $region45: #{net_forward.12} parent=15 // pred_check_branch
          %458 = sbr.rel (%p456) target = $region47
        $region46: #{net_forward.12} parent=15 // pred_region
          %s459 = smul.u32 4, %s18
          %p460 = scmp.lt.s32.totalorder %s16, 1
          %s461 = scalar_select %p460, %s16, 1
          %p462 = scmp.lt.s32.totalorder %s459, 7
          %s463 = scalar_select %p462, %s459, 7
          %s464 = smul.addr %s461, 8
          %s465 = sadd.s32 %s463, %s464
          %s466 = scalar_lea.vmem %s2, %s465
          %s467 = smul.u32 4, %s18
        $region47: #{net_forward.12} parent=15 // pred_fallthru
          _
      $region16: #{net_forward.12} parent=5 // pred_fallthru
        _
      %p468 = scmp.le.s32.totalorder 1, %s9
      %p469 = scmp.lt.s32.totalorder %s9, 5
      %p470 = pnand %p468, %p469
      %p471 = pneg %p470
      // Predicated region
      $region48: #{net_forward.12} parent=5 // pred_check
        _
      $region49: #{net_forward.12} parent=5 // pred_check_branch
        %473 = sbr.rel (%p470) target = $region51
      $region50: #{net_forward.12} parent=5 // pred_region
        %s474 = ssub.s32 %s9, 1
        %s475 = sand.u32 %s71, 1
        %s476 = sand.u32 %s71, 1
        %s477 = smul.addr %s476, 1024
        %s478 = scalar_lea.vmem [#allocation2], %s477
        // Predicated region
        $region52: #{net_forward.12} parent=50 // pred_check
          %p479 = pneg %p84
        $region53: #{net_forward.12} parent=50 // pred_check_branch
          %481 = sbr.rel (%p479) target = $region55
        $region54: #{net_forward.12} parent=50 // pred_region
          _
        $region55: #{net_forward.12} parent=50 // pred_fallthru
          _
        %p482 = scmp.lt.s32.totalorder %s19, 1
        %s483 = scalar_select %p482, %s19, 1
        %p484 = scmp.lt.s32.totalorder %s20, 0
        %s485 = scalar_select %p484, %s20, 0
        %s486 = smul.addr %s485, 4
        %s487 = smul.addr %s483, 4
        %s488 = sadd.s32 %s486, %s487
        %s489 = smul.addr %s488, 4
        %s490 = scalar_lea.vmem %s0, %s489
        %p491 = pneg %p56
        %p492 = pneg %p53
        %s493 = sand.u32 %s71, 1
        %s494 = sand.u32 %s71, 1
        %s495 = smul.addr %s494, 1024
        %s496 = scalar_lea.vmem [#allocation2], %s495
        %p497 = pneg %p84
        %p498 = pneg %p81
        %s499 = smul.u32 4, %s21
        %p500 = scmp.lt.s32.totalorder %s19, 1
        %s501 = scalar_select %p500, %s19, 1
        %p502 = scmp.lt.s32.totalorder %s499, 7
        %s503 = scalar_select %p502, %s499, 7
        %s504 = smul.addr %s501, 8
        %s505 = sadd.s32 %s503, %s504
        %s506 = scalar_lea.vmem %s2, %s505
        %p507 = pneg %p112
        %p508 = pneg %p109
        %p509 = pneg %p142
        %p510 = pneg %p139
        %s511 = smul.u32 4, %s21
        %p512 = scmp.lt.s32.totalorder %s19, 1
        %s513 = scalar_select %p512, %s19, 1
        %p514 = scmp.lt.s32.totalorder %s20, 0
        %s515 = scalar_select %p514, %s20, 0
        %p516 = scmp.lt.s32.totalorder %s511, 7
        %s517 = scalar_select %p516, %s511, 7
        %s518 = smul.addr %s515, 8
        %s519 = sadd.s32 %s517, %s518
        %s520 = smul.addr %s513, 8
        %s521 = sadd.s32 %s519, %s520
        %s522 = smul.addr %s521, 4
        %s523 = scalar_lea.vmem %s3, %s522
        %p524 = scmp.lt.s32.totalorder %s19, 1
        %s525 = scalar_select %p524, %s19, 1
        %p526 = scmp.lt.s32.totalorder %s20, 0
        %s527 = scalar_select %p526, %s20, 0
        %s528 = smul.addr %s527, 4
        %s529 = smul.addr %s525, 4
        %s530 = sadd.s32 %s528, %s529
        %s531 = smul.addr %s530, 4
        %s532 = scalar_lea.vmem %s0, %s531
        %s533 = smul.u32 4, %s21
        %s534 = smul.u32 4, %s21
        %p535 = scmp.lt.s32.totalorder %s19, 1
        %s536 = scalar_select %p535, %s19, 1
        %p537 = scmp.lt.s32.totalorder %s534, 7
        %s538 = scalar_select %p537, %s534, 7
        %s539 = smul.addr %s536, 8
        %s540 = sadd.s32 %s538, %s539
        %s541 = scalar_lea.vmem %s2, %s540
        %s542 = smul.u32 4, %s21
        %s543 = smul.u32 4, %s21
        %p544 = scmp.lt.s32.totalorder %s19, 1
        %s545 = scalar_select %p544, %s19, 1
        %p546 = scmp.lt.s32.totalorder %s20, 0
        %s547 = scalar_select %p546, %s20, 0
        %p548 = scmp.lt.s32.totalorder %s543, 7
        %s549 = scalar_select %p548, %s543, 7
        %s550 = smul.addr %s547, 8
        %s551 = sadd.s32 %s549, %s550
        %s552 = smul.addr %s545, 8
        %s553 = sadd.s32 %s551, %s552
        %s554 = smul.addr %s553, 4
        %s555 = scalar_lea.vmem %s3, %s554
        %s556 = smul.u32 4, %s21
        %v557 = vld [vmem:[%s532] sm:$0xff]
        %v558 = vld [vmem:[%s532 + $0x8] sm:$0xff]
        %v559 = vld [vmem:[%s478] sm:$0xff]
        %v560 = vld [vmem:[%s478 + $0x8] sm:$0xff]
        %v561 = vld [vmem:[%s478 + $0x10] sm:$0xff]
        %v562 = vld [vmem:[%s478 + $0x18] sm:$0xff]
        %v563 = vld [vmem:[%s478 + $0x20] sm:$0xff]
        %v564 = vld [vmem:[%s478 + $0x28] sm:$0xff]
        %v565 = vld [vmem:[%s478 + $0x30] sm:$0xff]
        %v566 = vld [vmem:[%s478 + $0x38] sm:$0xff]
        %v567 = vld [vmem:[%s478 + $0x40] sm:$0xff]
        %v568 = vld [vmem:[%s478 + $0x48] sm:$0xff]
        %v569 = vld [vmem:[%s478 + $0x50] sm:$0xff]
        %v570 = vld [vmem:[%s478 + $0x58] sm:$0xff]
        %v571 = vld [vmem:[%s478 + $0x60] sm:$0xff]
        %v572 = vld [vmem:[%s478 + $0x68] sm:$0xff]
        %v573 = vld [vmem:[%s478 + $0x70] sm:$0xff]
        %v574 = vld [vmem:[%s478 + $0x78] sm:$0xff]
        %v575 = vld [vmem:[%s478 + $0x80] sm:$0xff]
        %v576 = vld [vmem:[%s478 + $0x88] sm:$0xff]
        %v577 = vld [vmem:[%s478 + $0x90] sm:$0xff]
        %v578 = vld [vmem:[%s478 + $0x98] sm:$0xff]
        %v579 = vld [vmem:[%s478 + $0xa0] sm:$0xff]
        %v580 = vld [vmem:[%s478 + $0xa8] sm:$0xff]
        %v581 = vld [vmem:[%s478 + $0xb0] sm:$0xff]
        %v582 = vld [vmem:[%s478 + $0xb8] sm:$0xff]
        %v583 = vld [vmem:[%s478 + $0xc0] sm:$0xff]
        %v584 = vld [vmem:[%s478 + $0xc8] sm:$0xff]
        %v585 = vld [vmem:[%s478 + $0xd0] sm:$0xff]
        %v586 = vld [vmem:[%s478 + $0xd8] sm:$0xff]
        %v587 = vld [vmem:[%s478 + $0xe0] sm:$0xff]
        %v588 = vld [vmem:[%s478 + $0xe8] sm:$0xff]
        %v589 = vld [vmem:[%s478 + $0xf0] sm:$0xff]
        %v590 = vld [vmem:[%s478 + $0xf8] sm:$0xff]
        %v591 = vld [vmem:[%s478 + $0x100] sm:$0xff]
        %v592 = vld [vmem:[%s478 + $0x108] sm:$0xff]
        %v593 = vld [vmem:[%s478 + $0x110] sm:$0xff]
        %v594 = vld [vmem:[%s478 + $0x118] sm:$0xff]
        %v595 = vld [vmem:[%s478 + $0x120] sm:$0xff]
        %v596 = vld [vmem:[%s478 + $0x128] sm:$0xff]
        %v597 = vld [vmem:[%s478 + $0x130] sm:$0xff]
        %v598 = vld [vmem:[%s478 + $0x138] sm:$0xff]
        %v599 = vld [vmem:[%s478 + $0x140] sm:$0xff]
        %v600 = vld [vmem:[%s478 + $0x148] sm:$0xff]
        %v601 = vld [vmem:[%s478 + $0x150] sm:$0xff]
        %v602 = vld [vmem:[%s478 + $0x158] sm:$0xff]
        %v603 = vld [vmem:[%s478 + $0x160] sm:$0xff]
        %v604 = vld [vmem:[%s478 + $0x168] sm:$0xff]
        %v605 = vld [vmem:[%s478 + $0x170] sm:$0xff]
        %v606 = vld [vmem:[%s478 + $0x178] sm:$0xff]
        %v607 = vld [vmem:[%s478 + $0x180] sm:$0xff]
        %v608 = vld [vmem:[%s478 + $0x188] sm:$0xff]
        %v609 = vld [vmem:[%s478 + $0x190] sm:$0xff]
        %v610 = vld [vmem:[%s478 + $0x198] sm:$0xff]
        %v611 = vld [vmem:[%s478 + $0x1a0] sm:$0xff]
        %v612 = vld [vmem:[%s478 + $0x1a8] sm:$0xff]
        %v613 = vld [vmem:[%s478 + $0x1b0] sm:$0xff]
        %v614 = vld [vmem:[%s478 + $0x1b8] sm:$0xff]
        %v615 = vld [vmem:[%s478 + $0x1c0] sm:$0xff]
        %v616 = vld [vmem:[%s478 + $0x1c8] sm:$0xff]
        %v617 = vld [vmem:[%s478 + $0x1d0] sm:$0xff]
        %v618 = vld [vmem:[%s478 + $0x1d8] sm:$0xff]
        %v619 = vld [vmem:[%s478 + $0x1e0] sm:$0xff]
        %v620 = vld [vmem:[%s478 + $0x1e8] sm:$0xff]
        %v621 = vld [vmem:[%s478 + $0x1f0] sm:$0xff]
        %v622 = vld [vmem:[%s478 + $0x1f8] sm:$0xff]
        %v623 = vld [vmem:[%s478 + $0x200] sm:$0xff]
        %v624 = vld [vmem:[%s478 + $0x208] sm:$0xff]
        %v625 = vld [vmem:[%s478 + $0x210] sm:$0xff]
        %v626 = vld [vmem:[%s478 + $0x218] sm:$0xff]
        %v627 = vld [vmem:[%s478 + $0x220] sm:$0xff]
        %v628 = vld [vmem:[%s478 + $0x228] sm:$0xff]
        %v629 = vld [vmem:[%s478 + $0x230] sm:$0xff]
        %v630 = vld [vmem:[%s478 + $0x238] sm:$0xff]
        %v631 = vld [vmem:[%s478 + $0x240] sm:$0xff]
        %v632 = vld [vmem:[%s478 + $0x248] sm:$0xff]
        %v633 = vld [vmem:[%s478 + $0x250] sm:$0xff]
        %v634 = vld [vmem:[%s478 + $0x258] sm:$0xff]
        %v635 = vld [vmem:[%s478 + $0x260] sm:$0xff]
        %v636 = vld [vmem:[%s478 + $0x268] sm:$0xff]
        %v637 = vld [vmem:[%s478 + $0x270] sm:$0xff]
        %v638 = vld [vmem:[%s478 + $0x278] sm:$0xff]
        %v639 = vld [vmem:[%s478 + $0x280] sm:$0xff]
        %v640 = vld [vmem:[%s478 + $0x288] sm:$0xff]
        %v641 = vld [vmem:[%s478 + $0x290] sm:$0xff]
        %v642 = vld [vmem:[%s478 + $0x298] sm:$0xff]
        %v643 = vld [vmem:[%s478 + $0x2a0] sm:$0xff]
        %v644 = vld [vmem:[%s478 + $0x2a8] sm:$0xff]
        %v645 = vld [vmem:[%s478 + $0x2b0] sm:$0xff]
        %v646 = vld [vmem:[%s478 + $0x2b8] sm:$0xff]
        %v647 = vld [vmem:[%s478 + $0x2c0] sm:$0xff]
        %v648 = vld [vmem:[%s478 + $0x2c8] sm:$0xff]
        %v649 = vld [vmem:[%s478 + $0x2d0] sm:$0xff]
        %v650 = vld [vmem:[%s478 + $0x2d8] sm:$0xff]
        %v651 = vld [vmem:[%s478 + $0x2e0] sm:$0xff]
        %v652 = vld [vmem:[%s478 + $0x2e8] sm:$0xff]
        %v653 = vld [vmem:[%s478 + $0x2f0] sm:$0xff]
        %v654 = vld [vmem:[%s478 + $0x2f8] sm:$0xff]
        %v655 = vld [vmem:[%s478 + $0x300] sm:$0xff]
        %v656 = vld [vmem:[%s478 + $0x308] sm:$0xff]
        %v657 = vld [vmem:[%s478 + $0x310] sm:$0xff]
        %v658 = vld [vmem:[%s478 + $0x318] sm:$0xff]
        %v659 = vld [vmem:[%s478 + $0x320] sm:$0xff]
        %v660 = vld [vmem:[%s478 + $0x328] sm:$0xff]
        %v661 = vld [vmem:[%s478 + $0x330] sm:$0xff]
        %v662 = vld [vmem:[%s478 + $0x338] sm:$0xff]
        %v663 = vld [vmem:[%s478 + $0x340] sm:$0xff]
        %v664 = vld [vmem:[%s478 + $0x348] sm:$0xff]
        %v665 = vld [vmem:[%s478 + $0x350] sm:$0xff]
        %v666 = vld [vmem:[%s478 + $0x358] sm:$0xff]
        %v667 = vld [vmem:[%s478 + $0x360] sm:$0xff]
        %v668 = vld [vmem:[%s478 + $0x368] sm:$0xff]
        %v669 = vld [vmem:[%s478 + $0x370] sm:$0xff]
        %v670 = vld [vmem:[%s478 + $0x378] sm:$0xff]
        %v671 = vld [vmem:[%s478 + $0x380] sm:$0xff]
        %v672 = vld [vmem:[%s478 + $0x388] sm:$0xff]
        %v673 = vld [vmem:[%s478 + $0x390] sm:$0xff]
        %v674 = vld [vmem:[%s478 + $0x398] sm:$0xff]
        %v675 = vld [vmem:[%s478 + $0x3a0] sm:$0xff]
        %v676 = vld [vmem:[%s478 + $0x3a8] sm:$0xff]
        %v677 = vld [vmem:[%s478 + $0x3b0] sm:$0xff]
        %v678 = vld [vmem:[%s478 + $0x3b8] sm:$0xff]
        %v679 = vld [vmem:[%s478 + $0x3c0] sm:$0xff]
        %v680 = vld [vmem:[%s478 + $0x3c8] sm:$0xff]
        %v681 = vld [vmem:[%s478 + $0x3d0] sm:$0xff]
        %v682 = vld [vmem:[%s478 + $0x3d8] sm:$0xff]
        %v683 = vld [vmem:[%s478 + $0x3e0] sm:$0xff]
        %v684 = vld [vmem:[%s478 + $0x3e8] sm:$0xff]
        %v685 = vld [vmem:[%s478 + $0x3f0] sm:$0xff]
        %v686 = vld [vmem:[%s478 + $0x3f8] sm:$0xff]
        %v687 = vld [vmem:[%s541] sm:$0xf]
        %v689 = vlaneseq
        %v690 = vshrl.u32 %v689, 7
        %v691 = vsub.s32 0, %v690
        %v692 = vrot.slane %v687, %v691
        %v693 = vlaneseq
        %v694 = vshrl.u32 %v693, 7
        %v695 = vsub.s32 1, %v694
        %v696 = vrot.slane %v687, %v695
        %v697 = vlaneseq
        %v698 = vshrl.u32 %v697, 7
        %v699 = vsub.s32 2, %v698
        %v700 = vrot.slane %v687, %v699
        %v701 = vlaneseq
        %v702 = vshrl.u32 %v701, 7
        %v703 = vsub.s32 3, %v702
        %v704 = vrot.slane %v687, %v703
        %v711 = vunpack.c.l.b16 %v557
        %v712 = vunpack.c.h.b16 %v557
        %v713 = vunpack.c.l.b16 %v558
        %v714 = vunpack.c.h.b16 %v558
        %v715 = vpack.c.b16 %v711, %v711
        %v716 = vpack.c.b16 %v712, %v712
        %v717 = vpack.c.b16 %v713, %v713
        %v718 = vpack.c.b16 %v714, %v714
        %v851 = vunpack.c.l.b16 %v559
        %v852 = vunpack.c.h.b16 %v559
        %v853 = vunpack.c.l.b16 %v560
        %v854 = vunpack.c.h.b16 %v560
        %v855 = vunpack.c.l.b16 %v561
        %v856 = vunpack.c.h.b16 %v561
        %v857 = vunpack.c.l.b16 %v562
        %v858 = vunpack.c.h.b16 %v562
        %v859 = vunpack.c.l.b16 %v563
        %v860 = vunpack.c.h.b16 %v563
        %v861 = vunpack.c.l.b16 %v564
        %v862 = vunpack.c.h.b16 %v564
        %v863 = vunpack.c.l.b16 %v565
        %v864 = vunpack.c.h.b16 %v565
        %v865 = vunpack.c.l.b16 %v566
        %v866 = vunpack.c.h.b16 %v566
        %v867 = vunpack.c.l.b16 %v567
        %v868 = vunpack.c.h.b16 %v567
        %v869 = vunpack.c.l.b16 %v568
        %v870 = vunpack.c.h.b16 %v568
        %v871 = vunpack.c.l.b16 %v569
        %v872 = vunpack.c.h.b16 %v569
        %v873 = vunpack.c.l.b16 %v570
        %v874 = vunpack.c.h.b16 %v570
        %v875 = vunpack.c.l.b16 %v571
        %v876 = vunpack.c.h.b16 %v571
        %v877 = vunpack.c.l.b16 %v572
        %v878 = vunpack.c.h.b16 %v572
        %v879 = vunpack.c.l.b16 %v573
        %v880 = vunpack.c.h.b16 %v573
        %v881 = vunpack.c.l.b16 %v574
        %v882 = vunpack.c.h.b16 %v574
        %v883 = vunpack.c.l.b16 %v575
        %v884 = vunpack.c.h.b16 %v575
        %v885 = vunpack.c.l.b16 %v576
        %v886 = vunpack.c.h.b16 %v576
        %v887 = vunpack.c.l.b16 %v577
        %v888 = vunpack.c.h.b16 %v577
        %v889 = vunpack.c.l.b16 %v578
        %v890 = vunpack.c.h.b16 %v578
        %v891 = vunpack.c.l.b16 %v579
        %v892 = vunpack.c.h.b16 %v579
        %v893 = vunpack.c.l.b16 %v580
        %v894 = vunpack.c.h.b16 %v580
        %v895 = vunpack.c.l.b16 %v581
        %v896 = vunpack.c.h.b16 %v581
        %v897 = vunpack.c.l.b16 %v582
        %v898 = vunpack.c.h.b16 %v582
        %v899 = vunpack.c.l.b16 %v583
        %v900 = vunpack.c.h.b16 %v583
        %v901 = vunpack.c.l.b16 %v584
        %v902 = vunpack.c.h.b16 %v584
        %v903 = vunpack.c.l.b16 %v585
        %v904 = vunpack.c.h.b16 %v585
        %v905 = vunpack.c.l.b16 %v586
        %v906 = vunpack.c.h.b16 %v586
        %v907 = vunpack.c.l.b16 %v587
        %v908 = vunpack.c.h.b16 %v587
        %v909 = vunpack.c.l.b16 %v588
        %v910 = vunpack.c.h.b16 %v588
        %v911 = vunpack.c.l.b16 %v589
        %v912 = vunpack.c.h.b16 %v589
        %v913 = vunpack.c.l.b16 %v590
        %v914 = vunpack.c.h.b16 %v590
        %v915 = vunpack.c.l.b16 %v591
        %v916 = vunpack.c.h.b16 %v591
        %v917 = vunpack.c.l.b16 %v592
        %v918 = vunpack.c.h.b16 %v592
        %v919 = vunpack.c.l.b16 %v593
        %v920 = vunpack.c.h.b16 %v593
        %v921 = vunpack.c.l.b16 %v594
        %v922 = vunpack.c.h.b16 %v594
        %v923 = vunpack.c.l.b16 %v595
        %v924 = vunpack.c.h.b16 %v595
        %v925 = vunpack.c.l.b16 %v596
        %v926 = vunpack.c.h.b16 %v596
        %v927 = vunpack.c.l.b16 %v597
        %v928 = vunpack.c.h.b16 %v597
        %v929 = vunpack.c.l.b16 %v598
        %v930 = vunpack.c.h.b16 %v598
        %v931 = vunpack.c.l.b16 %v599
        %v932 = vunpack.c.h.b16 %v599
        %v933 = vunpack.c.l.b16 %v600
        %v934 = vunpack.c.h.b16 %v600
        %v935 = vunpack.c.l.b16 %v601
        %v936 = vunpack.c.h.b16 %v601
        %v937 = vunpack.c.l.b16 %v602
        %v938 = vunpack.c.h.b16 %v602
        %v939 = vunpack.c.l.b16 %v603
        %v940 = vunpack.c.h.b16 %v603
        %v941 = vunpack.c.l.b16 %v604
        %v942 = vunpack.c.h.b16 %v604
        %v943 = vunpack.c.l.b16 %v605
        %v944 = vunpack.c.h.b16 %v605
        %v945 = vunpack.c.l.b16 %v606
        %v946 = vunpack.c.h.b16 %v606
        %v947 = vunpack.c.l.b16 %v607
        %v948 = vunpack.c.h.b16 %v607
        %v949 = vunpack.c.l.b16 %v608
        %v950 = vunpack.c.h.b16 %v608
        %v951 = vunpack.c.l.b16 %v609
        %v952 = vunpack.c.h.b16 %v609
        %v953 = vunpack.c.l.b16 %v610
        %v954 = vunpack.c.h.b16 %v610
        %v955 = vunpack.c.l.b16 %v611
        %v956 = vunpack.c.h.b16 %v611
        %v957 = vunpack.c.l.b16 %v612
        %v958 = vunpack.c.h.b16 %v612
        %v959 = vunpack.c.l.b16 %v613
        %v960 = vunpack.c.h.b16 %v613
        %v961 = vunpack.c.l.b16 %v614
        %v962 = vunpack.c.h.b16 %v614
        %v963 = vunpack.c.l.b16 %v615
        %v964 = vunpack.c.h.b16 %v615
        %v965 = vunpack.c.l.b16 %v616
        %v966 = vunpack.c.h.b16 %v616
        %v967 = vunpack.c.l.b16 %v617
        %v968 = vunpack.c.h.b16 %v617
        %v969 = vunpack.c.l.b16 %v618
        %v970 = vunpack.c.h.b16 %v618
        %v971 = vunpack.c.l.b16 %v619
        %v972 = vunpack.c.h.b16 %v619
        %v973 = vunpack.c.l.b16 %v620
        %v974 = vunpack.c.h.b16 %v620
        %v975 = vunpack.c.l.b16 %v621
        %v976 = vunpack.c.h.b16 %v621
        %v977 = vunpack.c.l.b16 %v622
        %v978 = vunpack.c.h.b16 %v622
        %v979 = vunpack.c.l.b16 %v623
        %v980 = vunpack.c.h.b16 %v623
        %v981 = vunpack.c.l.b16 %v624
        %v982 = vunpack.c.h.b16 %v624
        %v983 = vunpack.c.l.b16 %v625
        %v984 = vunpack.c.h.b16 %v625
        %v985 = vunpack.c.l.b16 %v626
        %v986 = vunpack.c.h.b16 %v626
        %v987 = vunpack.c.l.b16 %v627
        %v988 = vunpack.c.h.b16 %v627
        %v989 = vunpack.c.l.b16 %v628
        %v990 = vunpack.c.h.b16 %v628
        %v991 = vunpack.c.l.b16 %v629
        %v992 = vunpack.c.h.b16 %v629
        %v993 = vunpack.c.l.b16 %v630
        %v994 = vunpack.c.h.b16 %v630
        %v995 = vunpack.c.l.b16 %v631
        %v996 = vunpack.c.h.b16 %v631
        %v997 = vunpack.c.l.b16 %v632
        %v998 = vunpack.c.h.b16 %v632
        %v999 = vunpack.c.l.b16 %v633
        %v1000 = vunpack.c.h.b16 %v633
        %v1001 = vunpack.c.l.b16 %v634
        %v1002 = vunpack.c.h.b16 %v634
        %v1003 = vunpack.c.l.b16 %v635
        %v1004 = vunpack.c.h.b16 %v635
        %v1005 = vunpack.c.l.b16 %v636
        %v1006 = vunpack.c.h.b16 %v636
        %v1007 = vunpack.c.l.b16 %v637
        %v1008 = vunpack.c.h.b16 %v637
        %v1009 = vunpack.c.l.b16 %v638
        %v1010 = vunpack.c.h.b16 %v638
        %v1011 = vunpack.c.l.b16 %v639
        %v1012 = vunpack.c.h.b16 %v639
        %v1013 = vunpack.c.l.b16 %v640
        %v1014 = vunpack.c.h.b16 %v640
        %v1015 = vunpack.c.l.b16 %v641
        %v1016 = vunpack.c.h.b16 %v641
        %v1017 = vunpack.c.l.b16 %v642
        %v1018 = vunpack.c.h.b16 %v642
        %v1019 = vunpack.c.l.b16 %v643
        %v1020 = vunpack.c.h.b16 %v643
        %v1021 = vunpack.c.l.b16 %v644
        %v1022 = vunpack.c.h.b16 %v644
        %v1023 = vunpack.c.l.b16 %v645
        %v1024 = vunpack.c.h.b16 %v645
        %v1025 = vunpack.c.l.b16 %v646
        %v1026 = vunpack.c.h.b16 %v646
        %v1027 = vunpack.c.l.b16 %v647
        %v1028 = vunpack.c.h.b16 %v647
        %v1029 = vunpack.c.l.b16 %v648
        %v1030 = vunpack.c.h.b16 %v648
        %v1031 = vunpack.c.l.b16 %v649
        %v1032 = vunpack.c.h.b16 %v649
        %v1033 = vunpack.c.l.b16 %v650
        %v1034 = vunpack.c.h.b16 %v650
        %v1035 = vunpack.c.l.b16 %v651
        %v1036 = vunpack.c.h.b16 %v651
        %v1037 = vunpack.c.l.b16 %v652
        %v1038 = vunpack.c.h.b16 %v652
        %v1039 = vunpack.c.l.b16 %v653
        %v1040 = vunpack.c.h.b16 %v653
        %v1041 = vunpack.c.l.b16 %v654
        %v1042 = vunpack.c.h.b16 %v654
        %v1043 = vunpack.c.l.b16 %v655
        %v1044 = vunpack.c.h.b16 %v655
        %v1045 = vunpack.c.l.b16 %v656
        %v1046 = vunpack.c.h.b16 %v656
        %v1047 = vunpack.c.l.b16 %v657
        %v1048 = vunpack.c.h.b16 %v657
        %v1049 = vunpack.c.l.b16 %v658
        %v1050 = vunpack.c.h.b16 %v658
        %v1051 = vunpack.c.l.b16 %v659
        %v1052 = vunpack.c.h.b16 %v659
        %v1053 = vunpack.c.l.b16 %v660
        %v1054 = vunpack.c.h.b16 %v660
        %v1055 = vunpack.c.l.b16 %v661
        %v1056 = vunpack.c.h.b16 %v661
        %v1057 = vunpack.c.l.b16 %v662
        %v1058 = vunpack.c.h.b16 %v662
        %v1059 = vunpack.c.l.b16 %v663
        %v1060 = vunpack.c.h.b16 %v663
        %v1061 = vunpack.c.l.b16 %v664
        %v1062 = vunpack.c.h.b16 %v664
        %v1063 = vunpack.c.l.b16 %v665
        %v1064 = vunpack.c.h.b16 %v665
        %v1065 = vunpack.c.l.b16 %v666
        %v1066 = vunpack.c.h.b16 %v666
        %v1067 = vunpack.c.l.b16 %v667
        %v1068 = vunpack.c.h.b16 %v667
        %v1069 = vunpack.c.l.b16 %v668
        %v1070 = vunpack.c.h.b16 %v668
        %v1071 = vunpack.c.l.b16 %v669
        %v1072 = vunpack.c.h.b16 %v669
        %v1073 = vunpack.c.l.b16 %v670
        %v1074 = vunpack.c.h.b16 %v670
        %v1075 = vunpack.c.l.b16 %v671
        %v1076 = vunpack.c.h.b16 %v671
        %v1077 = vunpack.c.l.b16 %v672
        %v1078 = vunpack.c.h.b16 %v672
        %v1079 = vunpack.c.l.b16 %v673
        %v1080 = vunpack.c.h.b16 %v673
        %v1081 = vunpack.c.l.b16 %v674
        %v1082 = vunpack.c.h.b16 %v674
        %v1083 = vunpack.c.l.b16 %v675
        %v1084 = vunpack.c.h.b16 %v675
        %v1085 = vunpack.c.l.b16 %v676
        %v1086 = vunpack.c.h.b16 %v676
        %v1087 = vunpack.c.l.b16 %v677
        %v1088 = vunpack.c.h.b16 %v677
        %v1089 = vunpack.c.l.b16 %v678
        %v1090 = vunpack.c.h.b16 %v678
        %v1091 = vunpack.c.l.b16 %v679
        %v1092 = vunpack.c.h.b16 %v679
        %v1093 = vunpack.c.l.b16 %v680
        %v1094 = vunpack.c.h.b16 %v680
        %v1095 = vunpack.c.l.b16 %v681
        %v1096 = vunpack.c.h.b16 %v681
        %v1097 = vunpack.c.l.b16 %v682
        %v1098 = vunpack.c.h.b16 %v682
        %v1099 = vunpack.c.l.b16 %v683
        %v1100 = vunpack.c.h.b16 %v683
        %v1101 = vunpack.c.l.b16 %v684
        %v1102 = vunpack.c.h.b16 %v684
        %v1103 = vunpack.c.l.b16 %v685
        %v1104 = vunpack.c.h.b16 %v685
        %v1105 = vunpack.c.l.b16 %v686
        %v1106 = vunpack.c.h.b16 %v686
        %v1107 = vpack.c.b16 %v855, %v851
        %v1108 = vpack.c.b16 %v856, %v852
        %v1109 = vpack.c.b16 %v857, %v853
        %v1110 = vpack.c.b16 %v858, %v854
        %v1111 = vpack.c.b16 %v863, %v859
        %v1112 = vpack.c.b16 %v864, %v860
        %v1113 = vpack.c.b16 %v865, %v861
        %v1114 = vpack.c.b16 %v866, %v862
        %v1115 = vpack.c.b16 %v871, %v867
        %v1116 = vpack.c.b16 %v872, %v868
        %v1117 = vpack.c.b16 %v873, %v869
        %v1118 = vpack.c.b16 %v874, %v870
        %v1119 = vpack.c.b16 %v879, %v875
        %v1120 = vpack.c.b16 %v880, %v876
        %v1121 = vpack.c.b16 %v881, %v877
        %v1122 = vpack.c.b16 %v882, %v878
        %v1123 = vpack.c.b16 %v887, %v883
        %v1124 = vpack.c.b16 %v888, %v884
        %v1125 = vpack.c.b16 %v889, %v885
        %v1126 = vpack.c.b16 %v890, %v886
        %v1127 = vpack.c.b16 %v895, %v891
        %v1128 = vpack.c.b16 %v896, %v892
        %v1129 = vpack.c.b16 %v897, %v893
        %v1130 = vpack.c.b16 %v898, %v894
        %v1131 = vpack.c.b16 %v903, %v899
        %v1132 = vpack.c.b16 %v904, %v900
        %v1133 = vpack.c.b16 %v905, %v901
        %v1134 = vpack.c.b16 %v906, %v902
        %v1135 = vpack.c.b16 %v911, %v907
        %v1136 = vpack.c.b16 %v912, %v908
        %v1137 = vpack.c.b16 %v913, %v909
        %v1138 = vpack.c.b16 %v914, %v910
        %v1139 = vpack.c.b16 %v919, %v915
        %v1140 = vpack.c.b16 %v920, %v916
        %v1141 = vpack.c.b16 %v921, %v917
        %v1142 = vpack.c.b16 %v922, %v918
        %v1143 = vpack.c.b16 %v927, %v923
        %v1144 = vpack.c.b16 %v928, %v924
        %v1145 = vpack.c.b16 %v929, %v925
        %v1146 = vpack.c.b16 %v930, %v926
        %v1147 = vpack.c.b16 %v935, %v931
        %v1148 = vpack.c.b16 %v936, %v932
        %v1149 = vpack.c.b16 %v937, %v933
        %v1150 = vpack.c.b16 %v938, %v934
        %v1151 = vpack.c.b16 %v943, %v939
        %v1152 = vpack.c.b16 %v944, %v940
        %v1153 = vpack.c.b16 %v945, %v941
        %v1154 = vpack.c.b16 %v946, %v942
        %v1155 = vpack.c.b16 %v951, %v947
        %v1156 = vpack.c.b16 %v952, %v948
        %v1157 = vpack.c.b16 %v953, %v949
        %v1158 = vpack.c.b16 %v954, %v950
        %v1159 = vpack.c.b16 %v959, %v955
        %v1160 = vpack.c.b16 %v960, %v956
        %v1161 = vpack.c.b16 %v961, %v957
        %v1162 = vpack.c.b16 %v962, %v958
        %v1163 = vpack.c.b16 %v967, %v963
        %v1164 = vpack.c.b16 %v968, %v964
        %v1165 = vpack.c.b16 %v969, %v965
        %v1166 = vpack.c.b16 %v970, %v966
        %v1167 = vpack.c.b16 %v975, %v971
        %v1168 = vpack.c.b16 %v976, %v972
        %v1169 = vpack.c.b16 %v977, %v973
        %v1170 = vpack.c.b16 %v978, %v974
        %v1171 = vpack.c.b16 %v983, %v979
        %v1172 = vpack.c.b16 %v984, %v980
        %v1173 = vpack.c.b16 %v985, %v981
        %v1174 = vpack.c.b16 %v986, %v982
        %v1175 = vpack.c.b16 %v991, %v987
        %v1176 = vpack.c.b16 %v992, %v988
        %v1177 = vpack.c.b16 %v993, %v989
        %v1178 = vpack.c.b16 %v994, %v990
        %v1179 = vpack.c.b16 %v999, %v995
        %v1180 = vpack.c.b16 %v1000, %v996
        %v1181 = vpack.c.b16 %v1001, %v997
        %v1182 = vpack.c.b16 %v1002, %v998
        %v1183 = vpack.c.b16 %v1007, %v1003
        %v1184 = vpack.c.b16 %v1008, %v1004
        %v1185 = vpack.c.b16 %v1009, %v1005
        %v1186 = vpack.c.b16 %v1010, %v1006
        %v1187 = vpack.c.b16 %v1015, %v1011
        %v1188 = vpack.c.b16 %v1016, %v1012
        %v1189 = vpack.c.b16 %v1017, %v1013
        %v1190 = vpack.c.b16 %v1018, %v1014
        %v1191 = vpack.c.b16 %v1023, %v1019
        %v1192 = vpack.c.b16 %v1024, %v1020
        %v1193 = vpack.c.b16 %v1025, %v1021
        %v1194 = vpack.c.b16 %v1026, %v1022
        %v1195 = vpack.c.b16 %v1031, %v1027
        %v1196 = vpack.c.b16 %v1032, %v1028
        %v1197 = vpack.c.b16 %v1033, %v1029
        %v1198 = vpack.c.b16 %v1034, %v1030
        %v1199 = vpack.c.b16 %v1039, %v1035
        %v1200 = vpack.c.b16 %v1040, %v1036
        %v1201 = vpack.c.b16 %v1041, %v1037
        %v1202 = vpack.c.b16 %v1042, %v1038
        %v1203 = vpack.c.b16 %v1047, %v1043
        %v1204 = vpack.c.b16 %v1048, %v1044
        %v1205 = vpack.c.b16 %v1049, %v1045
        %v1206 = vpack.c.b16 %v1050, %v1046
        %v1207 = vpack.c.b16 %v1055, %v1051
        %v1208 = vpack.c.b16 %v1056, %v1052
        %v1209 = vpack.c.b16 %v1057, %v1053
        %v1210 = vpack.c.b16 %v1058, %v1054
        %v1211 = vpack.c.b16 %v1063, %v1059
        %v1212 = vpack.c.b16 %v1064, %v1060
        %v1213 = vpack.c.b16 %v1065, %v1061
        %v1214 = vpack.c.b16 %v1066, %v1062
        %v1215 = vpack.c.b16 %v1071, %v1067
        %v1216 = vpack.c.b16 %v1072, %v1068
        %v1217 = vpack.c.b16 %v1073, %v1069
        %v1218 = vpack.c.b16 %v1074, %v1070
        %v1219 = vpack.c.b16 %v1079, %v1075
        %v1220 = vpack.c.b16 %v1080, %v1076
        %v1221 = vpack.c.b16 %v1081, %v1077
        %v1222 = vpack.c.b16 %v1082, %v1078
        %v1223 = vpack.c.b16 %v1087, %v1083
        %v1224 = vpack.c.b16 %v1088, %v1084
        %v1225 = vpack.c.b16 %v1089, %v1085
        %v1226 = vpack.c.b16 %v1090, %v1086
        %v1227 = vpack.c.b16 %v1095, %v1091
        %v1228 = vpack.c.b16 %v1096, %v1092
        %v1229 = vpack.c.b16 %v1097, %v1093
        %v1230 = vpack.c.b16 %v1098, %v1094
        %v1231 = vpack.c.b16 %v1103, %v1099
        %v1232 = vpack.c.b16 %v1104, %v1100
        %v1233 = vpack.c.b16 %v1105, %v1101
        %v1234 = vpack.c.b16 %v1106, %v1102
        %1363 = vmatprep.subr.bf16.mxu0 %v1136
        %1364 = vmatpush1.bf16.msra.mxu0 %v1135
        %1365 = vmatprep.subr.bf16.mxu0 %v1132
        %1366 = vmatpush1.bf16.msra.mxu0 %v1131
        %1367 = vmatprep.subr.bf16.mxu0 %v1128
        %1368 = vmatpush1.bf16.msra.mxu0 %v1127
        %1369 = vmatprep.subr.bf16.mxu0 %v1124
        %1370 = vmatpush1.bf16.msra.mxu0 %v1123
        %1371 = vmatprep.subr.bf16.mxu0 %v1120
        %1372 = vmatpush1.bf16.msra.mxu0 %v1119
        %1373 = vmatprep.subr.bf16.mxu0 %v1116
        %1374 = vmatpush1.bf16.msra.mxu0 %v1115
        %1375 = vmatprep.subr.bf16.mxu0 %v1112
        %1376 = vmatpush1.bf16.msra.mxu0 %v1111
        %1377 = vmatprep.subr.bf16.mxu0 %v1108
        %1378 = vmatpush1.bf16.msra.mxu0 %v1107
        %1379 = vmatprep.subr.bf16.mxu0 %v1168
        %1380 = vmatpush2.bf16.msra.mxu0 %v1167
        %1381 = vmatprep.subr.bf16.mxu0 %v1164
        %1382 = vmatpush2.bf16.msra.mxu0 %v1163
        %1383 = vmatprep.subr.bf16.mxu0 %v1160
        %1384 = vmatpush2.bf16.msra.mxu0 %v1159
        %1385 = vmatprep.subr.bf16.mxu0 %v1156
        %1386 = vmatpush2.bf16.msra.mxu0 %v1155
        %1387 = vmatprep.subr.bf16.mxu0 %v1152
        %1388 = vmatpush2.bf16.msra.mxu0 %v1151
        %1389 = vmatprep.subr.bf16.mxu0 %v1148
        %1390 = vmatpush2.bf16.msra.mxu0 %v1147
        %1391 = vmatprep.subr.bf16.mxu0 %v1144
        %1392 = vmatpush2.bf16.msra.mxu0 %v1143
        %1393 = vmatprep.subr.bf16.mxu0 %v1140
        %1394 = vmatpush2.bf16.msra.mxu0 %v1139
        %1395 = vmatprep.mubr.bf16.mxu0 %v716
        %1396 = vmatmul.mubr.bf16.gmra.mxu0 %v715
        %v1397 = vpop.f32.mrf.mxu0
        %v1398 = vadd.f32 %v692, %v1397
        %v1399 = vpop.f32.mrf.mxu0
        %v1400 = vadd.f32 %v696, %v1399
        %v1401 = vpop.f32.mrf.mxu0
        %v1402 = vpop.f32.mrf.mxu0
        %1403 = vdwg.mxu0
        %1404 = vmatprep.subr.bf16.mxu0 %v1200
        %1405 = vmatpush1.bf16.msra.mxu0 %v1199
        %1406 = vmatprep.subr.bf16.mxu0 %v1196
        %1407 = vmatpush1.bf16.msra.mxu0 %v1195
        %1408 = vmatprep.subr.bf16.mxu0 %v1192
        %1409 = vmatpush1.bf16.msra.mxu0 %v1191
        %1410 = vmatprep.subr.bf16.mxu0 %v1188
        %1411 = vmatpush1.bf16.msra.mxu0 %v1187
        %1412 = vmatprep.subr.bf16.mxu0 %v1184
        %1413 = vmatpush1.bf16.msra.mxu0 %v1183
        %1414 = vmatprep.subr.bf16.mxu0 %v1180
        %1415 = vmatpush1.bf16.msra.mxu0 %v1179
        %1416 = vmatprep.subr.bf16.mxu0 %v1176
        %1417 = vmatpush1.bf16.msra.mxu0 %v1175
        %1418 = vmatprep.subr.bf16.mxu0 %v1172
        %1419 = vmatpush1.bf16.msra.mxu0 %v1171
        %1420 = vmatprep.subr.bf16.mxu0 %v1232
        %1421 = vmatpush2.bf16.msra.mxu0 %v1231
        %1422 = vmatprep.subr.bf16.mxu0 %v1228
        %1423 = vmatpush2.bf16.msra.mxu0 %v1227
        %1424 = vmatprep.subr.bf16.mxu0 %v1224
        %1425 = vmatpush2.bf16.msra.mxu0 %v1223
        %1426 = vmatprep.subr.bf16.mxu0 %v1220
        %1427 = vmatpush2.bf16.msra.mxu0 %v1219
        %1428 = vmatprep.subr.bf16.mxu0 %v1216
        %1429 = vmatpush2.bf16.msra.mxu0 %v1215
        %1430 = vmatprep.subr.bf16.mxu0 %v1212
        %1431 = vmatpush2.bf16.msra.mxu0 %v1211
        %1432 = vmatprep.subr.bf16.mxu0 %v1208
        %1433 = vmatpush2.bf16.msra.mxu0 %v1207
        %1434 = vmatprep.subr.bf16.mxu0 %v1204
        %1435 = vmatpush2.bf16.msra.mxu0 %v1203
        %1436 = vmatprep.mubr.bf16.mxu0 %v718
        %1437 = vmatmul.mubr.bf16.gmra.mxu0 %v717
        %v1438 = vpop.f32.mrf.mxu0
        %v1439 = vadd.f32 %v1398, %v1438
        %v1440 = vpop.f32.mrf.mxu0
        %v1441 = vadd.f32 %v1400, %v1440
        %v1442 = vpop.f32.mrf.mxu0
        %v1443 = vpop.f32.mrf.mxu0
        %1444 = vdwg.mxu0
        %1445 = vmatprep.subr.bf16.mxu0 %v1138
        %1446 = vmatpush1.bf16.msra.mxu0 %v1137
        %1447 = vmatprep.subr.bf16.mxu0 %v1134
        %1448 = vmatpush1.bf16.msra.mxu0 %v1133
        %1449 = vmatprep.subr.bf16.mxu0 %v1130
        %1450 = vmatpush1.bf16.msra.mxu0 %v1129
        %1451 = vmatprep.subr.bf16.mxu0 %v1126
        %1452 = vmatpush1.bf16.msra.mxu0 %v1125
        %1453 = vmatprep.subr.bf16.mxu0 %v1122
        %1454 = vmatpush1.bf16.msra.mxu0 %v1121
        %1455 = vmatprep.subr.bf16.mxu0 %v1118
        %1456 = vmatpush1.bf16.msra.mxu0 %v1117
        %1457 = vmatprep.subr.bf16.mxu0 %v1114
        %1458 = vmatpush1.bf16.msra.mxu0 %v1113
        %1459 = vmatprep.subr.bf16.mxu0 %v1110
        %1460 = vmatpush1.bf16.msra.mxu0 %v1109
        %1461 = vmatprep.subr.bf16.mxu0 %v1170
        %1462 = vmatpush2.bf16.msra.mxu0 %v1169
        %1463 = vmatprep.subr.bf16.mxu0 %v1166
        %1464 = vmatpush2.bf16.msra.mxu0 %v1165
        %1465 = vmatprep.subr.bf16.mxu0 %v1162
        %1466 = vmatpush2.bf16.msra.mxu0 %v1161
        %1467 = vmatprep.subr.bf16.mxu0 %v1158
        %1468 = vmatpush2.bf16.msra.mxu0 %v1157
        %1469 = vmatprep.subr.bf16.mxu0 %v1154
        %1470 = vmatpush2.bf16.msra.mxu0 %v1153
        %1471 = vmatprep.subr.bf16.mxu0 %v1150
        %1472 = vmatpush2.bf16.msra.mxu0 %v1149
        %1473 = vmatprep.subr.bf16.mxu0 %v1146
        %1474 = vmatpush2.bf16.msra.mxu0 %v1145
        %1475 = vmatprep.subr.bf16.mxu0 %v1142
        %1476 = vmatpush2.bf16.msra.mxu0 %v1141
        %1477 = vmatprep.mubr.bf16.mxu0 %v716
        %1478 = vmatmul.mubr.bf16.gmra.mxu0 %v715
        %v1479 = vpop.f32.mrf.mxu0
        %v1480 = vadd.f32 %v700, %v1479
        %v1481 = vpop.f32.mrf.mxu0
        %v1482 = vadd.f32 %v704, %v1481
        %v1483 = vpop.f32.mrf.mxu0
        %v1484 = vpop.f32.mrf.mxu0
        %1485 = vdwg.mxu0
        %1486 = vmatprep.subr.bf16.mxu0 %v1202
        %1487 = vmatpush1.bf16.msra.mxu0 %v1201
        %1488 = vmatprep.subr.bf16.mxu0 %v1198
        %1489 = vmatpush1.bf16.msra.mxu0 %v1197
        %1490 = vmatprep.subr.bf16.mxu0 %v1194
        %1491 = vmatpush1.bf16.msra.mxu0 %v1193
        %1492 = vmatprep.subr.bf16.mxu0 %v1190
        %1493 = vmatpush1.bf16.msra.mxu0 %v1189
        %1494 = vmatprep.subr.bf16.mxu0 %v1186
        %1495 = vmatpush1.bf16.msra.mxu0 %v1185
        %1496 = vmatprep.subr.bf16.mxu0 %v1182
        %1497 = vmatpush1.bf16.msra.mxu0 %v1181
        %1498 = vmatprep.subr.bf16.mxu0 %v1178
        %1499 = vmatpush1.bf16.msra.mxu0 %v1177
        %1500 = vmatprep.subr.bf16.mxu0 %v1174
        %1501 = vmatpush1.bf16.msra.mxu0 %v1173
        %1502 = vmatprep.subr.bf16.mxu0 %v1234
        %1503 = vmatpush2.bf16.msra.mxu0 %v1233
        %1504 = vmatprep.subr.bf16.mxu0 %v1230
        %1505 = vmatpush2.bf16.msra.mxu0 %v1229
        %1506 = vmatprep.subr.bf16.mxu0 %v1226
        %1507 = vmatpush2.bf16.msra.mxu0 %v1225
        %1508 = vmatprep.subr.bf16.mxu0 %v1222
        %1509 = vmatpush2.bf16.msra.mxu0 %v1221
        %1510 = vmatprep.subr.bf16.mxu0 %v1218
        %1511 = vmatpush2.bf16.msra.mxu0 %v1217
        %1512 = vmatprep.subr.bf16.mxu0 %v1214
        %1513 = vmatpush2.bf16.msra.mxu0 %v1213
        %1514 = vmatprep.subr.bf16.mxu0 %v1210
        %1515 = vmatpush2.bf16.msra.mxu0 %v1209
        %1516 = vmatprep.subr.bf16.mxu0 %v1206
        %1517 = vmatpush2.bf16.msra.mxu0 %v1205
        %1518 = vmatprep.mubr.bf16.mxu0 %v718
        %1519 = vmatmul.mubr.bf16.gmra.mxu0 %v717
        %v1520 = vpop.f32.mrf.mxu0
        %v1521 = vadd.f32 %v1480, %v1520
        %v1522 = vpop.f32.mrf.mxu0
        %v1523 = vadd.f32 %v1482, %v1522
        %v1524 = vpop.f32.mrf.mxu0
        %v1525 = vpop.f32.mrf.mxu0
        %1526 = vdwg.mxu0
        %v1527 = vmax.f32 %v1439, 0.0
        %v1528 = vmax.f32 %v1441, 0.0
        %v1529 = vmax.f32 %v1521, 0.0
        %v1530 = vmax.f32 %v1523, 0.0
        %v1531 = vpack.c.bf16 %v1527, %v1527
        %v1532 = vpack.c.bf16 %v1528, %v1528
        %v1533 = vpack.c.bf16 %v1529, %v1529
        %v1534 = vpack.c.bf16 %v1530, %v1530
        %v1539 = vunpack.c.l.b16 %v1531
        %v1540 = vunpack.c.l.b16 %v1532
        %v1541 = vunpack.c.l.b16 %v1533
        %v1542 = vunpack.c.l.b16 %v1534
        %v1543 = vpack.c.b16 %v1540, %v1539
        %v1544 = vpack.c.b16 %v1542, %v1541
        %1547 = vst [vmem:[%s555] sm:$0xff] %v1543
        %1548 = vst [vmem:[%s555 + $0x8] sm:$0xff] %v1544
        %s1549 = smul.u32 4, %s21
        %p1550 = scmp.lt.s32.totalorder %s19, 1
        %s1551 = scalar_select %p1550, %s19, 1
        %p1552 = scmp.lt.s32.totalorder %s20, 0
        %s1553 = scalar_select %p1552, %s20, 0
        %p1554 = scmp.lt.s32.totalorder %s1549, 7
        %s1555 = scalar_select %p1554, %s1549, 7
        %s1556 = smul.addr %s1553, 8
        %s1557 = sadd.s32 %s1555, %s1556
        %s1558 = smul.addr %s1551, 8
        %s1559 = sadd.s32 %s1557, %s1558
        %s1560 = smul.addr %s1559, 4
        %s1561 = scalar_lea.vmem %s3, %s1560
        // Predicated region
        $region56: #{net_forward.12} parent=50 // pred_check
          %p1562 = pneg %p139
        $region57: #{net_forward.12} parent=50 // pred_check_branch
          %1564 = sbr.rel (%p1562) target = $region59
        $region58: #{net_forward.12} parent=50 // pred_region
          %s1565 = smul.u32 4, %s21
        $region59: #{net_forward.12} parent=50 // pred_fallthru
          _
      $region51: #{net_forward.12} parent=5 // pred_fallthru
        _
      %p1566 = scmp.le.s32.totalorder 2, %s9
      // Predicated region
      $region60: #{net_forward.12} parent=5 // pred_check
        %p1567 = pneg %p1566
      $region61: #{net_forward.12} parent=5 // pred_check_branch
        %1569 = sbr.rel (%p1567) target = $region63
      $region62: #{net_forward.12} parent=5 // pred_region
        %s1570 = ssub.s32 %s9, 2
        // Predicated region
        $region64: #{net_forward.12} parent=62 // pred_check
          %p1571 = pneg %p145
        $region65: #{net_forward.12} parent=62 // pred_check_branch
          %1573 = sbr.rel (%p1571) target = $region67
        $region66: #{net_forward.12} parent=62 // pred_region
          %s1574 = smul.u32 4, %s24
          %p1575 = scmp.lt.s32.totalorder %s22, 1
          %s1576 = scalar_select %p1575, %s22, 1
          %p1577 = scmp.lt.s32.totalorder %s23, 0
          %s1578 = scalar_select %p1577, %s23, 0
          %p1579 = scmp.lt.s32.totalorder %s1574, 7
          %s1580 = scalar_select %p1579, %s1574, 7
          %s1581 = smul.addr %s1578, 8
          %s1582 = sadd.s32 %s1580, %s1581
          %s1583 = smul.addr %s1576, 8
          %s1584 = sadd.s32 %s1582, %s1583
          %s1585 = smul.addr %s1584, 4
          %s1586 = scalar_lea.vmem %s3, %s1585
        $region67: #{net_forward.12} parent=62 // pred_fallthru
          _
      $region63: #{net_forward.12} parent=5 // pred_fallthru
        _
    $region6: #{net_forward.12} parent=1 // loop_footer
      %s13 = sadd.s32 1, %s9
    $region7: #{net_forward.12} parent=1 // loop_footer_branch
      %8 = sbr.rel target = $region3
    $region8: #{net_forward.12} parent=1 // loop_exit
      _

// kernel: net_forward.14
$region0: #{net_forward.14}
  #allocation0 [shape = 'u32[]', space=smem, size = 0x4, offset = 0x4, fixed_abs, tag = 'smem constant byte address 0x4 - core index']
  #allocation1 [shape = 'u32[144,128]{1,0:T(1,128)}', space=vmem, size = 0x12000, scoped, tag = 'internal scratch']
  %s0 = inlined_call_operand.vmem [shape: bf16[2,2,1,2048], index: 0, kind: input, shape index: {}]
  %s1 = inlined_call_operand.vmem [shape: bf16[2,2,2048], index: 1, kind: output, shape index: {}]
  %s2 = sld [smem:[#allocation0]]
  $region37: #{net_forward.14} parent=0
    _
  %s4 = ssub.s32 1, %s2
  %s5 = scalar_select 0, %s4, %s2
  loop: start=0, step=1, limit=4
  $region2: #{net_forward.14} parent=0 // loop_pre_header
    _
  $region3: #{net_forward.14} parent=0 // loop_header
    %s7 = sphi 0, %s11
    %p8 = scmp.ge.s32.totalorder %s7, 4
    %s17 = sphi 0, %s19
    %s20 = sphi 0, %s17
    %s21 = sphi 0, %s20
    %s37 = sphi 0, %s21
    %s43 = sphi 0, %s45
    %s46 = sphi 0, %s43
    %s47 = sphi 0, %s46
    %s63 = sphi 0, %s47
  $region4: #{net_forward.14} parent=0 // loop_header_branch
    %10 = sbr.rel (%p8) target = $region8
  $region5: #{net_forward.14} parent=0 // loop_body
    %s12 = ssub.s32 %s7, 1
    %s13 = ssub.s32 %s7, 2
    %s14 = sadd.s32 %s7, 1
    %s15 = ssub.s32 %s7, %s14
    %p16 = scmp.eq.s32.totalorder %s15, 0
    %s18 = sadd.s32 %s17, 1
    %s19 = scalar_select %p16, %s17, %s18
    %p22 = pneg %p16
    %p23 = scmp.eq.s32.totalorder %s7, 1
    %p24 = por %p22, %p23
    %p25 = scmp.ne.s32.totalorder %s17, %s20
    %p26 = scmp.eq.s32.totalorder %s7, 0
    %p27 = por %p25, %p26
    %p28 = scmp.ne.s32.totalorder %s17, %s20
    %p29 = scmp.eq.s32.totalorder %s12, 1
    %p30 = por %p28, %p29
    %p31 = scmp.ne.s32.totalorder %s20, %s21
    %p32 = scmp.eq.s32.totalorder %s12, 0
    %p33 = por %p31, %p32
    %p34 = scmp.ne.s32.totalorder %s20, %s21
    %p35 = scmp.eq.s32.totalorder %s13, 1
    %p36 = por %p34, %p35
    %p38 = scmp.ne.s32.totalorder %s21, %s37
    %p39 = scmp.eq.s32.totalorder %s13, 0
    %p40 = por %p38, %p39
    %s41 = ssub.s32 %s7, %s14
    %p42 = scmp.eq.s32.totalorder %s41, 0
    %s44 = sadd.s32 %s43, 1
    %s45 = scalar_select %p42, %s43, %s44
    %p48 = pneg %p42
    %p49 = scmp.eq.s32.totalorder %s7, 1
    %p50 = por %p48, %p49
    %p51 = scmp.ne.s32.totalorder %s43, %s46
    %p52 = scmp.eq.s32.totalorder %s7, 0
    %p53 = por %p51, %p52
    %p54 = scmp.ne.s32.totalorder %s43, %s46
    %p55 = scmp.eq.s32.totalorder %s12, 1
    %p56 = por %p54, %p55
    %p57 = scmp.ne.s32.totalorder %s46, %s47
    %p58 = scmp.eq.s32.totalorder %s12, 0
    %p59 = por %p57, %p58
    %p60 = scmp.ne.s32.totalorder %s46, %s47
    %p61 = scmp.eq.s32.totalorder %s13, 1
    %p62 = por %p60, %p61
    %p64 = scmp.ne.s32.totalorder %s47, %s63
    %p65 = scmp.eq.s32.totalorder %s13, 0
    %p66 = por %p64, %p65
    %p67 = scmp.le.s32.totalorder 1, %s7
    %p68 = scmp.lt.s32.totalorder %s7, 3
    %p69 = pnand %p67, %p68
    %p70 = pneg %p69
    // Predicated region
    $region9: #{net_forward.14} parent=5 // pred_check
      _
    $region10: #{net_forward.14} parent=5 // pred_check_branch
      %72 = sbr.rel (%p69) target = $region12
    $region11: #{net_forward.14} parent=5 // pred_region
      %s73 = ssub.s32 %s7, 1
    $region12: #{net_forward.14} parent=5 // pred_fallthru
      _
    %p74 = scmp.lt.s32.totalorder %s7, 2
    // Predicated region
    $region13: #{net_forward.14} parent=5 // pred_check
      %p75 = pneg %p74
    $region14: #{net_forward.14} parent=5 // pred_check_branch
      %77 = sbr.rel (%p75) target = $region16
    $region15: #{net_forward.14} parent=5 // pred_region
      // Predicated region
      $region17: #{net_forward.14} parent=15 // pred_check
        %p78 = pneg %p27
      $region18: #{net_forward.14} parent=15 // pred_check_branch
        %80 = sbr.rel (%p78) target = $region20
      $region19: #{net_forward.14} parent=15 // pred_region
        %p81 = scmp.lt.s32.totalorder %s7, 1
        %s82 = scalar_select %p81, %s7, 1
        %s83 = smul.addr %s82, 32
        %s84 = scalar_lea.vmem %s0, %s83
      $region20: #{net_forward.14} parent=15 // pred_fallthru
        _
    $region16: #{net_forward.14} parent=5 // pred_fallthru
      _
    %p85 = scmp.le.s32.totalorder 1, %s7
    %p86 = scmp.lt.s32.totalorder %s7, 3
    %p87 = pnand %p85, %p86
    %p88 = pneg %p87
    // Predicated region
    $region21: #{net_forward.14} parent=5 // pred_check
      _
    $region22: #{net_forward.14} parent=5 // pred_check_branch
      %90 = sbr.rel (%p87) target = $region24
    $region23: #{net_forward.14} parent=5 // pred_region
      %s91 = ssub.s32 %s7, 1
      %p92 = scmp.lt.s32.totalorder %s12, 1
      %s93 = scalar_select %p92, %s12, 1
      %s94 = smul.addr %s93, 32
      %s95 = scalar_lea.vmem %s0, %s94
      %p96 = pneg %p33
      %p97 = pneg %p30
      %p98 = pneg %p59
      %p99 = pneg %p56
      %p100 = scmp.lt.s32.totalorder %s12, 1
      %s101 = scalar_select %p100, %s12, 1
      %s102 = smul.addr %s101, 16
      %s103 = scalar_lea.vmem %s1, %s102
      %p104 = scmp.lt.s32.totalorder %s12, 1
      %s105 = scalar_select %p104, %s12, 1
      %s106 = smul.addr %s105, 32
      %s107 = scalar_lea.vmem %s0, %s106
      %p108 = scmp.lt.s32.totalorder %s12, 1
      %s109 = scalar_select %p108, %s12, 1
      %s110 = smul.addr %s109, 16
      %s111 = scalar_lea.vmem %s1, %s110
      %p112 = scmp.eq.s32.totalorder %s12, 0
      %s113 = scalar_select %p112, 0.5295, 0.4705
      %v114 = vld [vmem:[%s107] sm:$0xff]
      %v115 = vld [vmem:[%s107 + $0x8] sm:$0xff]
      %v116 = vld [vmem:[%s107 + $0x10] sm:$0xff]
      %v117 = vld [vmem:[%s107 + $0x18] sm:$0xff]
      %v118 = vunpack.c.l.bf16 %v114
      %v119 = vunpack.c.h.bf16 %v114
      %v120 = vunpack.c.l.bf16 %v115
      %v121 = vunpack.c.h.bf16 %v115
      %v122 = vunpack.c.l.bf16 %v116
      %v123 = vunpack.c.h.bf16 %v116
      %v124 = vunpack.c.l.bf16 %v117
      %v125 = vunpack.c.h.bf16 %v117
      %v126 = vadd.f32 %v118, 0.0
      %v127 = vadd.f32 %v119, 0.0
      %v128 = vadd.f32 %v120, 0.0
      %v129 = vadd.f32 %v121, 0.0
      %v130 = vadd.f32 %v122, 0.0
      %v131 = vadd.f32 %v123, 0.0
      %v132 = vadd.f32 %v124, 0.0
      %v133 = vadd.f32 %v125, 0.0
      %v134 = vstv %s113
      %v135 = vmul.f32 %v126, %v134
      %v136 = vmul.f32 %v127, %v134
      %v137 = vmul.f32 %v128, %v134
      %v138 = vmul.f32 %v129, %v134
      %v139 = vmul.f32 %v130, %v134
      %v140 = vmul.f32 %v131, %v134
      %v141 = vmul.f32 %v132, %v134
      %v142 = vmul.f32 %v133, %v134
      %v151 = vlaneseq
      %v152 = vshrl.u32 %v151, 7
      %v153 = vsub.s32 0, %v152
      %v154 = vrot.slane %v135, %v153
      %v155 = vlaneseq
      %v156 = vshrl.u32 %v155, 7
      %v157 = vsub.s32 2, %v156
      %v158 = vrot.slane %v135, %v157
      %v159 = vlaneseq
      %v160 = vshrl.u32 %v159, 7
      %v161 = vsub.s32 4, %v160
      %v162 = vrot.slane %v135, %v161
      %v163 = vlaneseq
      %v164 = vshrl.u32 %v163, 7
      %v165 = vsub.s32 6, %v164
      %v166 = vrot.slane %v135, %v165
      %v167 = vlaneseq
      %v168 = vshrl.u32 %v167, 7
      %v169 = vsub.s32 0, %v168
      %v170 = vrot.slane %v136, %v169
      %v171 = vlaneseq
      %v172 = vshrl.u32 %v171, 7
      %v173 = vsub.s32 2, %v172
      %v174 = vrot.slane %v136, %v173
      %v175 = vlaneseq
      %v176 = vshrl.u32 %v175, 7
      %v177 = vsub.s32 4, %v176
      %v178 = vrot.slane %v136, %v177
      %v179 = vlaneseq
      %v180 = vshrl.u32 %v179, 7
      %v181 = vsub.s32 6, %v180
      %v182 = vrot.slane %v136, %v181
      %v183 = vlaneseq
      %v184 = vshrl.u32 %v183, 7
      %v185 = vsub.s32 0, %v184
      %v186 = vrot.slane %v137, %v185
      %v187 = vlaneseq
      %v188 = vshrl.u32 %v187, 7
      %v189 = vsub.s32 2, %v188
      %v190 = vrot.slane %v137, %v189
      %v191 = vlaneseq
      %v192 = vshrl.u32 %v191, 7
      %v193 = vsub.s32 4, %v192
      %v194 = vrot.slane %v137, %v193
      %v195 = vlaneseq
      %v196 = vshrl.u32 %v195, 7
      %v197 = vsub.s32 6, %v196
      %v198 = vrot.slane %v137, %v197
      %v199 = vlaneseq
      %v200 = vshrl.u32 %v199, 7
      %v201 = vsub.s32 0, %v200
      %v202 = vrot.slane %v138, %v201
      %v203 = vlaneseq
      %v204 = vshrl.u32 %v203, 7
      %v205 = vsub.s32 2, %v204
      %v206 = vrot.slane %v138, %v205
      %v207 = vlaneseq
      %v208 = vshrl.u32 %v207, 7
      %v209 = vsub.s32 4, %v208
      %v210 = vrot.slane %v138, %v209
      %v211 = vlaneseq
      %v212 = vshrl.u32 %v211, 7
      %v213 = vsub.s32 6, %v212
      %v214 = vrot.slane %v138, %v213
      %v215 = vlaneseq
      %v216 = vshrl.u32 %v215, 7
      %v217 = vsub.s32 0, %v216
      %v218 = vrot.slane %v139, %v217
      %v219 = vlaneseq
      %v220 = vshrl.u32 %v219, 7
      %v221 = vsub.s32 2, %v220
      %v222 = vrot.slane %v139, %v221
      %v223 = vlaneseq
      %v224 = vshrl.u32 %v223, 7
      %v225 = vsub.s32 4, %v224
      %v226 = vrot.slane %v139, %v225
      %v227 = vlaneseq
      %v228 = vshrl.u32 %v227, 7
      %v229 = vsub.s32 6, %v228
      %v230 = vrot.slane %v139, %v229
      %v231 = vlaneseq
      %v232 = vshrl.u32 %v231, 7
      %v233 = vsub.s32 0, %v232
      %v234 = vrot.slane %v140, %v233
      %v235 = vlaneseq
      %v236 = vshrl.u32 %v235, 7
      %v237 = vsub.s32 2, %v236
      %v238 = vrot.slane %v140, %v237
      %v239 = vlaneseq
      %v240 = vshrl.u32 %v239, 7
      %v241 = vsub.s32 4, %v240
      %v242 = vrot.slane %v140, %v241
      %v243 = vlaneseq
      %v244 = vshrl.u32 %v243, 7
      %v245 = vsub.s32 6, %v244
      %v246 = vrot.slane %v140, %v245
      %v247 = vlaneseq
      %v248 = vshrl.u32 %v247, 7
      %v249 = vsub.s32 0, %v248
      %v250 = vrot.slane %v141, %v249
      %v251 = vlaneseq
      %v252 = vshrl.u32 %v251, 7
      %v253 = vsub.s32 2, %v252
      %v254 = vrot.slane %v141, %v253
      %v255 = vlaneseq
      %v256 = vshrl.u32 %v255, 7
      %v257 = vsub.s32 4, %v256
      %v258 = vrot.slane %v141, %v257
      %v259 = vlaneseq
      %v260 = vshrl.u32 %v259, 7
      %v261 = vsub.s32 6, %v260
      %v262 = vrot.slane %v141, %v261
      %v263 = vlaneseq
      %v264 = vshrl.u32 %v263, 7
      %v265 = vsub.s32 0, %v264
      %v266 = vrot.slane %v142, %v265
      %v267 = vlaneseq
      %v268 = vshrl.u32 %v267, 7
      %v269 = vsub.s32 2, %v268
      %v270 = vrot.slane %v142, %v269
      %v271 = vlaneseq
      %v272 = vshrl.u32 %v271, 7
      %v273 = vsub.s32 4, %v272
      %v274 = vrot.slane %v142, %v273
      %v275 = vlaneseq
      %v276 = vshrl.u32 %v275, 7
      %v277 = vsub.s32 6, %v276
      %v278 = vrot.slane %v142, %v277
      %v311 = vpack.c.bf16 %v154, %v154
      %v312 = vpack.c.bf16 %v158, %v158
      %v313 = vpack.c.bf16 %v162, %v162
      %v314 = vpack.c.bf16 %v166, %v166
      %v315 = vpack.c.bf16 %v170, %v170
      %v316 = vpack.c.bf16 %v174, %v174
      %v317 = vpack.c.bf16 %v178, %v178
      %v318 = vpack.c.bf16 %v182, %v182
      %v319 = vpack.c.bf16 %v186, %v186
      %v320 = vpack.c.bf16 %v190, %v190
      %v321 = vpack.c.bf16 %v194, %v194
      %v322 = vpack.c.bf16 %v198, %v198
      %v323 = vpack.c.bf16 %v202, %v202
      %v324 = vpack.c.bf16 %v206, %v206
      %v325 = vpack.c.bf16 %v210, %v210
      %v326 = vpack.c.bf16 %v214, %v214
      %v327 = vpack.c.bf16 %v218, %v218
      %v328 = vpack.c.bf16 %v222, %v222
      %v329 = vpack.c.bf16 %v226, %v226
      %v330 = vpack.c.bf16 %v230, %v230
      %v331 = vpack.c.bf16 %v234, %v234
      %v332 = vpack.c.bf16 %v238, %v238
      %v333 = vpack.c.bf16 %v242, %v242
      %v334 = vpack.c.bf16 %v246, %v246
      %v335 = vpack.c.bf16 %v250, %v250
      %v336 = vpack.c.bf16 %v254, %v254
      %v337 = vpack.c.bf16 %v258, %v258
      %v338 = vpack.c.bf16 %v262, %v262
      %v339 = vpack.c.bf16 %v266, %v266
      %v340 = vpack.c.bf16 %v270, %v270
      %v341 = vpack.c.bf16 %v274, %v274
      %v342 = vpack.c.bf16 %v278, %v278
      %v375 = vcombine.low %v311, %v312
      %v376 = vcombine.low %v313, %v314
      %v377 = vcombine.low %v315, %v316
      %v378 = vcombine.low %v317, %v318
      %v380 = vunpack.c.l.s4 1966171168
      %v381 = vunpack.c.0.s8 %v380
      %v382 = vlaneseq
      %v383 = vshrl.u32 %v382, 7
      %v384 = vsub.s32 %v381, %v383
      %v385 = vrot.slane %v375, %v384
      %v387 = vunpack.c.l.s4 1966171168
      %v388 = vunpack.c.0.s8 %v387
      %v389 = vlaneseq
      %v390 = vshrl.u32 %v389, 7
      %v391 = vsub.s32 %v388, %v390
      %v392 = vrot.slane %v376, %v391
      %v394 = vunpack.c.l.s4 1966171168
      %v395 = vunpack.c.0.s8 %v394
      %v396 = vlaneseq
      %v397 = vshrl.u32 %v396, 7
      %v398 = vsub.s32 %v395, %v397
      %v399 = vrot.slane %v377, %v398
      %v401 = vunpack.c.l.s4 1966171168
      %v402 = vunpack.c.0.s8 %v401
      %v403 = vlaneseq
      %v404 = vshrl.u32 %v403, 7
      %v405 = vsub.s32 %v402, %v404
      %v406 = vrot.slane %v378, %v405
      %v407 = vcombine.low %v385, %v392
      %v408 = vcombine.low %v399, %v406
      %v410 = vunpack.c.l.s4 1966171168
      %v411 = vunpack.c.0.s8 %v410
      %v412 = vlaneseq
      %v413 = vshrl.u32 %v412, 7
      %v414 = vsub.s32 %v411, %v413
      %v415 = vrot.slane %v407, %v414
      %v417 = vunpack.c.l.s4 1966171168
      %v418 = vunpack.c.0.s8 %v417
      %v419 = vlaneseq
      %v420 = vshrl.u32 %v419, 7
      %v421 = vsub.s32 %v418, %v420
      %v422 = vrot.slane %v408, %v421
      %v423 = vcombine.low %v415, %v422
      %v424 = vcombine.low %v319, %v320
      %v425 = vcombine.low %v321, %v322
      %v426 = vcombine.low %v323, %v324
      %v427 = vcombine.low %v325, %v326
      %v429 = vunpack.c.l.s4 1966171168
      %v430 = vunpack.c.0.s8 %v429
      %v431 = vlaneseq
      %v432 = vshrl.u32 %v431, 7
      %v433 = vsub.s32 %v430, %v432
      %v434 = vrot.slane %v424, %v433
      %v436 = vunpack.c.l.s4 1966171168
      %v437 = vunpack.c.0.s8 %v436
      %v438 = vlaneseq
      %v439 = vshrl.u32 %v438, 7
      %v440 = vsub.s32 %v437, %v439
      %v441 = vrot.slane %v425, %v440
      %v443 = vunpack.c.l.s4 1966171168
      %v444 = vunpack.c.0.s8 %v443
      %v445 = vlaneseq
      %v446 = vshrl.u32 %v445, 7
      %v447 = vsub.s32 %v444, %v446
      %v448 = vrot.slane %v426, %v447
      %v450 = vunpack.c.l.s4 1966171168
      %v451 = vunpack.c.0.s8 %v450
      %v452 = vlaneseq
      %v453 = vshrl.u32 %v452, 7
      %v454 = vsub.s32 %v451, %v453
      %v455 = vrot.slane %v427, %v454
      %v456 = vcombine.low %v434, %v441
      %v457 = vcombine.low %v448, %v455
      %v459 = vunpack.c.l.s4 1966171168
      %v460 = vunpack.c.0.s8 %v459
      %v461 = vlaneseq
      %v462 = vshrl.u32 %v461, 7
      %v463 = vsub.s32 %v460, %v462
      %v464 = vrot.slane %v456, %v463
      %v466 = vunpack.c.l.s4 1966171168
      %v467 = vunpack.c.0.s8 %v466
      %v468 = vlaneseq
      %v469 = vshrl.u32 %v468, 7
      %v470 = vsub.s32 %v467, %v469
      %v471 = vrot.slane %v457, %v470
      %v472 = vcombine.low %v464, %v471
      %v473 = vcombine.low %v327, %v328
      %v474 = vcombine.low %v329, %v330
      %v475 = vcombine.low %v331, %v332
      %v476 = vcombine.low %v333, %v334
      %v478 = vunpack.c.l.s4 1966171168
      %v479 = vunpack.c.0.s8 %v478
      %v480 = vlaneseq
      %v481 = vshrl.u32 %v480, 7
      %v482 = vsub.s32 %v479, %v481
      %v483 = vrot.slane %v473, %v482
      %v485 = vunpack.c.l.s4 1966171168
      %v486 = vunpack.c.0.s8 %v485
      %v487 = vlaneseq
      %v488 = vshrl.u32 %v487, 7
      %v489 = vsub.s32 %v486, %v488
      %v490 = vrot.slane %v474, %v489
      %v492 = vunpack.c.l.s4 1966171168
      %v493 = vunpack.c.0.s8 %v492
      %v494 = vlaneseq
      %v495 = vshrl.u32 %v494, 7
      %v496 = vsub.s32 %v493, %v495
      %v497 = vrot.slane %v475, %v496
      %v499 = vunpack.c.l.s4 1966171168
      %v500 = vunpack.c.0.s8 %v499
      %v501 = vlaneseq
      %v502 = vshrl.u32 %v501, 7
      %v503 = vsub.s32 %v500, %v502
      %v504 = vrot.slane %v476, %v503
      %v505 = vcombine.low %v483, %v490
      %v506 = vcombine.low %v497, %v504
      %v508 = vunpack.c.l.s4 1966171168
      %v509 = vunpack.c.0.s8 %v508
      %v510 = vlaneseq
      %v511 = vshrl.u32 %v510, 7
      %v512 = vsub.s32 %v509, %v511
      %v513 = vrot.slane %v505, %v512
      %v515 = vunpack.c.l.s4 1966171168
      %v516 = vunpack.c.0.s8 %v515
      %v517 = vlaneseq
      %v518 = vshrl.u32 %v517, 7
      %v519 = vsub.s32 %v516, %v518
      %v520 = vrot.slane %v506, %v519
      %v521 = vcombine.low %v513, %v520
      %v522 = vcombine.low %v335, %v336
      %v523 = vcombine.low %v337, %v338
      %v524 = vcombine.low %v339, %v340
      %v525 = vcombine.low %v341, %v342
      %v527 = vunpack.c.l.s4 1966171168
      %v528 = vunpack.c.0.s8 %v527
      %v529 = vlaneseq
      %v530 = vshrl.u32 %v529, 7
      %v531 = vsub.s32 %v528, %v530
      %v532 = vrot.slane %v522, %v531
      %v534 = vunpack.c.l.s4 1966171168
      %v535 = vunpack.c.0.s8 %v534
      %v536 = vlaneseq
      %v537 = vshrl.u32 %v536, 7
      %v538 = vsub.s32 %v535, %v537
      %v539 = vrot.slane %v523, %v538
      %v541 = vunpack.c.l.s4 1966171168
      %v542 = vunpack.c.0.s8 %v541
      %v543 = vlaneseq
      %v544 = vshrl.u32 %v543, 7
      %v545 = vsub.s32 %v542, %v544
      %v546 = vrot.slane %v524, %v545
      %v548 = vunpack.c.l.s4 1966171168
      %v549 = vunpack.c.0.s8 %v548
      %v550 = vlaneseq
      %v551 = vshrl.u32 %v550, 7
      %v552 = vsub.s32 %v549, %v551
      %v553 = vrot.slane %v525, %v552
      %v554 = vcombine.low %v532, %v539
      %v555 = vcombine.low %v546, %v553
      %v557 = vunpack.c.l.s4 1966171168
      %v558 = vunpack.c.0.s8 %v557
      %v559 = vlaneseq
      %v560 = vshrl.u32 %v559, 7
      %v561 = vsub.s32 %v558, %v560
      %v562 = vrot.slane %v554, %v561
      %v564 = vunpack.c.l.s4 1966171168
      %v565 = vunpack.c.0.s8 %v564
      %v566 = vlaneseq
      %v567 = vshrl.u32 %v566, 7
      %v568 = vsub.s32 %v565, %v567
      %v569 = vrot.slane %v555, %v568
      %v570 = vcombine.low %v562, %v569
      %v571 = vcombine.high %v423, %v423
      %v573 = vunpack.c.l.s4 1935823168
      %v574 = vunpack.c.0.s8 %v573
      %v575 = vlaneseq
      %v576 = vshrl.u32 %v575, 7
      %v577 = vsub.s32 %v574, %v576
      %v578 = vrot.slane %v423, %v577
      %v580 = vunpack.c.l.s4 1935823168
      %v581 = vunpack.c.0.s8 %v580
      %v582 = vlaneseq
      %v583 = vshrl.u32 %v582, 7
      %v584 = vsub.s32 %v581, %v583
      %v585 = vrot.slane %v571, %v584
      %v586 = vcombine.high %v578, %v578
      %v587 = vcombine.high %v585, %v585
      %v589 = vunpack.c.l.s4 1935823168
      %v590 = vunpack.c.0.s8 %v589
      %v591 = vlaneseq
      %v592 = vshrl.u32 %v591, 7
      %v593 = vsub.s32 %v590, %v592
      %v594 = vrot.slane %v578, %v593
      %v596 = vunpack.c.l.s4 1935823168
      %v597 = vunpack.c.0.s8 %v596
      %v598 = vlaneseq
      %v599 = vshrl.u32 %v598, 7
      %v600 = vsub.s32 %v597, %v599
      %v601 = vrot.slane %v586, %v600
      %v603 = vunpack.c.l.s4 1935823168
      %v604 = vunpack.c.0.s8 %v603
      %v605 = vlaneseq
      %v606 = vshrl.u32 %v605, 7
      %v607 = vsub.s32 %v604, %v606
      %v608 = vrot.slane %v585, %v607
      %v610 = vunpack.c.l.s4 1935823168
      %v611 = vunpack.c.0.s8 %v610
      %v612 = vlaneseq
      %v613 = vshrl.u32 %v612, 7
      %v614 = vsub.s32 %v611, %v613
      %v615 = vrot.slane %v587, %v614
      %v616 = vcombine.high %v472, %v472
      %v618 = vunpack.c.l.s4 1935823168
      %v619 = vunpack.c.0.s8 %v618
      %v620 = vlaneseq
      %v621 = vshrl.u32 %v620, 7
      %v622 = vsub.s32 %v619, %v621
      %v623 = vrot.slane %v472, %v622
      %v625 = vunpack.c.l.s4 1935823168
      %v626 = vunpack.c.0.s8 %v625
      %v627 = vlaneseq
      %v628 = vshrl.u32 %v627, 7
      %v629 = vsub.s32 %v626, %v628
      %v630 = vrot.slane %v616, %v629
      %v631 = vcombine.high %v623, %v623
      %v632 = vcombine.high %v630, %v630
      %v634 = vunpack.c.l.s4 1935823168
      %v635 = vunpack.c.0.s8 %v634
      %v636 = vlaneseq
      %v637 = vshrl.u32 %v636, 7
      %v638 = vsub.s32 %v635, %v637
      %v639 = vrot.slane %v623, %v638
      %v641 = vunpack.c.l.s4 1935823168
      %v642 = vunpack.c.0.s8 %v641
      %v643 = vlaneseq
      %v644 = vshrl.u32 %v643, 7
      %v645 = vsub.s32 %v642, %v644
      %v646 = vrot.slane %v631, %v645
      %v648 = vunpack.c.l.s4 1935823168
      %v649 = vunpack.c.0.s8 %v648
      %v650 = vlaneseq
      %v651 = vshrl.u32 %v650, 7
      %v652 = vsub.s32 %v649, %v651
      %v653 = vrot.slane %v630, %v652
      %v655 = vunpack.c.l.s4 1935823168
      %v656 = vunpack.c.0.s8 %v655
      %v657 = vlaneseq
      %v658 = vshrl.u32 %v657, 7
      %v659 = vsub.s32 %v656, %v658
      %v660 = vrot.slane %v632, %v659
      %v661 = vcombine.high %v521, %v521
      %v663 = vunpack.c.l.s4 1935823168
      %v664 = vunpack.c.0.s8 %v663
      %v665 = vlaneseq
      %v666 = vshrl.u32 %v665, 7
      %v667 = vsub.s32 %v664, %v666
      %v668 = vrot.slane %v521, %v667
      %v670 = vunpack.c.l.s4 1935823168
      %v671 = vunpack.c.0.s8 %v670
      %v672 = vlaneseq
      %v673 = vshrl.u32 %v672, 7
      %v674 = vsub.s32 %v671, %v673
      %v675 = vrot.slane %v661, %v674
      %v676 = vcombine.high %v668, %v668
      %v677 = vcombine.high %v675, %v675
      %v679 = vunpack.c.l.s4 1935823168
      %v680 = vunpack.c.0.s8 %v679
      %v681 = vlaneseq
      %v682 = vshrl.u32 %v681, 7
      %v683 = vsub.s32 %v680, %v682
      %v684 = vrot.slane %v668, %v683
      %v686 = vunpack.c.l.s4 1935823168
      %v687 = vunpack.c.0.s8 %v686
      %v688 = vlaneseq
      %v689 = vshrl.u32 %v688, 7
      %v690 = vsub.s32 %v687, %v689
      %v691 = vrot.slane %v676, %v690
      %v693 = vunpack.c.l.s4 1935823168
      %v694 = vunpack.c.0.s8 %v693
      %v695 = vlaneseq
      %v696 = vshrl.u32 %v695, 7
      %v697 = vsub.s32 %v694, %v696
      %v698 = vrot.slane %v675, %v697
      %v700 = vunpack.c.l.s4 1935823168
      %v701 = vunpack.c.0.s8 %v700
      %v702 = vlaneseq
      %v703 = vshrl.u32 %v702, 7
      %v704 = vsub.s32 %v701, %v703
      %v705 = vrot.slane %v677, %v704
      %v706 = vcombine.high %v570, %v570
      %v708 = vunpack.c.l.s4 1935823168
      %v709 = vunpack.c.0.s8 %v708
      %v710 = vlaneseq
      %v711 = vshrl.u32 %v710, 7
      %v712 = vsub.s32 %v709, %v711
      %v713 = vrot.slane %v570, %v712
      %v715 = vunpack.c.l.s4 1935823168
      %v716 = vunpack.c.0.s8 %v715
      %v717 = vlaneseq
      %v718 = vshrl.u32 %v717, 7
      %v719 = vsub.s32 %v716, %v718
      %v720 = vrot.slane %v706, %v719
      %v721 = vcombine.high %v713, %v713
      %v722 = vcombine.high %v720, %v720
      %v724 = vunpack.c.l.s4 1935823168
      %v725 = vunpack.c.0.s8 %v724
      %v726 = vlaneseq
      %v727 = vshrl.u32 %v726, 7
      %v728 = vsub.s32 %v725, %v727
      %v729 = vrot.slane %v713, %v728
      %v731 = vunpack.c.l.s4 1935823168
      %v732 = vunpack.c.0.s8 %v731
      %v733 = vlaneseq
      %v734 = vshrl.u32 %v733, 7
      %v735 = vsub.s32 %v732, %v734
      %v736 = vrot.slane %v721, %v735
      %v738 = vunpack.c.l.s4 1935823168
      %v739 = vunpack.c.0.s8 %v738
      %v740 = vlaneseq
      %v741 = vshrl.u32 %v740, 7
      %v742 = vsub.s32 %v739, %v741
      %v743 = vrot.slane %v720, %v742
      %v745 = vunpack.c.l.s4 1935823168
      %v746 = vunpack.c.0.s8 %v745
      %v747 = vlaneseq
      %v748 = vshrl.u32 %v747, 7
      %v749 = vsub.s32 %v746, %v748
      %v750 = vrot.slane %v722, %v749
      %v751 = vunpack.c.l.b16 %v594
      %v752 = vunpack.c.h.b16 %v594
      %v753 = vunpack.c.l.b16 %v601
      %v754 = vunpack.c.h.b16 %v601
      %v755 = vunpack.c.l.b16 %v608
      %v756 = vunpack.c.h.b16 %v608
      %v757 = vunpack.c.l.b16 %v615
      %v758 = vunpack.c.h.b16 %v615
      %v759 = vunpack.c.l.b16 %v639
      %v760 = vunpack.c.h.b16 %v639
      %v761 = vunpack.c.l.b16 %v646
      %v762 = vunpack.c.h.b16 %v646
      %v763 = vunpack.c.l.b16 %v653
      %v764 = vunpack.c.h.b16 %v653
      %v765 = vunpack.c.l.b16 %v660
      %v766 = vunpack.c.h.b16 %v660
      %v767 = vunpack.c.l.b16 %v684
      %v768 = vunpack.c.h.b16 %v684
      %v769 = vunpack.c.l.b16 %v691
      %v770 = vunpack.c.h.b16 %v691
      %v771 = vunpack.c.l.b16 %v698
      %v772 = vunpack.c.h.b16 %v698
      %v773 = vunpack.c.l.b16 %v705
      %v774 = vunpack.c.h.b16 %v705
      %v775 = vunpack.c.l.b16 %v729
      %v776 = vunpack.c.h.b16 %v729
      %v777 = vunpack.c.l.b16 %v736
      %v778 = vunpack.c.h.b16 %v736
      %v779 = vunpack.c.l.b16 %v743
      %v780 = vunpack.c.h.b16 %v743
      %v781 = vunpack.c.l.b16 %v750
      %v782 = vunpack.c.h.b16 %v750
      %v783 = vrot.slane %v767, 7
      %vm784 = vcmask 1041409
      %v785 = vsel %vm784, %v783, %v751
      %v786 = vrot.slane %v768, 7
      %v787 = vsel %vm784, %v786, %v752
      %v788 = vrot.slane %v769, 7
      %v789 = vsel %vm784, %v788, %v753
      %v790 = vrot.slane %v770, 7
      %v791 = vsel %vm784, %v790, %v754
      %v792 = vrot.slane %v771, 7
      %v793 = vsel %vm784, %v792, %v755
      %v794 = vrot.slane %v772, 7
      %v795 = vsel %vm784, %v794, %v756
      %v796 = vrot.slane %v773, 7
      %v797 = vsel %vm784, %v796, %v757
      %v798 = vrot.slane %v774, 7
      %v799 = vsel %vm784, %v798, %v758
      %v800 = vrot.slane %v775, 7
      %v801 = vsel %vm784, %v800, %v759
      %v802 = vrot.slane %v776, 7
      %v803 = vsel %vm784, %v802, %v760
      %v804 = vrot.slane %v777, 7
      %v805 = vsel %vm784, %v804, %v761
      %v806 = vrot.slane %v778, 7
      %v807 = vsel %vm784, %v806, %v762
      %v808 = vrot.slane %v779, 7
      %v809 = vsel %vm784, %v808, %v763
      %v810 = vrot.slane %v780, 7
      %v811 = vsel %vm784, %v810, %v764
      %v812 = vrot.slane %v781, 7
      %v813 = vsel %vm784, %v812, %v765
      %v814 = vrot.slane %v782, 7
      %v815 = vsel %vm784, %v814, %v766
      %v816 = vpack.c.b16 %v787, %v785
      %v817 = vpack.c.b16 %v791, %v789
      %v818 = vpack.c.b16 %v795, %v793
      %v819 = vpack.c.b16 %v799, %v797
      %v820 = vpack.c.b16 %v803, %v801
      %v821 = vpack.c.b16 %v807, %v805
      %v822 = vpack.c.b16 %v811, %v809
      %v823 = vpack.c.b16 %v815, %v813
      %v825 = vunpack.c.l.s4 1966171168
      %v826 = vunpack.c.0.s8 %v825
      %v827 = vlaneseq
      %v828 = vshrl.u32 %v827, 7
      %v829 = vsub.s32 %v826, %v828
      %v830 = vrot.slane %v816, %v829
      %v832 = vunpack.c.l.s4 1966171168
      %v833 = vunpack.c.0.s8 %v832
      %v834 = vlaneseq
      %v835 = vshrl.u32 %v834, 7
      %v836 = vsub.s32 %v833, %v835
      %v837 = vrot.slane %v817, %v836
      %v839 = vunpack.c.l.s4 1966171168
      %v840 = vunpack.c.0.s8 %v839
      %v841 = vlaneseq
      %v842 = vshrl.u32 %v841, 7
      %v843 = vsub.s32 %v840, %v842
      %v844 = vrot.slane %v818, %v843
      %v846 = vunpack.c.l.s4 1966171168
      %v847 = vunpack.c.0.s8 %v846
      %v848 = vlaneseq
      %v849 = vshrl.u32 %v848, 7
      %v850 = vsub.s32 %v847, %v849
      %v851 = vrot.slane %v819, %v850
      %v852 = vcombine.low %v830, %v837
      %v853 = vcombine.low %v844, %v851
      %v855 = vunpack.c.l.s4 1966171168
      %v856 = vunpack.c.0.s8 %v855
      %v857 = vlaneseq
      %v858 = vshrl.u32 %v857, 7
      %v859 = vsub.s32 %v856, %v858
      %v860 = vrot.slane %v852, %v859
      %v862 = vunpack.c.l.s4 1966171168
      %v863 = vunpack.c.0.s8 %v862
      %v864 = vlaneseq
      %v865 = vshrl.u32 %v864, 7
      %v866 = vsub.s32 %v863, %v865
      %v867 = vrot.slane %v853, %v866
      %v868 = vcombine.low %v860, %v867
      %v870 = vunpack.c.l.s4 1966171168
      %v871 = vunpack.c.0.s8 %v870
      %v872 = vlaneseq
      %v873 = vshrl.u32 %v872, 7
      %v874 = vsub.s32 %v871, %v873
      %v875 = vrot.slane %v820, %v874
      %v877 = vunpack.c.l.s4 1966171168
      %v878 = vunpack.c.0.s8 %v877
      %v879 = vlaneseq
      %v880 = vshrl.u32 %v879, 7
      %v881 = vsub.s32 %v878, %v880
      %v882 = vrot.slane %v821, %v881
      %v884 = vunpack.c.l.s4 1966171168
      %v885 = vunpack.c.0.s8 %v884
      %v886 = vlaneseq
      %v887 = vshrl.u32 %v886, 7
      %v888 = vsub.s32 %v885, %v887
      %v889 = vrot.slane %v822, %v888
      %v891 = vunpack.c.l.s4 1966171168
      %v892 = vunpack.c.0.s8 %v891
      %v893 = vlaneseq
      %v894 = vshrl.u32 %v893, 7
      %v895 = vsub.s32 %v892, %v894
      %v896 = vrot.slane %v823, %v895
      %v897 = vcombine.low %v875, %v882
      %v898 = vcombine.low %v889, %v896
      %v900 = vunpack.c.l.s4 1966171168
      %v901 = vunpack.c.0.s8 %v900
      %v902 = vlaneseq
      %v903 = vshrl.u32 %v902, 7
      %v904 = vsub.s32 %v901, %v903
      %v905 = vrot.slane %v897, %v904
      %v907 = vunpack.c.l.s4 1966171168
      %v908 = vunpack.c.0.s8 %v907
      %v909 = vlaneseq
      %v910 = vshrl.u32 %v909, 7
      %v911 = vsub.s32 %v908, %v910
      %v912 = vrot.slane %v898, %v911
      %v913 = vcombine.low %v905, %v912
      %916 = vst [vmem:[%s111] sm:$0xff] %v868
      %917 = vst [vmem:[%s111 + $0x8] sm:$0xff] %v913
      %p918 = scmp.lt.s32.totalorder %s12, 1
      %s919 = scalar_select %p918, %s12, 1
      %s920 = smul.addr %s919, 16
      %s921 = scalar_lea.vmem %s1, %s920
      // Predicated region
      $region25: #{net_forward.14} parent=23 // pred_check
        %p922 = pneg %p56
      $region26: #{net_forward.14} parent=23 // pred_check_branch
        %924 = sbr.rel (%p922) target = $region28
      $region27: #{net_forward.14} parent=23 // pred_region
        _
      $region28: #{net_forward.14} parent=23 // pred_fallthru
        _
    $region24: #{net_forward.14} parent=5 // pred_fallthru
      _
    %p925 = scmp.le.s32.totalorder 2, %s7
    // Predicated region
    $region29: #{net_forward.14} parent=5 // pred_check
      %p926 = pneg %p925
    $region30: #{net_forward.14} parent=5 // pred_check_branch
      %928 = sbr.rel (%p926) target = $region32
    $region31: #{net_forward.14} parent=5 // pred_region
      %s929 = ssub.s32 %s7, 2
      // Predicated region
      $region33: #{net_forward.14} parent=31 // pred_check
        %p930 = pneg %p62
      $region34: #{net_forward.14} parent=31 // pred_check_branch
        %932 = sbr.rel (%p930) target = $region36
      $region35: #{net_forward.14} parent=31 // pred_region
        %p933 = scmp.lt.s32.totalorder %s13, 1
        %s934 = scalar_select %p933, %s13, 1
        %s935 = smul.addr %s934, 16
        %s936 = scalar_lea.vmem %s1, %s935
      $region36: #{net_forward.14} parent=31 // pred_fallthru
        _
    $region32: #{net_forward.14} parent=5 // pred_fallthru
      _
  $region6: #{net_forward.14} parent=0 // loop_footer
    %s11 = sadd.s32 1, %s7
  $region7: #{net_forward.14} parent=0 // loop_footer_branch
    %6 = sbr.rel target = $region3
  $region8: #{net_forward.14} parent=0 // loop_exit
    _

// kernel: net_forward.13
$region0: #{net_forward.13}
  #allocation0 [shape = 'u32[]', space=smem, size = 0x4, offset = 0x4, fixed_abs, tag = 'smem constant byte address 0x4 - core index']
  #allocation1 [shape = 'u32[144,128]{1,0:T(1,128)}', space=vmem, size = 0x12000, scoped, tag = 'internal scratch']
  %s0 = inlined_call_operand.vmem [shape: bf16[2,2,1024], index: 0, kind: input, shape index: {}]
  %s1 = inlined_call_operand.vmem [shape: bf16[2,1024,2048], index: 1, kind: input, shape index: {}]
  %s2 = inlined_call_operand.vmem [shape: f32[2,1,2048], index: 2, kind: input, shape index: {}]
  %s3 = inlined_call_operand.vmem [shape: bf16[2,2,2048], index: 3, kind: output, shape index: {}]
  %s4 = sld [smem:[#allocation0]]
  $region68: #{net_forward.13} parent=0
    _
  %s6 = ssub.s32 1, %s4
  %s7 = scalar_select 0, %s6, %s4
  $region1: #{net_forward.13} parent=0
    #allocation2 [shape = 'u8[2097152]{0}', space=vmem, size = 0x200000, scoped, tag = 'input window, operand 1']
    loop: start=0, step=1, limit=10
    $region2: #{net_forward.13} parent=1 // loop_pre_header
      _
    $region3: #{net_forward.13} parent=1 // loop_header
      %s9 = sphi 0, %s13
      %p10 = scmp.ge.s32.totalorder %s9, 10
      %s16 = sphi 0, %s35
      %s17 = sphi 0, %s31
      %s18 = sphi 0, %s27
      %s19 = sphi 0, %s16
      %s20 = sphi 0, %s17
      %s21 = sphi 0, %s18
      %s22 = sphi 0, %s19
      %s23 = sphi 0, %s20
      %s24 = sphi 0, %s21
      %s40 = sphi 0, %s42
      %s43 = sphi 0, %s40
      %s44 = sphi 0, %s43
      %s60 = sphi 0, %s44
      %s68 = sphi 0, %s70
      %s71 = sphi 0, %s68
      %s72 = sphi 0, %s71
      %s88 = sphi 0, %s72
      %s96 = sphi 0, %s98
      %s99 = sphi 0, %s96
      %s100 = sphi 0, %s99
      %s116 = sphi 0, %s100
      %s126 = sphi 0, %s128
      %s129 = sphi 0, %s126
      %s130 = sphi 0, %s129
      %s146 = sphi 0, %s130
    $region4: #{net_forward.13} parent=1 // loop_header_branch
      %12 = sbr.rel (%p10) target = $region8
    $region5: #{net_forward.13} parent=1 // loop_body
      %s14 = ssub.s32 %s9, 1
      %s15 = ssub.s32 %s9, 2
      %s25 = sadd.s32 1, %s18
      %p26 = scmp.ge.s32.totalorder %s25, 4
      %s27 = scalar_select %p26, 0, %s25
      %s28 = sadd.s32 1, %s17
      %s29 = scalar_select %p26, %s28, %s17
      %p30 = scmp.ge.s32.totalorder %s29, 1
      %s31 = scalar_select %p30, 0, %s29
      %s32 = sadd.s32 1, %s16
      %s33 = scalar_select %p30, %s32, %s16
      %p34 = scmp.ge.s32.totalorder %s33, 2
      %s35 = scalar_select %p34, 0, %s33
      %s36 = ssub.s32 %s16, %s35
      %s37 = ssub.s32 %s17, %s31
      %s38 = sor.u32 %s36, %s37
      %p39 = scmp.eq.s32.totalorder %s38, 0
      %s41 = sadd.s32 %s40, 1
      %s42 = scalar_select %p39, %s40, %s41
      %p45 = pneg %p39
      %p46 = scmp.eq.s32.totalorder %s9, 7
      %p47 = por %p45, %p46
      %p48 = scmp.ne.s32.totalorder %s40, %s43
      %p49 = scmp.eq.s32.totalorder %s9, 0
      %p50 = por %p48, %p49
      %p51 = scmp.ne.s32.totalorder %s40, %s43
      %p52 = scmp.eq.s32.totalorder %s14, 7
      %p53 = por %p51, %p52
      %p54 = scmp.ne.s32.totalorder %s43, %s44
      %p55 = scmp.eq.s32.totalorder %s14, 0
      %p56 = por %p54, %p55
      %p57 = scmp.ne.s32.totalorder %s43, %s44
      %p58 = scmp.eq.s32.totalorder %s15, 7
      %p59 = por %p57, %p58
      %p61 = scmp.ne.s32.totalorder %s44, %s60
      %p62 = scmp.eq.s32.totalorder %s15, 0
      %p63 = por %p61, %p62
      %s64 = ssub.s32 %s16, %s35
      %s65 = ssub.s32 %s18, %s27
      %s66 = sor.u32 %s64, %s65
      %p67 = scmp.eq.s32.totalorder %s66, 0
      %s69 = sadd.s32 %s68, 1
      %s70 = scalar_select %p67, %s68, %s69
      %p73 = pneg %p67
      %p74 = scmp.eq.s32.totalorder %s9, 7
      %p75 = por %p73, %p74
      %p76 = scmp.ne.s32.totalorder %s68, %s71
      %p77 = scmp.eq.s32.totalorder %s9, 0
      %p78 = por %p76, %p77
      %p79 = scmp.ne.s32.totalorder %s68, %s71
      %p80 = scmp.eq.s32.totalorder %s14, 7
      %p81 = por %p79, %p80
      %p82 = scmp.ne.s32.totalorder %s71, %s72
      %p83 = scmp.eq.s32.totalorder %s14, 0
      %p84 = por %p82, %p83
      %p85 = scmp.ne.s32.totalorder %s71, %s72
      %p86 = scmp.eq.s32.totalorder %s15, 7
      %p87 = por %p85, %p86
      %p89 = scmp.ne.s32.totalorder %s72, %s88
      %p90 = scmp.eq.s32.totalorder %s15, 0
      %p91 = por %p89, %p90
      %s92 = ssub.s32 %s16, %s35
      %s93 = ssub.s32 %s18, %s27
      %s94 = sor.u32 %s92, %s93
      %p95 = scmp.eq.s32.totalorder %s94, 0
      %s97 = sadd.s32 %s96, 1
      %s98 = scalar_select %p95, %s96, %s97
      %p101 = pneg %p95
      %p102 = scmp.eq.s32.totalorder %s9, 7
      %p103 = por %p101, %p102
      %p104 = scmp.ne.s32.totalorder %s96, %s99
      %p105 = scmp.eq.s32.totalorder %s9, 0
      %p106 = por %p104, %p105
      %p107 = scmp.ne.s32.totalorder %s96, %s99
      %p108 = scmp.eq.s32.totalorder %s14, 7
      %p109 = por %p107, %p108
      %p110 = scmp.ne.s32.totalorder %s99, %s100
      %p111 = scmp.eq.s32.totalorder %s14, 0
      %p112 = por %p110, %p111
      %p113 = scmp.ne.s32.totalorder %s99, %s100
      %p114 = scmp.eq.s32.totalorder %s15, 7
      %p115 = por %p113, %p114
      %p117 = scmp.ne.s32.totalorder %s100, %s116
      %p118 = scmp.eq.s32.totalorder %s15, 0
      %p119 = por %p117, %p118
      %s120 = ssub.s32 %s16, %s35
      %s121 = ssub.s32 %s17, %s31
      %s122 = sor.u32 %s120, %s121
      %s123 = ssub.s32 %s18, %s27
      %s124 = sor.u32 %s122, %s123
      %p125 = scmp.eq.s32.totalorder %s124, 0
      %s127 = sadd.s32 %s126, 1
      %s128 = scalar_select %p125, %s126, %s127
      %p131 = pneg %p125
      %p132 = scmp.eq.s32.totalorder %s9, 7
      %p133 = por %p131, %p132
      %p134 = scmp.ne.s32.totalorder %s126, %s129
      %p135 = scmp.eq.s32.totalorder %s9, 0
      %p136 = por %p134, %p135
      %p137 = scmp.ne.s32.totalorder %s126, %s129
      %p138 = scmp.eq.s32.totalorder %s14, 7
      %p139 = por %p137, %p138
      %p140 = scmp.ne.s32.totalorder %s129, %s130
      %p141 = scmp.eq.s32.totalorder %s14, 0
      %p142 = por %p140, %p141
      %p143 = scmp.ne.s32.totalorder %s129, %s130
      %p144 = scmp.eq.s32.totalorder %s15, 7
      %p145 = por %p143, %p144
      %p147 = scmp.ne.s32.totalorder %s130, %s146
      %p148 = scmp.eq.s32.totalorder %s15, 0
      %p149 = por %p147, %p148
      %p150 = scmp.le.s32.totalorder 1, %s9
      %p151 = scmp.lt.s32.totalorder %s9, 9
      %p152 = pnand %p150, %p151
      %p153 = pneg %p152
      // Predicated region
      $region9: #{net_forward.13} parent=5 // pred_check
        _
      $region10: #{net_forward.13} parent=5 // pred_check_branch
        %155 = sbr.rel (%p152) target = $region12
      $region11: #{net_forward.13} parent=5 // pred_region
        %s156 = ssub.s32 %s9, 1
      $region12: #{net_forward.13} parent=5 // pred_fallthru
        _
      %p157 = scmp.lt.s32.totalorder %s9, 8
      // Predicated region
      $region13: #{net_forward.13} parent=5 // pred_check
        %p158 = pneg %p157
      $region14: #{net_forward.13} parent=5 // pred_check_branch
        %160 = sbr.rel (%p158) target = $region16
      $region15: #{net_forward.13} parent=5 // pred_region
        // Predicated region
        $region17: #{net_forward.13} parent=15 // pred_check
          %p161 = pneg %p50
        $region18: #{net_forward.13} parent=15 // pred_check_branch
          %163 = sbr.rel (%p161) target = $region20
        $region19: #{net_forward.13} parent=15 // pred_region
          %p164 = scmp.lt.s32.totalorder %s16, 1
          %s165 = scalar_select %p164, %s16, 1
          %p166 = scmp.lt.s32.totalorder %s17, 0
          %s167 = scalar_select %p166, %s17, 0
          %s168 = smul.addr %s167, 8
          %s169 = smul.addr %s165, 8
          %s170 = sadd.s32 %s168, %s169
          %s171 = scalar_lea.vmem %s0, %s170
        $region20: #{net_forward.13} parent=15 // pred_fallthru
          _
        // Predicated region
        $region21: #{net_forward.13} parent=15 // pred_check
          %p172 = pneg %p78
        $region22: #{net_forward.13} parent=15 // pred_check_branch
          %174 = sbr.rel (%p172) target = $region24
        $region23: #{net_forward.13} parent=15 // pred_region
          %s175 = sand.u32 %s68, 1
          %s176 = sand.u32 %s68, 1
          %s177 = smul.addr %s176, 2048
          %s178 = scalar_lea.vmem [#allocation2], %s177
          %s179 = smul.u32 4, %s18
          %s180 = smul.addr %s16, 2048
          %s181 = sadd.s32 %s179, %s180
          %s182 = smul.addr %s181, 4
          %s183 = scalar_lea.vmem %s1, %s182
          // Predicated region
          $region25: #{net_forward.13} parent=23 // pred_check
            _
          $region26: #{net_forward.13} parent=23 // pred_check_branch
            %185 = sbr.rel (0) target = $region28
          $region27: #{net_forward.13} parent=23 // pred_region
            // Predicated region
            $region29: #{net_forward.13} parent=27 // pred_check
              _
            $region30: #{net_forward.13} parent=27 // pred_check_branch
              %187 = sbr.rel (0) target = $region32
            $region31: #{net_forward.13} parent=27 // pred_region
              loop: start=0, step=1, limit=1
              $region33: #{net_forward.13} parent=31 // loop_pre_header
                _
              $region34: #{net_forward.13} parent=31 // loop_header
                %s189 = sphi 0, %s193
                %p190 = scmp.ge.s32.totalorder %s189, 1
                %s194 = sphi %s183, %s183
                %s195 = sphi %s178, %s178
              $region35: #{net_forward.13} parent=31 // loop_header_branch
                %192 = sbr.rel (%p190) target = $region39
              $region36: #{net_forward.13} parent=31 // loop_body
                %v196 = vld [vmem:[%s194] sm:$0xff]
                %197 = vst [vmem:[%s195] sm:$0xff] %v196
                %v198 = vld [vmem:[%s194 + $0x8] sm:$0xff]
                %199 = vst [vmem:[%s195 + $0x8] sm:$0xff] %v198
                %v200 = vld [vmem:[%s194 + $0x40] sm:$0xff]
                %201 = vst [vmem:[%s195 + $0x10] sm:$0xff] %v200
                %v202 = vld [vmem:[%s194 + $0x48] sm:$0xff]
                %203 = vst [vmem:[%s195 + $0x18] sm:$0xff] %v202
                %v204 = vld [vmem:[%s194 + $0x80] sm:$0xff]
                %205 = vst [vmem:[%s195 + $0x20] sm:$0xff] %v204
                %v206 = vld [vmem:[%s194 + $0x88] sm:$0xff]
                %207 = vst [vmem:[%s195 + $0x28] sm:$0xff] %v206
                %v208 = vld [vmem:[%s194 + $0xc0] sm:$0xff]
                %209 = vst [vmem:[%s195 + $0x30] sm:$0xff] %v208
                %v210 = vld [vmem:[%s194 + $0xc8] sm:$0xff]
                %211 = vst [vmem:[%s195 + $0x38] sm:$0xff] %v210
                %v212 = vld [vmem:[%s194 + $0x100] sm:$0xff]
                %213 = vst [vmem:[%s195 + $0x40] sm:$0xff] %v212
                %v214 = vld [vmem:[%s194 + $0x108] sm:$0xff]
                %215 = vst [vmem:[%s195 + $0x48] sm:$0xff] %v214
                %v216 = vld [vmem:[%s194 + $0x140] sm:$0xff]
                %217 = vst [vmem:[%s195 + $0x50] sm:$0xff] %v216
                %v218 = vld [vmem:[%s194 + $0x148] sm:$0xff]
                %219 = vst [vmem:[%s195 + $0x58] sm:$0xff] %v218
                %v220 = vld [vmem:[%s194 + $0x180] sm:$0xff]
                %221 = vst [vmem:[%s195 + $0x60] sm:$0xff] %v220
                %v222 = vld [vmem:[%s194 + $0x188] sm:$0xff]
                %223 = vst [vmem:[%s195 + $0x68] sm:$0xff] %v222
                %v224 = vld [vmem:[%s194 + $0x1c0] sm:$0xff]
                %225 = vst [vmem:[%s195 + $0x70] sm:$0xff] %v224
                %v226 = vld [vmem:[%s194 + $0x1c8] sm:$0xff]
                %227 = vst [vmem:[%s195 + $0x78] sm:$0xff] %v226
                %v228 = vld [vmem:[%s194 + $0x200] sm:$0xff]
                %229 = vst [vmem:[%s195 + $0x80] sm:$0xff] %v228
                %v230 = vld [vmem:[%s194 + $0x208] sm:$0xff]
                %231 = vst [vmem:[%s195 + $0x88] sm:$0xff] %v230
                %v232 = vld [vmem:[%s194 + $0x240] sm:$0xff]
                %233 = vst [vmem:[%s195 + $0x90] sm:$0xff] %v232
                %v234 = vld [vmem:[%s194 + $0x248] sm:$0xff]
                %235 = vst [vmem:[%s195 + $0x98] sm:$0xff] %v234
                %v236 = vld [vmem:[%s194 + $0x280] sm:$0xff]
                %237 = vst [vmem:[%s195 + $0xa0] sm:$0xff] %v236
                %v238 = vld [vmem:[%s194 + $0x288] sm:$0xff]
                %239 = vst [vmem:[%s195 + $0xa8] sm:$0xff] %v238
                %v240 = vld [vmem:[%s194 + $0x2c0] sm:$0xff]
                %241 = vst [vmem:[%s195 + $0xb0] sm:$0xff] %v240
                %v242 = vld [vmem:[%s194 + $0x2c8] sm:$0xff]
                %243 = vst [vmem:[%s195 + $0xb8] sm:$0xff] %v242
                %v244 = vld [vmem:[%s194 + $0x300] sm:$0xff]
                %245 = vst [vmem:[%s195 + $0xc0] sm:$0xff] %v244
                %v246 = vld [vmem:[%s194 + $0x308] sm:$0xff]
                %247 = vst [vmem:[%s195 + $0xc8] sm:$0xff] %v246
                %v248 = vld [vmem:[%s194 + $0x340] sm:$0xff]
                %249 = vst [vmem:[%s195 + $0xd0] sm:$0xff] %v248
                %v250 = vld [vmem:[%s194 + $0x348] sm:$0xff]
                %251 = vst [vmem:[%s195 + $0xd8] sm:$0xff] %v250
                %v252 = vld [vmem:[%s194 + $0x380] sm:$0xff]
                %253 = vst [vmem:[%s195 + $0xe0] sm:$0xff] %v252
                %v254 = vld [vmem:[%s194 + $0x388] sm:$0xff]
                %255 = vst [vmem:[%s195 + $0xe8] sm:$0xff] %v254
                %v256 = vld [vmem:[%s194 + $0x3c0] sm:$0xff]
                %257 = vst [vmem:[%s195 + $0xf0] sm:$0xff] %v256
                %v258 = vld [vmem:[%s194 + $0x3c8] sm:$0xff]
                %259 = vst [vmem:[%s195 + $0xf8] sm:$0xff] %v258
                %v260 = vld [vmem:[%s194 + $0x400] sm:$0xff]
                %261 = vst [vmem:[%s195 + $0x100] sm:$0xff] %v260
                %v262 = vld [vmem:[%s194 + $0x408] sm:$0xff]
                %263 = vst [vmem:[%s195 + $0x108] sm:$0xff] %v262
                %v264 = vld [vmem:[%s194 + $0x440] sm:$0xff]
                %265 = vst [vmem:[%s195 + $0x110] sm:$0xff] %v264
                %v266 = vld [vmem:[%s194 + $0x448] sm:$0xff]
                %267 = vst [vmem:[%s195 + $0x118] sm:$0xff] %v266
                %v268 = vld [vmem:[%s194 + $0x480] sm:$0xff]
                %269 = vst [vmem:[%s195 + $0x120] sm:$0xff] %v268
                %v270 = vld [vmem:[%s194 + $0x488] sm:$0xff]
                %271 = vst [vmem:[%s195 + $0x128] sm:$0xff] %v270
                %v272 = vld [vmem:[%s194 + $0x4c0] sm:$0xff]
                %273 = vst [vmem:[%s195 + $0x130] sm:$0xff] %v272
                %v274 = vld [vmem:[%s194 + $0x4c8] sm:$0xff]
                %275 = vst [vmem:[%s195 + $0x138] sm:$0xff] %v274
                %v276 = vld [vmem:[%s194 + $0x500] sm:$0xff]
                %277 = vst [vmem:[%s195 + $0x140] sm:$0xff] %v276
                %v278 = vld [vmem:[%s194 + $0x508] sm:$0xff]
                %279 = vst [vmem:[%s195 + $0x148] sm:$0xff] %v278
                %v280 = vld [vmem:[%s194 + $0x540] sm:$0xff]
                %281 = vst [vmem:[%s195 + $0x150] sm:$0xff] %v280
                %v282 = vld [vmem:[%s194 + $0x548] sm:$0xff]
                %283 = vst [vmem:[%s195 + $0x158] sm:$0xff] %v282
                %v284 = vld [vmem:[%s194 + $0x580] sm:$0xff]
                %285 = vst [vmem:[%s195 + $0x160] sm:$0xff] %v284
                %v286 = vld [vmem:[%s194 + $0x588] sm:$0xff]
                %287 = vst [vmem:[%s195 + $0x168] sm:$0xff] %v286
                %v288 = vld [vmem:[%s194 + $0x5c0] sm:$0xff]
                %289 = vst [vmem:[%s195 + $0x170] sm:$0xff] %v288
                %v290 = vld [vmem:[%s194 + $0x5c8] sm:$0xff]
                %291 = vst [vmem:[%s195 + $0x178] sm:$0xff] %v290
                %v292 = vld [vmem:[%s194 + $0x600] sm:$0xff]
                %293 = vst [vmem:[%s195 + $0x180] sm:$0xff] %v292
                %v294 = vld [vmem:[%s194 + $0x608] sm:$0xff]
                %295 = vst [vmem:[%s195 + $0x188] sm:$0xff] %v294
                %v296 = vld [vmem:[%s194 + $0x640] sm:$0xff]
                %297 = vst [vmem:[%s195 + $0x190] sm:$0xff] %v296
                %v298 = vld [vmem:[%s194 + $0x648] sm:$0xff]
                %299 = vst [vmem:[%s195 + $0x198] sm:$0xff] %v298
                %v300 = vld [vmem:[%s194 + $0x680] sm:$0xff]
                %301 = vst [vmem:[%s195 + $0x1a0] sm:$0xff] %v300
                %v302 = vld [vmem:[%s194 + $0x688] sm:$0xff]
                %303 = vst [vmem:[%s195 + $0x1a8] sm:$0xff] %v302
                %v304 = vld [vmem:[%s194 + $0x6c0] sm:$0xff]
                %305 = vst [vmem:[%s195 + $0x1b0] sm:$0xff] %v304
                %v306 = vld [vmem:[%s194 + $0x6c8] sm:$0xff]
                %307 = vst [vmem:[%s195 + $0x1b8] sm:$0xff] %v306
                %v308 = vld [vmem:[%s194 + $0x700] sm:$0xff]
                %309 = vst [vmem:[%s195 + $0x1c0] sm:$0xff] %v308
                %v310 = vld [vmem:[%s194 + $0x708] sm:$0xff]
                %311 = vst [vmem:[%s195 + $0x1c8] sm:$0xff] %v310
                %v312 = vld [vmem:[%s194 + $0x740] sm:$0xff]
                %313 = vst [vmem:[%s195 + $0x1d0] sm:$0xff] %v312
                %v314 = vld [vmem:[%s194 + $0x748] sm:$0xff]
                %315 = vst [vmem:[%s195 + $0x1d8] sm:$0xff] %v314
                %v316 = vld [vmem:[%s194 + $0x780] sm:$0xff]
                %317 = vst [vmem:[%s195 + $0x1e0] sm:$0xff] %v316
                %v318 = vld [vmem:[%s194 + $0x788] sm:$0xff]
                %319 = vst [vmem:[%s195 + $0x1e8] sm:$0xff] %v318
                %v320 = vld [vmem:[%s194 + $0x7c0] sm:$0xff]
                %321 = vst [vmem:[%s195 + $0x1f0] sm:$0xff] %v320
                %v322 = vld [vmem:[%s194 + $0x7c8] sm:$0xff]
                %323 = vst [vmem:[%s195 + $0x1f8] sm:$0xff] %v322
                %v324 = vld [vmem:[%s194 + $0x800] sm:$0xff]
                %325 = vst [vmem:[%s195 + $0x200] sm:$0xff] %v324
                %v326 = vld [vmem:[%s194 + $0x808] sm:$0xff]
                %327 = vst [vmem:[%s195 + $0x208] sm:$0xff] %v326
                %v328 = vld [vmem:[%s194 + $0x840] sm:$0xff]
                %329 = vst [vmem:[%s195 + $0x210] sm:$0xff] %v328
                %v330 = vld [vmem:[%s194 + $0x848] sm:$0xff]
                %331 = vst [vmem:[%s195 + $0x218] sm:$0xff] %v330
                %v332 = vld [vmem:[%s194 + $0x880] sm:$0xff]
                %333 = vst [vmem:[%s195 + $0x220] sm:$0xff] %v332
                %v334 = vld [vmem:[%s194 + $0x888] sm:$0xff]
                %335 = vst [vmem:[%s195 + $0x228] sm:$0xff] %v334
                %v336 = vld [vmem:[%s194 + $0x8c0] sm:$0xff]
                %337 = vst [vmem:[%s195 + $0x230] sm:$0xff] %v336
                %v338 = vld [vmem:[%s194 + $0x8c8] sm:$0xff]
                %339 = vst [vmem:[%s195 + $0x238] sm:$0xff] %v338
                %v340 = vld [vmem:[%s194 + $0x900] sm:$0xff]
                %341 = vst [vmem:[%s195 + $0x240] sm:$0xff] %v340
                %v342 = vld [vmem:[%s194 + $0x908] sm:$0xff]
                %343 = vst [vmem:[%s195 + $0x248] sm:$0xff] %v342
                %v344 = vld [vmem:[%s194 + $0x940] sm:$0xff]
                %345 = vst [vmem:[%s195 + $0x250] sm:$0xff] %v344
                %v346 = vld [vmem:[%s194 + $0x948] sm:$0xff]
                %347 = vst [vmem:[%s195 + $0x258] sm:$0xff] %v346
                %v348 = vld [vmem:[%s194 + $0x980] sm:$0xff]
                %349 = vst [vmem:[%s195 + $0x260] sm:$0xff] %v348
                %v350 = vld [vmem:[%s194 + $0x988] sm:$0xff]
                %351 = vst [vmem:[%s195 + $0x268] sm:$0xff] %v350
                %v352 = vld [vmem:[%s194 + $0x9c0] sm:$0xff]
                %353 = vst [vmem:[%s195 + $0x270] sm:$0xff] %v352
                %v354 = vld [vmem:[%s194 + $0x9c8] sm:$0xff]
                %355 = vst [vmem:[%s195 + $0x278] sm:$0xff] %v354
                %v356 = vld [vmem:[%s194 + $0xa00] sm:$0xff]
                %357 = vst [vmem:[%s195 + $0x280] sm:$0xff] %v356
                %v358 = vld [vmem:[%s194 + $0xa08] sm:$0xff]
                %359 = vst [vmem:[%s195 + $0x288] sm:$0xff] %v358
                %v360 = vld [vmem:[%s194 + $0xa40] sm:$0xff]
                %361 = vst [vmem:[%s195 + $0x290] sm:$0xff] %v360
                %v362 = vld [vmem:[%s194 + $0xa48] sm:$0xff]
                %363 = vst [vmem:[%s195 + $0x298] sm:$0xff] %v362
                %v364 = vld [vmem:[%s194 + $0xa80] sm:$0xff]
                %365 = vst [vmem:[%s195 + $0x2a0] sm:$0xff] %v364
                %v366 = vld [vmem:[%s194 + $0xa88] sm:$0xff]
                %367 = vst [vmem:[%s195 + $0x2a8] sm:$0xff] %v366
                %v368 = vld [vmem:[%s194 + $0xac0] sm:$0xff]
                %369 = vst [vmem:[%s195 + $0x2b0] sm:$0xff] %v368
                %v370 = vld [vmem:[%s194 + $0xac8] sm:$0xff]
                %371 = vst [vmem:[%s195 + $0x2b8] sm:$0xff] %v370
                %v372 = vld [vmem:[%s194 + $0xb00] sm:$0xff]
                %373 = vst [vmem:[%s195 + $0x2c0] sm:$0xff] %v372
                %v374 = vld [vmem:[%s194 + $0xb08] sm:$0xff]
                %375 = vst [vmem:[%s195 + $0x2c8] sm:$0xff] %v374
                %v376 = vld [vmem:[%s194 + $0xb40] sm:$0xff]
                %377 = vst [vmem:[%s195 + $0x2d0] sm:$0xff] %v376
                %v378 = vld [vmem:[%s194 + $0xb48] sm:$0xff]
                %379 = vst [vmem:[%s195 + $0x2d8] sm:$0xff] %v378
                %v380 = vld [vmem:[%s194 + $0xb80] sm:$0xff]
                %381 = vst [vmem:[%s195 + $0x2e0] sm:$0xff] %v380
                %v382 = vld [vmem:[%s194 + $0xb88] sm:$0xff]
                %383 = vst [vmem:[%s195 + $0x2e8] sm:$0xff] %v382
                %v384 = vld [vmem:[%s194 + $0xbc0] sm:$0xff]
                %385 = vst [vmem:[%s195 + $0x2f0] sm:$0xff] %v384
                %v386 = vld [vmem:[%s194 + $0xbc8] sm:$0xff]
                %387 = vst [vmem:[%s195 + $0x2f8] sm:$0xff] %v386
                %v388 = vld [vmem:[%s194 + $0xc00] sm:$0xff]
                %389 = vst [vmem:[%s195 + $0x300] sm:$0xff] %v388
                %v390 = vld [vmem:[%s194 + $0xc08] sm:$0xff]
                %391 = vst [vmem:[%s195 + $0x308] sm:$0xff] %v390
                %v392 = vld [vmem:[%s194 + $0xc40] sm:$0xff]
                %393 = vst [vmem:[%s195 + $0x310] sm:$0xff] %v392
                %v394 = vld [vmem:[%s194 + $0xc48] sm:$0xff]
                %395 = vst [vmem:[%s195 + $0x318] sm:$0xff] %v394
                %v396 = vld [vmem:[%s194 + $0xc80] sm:$0xff]
                %397 = vst [vmem:[%s195 + $0x320] sm:$0xff] %v396
                %v398 = vld [vmem:[%s194 + $0xc88] sm:$0xff]
                %399 = vst [vmem:[%s195 + $0x328] sm:$0xff] %v398
                %v400 = vld [vmem:[%s194 + $0xcc0] sm:$0xff]
                %401 = vst [vmem:[%s195 + $0x330] sm:$0xff] %v400
                %v402 = vld [vmem:[%s194 + $0xcc8] sm:$0xff]
                %403 = vst [vmem:[%s195 + $0x338] sm:$0xff] %v402
                %v404 = vld [vmem:[%s194 + $0xd00] sm:$0xff]
                %405 = vst [vmem:[%s195 + $0x340] sm:$0xff] %v404
                %v406 = vld [vmem:[%s194 + $0xd08] sm:$0xff]
                %407 = vst [vmem:[%s195 + $0x348] sm:$0xff] %v406
                %v408 = vld [vmem:[%s194 + $0xd40] sm:$0xff]
                %409 = vst [vmem:[%s195 + $0x350] sm:$0xff] %v408
                %v410 = vld [vmem:[%s194 + $0xd48] sm:$0xff]
                %411 = vst [vmem:[%s195 + $0x358] sm:$0xff] %v410
                %v412 = vld [vmem:[%s194 + $0xd80] sm:$0xff]
                %413 = vst [vmem:[%s195 + $0x360] sm:$0xff] %v412
                %v414 = vld [vmem:[%s194 + $0xd88] sm:$0xff]
                %415 = vst [vmem:[%s195 + $0x368] sm:$0xff] %v414
                %v416 = vld [vmem:[%s194 + $0xdc0] sm:$0xff]
                %417 = vst [vmem:[%s195 + $0x370] sm:$0xff] %v416
                %v418 = vld [vmem:[%s194 + $0xdc8] sm:$0xff]
                %419 = vst [vmem:[%s195 + $0x378] sm:$0xff] %v418
                %v420 = vld [vmem:[%s194 + $0xe00] sm:$0xff]
                %421 = vst [vmem:[%s195 + $0x380] sm:$0xff] %v420
                %v422 = vld [vmem:[%s194 + $0xe08] sm:$0xff]
                %423 = vst [vmem:[%s195 + $0x388] sm:$0xff] %v422
                %v424 = vld [vmem:[%s194 + $0xe40] sm:$0xff]
                %425 = vst [vmem:[%s195 + $0x390] sm:$0xff] %v424
                %v426 = vld [vmem:[%s194 + $0xe48] sm:$0xff]
                %427 = vst [vmem:[%s195 + $0x398] sm:$0xff] %v426
                %v428 = vld [vmem:[%s194 + $0xe80] sm:$0xff]
                %429 = vst [vmem:[%s195 + $0x3a0] sm:$0xff] %v428
                %v430 = vld [vmem:[%s194 + $0xe88] sm:$0xff]
                %431 = vst [vmem:[%s195 + $0x3a8] sm:$0xff] %v430
                %v432 = vld [vmem:[%s194 + $0xec0] sm:$0xff]
                %433 = vst [vmem:[%s195 + $0x3b0] sm:$0xff] %v432
                %v434 = vld [vmem:[%s194 + $0xec8] sm:$0xff]
                %435 = vst [vmem:[%s195 + $0x3b8] sm:$0xff] %v434
                %v436 = vld [vmem:[%s194 + $0xf00] sm:$0xff]
                %437 = vst [vmem:[%s195 + $0x3c0] sm:$0xff] %v436
                %v438 = vld [vmem:[%s194 + $0xf08] sm:$0xff]
                %439 = vst [vmem:[%s195 + $0x3c8] sm:$0xff] %v438
                %v440 = vld [vmem:[%s194 + $0xf40] sm:$0xff]
                %441 = vst [vmem:[%s195 + $0x3d0] sm:$0xff] %v440
                %v442 = vld [vmem:[%s194 + $0xf48] sm:$0xff]
                %443 = vst [vmem:[%s195 + $0x3d8] sm:$0xff] %v442
                %v444 = vld [vmem:[%s194 + $0xf80] sm:$0xff]
                %445 = vst [vmem:[%s195 + $0x3e0] sm:$0xff] %v444
                %v446 = vld [vmem:[%s194 + $0xf88] sm:$0xff]
                %447 = vst [vmem:[%s195 + $0x3e8] sm:$0xff] %v446
                %v448 = vld [vmem:[%s194 + $0xfc0] sm:$0xff]
                %449 = vst [vmem:[%s195 + $0x3f0] sm:$0xff] %v448
                %v450 = vld [vmem:[%s194 + $0xfc8] sm:$0xff]
                %451 = vst [vmem:[%s195 + $0x3f8] sm:$0xff] %v450
                %v452 = vld [vmem:[%s194 + $0x1000] sm:$0xff]
                %453 = vst [vmem:[%s195 + $0x400] sm:$0xff] %v452
                %v454 = vld [vmem:[%s194 + $0x1008] sm:$0xff]
                %455 = vst [vmem:[%s195 + $0x408] sm:$0xff] %v454
                %v456 = vld [vmem:[%s194 + $0x1040] sm:$0xff]
                %457 = vst [vmem:[%s195 + $0x410] sm:$0xff] %v456
                %v458 = vld [vmem:[%s194 + $0x1048] sm:$0xff]
                %459 = vst [vmem:[%s195 + $0x418] sm:$0xff] %v458
                %v460 = vld [vmem:[%s194 + $0x1080] sm:$0xff]
                %461 = vst [vmem:[%s195 + $0x420] sm:$0xff] %v460
                %v462 = vld [vmem:[%s194 + $0x1088] sm:$0xff]
                %463 = vst [vmem:[%s195 + $0x428] sm:$0xff] %v462
                %v464 = vld [vmem:[%s194 + $0x10c0] sm:$0xff]
                %465 = vst [vmem:[%s195 + $0x430] sm:$0xff] %v464
                %v466 = vld [vmem:[%s194 + $0x10c8] sm:$0xff]
                %467 = vst [vmem:[%s195 + $0x438] sm:$0xff] %v466
                %v468 = vld [vmem:[%s194 + $0x1100] sm:$0xff]
                %469 = vst [vmem:[%s195 + $0x440] sm:$0xff] %v468
                %v470 = vld [vmem:[%s194 + $0x1108] sm:$0xff]
                %471 = vst [vmem:[%s195 + $0x448] sm:$0xff] %v470
                %v472 = vld [vmem:[%s194 + $0x1140] sm:$0xff]
                %473 = vst [vmem:[%s195 + $0x450] sm:$0xff] %v472
                %v474 = vld [vmem:[%s194 + $0x1148] sm:$0xff]
                %475 = vst [vmem:[%s195 + $0x458] sm:$0xff] %v474
                %v476 = vld [vmem:[%s194 + $0x1180] sm:$0xff]
                %477 = vst [vmem:[%s195 + $0x460] sm:$0xff] %v476
                %v478 = vld [vmem:[%s194 + $0x1188] sm:$0xff]
                %479 = vst [vmem:[%s195 + $0x468] sm:$0xff] %v478
                %v480 = vld [vmem:[%s194 + $0x11c0] sm:$0xff]
                %481 = vst [vmem:[%s195 + $0x470] sm:$0xff] %v480
                %v482 = vld [vmem:[%s194 + $0x11c8] sm:$0xff]
                %483 = vst [vmem:[%s195 + $0x478] sm:$0xff] %v482
                %v484 = vld [vmem:[%s194 + $0x1200] sm:$0xff]
                %485 = vst [vmem:[%s195 + $0x480] sm:$0xff] %v484
                %v486 = vld [vmem:[%s194 + $0x1208] sm:$0xff]
                %487 = vst [vmem:[%s195 + $0x488] sm:$0xff] %v486
                %v488 = vld [vmem:[%s194 + $0x1240] sm:$0xff]
                %489 = vst [vmem:[%s195 + $0x490] sm:$0xff] %v488
                %v490 = vld [vmem:[%s194 + $0x1248] sm:$0xff]
                %491 = vst [vmem:[%s195 + $0x498] sm:$0xff] %v490
                %v492 = vld [vmem:[%s194 + $0x1280] sm:$0xff]
                %493 = vst [vmem:[%s195 + $0x4a0] sm:$0xff] %v492
                %v494 = vld [vmem:[%s194 + $0x1288] sm:$0xff]
                %495 = vst [vmem:[%s195 + $0x4a8] sm:$0xff] %v494
                %v496 = vld [vmem:[%s194 + $0x12c0] sm:$0xff]
                %497 = vst [vmem:[%s195 + $0x4b0] sm:$0xff] %v496
                %v498 = vld [vmem:[%s194 + $0x12c8] sm:$0xff]
                %499 = vst [vmem:[%s195 + $0x4b8] sm:$0xff] %v498
                %v500 = vld [vmem:[%s194 + $0x1300] sm:$0xff]
                %501 = vst [vmem:[%s195 + $0x4c0] sm:$0xff] %v500
                %v502 = vld [vmem:[%s194 + $0x1308] sm:$0xff]
                %503 = vst [vmem:[%s195 + $0x4c8] sm:$0xff] %v502
                %v504 = vld [vmem:[%s194 + $0x1340] sm:$0xff]
                %505 = vst [vmem:[%s195 + $0x4d0] sm:$0xff] %v504
                %v506 = vld [vmem:[%s194 + $0x1348] sm:$0xff]
                %507 = vst [vmem:[%s195 + $0x4d8] sm:$0xff] %v506
                %v508 = vld [vmem:[%s194 + $0x1380] sm:$0xff]
                %509 = vst [vmem:[%s195 + $0x4e0] sm:$0xff] %v508
                %v510 = vld [vmem:[%s194 + $0x1388] sm:$0xff]
                %511 = vst [vmem:[%s195 + $0x4e8] sm:$0xff] %v510
                %v512 = vld [vmem:[%s194 + $0x13c0] sm:$0xff]
                %513 = vst [vmem:[%s195 + $0x4f0] sm:$0xff] %v512
                %v514 = vld [vmem:[%s194 + $0x13c8] sm:$0xff]
                %515 = vst [vmem:[%s195 + $0x4f8] sm:$0xff] %v514
                %v516 = vld [vmem:[%s194 + $0x1400] sm:$0xff]
                %517 = vst [vmem:[%s195 + $0x500] sm:$0xff] %v516
                %v518 = vld [vmem:[%s194 + $0x1408] sm:$0xff]
                %519 = vst [vmem:[%s195 + $0x508] sm:$0xff] %v518
                %v520 = vld [vmem:[%s194 + $0x1440] sm:$0xff]
                %521 = vst [vmem:[%s195 + $0x510] sm:$0xff] %v520
                %v522 = vld [vmem:[%s194 + $0x1448] sm:$0xff]
                %523 = vst [vmem:[%s195 + $0x518] sm:$0xff] %v522
                %v524 = vld [vmem:[%s194 + $0x1480] sm:$0xff]
                %525 = vst [vmem:[%s195 + $0x520] sm:$0xff] %v524
                %v526 = vld [vmem:[%s194 + $0x1488] sm:$0xff]
                %527 = vst [vmem:[%s195 + $0x528] sm:$0xff] %v526
                %v528 = vld [vmem:[%s194 + $0x14c0] sm:$0xff]
                %529 = vst [vmem:[%s195 + $0x530] sm:$0xff] %v528
                %v530 = vld [vmem:[%s194 + $0x14c8] sm:$0xff]
                %531 = vst [vmem:[%s195 + $0x538] sm:$0xff] %v530
                %v532 = vld [vmem:[%s194 + $0x1500] sm:$0xff]
                %533 = vst [vmem:[%s195 + $0x540] sm:$0xff] %v532
                %v534 = vld [vmem:[%s194 + $0x1508] sm:$0xff]
                %535 = vst [vmem:[%s195 + $0x548] sm:$0xff] %v534
                %v536 = vld [vmem:[%s194 + $0x1540] sm:$0xff]
                %537 = vst [vmem:[%s195 + $0x550] sm:$0xff] %v536
                %v538 = vld [vmem:[%s194 + $0x1548] sm:$0xff]
                %539 = vst [vmem:[%s195 + $0x558] sm:$0xff] %v538
                %v540 = vld [vmem:[%s194 + $0x1580] sm:$0xff]
                %541 = vst [vmem:[%s195 + $0x560] sm:$0xff] %v540
                %v542 = vld [vmem:[%s194 + $0x1588] sm:$0xff]
                %543 = vst [vmem:[%s195 + $0x568] sm:$0xff] %v542
                %v544 = vld [vmem:[%s194 + $0x15c0] sm:$0xff]
                %545 = vst [vmem:[%s195 + $0x570] sm:$0xff] %v544
                %v546 = vld [vmem:[%s194 + $0x15c8] sm:$0xff]
                %547 = vst [vmem:[%s195 + $0x578] sm:$0xff] %v546
                %v548 = vld [vmem:[%s194 + $0x1600] sm:$0xff]
                %549 = vst [vmem:[%s195 + $0x580] sm:$0xff] %v548
                %v550 = vld [vmem:[%s194 + $0x1608] sm:$0xff]
                %551 = vst [vmem:[%s195 + $0x588] sm:$0xff] %v550
                %v552 = vld [vmem:[%s194 + $0x1640] sm:$0xff]
                %553 = vst [vmem:[%s195 + $0x590] sm:$0xff] %v552
                %v554 = vld [vmem:[%s194 + $0x1648] sm:$0xff]
                %555 = vst [vmem:[%s195 + $0x598] sm:$0xff] %v554
                %v556 = vld [vmem:[%s194 + $0x1680] sm:$0xff]
                %557 = vst [vmem:[%s195 + $0x5a0] sm:$0xff] %v556
                %v558 = vld [vmem:[%s194 + $0x1688] sm:$0xff]
                %559 = vst [vmem:[%s195 + $0x5a8] sm:$0xff] %v558
                %v560 = vld [vmem:[%s194 + $0x16c0] sm:$0xff]
                %561 = vst [vmem:[%s195 + $0x5b0] sm:$0xff] %v560
                %v562 = vld [vmem:[%s194 + $0x16c8] sm:$0xff]
                %563 = vst [vmem:[%s195 + $0x5b8] sm:$0xff] %v562
                %v564 = vld [vmem:[%s194 + $0x1700] sm:$0xff]
                %565 = vst [vmem:[%s195 + $0x5c0] sm:$0xff] %v564
                %v566 = vld [vmem:[%s194 + $0x1708] sm:$0xff]
                %567 = vst [vmem:[%s195 + $0x5c8] sm:$0xff] %v566
                %v568 = vld [vmem:[%s194 + $0x1740] sm:$0xff]
                %569 = vst [vmem:[%s195 + $0x5d0] sm:$0xff] %v568
                %v570 = vld [vmem:[%s194 + $0x1748] sm:$0xff]
                %571 = vst [vmem:[%s195 + $0x5d8] sm:$0xff] %v570
                %v572 = vld [vmem:[%s194 + $0x1780] sm:$0xff]
                %573 = vst [vmem:[%s195 + $0x5e0] sm:$0xff] %v572
                %v574 = vld [vmem:[%s194 + $0x1788] sm:$0xff]
                %575 = vst [vmem:[%s195 + $0x5e8] sm:$0xff] %v574
                %v576 = vld [vmem:[%s194 + $0x17c0] sm:$0xff]
                %577 = vst [vmem:[%s195 + $0x5f0] sm:$0xff] %v576
                %v578 = vld [vmem:[%s194 + $0x17c8] sm:$0xff]
                %579 = vst [vmem:[%s195 + $0x5f8] sm:$0xff] %v578
                %v580 = vld [vmem:[%s194 + $0x1800] sm:$0xff]
                %581 = vst [vmem:[%s195 + $0x600] sm:$0xff] %v580
                %v582 = vld [vmem:[%s194 + $0x1808] sm:$0xff]
                %583 = vst [vmem:[%s195 + $0x608] sm:$0xff] %v582
                %v584 = vld [vmem:[%s194 + $0x1840] sm:$0xff]
                %585 = vst [vmem:[%s195 + $0x610] sm:$0xff] %v584
                %v586 = vld [vmem:[%s194 + $0x1848] sm:$0xff]
                %587 = vst [vmem:[%s195 + $0x618] sm:$0xff] %v586
                %v588 = vld [vmem:[%s194 + $0x1880] sm:$0xff]
                %589 = vst [vmem:[%s195 + $0x620] sm:$0xff] %v588
                %v590 = vld [vmem:[%s194 + $0x1888] sm:$0xff]
                %591 = vst [vmem:[%s195 + $0x628] sm:$0xff] %v590
                %v592 = vld [vmem:[%s194 + $0x18c0] sm:$0xff]
                %593 = vst [vmem:[%s195 + $0x630] sm:$0xff] %v592
                %v594 = vld [vmem:[%s194 + $0x18c8] sm:$0xff]
                %595 = vst [vmem:[%s195 + $0x638] sm:$0xff] %v594
                %v596 = vld [vmem:[%s194 + $0x1900] sm:$0xff]
                %597 = vst [vmem:[%s195 + $0x640] sm:$0xff] %v596
                %v598 = vld [vmem:[%s194 + $0x1908] sm:$0xff]
                %599 = vst [vmem:[%s195 + $0x648] sm:$0xff] %v598
                %v600 = vld [vmem:[%s194 + $0x1940] sm:$0xff]
                %601 = vst [vmem:[%s195 + $0x650] sm:$0xff] %v600
                %v602 = vld [vmem:[%s194 + $0x1948] sm:$0xff]
                %603 = vst [vmem:[%s195 + $0x658] sm:$0xff] %v602
                %v604 = vld [vmem:[%s194 + $0x1980] sm:$0xff]
                %605 = vst [vmem:[%s195 + $0x660] sm:$0xff] %v604
                %v606 = vld [vmem:[%s194 + $0x1988] sm:$0xff]
                %607 = vst [vmem:[%s195 + $0x668] sm:$0xff] %v606
                %v608 = vld [vmem:[%s194 + $0x19c0] sm:$0xff]
                %609 = vst [vmem:[%s195 + $0x670] sm:$0xff] %v608
                %v610 = vld [vmem:[%s194 + $0x19c8] sm:$0xff]
                %611 = vst [vmem:[%s195 + $0x678] sm:$0xff] %v610
                %v612 = vld [vmem:[%s194 + $0x1a00] sm:$0xff]
                %613 = vst [vmem:[%s195 + $0x680] sm:$0xff] %v612
                %v614 = vld [vmem:[%s194 + $0x1a08] sm:$0xff]
                %615 = vst [vmem:[%s195 + $0x688] sm:$0xff] %v614
                %v616 = vld [vmem:[%s194 + $0x1a40] sm:$0xff]
                %617 = vst [vmem:[%s195 + $0x690] sm:$0xff] %v616
                %v618 = vld [vmem:[%s194 + $0x1a48] sm:$0xff]
                %619 = vst [vmem:[%s195 + $0x698] sm:$0xff] %v618
                %v620 = vld [vmem:[%s194 + $0x1a80] sm:$0xff]
                %621 = vst [vmem:[%s195 + $0x6a0] sm:$0xff] %v620
                %v622 = vld [vmem:[%s194 + $0x1a88] sm:$0xff]
                %623 = vst [vmem:[%s195 + $0x6a8] sm:$0xff] %v622
                %v624 = vld [vmem:[%s194 + $0x1ac0] sm:$0xff]
                %625 = vst [vmem:[%s195 + $0x6b0] sm:$0xff] %v624
                %v626 = vld [vmem:[%s194 + $0x1ac8] sm:$0xff]
                %627 = vst [vmem:[%s195 + $0x6b8] sm:$0xff] %v626
                %v628 = vld [vmem:[%s194 + $0x1b00] sm:$0xff]
                %629 = vst [vmem:[%s195 + $0x6c0] sm:$0xff] %v628
                %v630 = vld [vmem:[%s194 + $0x1b08] sm:$0xff]
                %631 = vst [vmem:[%s195 + $0x6c8] sm:$0xff] %v630
                %v632 = vld [vmem:[%s194 + $0x1b40] sm:$0xff]
                %633 = vst [vmem:[%s195 + $0x6d0] sm:$0xff] %v632
                %v634 = vld [vmem:[%s194 + $0x1b48] sm:$0xff]
                %635 = vst [vmem:[%s195 + $0x6d8] sm:$0xff] %v634
                %v636 = vld [vmem:[%s194 + $0x1b80] sm:$0xff]
                %637 = vst [vmem:[%s195 + $0x6e0] sm:$0xff] %v636
                %v638 = vld [vmem:[%s194 + $0x1b88] sm:$0xff]
                %639 = vst [vmem:[%s195 + $0x6e8] sm:$0xff] %v638
                %v640 = vld [vmem:[%s194 + $0x1bc0] sm:$0xff]
                %641 = vst [vmem:[%s195 + $0x6f0] sm:$0xff] %v640
                %v642 = vld [vmem:[%s194 + $0x1bc8] sm:$0xff]
                %643 = vst [vmem:[%s195 + $0x6f8] sm:$0xff] %v642
                %v644 = vld [vmem:[%s194 + $0x1c00] sm:$0xff]
                %645 = vst [vmem:[%s195 + $0x700] sm:$0xff] %v644
                %v646 = vld [vmem:[%s194 + $0x1c08] sm:$0xff]
                %647 = vst [vmem:[%s195 + $0x708] sm:$0xff] %v646
                %v648 = vld [vmem:[%s194 + $0x1c40] sm:$0xff]
                %649 = vst [vmem:[%s195 + $0x710] sm:$0xff] %v648
                %v650 = vld [vmem:[%s194 + $0x1c48] sm:$0xff]
                %651 = vst [vmem:[%s195 + $0x718] sm:$0xff] %v650
                %v652 = vld [vmem:[%s194 + $0x1c80] sm:$0xff]
                %653 = vst [vmem:[%s195 + $0x720] sm:$0xff] %v652
                %v654 = vld [vmem:[%s194 + $0x1c88] sm:$0xff]
                %655 = vst [vmem:[%s195 + $0x728] sm:$0xff] %v654
                %v656 = vld [vmem:[%s194 + $0x1cc0] sm:$0xff]
                %657 = vst [vmem:[%s195 + $0x730] sm:$0xff] %v656
                %v658 = vld [vmem:[%s194 + $0x1cc8] sm:$0xff]
                %659 = vst [vmem:[%s195 + $0x738] sm:$0xff] %v658
                %v660 = vld [vmem:[%s194 + $0x1d00] sm:$0xff]
                %661 = vst [vmem:[%s195 + $0x740] sm:$0xff] %v660
                %v662 = vld [vmem:[%s194 + $0x1d08] sm:$0xff]
                %663 = vst [vmem:[%s195 + $0x748] sm:$0xff] %v662
                %v664 = vld [vmem:[%s194 + $0x1d40] sm:$0xff]
                %665 = vst [vmem:[%s195 + $0x750] sm:$0xff] %v664
                %v666 = vld [vmem:[%s194 + $0x1d48] sm:$0xff]
                %667 = vst [vmem:[%s195 + $0x758] sm:$0xff] %v666
                %v668 = vld [vmem:[%s194 + $0x1d80] sm:$0xff]
                %669 = vst [vmem:[%s195 + $0x760] sm:$0xff] %v668
                %v670 = vld [vmem:[%s194 + $0x1d88] sm:$0xff]
                %671 = vst [vmem:[%s195 + $0x768] sm:$0xff] %v670
                %v672 = vld [vmem:[%s194 + $0x1dc0] sm:$0xff]
                %673 = vst [vmem:[%s195 + $0x770] sm:$0xff] %v672
                %v674 = vld [vmem:[%s194 + $0x1dc8] sm:$0xff]
                %675 = vst [vmem:[%s195 + $0x778] sm:$0xff] %v674
                %v676 = vld [vmem:[%s194 + $0x1e00] sm:$0xff]
                %677 = vst [vmem:[%s195 + $0x780] sm:$0xff] %v676
                %v678 = vld [vmem:[%s194 + $0x1e08] sm:$0xff]
                %679 = vst [vmem:[%s195 + $0x788] sm:$0xff] %v678
                %v680 = vld [vmem:[%s194 + $0x1e40] sm:$0xff]
                %681 = vst [vmem:[%s195 + $0x790] sm:$0xff] %v680
                %v682 = vld [vmem:[%s194 + $0x1e48] sm:$0xff]
                %683 = vst [vmem:[%s195 + $0x798] sm:$0xff] %v682
                %v684 = vld [vmem:[%s194 + $0x1e80] sm:$0xff]
                %685 = vst [vmem:[%s195 + $0x7a0] sm:$0xff] %v684
                %v686 = vld [vmem:[%s194 + $0x1e88] sm:$0xff]
                %687 = vst [vmem:[%s195 + $0x7a8] sm:$0xff] %v686
                %v688 = vld [vmem:[%s194 + $0x1ec0] sm:$0xff]
                %689 = vst [vmem:[%s195 + $0x7b0] sm:$0xff] %v688
                %v690 = vld [vmem:[%s194 + $0x1ec8] sm:$0xff]
                %691 = vst [vmem:[%s195 + $0x7b8] sm:$0xff] %v690
                %v692 = vld [vmem:[%s194 + $0x1f00] sm:$0xff]
                %693 = vst [vmem:[%s195 + $0x7c0] sm:$0xff] %v692
                %v694 = vld [vmem:[%s194 + $0x1f08] sm:$0xff]
                %695 = vst [vmem:[%s195 + $0x7c8] sm:$0xff] %v694
                %v696 = vld [vmem:[%s194 + $0x1f40] sm:$0xff]
                %697 = vst [vmem:[%s195 + $0x7d0] sm:$0xff] %v696
                %v698 = vld [vmem:[%s194 + $0x1f48] sm:$0xff]
                %699 = vst [vmem:[%s195 + $0x7d8] sm:$0xff] %v698
                %v700 = vld [vmem:[%s194 + $0x1f80] sm:$0xff]
                %701 = vst [vmem:[%s195 + $0x7e0] sm:$0xff] %v700
                %v702 = vld [vmem:[%s194 + $0x1f88] sm:$0xff]
                %703 = vst [vmem:[%s195 + $0x7e8] sm:$0xff] %v702
                %v704 = vld [vmem:[%s194 + $0x1fc0] sm:$0xff]
                %705 = vst [vmem:[%s195 + $0x7f0] sm:$0xff] %v704
                %v706 = vld [vmem:[%s194 + $0x1fc8] sm:$0xff]
                %707 = vst [vmem:[%s195 + $0x7f8] sm:$0xff] %v706
              $region37: #{net_forward.13} parent=31 // loop_footer
                %s193 = sadd.s32 1, %s189
              $region38: #{net_forward.13} parent=31 // loop_footer_branch
                %188 = sbr.rel target = $region34
              $region39: #{net_forward.13} parent=31 // loop_exit
                _
            $region32: #{net_forward.13} parent=27 // pred_fallthru
              _
            // Predicated region
            $region40: #{net_forward.13} parent=27 // pred_check
              _
            $region41: #{net_forward.13} parent=27 // pred_check_branch
              %709 = sbr.rel target = $region43
            $region42: #{net_forward.13} parent=27 // pred_region
              _
            $region43: #{net_forward.13} parent=27 // pred_fallthru
              _
          $region28: #{net_forward.13} parent=23 // pred_fallthru
            _
          %710 = vnop
        $region24: #{net_forward.13} parent=15 // pred_fallthru
          _
        // Predicated region
        $region44: #{net_forward.13} parent=15 // pred_check
          %p711 = pneg %p106
        $region45: #{net_forward.13} parent=15 // pred_check_branch
          %713 = sbr.rel (%p711) target = $region47
        $region46: #{net_forward.13} parent=15 // pred_region
          %s714 = smul.u32 4, %s18
          %p715 = scmp.lt.s32.totalorder %s16, 1
          %s716 = scalar_select %p715, %s16, 1
          %p717 = scmp.lt.s32.totalorder %s714, 15
          %s718 = scalar_select %p717, %s714, 15
          %s719 = smul.addr %s716, 16
          %s720 = sadd.s32 %s718, %s719
          %s721 = scalar_lea.vmem %s2, %s720
          %s722 = smul.u32 4, %s18
        $region47: #{net_forward.13} parent=15 // pred_fallthru
          _
      $region16: #{net_forward.13} parent=5 // pred_fallthru
        _
      %p723 = scmp.le.s32.totalorder 1, %s9
      %p724 = scmp.lt.s32.totalorder %s9, 9
      %p725 = pnand %p723, %p724
      %p726 = pneg %p725
      // Predicated region
      $region48: #{net_forward.13} parent=5 // pred_check
        _
      $region49: #{net_forward.13} parent=5 // pred_check_branch
        %728 = sbr.rel (%p725) target = $region51
      $region50: #{net_forward.13} parent=5 // pred_region
        %s729 = ssub.s32 %s9, 1
        %s730 = sand.u32 %s71, 1
        %s731 = sand.u32 %s71, 1
        %s732 = smul.addr %s731, 2048
        %s733 = scalar_lea.vmem [#allocation2], %s732
        // Predicated region
        $region52: #{net_forward.13} parent=50 // pred_check
          %p734 = pneg %p84
        $region53: #{net_forward.13} parent=50 // pred_check_branch
          %736 = sbr.rel (%p734) target = $region55
        $region54: #{net_forward.13} parent=50 // pred_region
          _
        $region55: #{net_forward.13} parent=50 // pred_fallthru
          _
        %p737 = scmp.lt.s32.totalorder %s19, 1
        %s738 = scalar_select %p737, %s19, 1
        %p739 = scmp.lt.s32.totalorder %s20, 0
        %s740 = scalar_select %p739, %s20, 0
        %s741 = smul.addr %s740, 8
        %s742 = smul.addr %s738, 8
        %s743 = sadd.s32 %s741, %s742
        %s744 = scalar_lea.vmem %s0, %s743
        %p745 = pneg %p56
        %p746 = pneg %p53
        %s747 = sand.u32 %s71, 1
        %s748 = sand.u32 %s71, 1
        %s749 = smul.addr %s748, 2048
        %s750 = scalar_lea.vmem [#allocation2], %s749
        %p751 = pneg %p84
        %p752 = pneg %p81
        %s753 = smul.u32 4, %s21
        %p754 = scmp.lt.s32.totalorder %s19, 1
        %s755 = scalar_select %p754, %s19, 1
        %p756 = scmp.lt.s32.totalorder %s753, 15
        %s757 = scalar_select %p756, %s753, 15
        %s758 = smul.addr %s755, 16
        %s759 = sadd.s32 %s757, %s758
        %s760 = scalar_lea.vmem %s2, %s759
        %p761 = pneg %p112
        %p762 = pneg %p109
        %p763 = pneg %p142
        %p764 = pneg %p139
        %s765 = smul.u32 4, %s21
        %p766 = scmp.lt.s32.totalorder %s19, 1
        %s767 = scalar_select %p766, %s19, 1
        %p768 = scmp.lt.s32.totalorder %s20, 0
        %s769 = scalar_select %p768, %s20, 0
        %p770 = scmp.lt.s32.totalorder %s765, 15
        %s771 = scalar_select %p770, %s765, 15
        %s772 = smul.addr %s769, 16
        %s773 = sadd.s32 %s771, %s772
        %s774 = smul.addr %s767, 16
        %s775 = sadd.s32 %s773, %s774
        %s776 = scalar_lea.vmem %s3, %s775
        %p777 = scmp.lt.s32.totalorder %s19, 1
        %s778 = scalar_select %p777, %s19, 1
        %p779 = scmp.lt.s32.totalorder %s20, 0
        %s780 = scalar_select %p779, %s20, 0
        %s781 = smul.addr %s780, 8
        %s782 = smul.addr %s778, 8
        %s783 = sadd.s32 %s781, %s782
        %s784 = scalar_lea.vmem %s0, %s783
        %s785 = smul.u32 4, %s21
        %s786 = smul.u32 4, %s21
        %p787 = scmp.lt.s32.totalorder %s19, 1
        %s788 = scalar_select %p787, %s19, 1
        %p789 = scmp.lt.s32.totalorder %s786, 15
        %s790 = scalar_select %p789, %s786, 15
        %s791 = smul.addr %s788, 16
        %s792 = sadd.s32 %s790, %s791
        %s793 = scalar_lea.vmem %s2, %s792
        %s794 = smul.u32 4, %s21
        %s795 = smul.u32 4, %s21
        %p796 = scmp.lt.s32.totalorder %s19, 1
        %s797 = scalar_select %p796, %s19, 1
        %p798 = scmp.lt.s32.totalorder %s20, 0
        %s799 = scalar_select %p798, %s20, 0
        %p800 = scmp.lt.s32.totalorder %s795, 15
        %s801 = scalar_select %p800, %s795, 15
        %s802 = smul.addr %s799, 16
        %s803 = sadd.s32 %s801, %s802
        %s804 = smul.addr %s797, 16
        %s805 = sadd.s32 %s803, %s804
        %s806 = scalar_lea.vmem %s3, %s805
        %s807 = smul.u32 4, %s21
        %v808 = vld [vmem:[%s784] sm:$0xff]
        %v809 = vld [vmem:[%s733] sm:$0xff]
        %v810 = vld [vmem:[%s733 + $0x8] sm:$0xff]
        %v811 = vld [vmem:[%s733 + $0x10] sm:$0xff]
        %v812 = vld [vmem:[%s733 + $0x18] sm:$0xff]
        %v813 = vld [vmem:[%s733 + $0x20] sm:$0xff]
        %v814 = vld [vmem:[%s733 + $0x28] sm:$0xff]
        %v815 = vld [vmem:[%s733 + $0x30] sm:$0xff]
        %v816 = vld [vmem:[%s733 + $0x38] sm:$0xff]
        %v817 = vld [vmem:[%s733 + $0x40] sm:$0xff]
        %v818 = vld [vmem:[%s733 + $0x48] sm:$0xff]
        %v819 = vld [vmem:[%s733 + $0x50] sm:$0xff]
        %v820 = vld [vmem:[%s733 + $0x58] sm:$0xff]
        %v821 = vld [vmem:[%s733 + $0x60] sm:$0xff]
        %v822 = vld [vmem:[%s733 + $0x68] sm:$0xff]
        %v823 = vld [vmem:[%s733 + $0x70] sm:$0xff]
        %v824 = vld [vmem:[%s733 + $0x78] sm:$0xff]
        %v825 = vld [vmem:[%s733 + $0x80] sm:$0xff]
        %v826 = vld [vmem:[%s733 + $0x88] sm:$0xff]
        %v827 = vld [vmem:[%s733 + $0x90] sm:$0xff]
        %v828 = vld [vmem:[%s733 + $0x98] sm:$0xff]
        %v829 = vld [vmem:[%s733 + $0xa0] sm:$0xff]
        %v830 = vld [vmem:[%s733 + $0xa8] sm:$0xff]
        %v831 = vld [vmem:[%s733 + $0xb0] sm:$0xff]
        %v832 = vld [vmem:[%s733 + $0xb8] sm:$0xff]
        %v833 = vld [vmem:[%s733 + $0xc0] sm:$0xff]
        %v834 = vld [vmem:[%s733 + $0xc8] sm:$0xff]
        %v835 = vld [vmem:[%s733 + $0xd0] sm:$0xff]
        %v836 = vld [vmem:[%s733 + $0xd8] sm:$0xff]
        %v837 = vld [vmem:[%s733 + $0xe0] sm:$0xff]
        %v838 = vld [vmem:[%s733 + $0xe8] sm:$0xff]
        %v839 = vld [vmem:[%s733 + $0xf0] sm:$0xff]
        %v840 = vld [vmem:[%s733 + $0xf8] sm:$0xff]
        %v841 = vld [vmem:[%s733 + $0x100] sm:$0xff]
        %v842 = vld [vmem:[%s733 + $0x108] sm:$0xff]
        %v843 = vld [vmem:[%s733 + $0x110] sm:$0xff]
        %v844 = vld [vmem:[%s733 + $0x118] sm:$0xff]
        %v845 = vld [vmem:[%s733 + $0x120] sm:$0xff]
        %v846 = vld [vmem:[%s733 + $0x128] sm:$0xff]
        %v847 = vld [vmem:[%s733 + $0x130] sm:$0xff]
        %v848 = vld [vmem:[%s733 + $0x138] sm:$0xff]
        %v849 = vld [vmem:[%s733 + $0x140] sm:$0xff]
        %v850 = vld [vmem:[%s733 + $0x148] sm:$0xff]
        %v851 = vld [vmem:[%s733 + $0x150] sm:$0xff]
        %v852 = vld [vmem:[%s733 + $0x158] sm:$0xff]
        %v853 = vld [vmem:[%s733 + $0x160] sm:$0xff]
        %v854 = vld [vmem:[%s733 + $0x168] sm:$0xff]
        %v855 = vld [vmem:[%s733 + $0x170] sm:$0xff]
        %v856 = vld [vmem:[%s733 + $0x178] sm:$0xff]
        %v857 = vld [vmem:[%s733 + $0x180] sm:$0xff]
        %v858 = vld [vmem:[%s733 + $0x188] sm:$0xff]
        %v859 = vld [vmem:[%s733 + $0x190] sm:$0xff]
        %v860 = vld [vmem:[%s733 + $0x198] sm:$0xff]
        %v861 = vld [vmem:[%s733 + $0x1a0] sm:$0xff]
        %v862 = vld [vmem:[%s733 + $0x1a8] sm:$0xff]
        %v863 = vld [vmem:[%s733 + $0x1b0] sm:$0xff]
        %v864 = vld [vmem:[%s733 + $0x1b8] sm:$0xff]
        %v865 = vld [vmem:[%s733 + $0x1c0] sm:$0xff]
        %v866 = vld [vmem:[%s733 + $0x1c8] sm:$0xff]
        %v867 = vld [vmem:[%s733 + $0x1d0] sm:$0xff]
        %v868 = vld [vmem:[%s733 + $0x1d8] sm:$0xff]
        %v869 = vld [vmem:[%s733 + $0x1e0] sm:$0xff]
        %v870 = vld [vmem:[%s733 + $0x1e8] sm:$0xff]
        %v871 = vld [vmem:[%s733 + $0x1f0] sm:$0xff]
        %v872 = vld [vmem:[%s733 + $0x1f8] sm:$0xff]
        %v873 = vld [vmem:[%s733 + $0x200] sm:$0xff]
        %v874 = vld [vmem:[%s733 + $0x208] sm:$0xff]
        %v875 = vld [vmem:[%s733 + $0x210] sm:$0xff]
        %v876 = vld [vmem:[%s733 + $0x218] sm:$0xff]
        %v877 = vld [vmem:[%s733 + $0x220] sm:$0xff]
        %v878 = vld [vmem:[%s733 + $0x228] sm:$0xff]
        %v879 = vld [vmem:[%s733 + $0x230] sm:$0xff]
        %v880 = vld [vmem:[%s733 + $0x238] sm:$0xff]
        %v881 = vld [vmem:[%s733 + $0x240] sm:$0xff]
        %v882 = vld [vmem:[%s733 + $0x248] sm:$0xff]
        %v883 = vld [vmem:[%s733 + $0x250] sm:$0xff]
        %v884 = vld [vmem:[%s733 + $0x258] sm:$0xff]
        %v885 = vld [vmem:[%s733 + $0x260] sm:$0xff]
        %v886 = vld [vmem:[%s733 + $0x268] sm:$0xff]
        %v887 = vld [vmem:[%s733 + $0x270] sm:$0xff]
        %v888 = vld [vmem:[%s733 + $0x278] sm:$0xff]
        %v889 = vld [vmem:[%s733 + $0x280] sm:$0xff]
        %v890 = vld [vmem:[%s733 + $0x288] sm:$0xff]
        %v891 = vld [vmem:[%s733 + $0x290] sm:$0xff]
        %v892 = vld [vmem:[%s733 + $0x298] sm:$0xff]
        %v893 = vld [vmem:[%s733 + $0x2a0] sm:$0xff]
        %v894 = vld [vmem:[%s733 + $0x2a8] sm:$0xff]
        %v895 = vld [vmem:[%s733 + $0x2b0] sm:$0xff]
        %v896 = vld [vmem:[%s733 + $0x2b8] sm:$0xff]
        %v897 = vld [vmem:[%s733 + $0x2c0] sm:$0xff]
        %v898 = vld [vmem:[%s733 + $0x2c8] sm:$0xff]
        %v899 = vld [vmem:[%s733 + $0x2d0] sm:$0xff]
        %v900 = vld [vmem:[%s733 + $0x2d8] sm:$0xff]
        %v901 = vld [vmem:[%s733 + $0x2e0] sm:$0xff]
        %v902 = vld [vmem:[%s733 + $0x2e8] sm:$0xff]
        %v903 = vld [vmem:[%s733 + $0x2f0] sm:$0xff]
        %v904 = vld [vmem:[%s733 + $0x2f8] sm:$0xff]
        %v905 = vld [vmem:[%s733 + $0x300] sm:$0xff]
        %v906 = vld [vmem:[%s733 + $0x308] sm:$0xff]
        %v907 = vld [vmem:[%s733 + $0x310] sm:$0xff]
        %v908 = vld [vmem:[%s733 + $0x318] sm:$0xff]
        %v909 = vld [vmem:[%s733 + $0x320] sm:$0xff]
        %v910 = vld [vmem:[%s733 + $0x328] sm:$0xff]
        %v911 = vld [vmem:[%s733 + $0x330] sm:$0xff]
        %v912 = vld [vmem:[%s733 + $0x338] sm:$0xff]
        %v913 = vld [vmem:[%s733 + $0x340] sm:$0xff]
        %v914 = vld [vmem:[%s733 + $0x348] sm:$0xff]
        %v915 = vld [vmem:[%s733 + $0x350] sm:$0xff]
        %v916 = vld [vmem:[%s733 + $0x358] sm:$0xff]
        %v917 = vld [vmem:[%s733 + $0x360] sm:$0xff]
        %v918 = vld [vmem:[%s733 + $0x368] sm:$0xff]
        %v919 = vld [vmem:[%s733 + $0x370] sm:$0xff]
        %v920 = vld [vmem:[%s733 + $0x378] sm:$0xff]
        %v921 = vld [vmem:[%s733 + $0x380] sm:$0xff]
        %v922 = vld [vmem:[%s733 + $0x388] sm:$0xff]
        %v923 = vld [vmem:[%s733 + $0x390] sm:$0xff]
        %v924 = vld [vmem:[%s733 + $0x398] sm:$0xff]
        %v925 = vld [vmem:[%s733 + $0x3a0] sm:$0xff]
        %v926 = vld [vmem:[%s733 + $0x3a8] sm:$0xff]
        %v927 = vld [vmem:[%s733 + $0x3b0] sm:$0xff]
        %v928 = vld [vmem:[%s733 + $0x3b8] sm:$0xff]
        %v929 = vld [vmem:[%s733 + $0x3c0] sm:$0xff]
        %v930 = vld [vmem:[%s733 + $0x3c8] sm:$0xff]
        %v931 = vld [vmem:[%s733 + $0x3d0] sm:$0xff]
        %v932 = vld [vmem:[%s733 + $0x3d8] sm:$0xff]
        %v933 = vld [vmem:[%s733 + $0x3e0] sm:$0xff]
        %v934 = vld [vmem:[%s733 + $0x3e8] sm:$0xff]
        %v935 = vld [vmem:[%s733 + $0x3f0] sm:$0xff]
        %v936 = vld [vmem:[%s733 + $0x3f8] sm:$0xff]
        %v937 = vld [vmem:[%s733 + $0x400] sm:$0xff]
        %v938 = vld [vmem:[%s733 + $0x408] sm:$0xff]
        %v939 = vld [vmem:[%s733 + $0x410] sm:$0xff]
        %v940 = vld [vmem:[%s733 + $0x418] sm:$0xff]
        %v941 = vld [vmem:[%s733 + $0x420] sm:$0xff]
        %v942 = vld [vmem:[%s733 + $0x428] sm:$0xff]
        %v943 = vld [vmem:[%s733 + $0x430] sm:$0xff]
        %v944 = vld [vmem:[%s733 + $0x438] sm:$0xff]
        %v945 = vld [vmem:[%s733 + $0x440] sm:$0xff]
        %v946 = vld [vmem:[%s733 + $0x448] sm:$0xff]
        %v947 = vld [vmem:[%s733 + $0x450] sm:$0xff]
        %v948 = vld [vmem:[%s733 + $0x458] sm:$0xff]
        %v949 = vld [vmem:[%s733 + $0x460] sm:$0xff]
        %v950 = vld [vmem:[%s733 + $0x468] sm:$0xff]
        %v951 = vld [vmem:[%s733 + $0x470] sm:$0xff]
        %v952 = vld [vmem:[%s733 + $0x478] sm:$0xff]
        %v953 = vld [vmem:[%s733 + $0x480] sm:$0xff]
        %v954 = vld [vmem:[%s733 + $0x488] sm:$0xff]
        %v955 = vld [vmem:[%s733 + $0x490] sm:$0xff]
        %v956 = vld [vmem:[%s733 + $0x498] sm:$0xff]
        %v957 = vld [vmem:[%s733 + $0x4a0] sm:$0xff]
        %v958 = vld [vmem:[%s733 + $0x4a8] sm:$0xff]
        %v959 = vld [vmem:[%s733 + $0x4b0] sm:$0xff]
        %v960 = vld [vmem:[%s733 + $0x4b8] sm:$0xff]
        %v961 = vld [vmem:[%s733 + $0x4c0] sm:$0xff]
        %v962 = vld [vmem:[%s733 + $0x4c8] sm:$0xff]
        %v963 = vld [vmem:[%s733 + $0x4d0] sm:$0xff]
        %v964 = vld [vmem:[%s733 + $0x4d8] sm:$0xff]
        %v965 = vld [vmem:[%s733 + $0x4e0] sm:$0xff]
        %v966 = vld [vmem:[%s733 + $0x4e8] sm:$0xff]
        %v967 = vld [vmem:[%s733 + $0x4f0] sm:$0xff]
        %v968 = vld [vmem:[%s733 + $0x4f8] sm:$0xff]
        %v969 = vld [vmem:[%s733 + $0x500] sm:$0xff]
        %v970 = vld [vmem:[%s733 + $0x508] sm:$0xff]
        %v971 = vld [vmem:[%s733 + $0x510] sm:$0xff]
        %v972 = vld [vmem:[%s733 + $0x518] sm:$0xff]
        %v973 = vld [vmem:[%s733 + $0x520] sm:$0xff]
        %v974 = vld [vmem:[%s733 + $0x528] sm:$0xff]
        %v975 = vld [vmem:[%s733 + $0x530] sm:$0xff]
        %v976 = vld [vmem:[%s733 + $0x538] sm:$0xff]
        %v977 = vld [vmem:[%s733 + $0x540] sm:$0xff]
        %v978 = vld [vmem:[%s733 + $0x548] sm:$0xff]
        %v979 = vld [vmem:[%s733 + $0x550] sm:$0xff]
        %v980 = vld [vmem:[%s733 + $0x558] sm:$0xff]
        %v981 = vld [vmem:[%s733 + $0x560] sm:$0xff]
        %v982 = vld [vmem:[%s733 + $0x568] sm:$0xff]
        %v983 = vld [vmem:[%s733 + $0x570] sm:$0xff]
        %v984 = vld [vmem:[%s733 + $0x578] sm:$0xff]
        %v985 = vld [vmem:[%s733 + $0x580] sm:$0xff]
        %v986 = vld [vmem:[%s733 + $0x588] sm:$0xff]
        %v987 = vld [vmem:[%s733 + $0x590] sm:$0xff]
        %v988 = vld [vmem:[%s733 + $0x598] sm:$0xff]
        %v989 = vld [vmem:[%s733 + $0x5a0] sm:$0xff]
        %v990 = vld [vmem:[%s733 + $0x5a8] sm:$0xff]
        %v991 = vld [vmem:[%s733 + $0x5b0] sm:$0xff]
        %v992 = vld [vmem:[%s733 + $0x5b8] sm:$0xff]
        %v993 = vld [vmem:[%s733 + $0x5c0] sm:$0xff]
        %v994 = vld [vmem:[%s733 + $0x5c8] sm:$0xff]
        %v995 = vld [vmem:[%s733 + $0x5d0] sm:$0xff]
        %v996 = vld [vmem:[%s733 + $0x5d8] sm:$0xff]
        %v997 = vld [vmem:[%s733 + $0x5e0] sm:$0xff]
        %v998 = vld [vmem:[%s733 + $0x5e8] sm:$0xff]
        %v999 = vld [vmem:[%s733 + $0x5f0] sm:$0xff]
        %v1000 = vld [vmem:[%s733 + $0x5f8] sm:$0xff]
        %v1001 = vld [vmem:[%s733 + $0x600] sm:$0xff]
        %v1002 = vld [vmem:[%s733 + $0x608] sm:$0xff]
        %v1003 = vld [vmem:[%s733 + $0x610] sm:$0xff]
        %v1004 = vld [vmem:[%s733 + $0x618] sm:$0xff]
        %v1005 = vld [vmem:[%s733 + $0x620] sm:$0xff]
        %v1006 = vld [vmem:[%s733 + $0x628] sm:$0xff]
        %v1007 = vld [vmem:[%s733 + $0x630] sm:$0xff]
        %v1008 = vld [vmem:[%s733 + $0x638] sm:$0xff]
        %v1009 = vld [vmem:[%s733 + $0x640] sm:$0xff]
        %v1010 = vld [vmem:[%s733 + $0x648] sm:$0xff]
        %v1011 = vld [vmem:[%s733 + $0x650] sm:$0xff]
        %v1012 = vld [vmem:[%s733 + $0x658] sm:$0xff]
        %v1013 = vld [vmem:[%s733 + $0x660] sm:$0xff]
        %v1014 = vld [vmem:[%s733 + $0x668] sm:$0xff]
        %v1015 = vld [vmem:[%s733 + $0x670] sm:$0xff]
        %v1016 = vld [vmem:[%s733 + $0x678] sm:$0xff]
        %v1017 = vld [vmem:[%s733 + $0x680] sm:$0xff]
        %v1018 = vld [vmem:[%s733 + $0x688] sm:$0xff]
        %v1019 = vld [vmem:[%s733 + $0x690] sm:$0xff]
        %v1020 = vld [vmem:[%s733 + $0x698] sm:$0xff]
        %v1021 = vld [vmem:[%s733 + $0x6a0] sm:$0xff]
        %v1022 = vld [vmem:[%s733 + $0x6a8] sm:$0xff]
        %v1023 = vld [vmem:[%s733 + $0x6b0] sm:$0xff]
        %v1024 = vld [vmem:[%s733 + $0x6b8] sm:$0xff]
        %v1025 = vld [vmem:[%s733 + $0x6c0] sm:$0xff]
        %v1026 = vld [vmem:[%s733 + $0x6c8] sm:$0xff]
        %v1027 = vld [vmem:[%s733 + $0x6d0] sm:$0xff]
        %v1028 = vld [vmem:[%s733 + $0x6d8] sm:$0xff]
        %v1029 = vld [vmem:[%s733 + $0x6e0] sm:$0xff]
        %v1030 = vld [vmem:[%s733 + $0x6e8] sm:$0xff]
        %v1031 = vld [vmem:[%s733 + $0x6f0] sm:$0xff]
        %v1032 = vld [vmem:[%s733 + $0x6f8] sm:$0xff]
        %v1033 = vld [vmem:[%s733 + $0x700] sm:$0xff]
        %v1034 = vld [vmem:[%s733 + $0x708] sm:$0xff]
        %v1035 = vld [vmem:[%s733 + $0x710] sm:$0xff]
        %v1036 = vld [vmem:[%s733 + $0x718] sm:$0xff]
        %v1037 = vld [vmem:[%s733 + $0x720] sm:$0xff]
        %v1038 = vld [vmem:[%s733 + $0x728] sm:$0xff]
        %v1039 = vld [vmem:[%s733 + $0x730] sm:$0xff]
        %v1040 = vld [vmem:[%s733 + $0x738] sm:$0xff]
        %v1041 = vld [vmem:[%s733 + $0x740] sm:$0xff]
        %v1042 = vld [vmem:[%s733 + $0x748] sm:$0xff]
        %v1043 = vld [vmem:[%s733 + $0x750] sm:$0xff]
        %v1044 = vld [vmem:[%s733 + $0x758] sm:$0xff]
        %v1045 = vld [vmem:[%s733 + $0x760] sm:$0xff]
        %v1046 = vld [vmem:[%s733 + $0x768] sm:$0xff]
        %v1047 = vld [vmem:[%s733 + $0x770] sm:$0xff]
        %v1048 = vld [vmem:[%s733 + $0x778] sm:$0xff]
        %v1049 = vld [vmem:[%s733 + $0x780] sm:$0xff]
        %v1050 = vld [vmem:[%s733 + $0x788] sm:$0xff]
        %v1051 = vld [vmem:[%s733 + $0x790] sm:$0xff]
        %v1052 = vld [vmem:[%s733 + $0x798] sm:$0xff]
        %v1053 = vld [vmem:[%s733 + $0x7a0] sm:$0xff]
        %v1054 = vld [vmem:[%s733 + $0x7a8] sm:$0xff]
        %v1055 = vld [vmem:[%s733 + $0x7b0] sm:$0xff]
        %v1056 = vld [vmem:[%s733 + $0x7b8] sm:$0xff]
        %v1057 = vld [vmem:[%s733 + $0x7c0] sm:$0xff]
        %v1058 = vld [vmem:[%s733 + $0x7c8] sm:$0xff]
        %v1059 = vld [vmem:[%s733 + $0x7d0] sm:$0xff]
        %v1060 = vld [vmem:[%s733 + $0x7d8] sm:$0xff]
        %v1061 = vld [vmem:[%s733 + $0x7e0] sm:$0xff]
        %v1062 = vld [vmem:[%s733 + $0x7e8] sm:$0xff]
        %v1063 = vld [vmem:[%s733 + $0x7f0] sm:$0xff]
        %v1064 = vld [vmem:[%s733 + $0x7f8] sm:$0xff]
        %v1065 = vld [vmem:[%s793] sm:$0xf]
        %v1067 = vlaneseq
        %v1068 = vshrl.u32 %v1067, 7
        %v1069 = vsub.s32 0, %v1068
        %v1070 = vrot.slane %v1065, %v1069
        %v1071 = vlaneseq
        %v1072 = vshrl.u32 %v1071, 7
        %v1073 = vsub.s32 1, %v1072
        %v1074 = vrot.slane %v1065, %v1073
        %v1075 = vlaneseq
        %v1076 = vshrl.u32 %v1075, 7
        %v1077 = vsub.s32 2, %v1076
        %v1078 = vrot.slane %v1065, %v1077
        %v1079 = vlaneseq
        %v1080 = vshrl.u32 %v1079, 7
        %v1081 = vsub.s32 3, %v1080
        %v1082 = vrot.slane %v1065, %v1081
        %v1088 = vcombine.high %v808, %v808
        %v1090 = vunpack.c.l.s4 1966171168
        %v1091 = vunpack.c.0.s8 %v1090
        %v1092 = vlaneseq
        %v1093 = vshrl.u32 %v1092, 7
        %v1094 = vsub.s32 %v1091, %v1093
        %v1095 = vrot.slane %v808, %v1094
        %v1097 = vunpack.c.l.s4 1966171168
        %v1098 = vunpack.c.0.s8 %v1097
        %v1099 = vlaneseq
        %v1100 = vshrl.u32 %v1099, 7
        %v1101 = vsub.s32 %v1098, %v1100
        %v1102 = vrot.slane %v1088, %v1101
        %v1103 = vcombine.high %v1095, %v1095
        %v1104 = vcombine.high %v1102, %v1102
        %v1106 = vunpack.c.l.s4 1966171168
        %v1107 = vunpack.c.0.s8 %v1106
        %v1108 = vlaneseq
        %v1109 = vshrl.u32 %v1108, 7
        %v1110 = vsub.s32 %v1107, %v1109
        %v1111 = vrot.slane %v1095, %v1110
        %v1113 = vunpack.c.l.s4 1966171168
        %v1114 = vunpack.c.0.s8 %v1113
        %v1115 = vlaneseq
        %v1116 = vshrl.u32 %v1115, 7
        %v1117 = vsub.s32 %v1114, %v1116
        %v1118 = vrot.slane %v1102, %v1117
        %v1120 = vunpack.c.l.s4 1966171168
        %v1121 = vunpack.c.0.s8 %v1120
        %v1122 = vlaneseq
        %v1123 = vshrl.u32 %v1122, 7
        %v1124 = vsub.s32 %v1121, %v1123
        %v1125 = vrot.slane %v1103, %v1124
        %v1127 = vunpack.c.l.s4 1966171168
        %v1128 = vunpack.c.0.s8 %v1127
        %v1129 = vlaneseq
        %v1130 = vshrl.u32 %v1129, 7
        %v1131 = vsub.s32 %v1128, %v1130
        %v1132 = vrot.slane %v1104, %v1131
        %v1133 = vcombine.high %v1111, %v1111
        %v1134 = vcombine.high %v1118, %v1118
        %v1135 = vcombine.high %v1125, %v1125
        %v1136 = vcombine.high %v1132, %v1132
        %v1401 = vunpack.c.l.b16 %v809
        %v1402 = vunpack.c.h.b16 %v809
        %v1403 = vunpack.c.l.b16 %v810
        %v1404 = vunpack.c.h.b16 %v810
        %v1405 = vunpack.c.l.b16 %v811
        %v1406 = vunpack.c.h.b16 %v811
        %v1407 = vunpack.c.l.b16 %v812
        %v1408 = vunpack.c.h.b16 %v812
        %v1409 = vunpack.c.l.b16 %v813
        %v1410 = vunpack.c.h.b16 %v813
        %v1411 = vunpack.c.l.b16 %v814
        %v1412 = vunpack.c.h.b16 %v814
        %v1413 = vunpack.c.l.b16 %v815
        %v1414 = vunpack.c.h.b16 %v815
        %v1415 = vunpack.c.l.b16 %v816
        %v1416 = vunpack.c.h.b16 %v816
        %v1417 = vunpack.c.l.b16 %v817
        %v1418 = vunpack.c.h.b16 %v817
        %v1419 = vunpack.c.l.b16 %v818
        %v1420 = vunpack.c.h.b16 %v818
        %v1421 = vunpack.c.l.b16 %v819
        %v1422 = vunpack.c.h.b16 %v819
        %v1423 = vunpack.c.l.b16 %v820
        %v1424 = vunpack.c.h.b16 %v820
        %v1425 = vunpack.c.l.b16 %v821
        %v1426 = vunpack.c.h.b16 %v821
        %v1427 = vunpack.c.l.b16 %v822
        %v1428 = vunpack.c.h.b16 %v822
        %v1429 = vunpack.c.l.b16 %v823
        %v1430 = vunpack.c.h.b16 %v823
        %v1431 = vunpack.c.l.b16 %v824
        %v1432 = vunpack.c.h.b16 %v824
        %v1433 = vunpack.c.l.b16 %v825
        %v1434 = vunpack.c.h.b16 %v825
        %v1435 = vunpack.c.l.b16 %v826
        %v1436 = vunpack.c.h.b16 %v826
        %v1437 = vunpack.c.l.b16 %v827
        %v1438 = vunpack.c.h.b16 %v827
        %v1439 = vunpack.c.l.b16 %v828
        %v1440 = vunpack.c.h.b16 %v828
        %v1441 = vunpack.c.l.b16 %v829
        %v1442 = vunpack.c.h.b16 %v829
        %v1443 = vunpack.c.l.b16 %v830
        %v1444 = vunpack.c.h.b16 %v830
        %v1445 = vunpack.c.l.b16 %v831
        %v1446 = vunpack.c.h.b16 %v831
        %v1447 = vunpack.c.l.b16 %v832
        %v1448 = vunpack.c.h.b16 %v832
        %v1449 = vunpack.c.l.b16 %v833
        %v1450 = vunpack.c.h.b16 %v833
        %v1451 = vunpack.c.l.b16 %v834
        %v1452 = vunpack.c.h.b16 %v834
        %v1453 = vunpack.c.l.b16 %v835
        %v1454 = vunpack.c.h.b16 %v835
        %v1455 = vunpack.c.l.b16 %v836
        %v1456 = vunpack.c.h.b16 %v836
        %v1457 = vunpack.c.l.b16 %v837
        %v1458 = vunpack.c.h.b16 %v837
        %v1459 = vunpack.c.l.b16 %v838
        %v1460 = vunpack.c.h.b16 %v838
        %v1461 = vunpack.c.l.b16 %v839
        %v1462 = vunpack.c.h.b16 %v839
        %v1463 = vunpack.c.l.b16 %v840
        %v1464 = vunpack.c.h.b16 %v840
        %v1465 = vunpack.c.l.b16 %v841
        %v1466 = vunpack.c.h.b16 %v841
        %v1467 = vunpack.c.l.b16 %v842
        %v1468 = vunpack.c.h.b16 %v842
        %v1469 = vunpack.c.l.b16 %v843
        %v1470 = vunpack.c.h.b16 %v843
        %v1471 = vunpack.c.l.b16 %v844
        %v1472 = vunpack.c.h.b16 %v844
        %v1473 = vunpack.c.l.b16 %v845
        %v1474 = vunpack.c.h.b16 %v845
        %v1475 = vunpack.c.l.b16 %v846
        %v1476 = vunpack.c.h.b16 %v846
        %v1477 = vunpack.c.l.b16 %v847
        %v1478 = vunpack.c.h.b16 %v847
        %v1479 = vunpack.c.l.b16 %v848
        %v1480 = vunpack.c.h.b16 %v848
        %v1481 = vunpack.c.l.b16 %v849
        %v1482 = vunpack.c.h.b16 %v849
        %v1483 = vunpack.c.l.b16 %v850
        %v1484 = vunpack.c.h.b16 %v850
        %v1485 = vunpack.c.l.b16 %v851
        %v1486 = vunpack.c.h.b16 %v851
        %v1487 = vunpack.c.l.b16 %v852
        %v1488 = vunpack.c.h.b16 %v852
        %v1489 = vunpack.c.l.b16 %v853
        %v1490 = vunpack.c.h.b16 %v853
        %v1491 = vunpack.c.l.b16 %v854
        %v1492 = vunpack.c.h.b16 %v854
        %v1493 = vunpack.c.l.b16 %v855
        %v1494 = vunpack.c.h.b16 %v855
        %v1495 = vunpack.c.l.b16 %v856
        %v1496 = vunpack.c.h.b16 %v856
        %v1497 = vunpack.c.l.b16 %v857
        %v1498 = vunpack.c.h.b16 %v857
        %v1499 = vunpack.c.l.b16 %v858
        %v1500 = vunpack.c.h.b16 %v858
        %v1501 = vunpack.c.l.b16 %v859
        %v1502 = vunpack.c.h.b16 %v859
        %v1503 = vunpack.c.l.b16 %v860
        %v1504 = vunpack.c.h.b16 %v860
        %v1505 = vunpack.c.l.b16 %v861
        %v1506 = vunpack.c.h.b16 %v861
        %v1507 = vunpack.c.l.b16 %v862
        %v1508 = vunpack.c.h.b16 %v862
        %v1509 = vunpack.c.l.b16 %v863
        %v1510 = vunpack.c.h.b16 %v863
        %v1511 = vunpack.c.l.b16 %v864
        %v1512 = vunpack.c.h.b16 %v864
        %v1513 = vunpack.c.l.b16 %v865
        %v1514 = vunpack.c.h.b16 %v865
        %v1515 = vunpack.c.l.b16 %v866
        %v1516 = vunpack.c.h.b16 %v866
        %v1517 = vunpack.c.l.b16 %v867
        %v1518 = vunpack.c.h.b16 %v867
        %v1519 = vunpack.c.l.b16 %v868
        %v1520 = vunpack.c.h.b16 %v868
        %v1521 = vunpack.c.l.b16 %v869
        %v1522 = vunpack.c.h.b16 %v869
        %v1523 = vunpack.c.l.b16 %v870
        %v1524 = vunpack.c.h.b16 %v870
        %v1525 = vunpack.c.l.b16 %v871
        %v1526 = vunpack.c.h.b16 %v871
        %v1527 = vunpack.c.l.b16 %v872
        %v1528 = vunpack.c.h.b16 %v872
        %v1529 = vunpack.c.l.b16 %v873
        %v1530 = vunpack.c.h.b16 %v873
        %v1531 = vunpack.c.l.b16 %v874
        %v1532 = vunpack.c.h.b16 %v874
        %v1533 = vunpack.c.l.b16 %v875
        %v1534 = vunpack.c.h.b16 %v875
        %v1535 = vunpack.c.l.b16 %v876
        %v1536 = vunpack.c.h.b16 %v876
        %v1537 = vunpack.c.l.b16 %v877
        %v1538 = vunpack.c.h.b16 %v877
        %v1539 = vunpack.c.l.b16 %v878
        %v1540 = vunpack.c.h.b16 %v878
        %v1541 = vunpack.c.l.b16 %v879
        %v1542 = vunpack.c.h.b16 %v879
        %v1543 = vunpack.c.l.b16 %v880
        %v1544 = vunpack.c.h.b16 %v880
        %v1545 = vunpack.c.l.b16 %v881
        %v1546 = vunpack.c.h.b16 %v881
        %v1547 = vunpack.c.l.b16 %v882
        %v1548 = vunpack.c.h.b16 %v882
        %v1549 = vunpack.c.l.b16 %v883
        %v1550 = vunpack.c.h.b16 %v883
        %v1551 = vunpack.c.l.b16 %v884
        %v1552 = vunpack.c.h.b16 %v884
        %v1553 = vunpack.c.l.b16 %v885
        %v1554 = vunpack.c.h.b16 %v885
        %v1555 = vunpack.c.l.b16 %v886
        %v1556 = vunpack.c.h.b16 %v886
        %v1557 = vunpack.c.l.b16 %v887
        %v1558 = vunpack.c.h.b16 %v887
        %v1559 = vunpack.c.l.b16 %v888
        %v1560 = vunpack.c.h.b16 %v888
        %v1561 = vunpack.c.l.b16 %v889
        %v1562 = vunpack.c.h.b16 %v889
        %v1563 = vunpack.c.l.b16 %v890
        %v1564 = vunpack.c.h.b16 %v890
        %v1565 = vunpack.c.l.b16 %v891
        %v1566 = vunpack.c.h.b16 %v891
        %v1567 = vunpack.c.l.b16 %v892
        %v1568 = vunpack.c.h.b16 %v892
        %v1569 = vunpack.c.l.b16 %v893
        %v1570 = vunpack.c.h.b16 %v893
        %v1571 = vunpack.c.l.b16 %v894
        %v1572 = vunpack.c.h.b16 %v894
        %v1573 = vunpack.c.l.b16 %v895
        %v1574 = vunpack.c.h.b16 %v895
        %v1575 = vunpack.c.l.b16 %v896
        %v1576 = vunpack.c.h.b16 %v896
        %v1577 = vunpack.c.l.b16 %v897
        %v1578 = vunpack.c.h.b16 %v897
        %v1579 = vunpack.c.l.b16 %v898
        %v1580 = vunpack.c.h.b16 %v898
        %v1581 = vunpack.c.l.b16 %v899
        %v1582 = vunpack.c.h.b16 %v899
        %v1583 = vunpack.c.l.b16 %v900
        %v1584 = vunpack.c.h.b16 %v900
        %v1585 = vunpack.c.l.b16 %v901
        %v1586 = vunpack.c.h.b16 %v901
        %v1587 = vunpack.c.l.b16 %v902
        %v1588 = vunpack.c.h.b16 %v902
        %v1589 = vunpack.c.l.b16 %v903
        %v1590 = vunpack.c.h.b16 %v903
        %v1591 = vunpack.c.l.b16 %v904
        %v1592 = vunpack.c.h.b16 %v904
        %v1593 = vunpack.c.l.b16 %v905
        %v1594 = vunpack.c.h.b16 %v905
        %v1595 = vunpack.c.l.b16 %v906
        %v1596 = vunpack.c.h.b16 %v906
        %v1597 = vunpack.c.l.b16 %v907
        %v1598 = vunpack.c.h.b16 %v907
        %v1599 = vunpack.c.l.b16 %v908
        %v1600 = vunpack.c.h.b16 %v908
        %v1601 = vunpack.c.l.b16 %v909
        %v1602 = vunpack.c.h.b16 %v909
        %v1603 = vunpack.c.l.b16 %v910
        %v1604 = vunpack.c.h.b16 %v910
        %v1605 = vunpack.c.l.b16 %v911
        %v1606 = vunpack.c.h.b16 %v911
        %v1607 = vunpack.c.l.b16 %v912
        %v1608 = vunpack.c.h.b16 %v912
        %v1609 = vunpack.c.l.b16 %v913
        %v1610 = vunpack.c.h.b16 %v913
        %v1611 = vunpack.c.l.b16 %v914
        %v1612 = vunpack.c.h.b16 %v914
        %v1613 = vunpack.c.l.b16 %v915
        %v1614 = vunpack.c.h.b16 %v915
        %v1615 = vunpack.c.l.b16 %v916
        %v1616 = vunpack.c.h.b16 %v916
        %v1617 = vunpack.c.l.b16 %v917
        %v1618 = vunpack.c.h.b16 %v917
        %v1619 = vunpack.c.l.b16 %v918
        %v1620 = vunpack.c.h.b16 %v918
        %v1621 = vunpack.c.l.b16 %v919
        %v1622 = vunpack.c.h.b16 %v919
        %v1623 = vunpack.c.l.b16 %v920
        %v1624 = vunpack.c.h.b16 %v920
        %v1625 = vunpack.c.l.b16 %v921
        %v1626 = vunpack.c.h.b16 %v921
        %v1627 = vunpack.c.l.b16 %v922
        %v1628 = vunpack.c.h.b16 %v922
        %v1629 = vunpack.c.l.b16 %v923
        %v1630 = vunpack.c.h.b16 %v923
        %v1631 = vunpack.c.l.b16 %v924
        %v1632 = vunpack.c.h.b16 %v924
        %v1633 = vunpack.c.l.b16 %v925
        %v1634 = vunpack.c.h.b16 %v925
        %v1635 = vunpack.c.l.b16 %v926
        %v1636 = vunpack.c.h.b16 %v926
        %v1637 = vunpack.c.l.b16 %v927
        %v1638 = vunpack.c.h.b16 %v927
        %v1639 = vunpack.c.l.b16 %v928
        %v1640 = vunpack.c.h.b16 %v928
        %v1641 = vunpack.c.l.b16 %v929
        %v1642 = vunpack.c.h.b16 %v929
        %v1643 = vunpack.c.l.b16 %v930
        %v1644 = vunpack.c.h.b16 %v930
        %v1645 = vunpack.c.l.b16 %v931
        %v1646 = vunpack.c.h.b16 %v931
        %v1647 = vunpack.c.l.b16 %v932
        %v1648 = vunpack.c.h.b16 %v932
        %v1649 = vunpack.c.l.b16 %v933
        %v1650 = vunpack.c.h.b16 %v933
        %v1651 = vunpack.c.l.b16 %v934
        %v1652 = vunpack.c.h.b16 %v934
        %v1653 = vunpack.c.l.b16 %v935
        %v1654 = vunpack.c.h.b16 %v935
        %v1655 = vunpack.c.l.b16 %v936
        %v1656 = vunpack.c.h.b16 %v936
        %v1657 = vunpack.c.l.b16 %v937
        %v1658 = vunpack.c.h.b16 %v937
        %v1659 = vunpack.c.l.b16 %v938
        %v1660 = vunpack.c.h.b16 %v938
        %v1661 = vunpack.c.l.b16 %v939
        %v1662 = vunpack.c.h.b16 %v939
        %v1663 = vunpack.c.l.b16 %v940
        %v1664 = vunpack.c.h.b16 %v940
        %v1665 = vunpack.c.l.b16 %v941
        %v1666 = vunpack.c.h.b16 %v941
        %v1667 = vunpack.c.l.b16 %v942
        %v1668 = vunpack.c.h.b16 %v942
        %v1669 = vunpack.c.l.b16 %v943
        %v1670 = vunpack.c.h.b16 %v943
        %v1671 = vunpack.c.l.b16 %v944
        %v1672 = vunpack.c.h.b16 %v944
        %v1673 = vunpack.c.l.b16 %v945
        %v1674 = vunpack.c.h.b16 %v945
        %v1675 = vunpack.c.l.b16 %v946
        %v1676 = vunpack.c.h.b16 %v946
        %v1677 = vunpack.c.l.b16 %v947
        %v1678 = vunpack.c.h.b16 %v947
        %v1679 = vunpack.c.l.b16 %v948
        %v1680 = vunpack.c.h.b16 %v948
        %v1681 = vunpack.c.l.b16 %v949
        %v1682 = vunpack.c.h.b16 %v949
        %v1683 = vunpack.c.l.b16 %v950
        %v1684 = vunpack.c.h.b16 %v950
        %v1685 = vunpack.c.l.b16 %v951
        %v1686 = vunpack.c.h.b16 %v951
        %v1687 = vunpack.c.l.b16 %v952
        %v1688 = vunpack.c.h.b16 %v952
        %v1689 = vunpack.c.l.b16 %v953
        %v1690 = vunpack.c.h.b16 %v953
        %v1691 = vunpack.c.l.b16 %v954
        %v1692 = vunpack.c.h.b16 %v954
        %v1693 = vunpack.c.l.b16 %v955
        %v1694 = vunpack.c.h.b16 %v955
        %v1695 = vunpack.c.l.b16 %v956
        %v1696 = vunpack.c.h.b16 %v956
        %v1697 = vunpack.c.l.b16 %v957
        %v1698 = vunpack.c.h.b16 %v957
        %v1699 = vunpack.c.l.b16 %v958
        %v1700 = vunpack.c.h.b16 %v958
        %v1701 = vunpack.c.l.b16 %v959
        %v1702 = vunpack.c.h.b16 %v959
        %v1703 = vunpack.c.l.b16 %v960
        %v1704 = vunpack.c.h.b16 %v960
        %v1705 = vunpack.c.l.b16 %v961
        %v1706 = vunpack.c.h.b16 %v961
        %v1707 = vunpack.c.l.b16 %v962
        %v1708 = vunpack.c.h.b16 %v962
        %v1709 = vunpack.c.l.b16 %v963
        %v1710 = vunpack.c.h.b16 %v963
        %v1711 = vunpack.c.l.b16 %v964
        %v1712 = vunpack.c.h.b16 %v964
        %v1713 = vunpack.c.l.b16 %v965
        %v1714 = vunpack.c.h.b16 %v965
        %v1715 = vunpack.c.l.b16 %v966
        %v1716 = vunpack.c.h.b16 %v966
        %v1717 = vunpack.c.l.b16 %v967
        %v1718 = vunpack.c.h.b16 %v967
        %v1719 = vunpack.c.l.b16 %v968
        %v1720 = vunpack.c.h.b16 %v968
        %v1721 = vunpack.c.l.b16 %v969
        %v1722 = vunpack.c.h.b16 %v969
        %v1723 = vunpack.c.l.b16 %v970
        %v1724 = vunpack.c.h.b16 %v970
        %v1725 = vunpack.c.l.b16 %v971
        %v1726 = vunpack.c.h.b16 %v971
        %v1727 = vunpack.c.l.b16 %v972
        %v1728 = vunpack.c.h.b16 %v972
        %v1729 = vunpack.c.l.b16 %v973
        %v1730 = vunpack.c.h.b16 %v973
        %v1731 = vunpack.c.l.b16 %v974
        %v1732 = vunpack.c.h.b16 %v974
        %v1733 = vunpack.c.l.b16 %v975
        %v1734 = vunpack.c.h.b16 %v975
        %v1735 = vunpack.c.l.b16 %v976
        %v1736 = vunpack.c.h.b16 %v976
        %v1737 = vunpack.c.l.b16 %v977
        %v1738 = vunpack.c.h.b16 %v977
        %v1739 = vunpack.c.l.b16 %v978
        %v1740 = vunpack.c.h.b16 %v978
        %v1741 = vunpack.c.l.b16 %v979
        %v1742 = vunpack.c.h.b16 %v979
        %v1743 = vunpack.c.l.b16 %v980
        %v1744 = vunpack.c.h.b16 %v980
        %v1745 = vunpack.c.l.b16 %v981
        %v1746 = vunpack.c.h.b16 %v981
        %v1747 = vunpack.c.l.b16 %v982
        %v1748 = vunpack.c.h.b16 %v982
        %v1749 = vunpack.c.l.b16 %v983
        %v1750 = vunpack.c.h.b16 %v983
        %v1751 = vunpack.c.l.b16 %v984
        %v1752 = vunpack.c.h.b16 %v984
        %v1753 = vunpack.c.l.b16 %v985
        %v1754 = vunpack.c.h.b16 %v985
        %v1755 = vunpack.c.l.b16 %v986
        %v1756 = vunpack.c.h.b16 %v986
        %v1757 = vunpack.c.l.b16 %v987
        %v1758 = vunpack.c.h.b16 %v987
        %v1759 = vunpack.c.l.b16 %v988
        %v1760 = vunpack.c.h.b16 %v988
        %v1761 = vunpack.c.l.b16 %v989
        %v1762 = vunpack.c.h.b16 %v989
        %v1763 = vunpack.c.l.b16 %v990
        %v1764 = vunpack.c.h.b16 %v990
        %v1765 = vunpack.c.l.b16 %v991
        %v1766 = vunpack.c.h.b16 %v991
        %v1767 = vunpack.c.l.b16 %v992
        %v1768 = vunpack.c.h.b16 %v992
        %v1769 = vunpack.c.l.b16 %v993
        %v1770 = vunpack.c.h.b16 %v993
        %v1771 = vunpack.c.l.b16 %v994
        %v1772 = vunpack.c.h.b16 %v994
        %v1773 = vunpack.c.l.b16 %v995
        %v1774 = vunpack.c.h.b16 %v995
        %v1775 = vunpack.c.l.b16 %v996
        %v1776 = vunpack.c.h.b16 %v996
        %v1777 = vunpack.c.l.b16 %v997
        %v1778 = vunpack.c.h.b16 %v997
        %v1779 = vunpack.c.l.b16 %v998
        %v1780 = vunpack.c.h.b16 %v998
        %v1781 = vunpack.c.l.b16 %v999
        %v1782 = vunpack.c.h.b16 %v999
        %v1783 = vunpack.c.l.b16 %v1000
        %v1784 = vunpack.c.h.b16 %v1000
        %v1785 = vunpack.c.l.b16 %v1001
        %v1786 = vunpack.c.h.b16 %v1001
        %v1787 = vunpack.c.l.b16 %v1002
        %v1788 = vunpack.c.h.b16 %v1002
        %v1789 = vunpack.c.l.b16 %v1003
        %v1790 = vunpack.c.h.b16 %v1003
        %v1791 = vunpack.c.l.b16 %v1004
        %v1792 = vunpack.c.h.b16 %v1004
        %v1793 = vunpack.c.l.b16 %v1005
        %v1794 = vunpack.c.h.b16 %v1005
        %v1795 = vunpack.c.l.b16 %v1006
        %v1796 = vunpack.c.h.b16 %v1006
        %v1797 = vunpack.c.l.b16 %v1007
        %v1798 = vunpack.c.h.b16 %v1007
        %v1799 = vunpack.c.l.b16 %v1008
        %v1800 = vunpack.c.h.b16 %v1008
        %v1801 = vunpack.c.l.b16 %v1009
        %v1802 = vunpack.c.h.b16 %v1009
        %v1803 = vunpack.c.l.b16 %v1010
        %v1804 = vunpack.c.h.b16 %v1010
        %v1805 = vunpack.c.l.b16 %v1011
        %v1806 = vunpack.c.h.b16 %v1011
        %v1807 = vunpack.c.l.b16 %v1012
        %v1808 = vunpack.c.h.b16 %v1012
        %v1809 = vunpack.c.l.b16 %v1013
        %v1810 = vunpack.c.h.b16 %v1013
        %v1811 = vunpack.c.l.b16 %v1014
        %v1812 = vunpack.c.h.b16 %v1014
        %v1813 = vunpack.c.l.b16 %v1015
        %v1814 = vunpack.c.h.b16 %v1015
        %v1815 = vunpack.c.l.b16 %v1016
        %v1816 = vunpack.c.h.b16 %v1016
        %v1817 = vunpack.c.l.b16 %v1017
        %v1818 = vunpack.c.h.b16 %v1017
        %v1819 = vunpack.c.l.b16 %v1018
        %v1820 = vunpack.c.h.b16 %v1018
        %v1821 = vunpack.c.l.b16 %v1019
        %v1822 = vunpack.c.h.b16 %v1019
        %v1823 = vunpack.c.l.b16 %v1020
        %v1824 = vunpack.c.h.b16 %v1020
        %v1825 = vunpack.c.l.b16 %v1021
        %v1826 = vunpack.c.h.b16 %v1021
        %v1827 = vunpack.c.l.b16 %v1022
        %v1828 = vunpack.c.h.b16 %v1022
        %v1829 = vunpack.c.l.b16 %v1023
        %v1830 = vunpack.c.h.b16 %v1023
        %v1831 = vunpack.c.l.b16 %v1024
        %v1832 = vunpack.c.h.b16 %v1024
        %v1833 = vunpack.c.l.b16 %v1025
        %v1834 = vunpack.c.h.b16 %v1025
        %v1835 = vunpack.c.l.b16 %v1026
        %v1836 = vunpack.c.h.b16 %v1026
        %v1837 = vunpack.c.l.b16 %v1027
        %v1838 = vunpack.c.h.b16 %v1027
        %v1839 = vunpack.c.l.b16 %v1028
        %v1840 = vunpack.c.h.b16 %v1028
        %v1841 = vunpack.c.l.b16 %v1029
        %v1842 = vunpack.c.h.b16 %v1029
        %v1843 = vunpack.c.l.b16 %v1030
        %v1844 = vunpack.c.h.b16 %v1030
        %v1845 = vunpack.c.l.b16 %v1031
        %v1846 = vunpack.c.h.b16 %v1031
        %v1847 = vunpack.c.l.b16 %v1032
        %v1848 = vunpack.c.h.b16 %v1032
        %v1849 = vunpack.c.l.b16 %v1033
        %v1850 = vunpack.c.h.b16 %v1033
        %v1851 = vunpack.c.l.b16 %v1034
        %v1852 = vunpack.c.h.b16 %v1034
        %v1853 = vunpack.c.l.b16 %v1035
        %v1854 = vunpack.c.h.b16 %v1035
        %v1855 = vunpack.c.l.b16 %v1036
        %v1856 = vunpack.c.h.b16 %v1036
        %v1857 = vunpack.c.l.b16 %v1037
        %v1858 = vunpack.c.h.b16 %v1037
        %v1859 = vunpack.c.l.b16 %v1038
        %v1860 = vunpack.c.h.b16 %v1038
        %v1861 = vunpack.c.l.b16 %v1039
        %v1862 = vunpack.c.h.b16 %v1039
        %v1863 = vunpack.c.l.b16 %v1040
        %v1864 = vunpack.c.h.b16 %v1040
        %v1865 = vunpack.c.l.b16 %v1041
        %v1866 = vunpack.c.h.b16 %v1041
        %v1867 = vunpack.c.l.b16 %v1042
        %v1868 = vunpack.c.h.b16 %v1042
        %v1869 = vunpack.c.l.b16 %v1043
        %v1870 = vunpack.c.h.b16 %v1043
        %v1871 = vunpack.c.l.b16 %v1044
        %v1872 = vunpack.c.h.b16 %v1044
        %v1873 = vunpack.c.l.b16 %v1045
        %v1874 = vunpack.c.h.b16 %v1045
        %v1875 = vunpack.c.l.b16 %v1046
        %v1876 = vunpack.c.h.b16 %v1046
        %v1877 = vunpack.c.l.b16 %v1047
        %v1878 = vunpack.c.h.b16 %v1047
        %v1879 = vunpack.c.l.b16 %v1048
        %v1880 = vunpack.c.h.b16 %v1048
        %v1881 = vunpack.c.l.b16 %v1049
        %v1882 = vunpack.c.h.b16 %v1049
        %v1883 = vunpack.c.l.b16 %v1050
        %v1884 = vunpack.c.h.b16 %v1050
        %v1885 = vunpack.c.l.b16 %v1051
        %v1886 = vunpack.c.h.b16 %v1051
        %v1887 = vunpack.c.l.b16 %v1052
        %v1888 = vunpack.c.h.b16 %v1052
        %v1889 = vunpack.c.l.b16 %v1053
        %v1890 = vunpack.c.h.b16 %v1053
        %v1891 = vunpack.c.l.b16 %v1054
        %v1892 = vunpack.c.h.b16 %v1054
        %v1893 = vunpack.c.l.b16 %v1055
        %v1894 = vunpack.c.h.b16 %v1055
        %v1895 = vunpack.c.l.b16 %v1056
        %v1896 = vunpack.c.h.b16 %v1056
        %v1897 = vunpack.c.l.b16 %v1057
        %v1898 = vunpack.c.h.b16 %v1057
        %v1899 = vunpack.c.l.b16 %v1058
        %v1900 = vunpack.c.h.b16 %v1058
        %v1901 = vunpack.c.l.b16 %v1059
        %v1902 = vunpack.c.h.b16 %v1059
        %v1903 = vunpack.c.l.b16 %v1060
        %v1904 = vunpack.c.h.b16 %v1060
        %v1905 = vunpack.c.l.b16 %v1061
        %v1906 = vunpack.c.h.b16 %v1061
        %v1907 = vunpack.c.l.b16 %v1062
        %v1908 = vunpack.c.h.b16 %v1062
        %v1909 = vunpack.c.l.b16 %v1063
        %v1910 = vunpack.c.h.b16 %v1063
        %v1911 = vunpack.c.l.b16 %v1064
        %v1912 = vunpack.c.h.b16 %v1064
        %v1913 = vpack.c.b16 %v1405, %v1401
        %v1914 = vpack.c.b16 %v1406, %v1402
        %v1915 = vpack.c.b16 %v1407, %v1403
        %v1916 = vpack.c.b16 %v1408, %v1404
        %v1917 = vpack.c.b16 %v1413, %v1409
        %v1918 = vpack.c.b16 %v1414, %v1410
        %v1919 = vpack.c.b16 %v1415, %v1411
        %v1920 = vpack.c.b16 %v1416, %v1412
        %v1921 = vpack.c.b16 %v1421, %v1417
        %v1922 = vpack.c.b16 %v1422, %v1418
        %v1923 = vpack.c.b16 %v1423, %v1419
        %v1924 = vpack.c.b16 %v1424, %v1420
        %v1925 = vpack.c.b16 %v1429, %v1425
        %v1926 = vpack.c.b16 %v1430, %v1426
        %v1927 = vpack.c.b16 %v1431, %v1427
        %v1928 = vpack.c.b16 %v1432, %v1428
        %v1929 = vpack.c.b16 %v1437, %v1433
        %v1930 = vpack.c.b16 %v1438, %v1434
        %v1931 = vpack.c.b16 %v1439, %v1435
        %v1932 = vpack.c.b16 %v1440, %v1436
        %v1933 = vpack.c.b16 %v1445, %v1441
        %v1934 = vpack.c.b16 %v1446, %v1442
        %v1935 = vpack.c.b16 %v1447, %v1443
        %v1936 = vpack.c.b16 %v1448, %v1444
        %v1937 = vpack.c.b16 %v1453, %v1449
        %v1938 = vpack.c.b16 %v1454, %v1450
        %v1939 = vpack.c.b16 %v1455, %v1451
        %v1940 = vpack.c.b16 %v1456, %v1452
        %v1941 = vpack.c.b16 %v1461, %v1457
        %v1942 = vpack.c.b16 %v1462, %v1458
        %v1943 = vpack.c.b16 %v1463, %v1459
        %v1944 = vpack.c.b16 %v1464, %v1460
        %v1945 = vpack.c.b16 %v1469, %v1465
        %v1946 = vpack.c.b16 %v1470, %v1466
        %v1947 = vpack.c.b16 %v1471, %v1467
        %v1948 = vpack.c.b16 %v1472, %v1468
        %v1949 = vpack.c.b16 %v1477, %v1473
        %v1950 = vpack.c.b16 %v1478, %v1474
        %v1951 = vpack.c.b16 %v1479, %v1475
        %v1952 = vpack.c.b16 %v1480, %v1476
        %v1953 = vpack.c.b16 %v1485, %v1481
        %v1954 = vpack.c.b16 %v1486, %v1482
        %v1955 = vpack.c.b16 %v1487, %v1483
        %v1956 = vpack.c.b16 %v1488, %v1484
        %v1957 = vpack.c.b16 %v1493, %v1489
        %v1958 = vpack.c.b16 %v1494, %v1490
        %v1959 = vpack.c.b16 %v1495, %v1491
        %v1960 = vpack.c.b16 %v1496, %v1492
        %v1961 = vpack.c.b16 %v1501, %v1497
        %v1962 = vpack.c.b16 %v1502, %v1498
        %v1963 = vpack.c.b16 %v1503, %v1499
        %v1964 = vpack.c.b16 %v1504, %v1500
        %v1965 = vpack.c.b16 %v1509, %v1505
        %v1966 = vpack.c.b16 %v1510, %v1506
        %v1967 = vpack.c.b16 %v1511, %v1507
        %v1968 = vpack.c.b16 %v1512, %v1508
        %v1969 = vpack.c.b16 %v1517, %v1513
        %v1970 = vpack.c.b16 %v1518, %v1514
        %v1971 = vpack.c.b16 %v1519, %v1515
        %v1972 = vpack.c.b16 %v1520, %v1516
        %v1973 = vpack.c.b16 %v1525, %v1521
        %v1974 = vpack.c.b16 %v1526, %v1522
        %v1975 = vpack.c.b16 %v1527, %v1523
        %v1976 = vpack.c.b16 %v1528, %v1524
        %v1977 = vpack.c.b16 %v1533, %v1529
        %v1978 = vpack.c.b16 %v1534, %v1530
        %v1979 = vpack.c.b16 %v1535, %v1531
        %v1980 = vpack.c.b16 %v1536, %v1532
        %v1981 = vpack.c.b16 %v1541, %v1537
        %v1982 = vpack.c.b16 %v1542, %v1538
        %v1983 = vpack.c.b16 %v1543, %v1539
        %v1984 = vpack.c.b16 %v1544, %v1540
        %v1985 = vpack.c.b16 %v1549, %v1545
        %v1986 = vpack.c.b16 %v1550, %v1546
        %v1987 = vpack.c.b16 %v1551, %v1547
        %v1988 = vpack.c.b16 %v1552, %v1548
        %v1989 = vpack.c.b16 %v1557, %v1553
        %v1990 = vpack.c.b16 %v1558, %v1554
        %v1991 = vpack.c.b16 %v1559, %v1555
        %v1992 = vpack.c.b16 %v1560, %v1556
        %v1993 = vpack.c.b16 %v1565, %v1561
        %v1994 = vpack.c.b16 %v1566, %v1562
        %v1995 = vpack.c.b16 %v1567, %v1563
        %v1996 = vpack.c.b16 %v1568, %v1564
        %v1997 = vpack.c.b16 %v1573, %v1569
        %v1998 = vpack.c.b16 %v1574, %v1570
        %v1999 = vpack.c.b16 %v1575, %v1571
        %v2000 = vpack.c.b16 %v1576, %v1572
        %v2001 = vpack.c.b16 %v1581, %v1577
        %v2002 = vpack.c.b16 %v1582, %v1578
        %v2003 = vpack.c.b16 %v1583, %v1579
        %v2004 = vpack.c.b16 %v1584, %v1580
        %v2005 = vpack.c.b16 %v1589, %v1585
        %v2006 = vpack.c.b16 %v1590, %v1586
        %v2007 = vpack.c.b16 %v1591, %v1587
        %v2008 = vpack.c.b16 %v1592, %v1588
        %v2009 = vpack.c.b16 %v1597, %v1593
        %v2010 = vpack.c.b16 %v1598, %v1594
        %v2011 = vpack.c.b16 %v1599, %v1595
        %v2012 = vpack.c.b16 %v1600, %v1596
        %v2013 = vpack.c.b16 %v1605, %v1601
        %v2014 = vpack.c.b16 %v1606, %v1602
        %v2015 = vpack.c.b16 %v1607, %v1603
        %v2016 = vpack.c.b16 %v1608, %v1604
        %v2017 = vpack.c.b16 %v1613, %v1609
        %v2018 = vpack.c.b16 %v1614, %v1610
        %v2019 = vpack.c.b16 %v1615, %v1611
        %v2020 = vpack.c.b16 %v1616, %v1612
        %v2021 = vpack.c.b16 %v1621, %v1617
        %v2022 = vpack.c.b16 %v1622, %v1618
        %v2023 = vpack.c.b16 %v1623, %v1619
        %v2024 = vpack.c.b16 %v1624, %v1620
        %v2025 = vpack.c.b16 %v1629, %v1625
        %v2026 = vpack.c.b16 %v1630, %v1626
        %v2027 = vpack.c.b16 %v1631, %v1627
        %v2028 = vpack.c.b16 %v1632, %v1628
        %v2029 = vpack.c.b16 %v1637, %v1633
        %v2030 = vpack.c.b16 %v1638, %v1634
        %v2031 = vpack.c.b16 %v1639, %v1635
        %v2032 = vpack.c.b16 %v1640, %v1636
        %v2033 = vpack.c.b16 %v1645, %v1641
        %v2034 = vpack.c.b16 %v1646, %v1642
        %v2035 = vpack.c.b16 %v1647, %v1643
        %v2036 = vpack.c.b16 %v1648, %v1644
        %v2037 = vpack.c.b16 %v1653, %v1649
        %v2038 = vpack.c.b16 %v1654, %v1650
        %v2039 = vpack.c.b16 %v1655, %v1651
        %v2040 = vpack.c.b16 %v1656, %v1652
        %v2041 = vpack.c.b16 %v1661, %v1657
        %v2042 = vpack.c.b16 %v1662, %v1658
        %v2043 = vpack.c.b16 %v1663, %v1659
        %v2044 = vpack.c.b16 %v1664, %v1660
        %v2045 = vpack.c.b16 %v1669, %v1665
        %v2046 = vpack.c.b16 %v1670, %v1666
        %v2047 = vpack.c.b16 %v1671, %v1667
        %v2048 = vpack.c.b16 %v1672, %v1668
        %v2049 = vpack.c.b16 %v1677, %v1673
        %v2050 = vpack.c.b16 %v1678, %v1674
        %v2051 = vpack.c.b16 %v1679, %v1675
        %v2052 = vpack.c.b16 %v1680, %v1676
        %v2053 = vpack.c.b16 %v1685, %v1681
        %v2054 = vpack.c.b16 %v1686, %v1682
        %v2055 = vpack.c.b16 %v1687, %v1683
        %v2056 = vpack.c.b16 %v1688, %v1684
        %v2057 = vpack.c.b16 %v1693, %v1689
        %v2058 = vpack.c.b16 %v1694, %v1690
        %v2059 = vpack.c.b16 %v1695, %v1691
        %v2060 = vpack.c.b16 %v1696, %v1692
        %v2061 = vpack.c.b16 %v1701, %v1697
        %v2062 = vpack.c.b16 %v1702, %v1698
        %v2063 = vpack.c.b16 %v1703, %v1699
        %v2064 = vpack.c.b16 %v1704, %v1700
        %v2065 = vpack.c.b16 %v1709, %v1705
        %v2066 = vpack.c.b16 %v1710, %v1706
        %v2067 = vpack.c.b16 %v1711, %v1707
        %v2068 = vpack.c.b16 %v1712, %v1708
        %v2069 = vpack.c.b16 %v1717, %v1713
        %v2070 = vpack.c.b16 %v1718, %v1714
        %v2071 = vpack.c.b16 %v1719, %v1715
        %v2072 = vpack.c.b16 %v1720, %v1716
        %v2073 = vpack.c.b16 %v1725, %v1721
        %v2074 = vpack.c.b16 %v1726, %v1722
        %v2075 = vpack.c.b16 %v1727, %v1723
        %v2076 = vpack.c.b16 %v1728, %v1724
        %v2077 = vpack.c.b16 %v1733, %v1729
        %v2078 = vpack.c.b16 %v1734, %v1730
        %v2079 = vpack.c.b16 %v1735, %v1731
        %v2080 = vpack.c.b16 %v1736, %v1732
        %v2081 = vpack.c.b16 %v1741, %v1737
        %v2082 = vpack.c.b16 %v1742, %v1738
        %v2083 = vpack.c.b16 %v1743, %v1739
        %v2084 = vpack.c.b16 %v1744, %v1740
        %v2085 = vpack.c.b16 %v1749, %v1745
        %v2086 = vpack.c.b16 %v1750, %v1746
        %v2087 = vpack.c.b16 %v1751, %v1747
        %v2088 = vpack.c.b16 %v1752, %v1748
        %v2089 = vpack.c.b16 %v1757, %v1753
        %v2090 = vpack.c.b16 %v1758, %v1754
        %v2091 = vpack.c.b16 %v1759, %v1755
        %v2092 = vpack.c.b16 %v1760, %v1756
        %v2093 = vpack.c.b16 %v1765, %v1761
        %v2094 = vpack.c.b16 %v1766, %v1762
        %v2095 = vpack.c.b16 %v1767, %v1763
        %v2096 = vpack.c.b16 %v1768, %v1764
        %v2097 = vpack.c.b16 %v1773, %v1769
        %v2098 = vpack.c.b16 %v1774, %v1770
        %v2099 = vpack.c.b16 %v1775, %v1771
        %v2100 = vpack.c.b16 %v1776, %v1772
        %v2101 = vpack.c.b16 %v1781, %v1777
        %v2102 = vpack.c.b16 %v1782, %v1778
        %v2103 = vpack.c.b16 %v1783, %v1779
        %v2104 = vpack.c.b16 %v1784, %v1780
        %v2105 = vpack.c.b16 %v1789, %v1785
        %v2106 = vpack.c.b16 %v1790, %v1786
        %v2107 = vpack.c.b16 %v1791, %v1787
        %v2108 = vpack.c.b16 %v1792, %v1788
        %v2109 = vpack.c.b16 %v1797, %v1793
        %v2110 = vpack.c.b16 %v1798, %v1794
        %v2111 = vpack.c.b16 %v1799, %v1795
        %v2112 = vpack.c.b16 %v1800, %v1796
        %v2113 = vpack.c.b16 %v1805, %v1801
        %v2114 = vpack.c.b16 %v1806, %v1802
        %v2115 = vpack.c.b16 %v1807, %v1803
        %v2116 = vpack.c.b16 %v1808, %v1804
        %v2117 = vpack.c.b16 %v1813, %v1809
        %v2118 = vpack.c.b16 %v1814, %v1810
        %v2119 = vpack.c.b16 %v1815, %v1811
        %v2120 = vpack.c.b16 %v1816, %v1812
        %v2121 = vpack.c.b16 %v1821, %v1817
        %v2122 = vpack.c.b16 %v1822, %v1818
        %v2123 = vpack.c.b16 %v1823, %v1819
        %v2124 = vpack.c.b16 %v1824, %v1820
        %v2125 = vpack.c.b16 %v1829, %v1825
        %v2126 = vpack.c.b16 %v1830, %v1826
        %v2127 = vpack.c.b16 %v1831, %v1827
        %v2128 = vpack.c.b16 %v1832, %v1828
        %v2129 = vpack.c.b16 %v1837, %v1833
        %v2130 = vpack.c.b16 %v1838, %v1834
        %v2131 = vpack.c.b16 %v1839, %v1835
        %v2132 = vpack.c.b16 %v1840, %v1836
        %v2133 = vpack.c.b16 %v1845, %v1841
        %v2134 = vpack.c.b16 %v1846, %v1842
        %v2135 = vpack.c.b16 %v1847, %v1843
        %v2136 = vpack.c.b16 %v1848, %v1844
        %v2137 = vpack.c.b16 %v1853, %v1849
        %v2138 = vpack.c.b16 %v1854, %v1850
        %v2139 = vpack.c.b16 %v1855, %v1851
        %v2140 = vpack.c.b16 %v1856, %v1852
        %v2141 = vpack.c.b16 %v1861, %v1857
        %v2142 = vpack.c.b16 %v1862, %v1858
        %v2143 = vpack.c.b16 %v1863, %v1859
        %v2144 = vpack.c.b16 %v1864, %v1860
        %v2145 = vpack.c.b16 %v1869, %v1865
        %v2146 = vpack.c.b16 %v1870, %v1866
        %v2147 = vpack.c.b16 %v1871, %v1867
        %v2148 = vpack.c.b16 %v1872, %v1868
        %v2149 = vpack.c.b16 %v1877, %v1873
        %v2150 = vpack.c.b16 %v1878, %v1874
        %v2151 = vpack.c.b16 %v1879, %v1875
        %v2152 = vpack.c.b16 %v1880, %v1876
        %v2153 = vpack.c.b16 %v1885, %v1881
        %v2154 = vpack.c.b16 %v1886, %v1882
        %v2155 = vpack.c.b16 %v1887, %v1883
        %v2156 = vpack.c.b16 %v1888, %v1884
        %v2157 = vpack.c.b16 %v1893, %v1889
        %v2158 = vpack.c.b16 %v1894, %v1890
        %v2159 = vpack.c.b16 %v1895, %v1891
        %v2160 = vpack.c.b16 %v1896, %v1892
        %v2161 = vpack.c.b16 %v1901, %v1897
        %v2162 = vpack.c.b16 %v1902, %v1898
        %v2163 = vpack.c.b16 %v1903, %v1899
        %v2164 = vpack.c.b16 %v1904, %v1900
        %v2165 = vpack.c.b16 %v1909, %v1905
        %v2166 = vpack.c.b16 %v1910, %v1906
        %v2167 = vpack.c.b16 %v1911, %v1907
        %v2168 = vpack.c.b16 %v1912, %v1908
        %2425 = vmatprep.subr.bf16.mxu0 %v1942
        %2426 = vmatpush1.bf16.msra.mxu0 %v1941
        %2427 = vmatprep.subr.bf16.mxu0 %v1938
        %2428 = vmatpush1.bf16.msra.mxu0 %v1937
        %2429 = vmatprep.subr.bf16.mxu0 %v1934
        %2430 = vmatpush1.bf16.msra.mxu0 %v1933
        %2431 = vmatprep.subr.bf16.mxu0 %v1930
        %2432 = vmatpush1.bf16.msra.mxu0 %v1929
        %2433 = vmatprep.subr.bf16.mxu0 %v1926
        %2434 = vmatpush1.bf16.msra.mxu0 %v1925
        %2435 = vmatprep.subr.bf16.mxu0 %v1922
        %2436 = vmatpush1.bf16.msra.mxu0 %v1921
        %2437 = vmatprep.subr.bf16.mxu0 %v1918
        %2438 = vmatpush1.bf16.msra.mxu0 %v1917
        %2439 = vmatprep.subr.bf16.mxu0 %v1914
        %2440 = vmatpush1.bf16.msra.mxu0 %v1913
        %2441 = vmatprep.subr.bf16.mxu0 %v1974
        %2442 = vmatpush2.bf16.msra.mxu0 %v1973
        %2443 = vmatprep.subr.bf16.mxu0 %v1970
        %2444 = vmatpush2.bf16.msra.mxu0 %v1969
        %2445 = vmatprep.subr.bf16.mxu0 %v1966
        %2446 = vmatpush2.bf16.msra.mxu0 %v1965
        %2447 = vmatprep.subr.bf16.mxu0 %v1962
        %2448 = vmatpush2.bf16.msra.mxu0 %v1961
        %2449 = vmatprep.subr.bf16.mxu0 %v1958
        %2450 = vmatpush2.bf16.msra.mxu0 %v1957
        %2451 = vmatprep.subr.bf16.mxu0 %v1954
        %2452 = vmatpush2.bf16.msra.mxu0 %v1953
        %2453 = vmatprep.subr.bf16.mxu0 %v1950
        %2454 = vmatpush2.bf16.msra.mxu0 %v1949
        %2455 = vmatprep.subr.bf16.mxu0 %v1946
        %2456 = vmatpush2.bf16.msra.mxu0 %v1945
        %2457 = vmatprep.mubr.bf16.mxu0 %v1125
        %2458 = vmatmul.mubr.bf16.gmra.mxu0 %v1111
        %v2459 = vpop.f32.mrf.mxu0
        %v2460 = vadd.f32 %v1070, %v2459
        %v2461 = vpop.f32.mrf.mxu0
        %v2462 = vadd.f32 %v1074, %v2461
        %v2463 = vpop.f32.mrf.mxu0
        %v2464 = vpop.f32.mrf.mxu0
        %2465 = vdwg.mxu0
        %2466 = vmatprep.subr.bf16.mxu0 %v2006
        %2467 = vmatpush1.bf16.msra.mxu0 %v2005
        %2468 = vmatprep.subr.bf16.mxu0 %v2002
        %2469 = vmatpush1.bf16.msra.mxu0 %v2001
        %2470 = vmatprep.subr.bf16.mxu0 %v1998
        %2471 = vmatpush1.bf16.msra.mxu0 %v1997
        %2472 = vmatprep.subr.bf16.mxu0 %v1994
        %2473 = vmatpush1.bf16.msra.mxu0 %v1993
        %2474 = vmatprep.subr.bf16.mxu0 %v1990
        %2475 = vmatpush1.bf16.msra.mxu0 %v1989
        %2476 = vmatprep.subr.bf16.mxu0 %v1986
        %2477 = vmatpush1.bf16.msra.mxu0 %v1985
        %2478 = vmatprep.subr.bf16.mxu0 %v1982
        %2479 = vmatpush1.bf16.msra.mxu0 %v1981
        %2480 = vmatprep.subr.bf16.mxu0 %v1978
        %2481 = vmatpush1.bf16.msra.mxu0 %v1977
        %2482 = vmatprep.subr.bf16.mxu0 %v2038
        %2483 = vmatpush2.bf16.msra.mxu0 %v2037
        %2484 = vmatprep.subr.bf16.mxu0 %v2034
        %2485 = vmatpush2.bf16.msra.mxu0 %v2033
        %2486 = vmatprep.subr.bf16.mxu0 %v2030
        %2487 = vmatpush2.bf16.msra.mxu0 %v2029
        %2488 = vmatprep.subr.bf16.mxu0 %v2026
        %2489 = vmatpush2.bf16.msra.mxu0 %v2025
        %2490 = vmatprep.subr.bf16.mxu0 %v2022
        %2491 = vmatpush2.bf16.msra.mxu0 %v2021
        %2492 = vmatprep.subr.bf16.mxu0 %v2018
        %2493 = vmatpush2.bf16.msra.mxu0 %v2017
        %2494 = vmatprep.subr.bf16.mxu0 %v2014
        %2495 = vmatpush2.bf16.msra.mxu0 %v2013
        %2496 = vmatprep.subr.bf16.mxu0 %v2010
        %2497 = vmatpush2.bf16.msra.mxu0 %v2009
        %2498 = vmatprep.mubr.bf16.mxu0 %v1135
        %2499 = vmatmul.mubr.bf16.gmra.mxu0 %v1133
        %v2500 = vpop.f32.mrf.mxu0
        %v2501 = vadd.f32 %v2460, %v2500
        %v2502 = vpop.f32.mrf.mxu0
        %v2503 = vadd.f32 %v2462, %v2502
        %v2504 = vpop.f32.mrf.mxu0
        %v2505 = vpop.f32.mrf.mxu0
        %2506 = vdwg.mxu0
        %2507 = vmatprep.subr.bf16.mxu0 %v2070
        %2508 = vmatpush1.bf16.msra.mxu0 %v2069
        %2509 = vmatprep.subr.bf16.mxu0 %v2066
        %2510 = vmatpush1.bf16.msra.mxu0 %v2065
        %2511 = vmatprep.subr.bf16.mxu0 %v2062
        %2512 = vmatpush1.bf16.msra.mxu0 %v2061
        %2513 = vmatprep.subr.bf16.mxu0 %v2058
        %2514 = vmatpush1.bf16.msra.mxu0 %v2057
        %2515 = vmatprep.subr.bf16.mxu0 %v2054
        %2516 = vmatpush1.bf16.msra.mxu0 %v2053
        %2517 = vmatprep.subr.bf16.mxu0 %v2050
        %2518 = vmatpush1.bf16.msra.mxu0 %v2049
        %2519 = vmatprep.subr.bf16.mxu0 %v2046
        %2520 = vmatpush1.bf16.msra.mxu0 %v2045
        %2521 = vmatprep.subr.bf16.mxu0 %v2042
        %2522 = vmatpush1.bf16.msra.mxu0 %v2041
        %2523 = vmatprep.subr.bf16.mxu0 %v2102
        %2524 = vmatpush2.bf16.msra.mxu0 %v2101
        %2525 = vmatprep.subr.bf16.mxu0 %v2098
        %2526 = vmatpush2.bf16.msra.mxu0 %v2097
        %2527 = vmatprep.subr.bf16.mxu0 %v2094
        %2528 = vmatpush2.bf16.msra.mxu0 %v2093
        %2529 = vmatprep.subr.bf16.mxu0 %v2090
        %2530 = vmatpush2.bf16.msra.mxu0 %v2089
        %2531 = vmatprep.subr.bf16.mxu0 %v2086
        %2532 = vmatpush2.bf16.msra.mxu0 %v2085
        %2533 = vmatprep.subr.bf16.mxu0 %v2082
        %2534 = vmatpush2.bf16.msra.mxu0 %v2081
        %2535 = vmatprep.subr.bf16.mxu0 %v2078
        %2536 = vmatpush2.bf16.msra.mxu0 %v2077
        %2537 = vmatprep.subr.bf16.mxu0 %v2074
        %2538 = vmatpush2.bf16.msra.mxu0 %v2073
        %2539 = vmatprep.mubr.bf16.mxu0 %v1132
        %2540 = vmatmul.mubr.bf16.gmra.mxu0 %v1118
        %v2541 = vpop.f32.mrf.mxu0
        %v2542 = vadd.f32 %v2501, %v2541
        %v2543 = vpop.f32.mrf.mxu0
        %v2544 = vadd.f32 %v2503, %v2543
        %v2545 = vpop.f32.mrf.mxu0
        %v2546 = vpop.f32.mrf.mxu0
        %2547 = vdwg.mxu0
        %2548 = vmatprep.subr.bf16.mxu0 %v2134
        %2549 = vmatpush1.bf16.msra.mxu0 %v2133
        %2550 = vmatprep.subr.bf16.mxu0 %v2130
        %2551 = vmatpush1.bf16.msra.mxu0 %v2129
        %2552 = vmatprep.subr.bf16.mxu0 %v2126
        %2553 = vmatpush1.bf16.msra.mxu0 %v2125
        %2554 = vmatprep.subr.bf16.mxu0 %v2122
        %2555 = vmatpush1.bf16.msra.mxu0 %v2121
        %2556 = vmatprep.subr.bf16.mxu0 %v2118
        %2557 = vmatpush1.bf16.msra.mxu0 %v2117
        %2558 = vmatprep.subr.bf16.mxu0 %v2114
        %2559 = vmatpush1.bf16.msra.mxu0 %v2113
        %2560 = vmatprep.subr.bf16.mxu0 %v2110
        %2561 = vmatpush1.bf16.msra.mxu0 %v2109
        %2562 = vmatprep.subr.bf16.mxu0 %v2106
        %2563 = vmatpush1.bf16.msra.mxu0 %v2105
        %2564 = vmatprep.subr.bf16.mxu0 %v2166
        %2565 = vmatpush2.bf16.msra.mxu0 %v2165
        %2566 = vmatprep.subr.bf16.mxu0 %v2162
        %2567 = vmatpush2.bf16.msra.mxu0 %v2161
        %2568 = vmatprep.subr.bf16.mxu0 %v2158
        %2569 = vmatpush2.bf16.msra.mxu0 %v2157
        %2570 = vmatprep.subr.bf16.mxu0 %v2154
        %2571 = vmatpush2.bf16.msra.mxu0 %v2153
        %2572 = vmatprep.subr.bf16.mxu0 %v2150
        %2573 = vmatpush2.bf16.msra.mxu0 %v2149
        %2574 = vmatprep.subr.bf16.mxu0 %v2146
        %2575 = vmatpush2.bf16.msra.mxu0 %v2145
        %2576 = vmatprep.subr.bf16.mxu0 %v2142
        %2577 = vmatpush2.bf16.msra.mxu0 %v2141
        %2578 = vmatprep.subr.bf16.mxu0 %v2138
        %2579 = vmatpush2.bf16.msra.mxu0 %v2137
        %2580 = vmatprep.mubr.bf16.mxu0 %v1136
        %2581 = vmatmul.mubr.bf16.gmra.mxu0 %v1134
        %v2582 = vpop.f32.mrf.mxu0
        %v2583 = vadd.f32 %v2542, %v2582
        %v2584 = vpop.f32.mrf.mxu0
        %v2585 = vadd.f32 %v2544, %v2584
        %v2586 = vpop.f32.mrf.mxu0
        %v2587 = vpop.f32.mrf.mxu0
        %2588 = vdwg.mxu0
        %2589 = vmatprep.subr.bf16.mxu0 %v1944
        %2590 = vmatpush1.bf16.msra.mxu0 %v1943
        %2591 = vmatprep.subr.bf16.mxu0 %v1940
        %2592 = vmatpush1.bf16.msra.mxu0 %v1939
        %2593 = vmatprep.subr.bf16.mxu0 %v1936
        %2594 = vmatpush1.bf16.msra.mxu0 %v1935
        %2595 = vmatprep.subr.bf16.mxu0 %v1932
        %2596 = vmatpush1.bf16.msra.mxu0 %v1931
        %2597 = vmatprep.subr.bf16.mxu0 %v1928
        %2598 = vmatpush1.bf16.msra.mxu0 %v1927
        %2599 = vmatprep.subr.bf16.mxu0 %v1924
        %2600 = vmatpush1.bf16.msra.mxu0 %v1923
        %2601 = vmatprep.subr.bf16.mxu0 %v1920
        %2602 = vmatpush1.bf16.msra.mxu0 %v1919
        %2603 = vmatprep.subr.bf16.mxu0 %v1916
        %2604 = vmatpush1.bf16.msra.mxu0 %v1915
        %2605 = vmatprep.subr.bf16.mxu0 %v1976
        %2606 = vmatpush2.bf16.msra.mxu0 %v1975
        %2607 = vmatprep.subr.bf16.mxu0 %v1972
        %2608 = vmatpush2.bf16.msra.mxu0 %v1971
        %2609 = vmatprep.subr.bf16.mxu0 %v1968
        %2610 = vmatpush2.bf16.msra.mxu0 %v1967
        %2611 = vmatprep.subr.bf16.mxu0 %v1964
        %2612 = vmatpush2.bf16.msra.mxu0 %v1963
        %2613 = vmatprep.subr.bf16.mxu0 %v1960
        %2614 = vmatpush2.bf16.msra.mxu0 %v1959
        %2615 = vmatprep.subr.bf16.mxu0 %v1956
        %2616 = vmatpush2.bf16.msra.mxu0 %v1955
        %2617 = vmatprep.subr.bf16.mxu0 %v1952
        %2618 = vmatpush2.bf16.msra.mxu0 %v1951
        %2619 = vmatprep.subr.bf16.mxu0 %v1948
        %2620 = vmatpush2.bf16.msra.mxu0 %v1947
        %2621 = vmatprep.mubr.bf16.mxu0 %v1125
        %2622 = vmatmul.mubr.bf16.gmra.mxu0 %v1111
        %v2623 = vpop.f32.mrf.mxu0
        %v2624 = vadd.f32 %v1078, %v2623
        %v2625 = vpop.f32.mrf.mxu0
        %v2626 = vadd.f32 %v1082, %v2625
        %v2627 = vpop.f32.mrf.mxu0
        %v2628 = vpop.f32.mrf.mxu0
        %2629 = vdwg.mxu0
        %2630 = vmatprep.subr.bf16.mxu0 %v2008
        %2631 = vmatpush1.bf16.msra.mxu0 %v2007
        %2632 = vmatprep.subr.bf16.mxu0 %v2004
        %2633 = vmatpush1.bf16.msra.mxu0 %v2003
        %2634 = vmatprep.subr.bf16.mxu0 %v2000
        %2635 = vmatpush1.bf16.msra.mxu0 %v1999
        %2636 = vmatprep.subr.bf16.mxu0 %v1996
        %2637 = vmatpush1.bf16.msra.mxu0 %v1995
        %2638 = vmatprep.subr.bf16.mxu0 %v1992
        %2639 = vmatpush1.bf16.msra.mxu0 %v1991
        %2640 = vmatprep.subr.bf16.mxu0 %v1988
        %2641 = vmatpush1.bf16.msra.mxu0 %v1987
        %2642 = vmatprep.subr.bf16.mxu0 %v1984
        %2643 = vmatpush1.bf16.msra.mxu0 %v1983
        %2644 = vmatprep.subr.bf16.mxu0 %v1980
        %2645 = vmatpush1.bf16.msra.mxu0 %v1979
        %2646 = vmatprep.subr.bf16.mxu0 %v2040
        %2647 = vmatpush2.bf16.msra.mxu0 %v2039
        %2648 = vmatprep.subr.bf16.mxu0 %v2036
        %2649 = vmatpush2.bf16.msra.mxu0 %v2035
        %2650 = vmatprep.subr.bf16.mxu0 %v2032
        %2651 = vmatpush2.bf16.msra.mxu0 %v2031
        %2652 = vmatprep.subr.bf16.mxu0 %v2028
        %2653 = vmatpush2.bf16.msra.mxu0 %v2027
        %2654 = vmatprep.subr.bf16.mxu0 %v2024
        %2655 = vmatpush2.bf16.msra.mxu0 %v2023
        %2656 = vmatprep.subr.bf16.mxu0 %v2020
        %2657 = vmatpush2.bf16.msra.mxu0 %v2019
        %2658 = vmatprep.subr.bf16.mxu0 %v2016
        %2659 = vmatpush2.bf16.msra.mxu0 %v2015
        %2660 = vmatprep.subr.bf16.mxu0 %v2012
        %2661 = vmatpush2.bf16.msra.mxu0 %v2011
        %2662 = vmatprep.mubr.bf16.mxu0 %v1135
        %2663 = vmatmul.mubr.bf16.gmra.mxu0 %v1133
        %v2664 = vpop.f32.mrf.mxu0
        %v2665 = vadd.f32 %v2624, %v2664
        %v2666 = vpop.f32.mrf.mxu0
        %v2667 = vadd.f32 %v2626, %v2666
        %v2668 = vpop.f32.mrf.mxu0
        %v2669 = vpop.f32.mrf.mxu0
        %2670 = vdwg.mxu0
        %2671 = vmatprep.subr.bf16.mxu0 %v2072
        %2672 = vmatpush1.bf16.msra.mxu0 %v2071
        %2673 = vmatprep.subr.bf16.mxu0 %v2068
        %2674 = vmatpush1.bf16.msra.mxu0 %v2067
        %2675 = vmatprep.subr.bf16.mxu0 %v2064
        %2676 = vmatpush1.bf16.msra.mxu0 %v2063
        %2677 = vmatprep.subr.bf16.mxu0 %v2060
        %2678 = vmatpush1.bf16.msra.mxu0 %v2059
        %2679 = vmatprep.subr.bf16.mxu0 %v2056
        %2680 = vmatpush1.bf16.msra.mxu0 %v2055
        %2681 = vmatprep.subr.bf16.mxu0 %v2052
        %2682 = vmatpush1.bf16.msra.mxu0 %v2051
        %2683 = vmatprep.subr.bf16.mxu0 %v2048
        %2684 = vmatpush1.bf16.msra.mxu0 %v2047
        %2685 = vmatprep.subr.bf16.mxu0 %v2044
        %2686 = vmatpush1.bf16.msra.mxu0 %v2043
        %2687 = vmatprep.subr.bf16.mxu0 %v2104
        %2688 = vmatpush2.bf16.msra.mxu0 %v2103
        %2689 = vmatprep.subr.bf16.mxu0 %v2100
        %2690 = vmatpush2.bf16.msra.mxu0 %v2099
        %2691 = vmatprep.subr.bf16.mxu0 %v2096
        %2692 = vmatpush2.bf16.msra.mxu0 %v2095
        %2693 = vmatprep.subr.bf16.mxu0 %v2092
        %2694 = vmatpush2.bf16.msra.mxu0 %v2091
        %2695 = vmatprep.subr.bf16.mxu0 %v2088
        %2696 = vmatpush2.bf16.msra.mxu0 %v2087
        %2697 = vmatprep.subr.bf16.mxu0 %v2084
        %2698 = vmatpush2.bf16.msra.mxu0 %v2083
        %2699 = vmatprep.subr.bf16.mxu0 %v2080
        %2700 = vmatpush2.bf16.msra.mxu0 %v2079
        %2701 = vmatprep.subr.bf16.mxu0 %v2076
        %2702 = vmatpush2.bf16.msra.mxu0 %v2075
        %2703 = vmatprep.mubr.bf16.mxu0 %v1132
        %2704 = vmatmul.mubr.bf16.gmra.mxu0 %v1118
        %v2705 = vpop.f32.mrf.mxu0
        %v2706 = vadd.f32 %v2665, %v2705
        %v2707 = vpop.f32.mrf.mxu0
        %v2708 = vadd.f32 %v2667, %v2707
        %v2709 = vpop.f32.mrf.mxu0
        %v2710 = vpop.f32.mrf.mxu0
        %2711 = vdwg.mxu0
        %2712 = vmatprep.subr.bf16.mxu0 %v2136
        %2713 = vmatpush1.bf16.msra.mxu0 %v2135
        %2714 = vmatprep.subr.bf16.mxu0 %v2132
        %2715 = vmatpush1.bf16.msra.mxu0 %v2131
        %2716 = vmatprep.subr.bf16.mxu0 %v2128
        %2717 = vmatpush1.bf16.msra.mxu0 %v2127
        %2718 = vmatprep.subr.bf16.mxu0 %v2124
        %2719 = vmatpush1.bf16.msra.mxu0 %v2123
        %2720 = vmatprep.subr.bf16.mxu0 %v2120
        %2721 = vmatpush1.bf16.msra.mxu0 %v2119
        %2722 = vmatprep.subr.bf16.mxu0 %v2116
        %2723 = vmatpush1.bf16.msra.mxu0 %v2115
        %2724 = vmatprep.subr.bf16.mxu0 %v2112
        %2725 = vmatpush1.bf16.msra.mxu0 %v2111
        %2726 = vmatprep.subr.bf16.mxu0 %v2108
        %2727 = vmatpush1.bf16.msra.mxu0 %v2107
        %2728 = vmatprep.subr.bf16.mxu0 %v2168
        %2729 = vmatpush2.bf16.msra.mxu0 %v2167
        %2730 = vmatprep.subr.bf16.mxu0 %v2164
        %2731 = vmatpush2.bf16.msra.mxu0 %v2163
        %2732 = vmatprep.subr.bf16.mxu0 %v2160
        %2733 = vmatpush2.bf16.msra.mxu0 %v2159
        %2734 = vmatprep.subr.bf16.mxu0 %v2156
        %2735 = vmatpush2.bf16.msra.mxu0 %v2155
        %2736 = vmatprep.subr.bf16.mxu0 %v2152
        %2737 = vmatpush2.bf16.msra.mxu0 %v2151
        %2738 = vmatprep.subr.bf16.mxu0 %v2148
        %2739 = vmatpush2.bf16.msra.mxu0 %v2147
        %2740 = vmatprep.subr.bf16.mxu0 %v2144
        %2741 = vmatpush2.bf16.msra.mxu0 %v2143
        %2742 = vmatprep.subr.bf16.mxu0 %v2140
        %2743 = vmatpush2.bf16.msra.mxu0 %v2139
        %2744 = vmatprep.mubr.bf16.mxu0 %v1136
        %2745 = vmatmul.mubr.bf16.gmra.mxu0 %v1134
        %v2746 = vpop.f32.mrf.mxu0
        %v2747 = vadd.f32 %v2706, %v2746
        %v2748 = vpop.f32.mrf.mxu0
        %v2749 = vadd.f32 %v2708, %v2748
        %v2750 = vpop.f32.mrf.mxu0
        %v2751 = vpop.f32.mrf.mxu0
        %2752 = vdwg.mxu0
        %v2753 = vmax.f32 %v2583, 0.0
        %v2754 = vmax.f32 %v2585, 0.0
        %v2755 = vmax.f32 %v2747, 0.0
        %v2756 = vmax.f32 %v2749, 0.0
        %v2757 = vpack.c.bf16 %v2753, %v2753
        %v2758 = vpack.c.bf16 %v2754, %v2754
        %v2759 = vpack.c.bf16 %v2755, %v2755
        %v2760 = vpack.c.bf16 %v2756, %v2756
        %v2765 = vcombine.low %v2757, %v2758
        %v2766 = vcombine.low %v2759, %v2760
        %v2768 = vunpack.c.l.s4 1966171168
        %v2769 = vunpack.c.0.s8 %v2768
        %v2770 = vlaneseq
        %v2771 = vshrl.u32 %v2770, 7
        %v2772 = vsub.s32 %v2769, %v2771
        %v2773 = vrot.slane %v2765, %v2772
        %v2775 = vunpack.c.l.s4 1966171168
        %v2776 = vunpack.c.0.s8 %v2775
        %v2777 = vlaneseq
        %v2778 = vshrl.u32 %v2777, 7
        %v2779 = vsub.s32 %v2776, %v2778
        %v2780 = vrot.slane %v2766, %v2779
        %v2781 = vcombine.low %v2773, %v2780
        %v2783 = vunpack.c.l.s4 1966171168
        %v2784 = vunpack.c.0.s8 %v2783
        %v2785 = vlaneseq
        %v2786 = vshrl.u32 %v2785, 7
        %v2787 = vsub.s32 %v2784, %v2786
        %v2788 = vrot.slane %v2781, %v2787
        %2790 = vst [vmem:[%s806] sm:$0xf] %v2788
        %s2791 = smul.u32 4, %s21
        %p2792 = scmp.lt.s32.totalorder %s19, 1
        %s2793 = scalar_select %p2792, %s19, 1
        %p2794 = scmp.lt.s32.totalorder %s20, 0
        %s2795 = scalar_select %p2794, %s20, 0
        %p2796 = scmp.lt.s32.totalorder %s2791, 15
        %s2797 = scalar_select %p2796, %s2791, 15
        %s2798 = smul.addr %s2795, 16
        %s2799 = sadd.s32 %s2797, %s2798
        %s2800 = smul.addr %s2793, 16
        %s2801 = sadd.s32 %s2799, %s2800
        %s2802 = scalar_lea.vmem %s3, %s2801
        // Predicated region
        $region56: #{net_forward.13} parent=50 // pred_check
          %p2803 = pneg %p139
        $region57: #{net_forward.13} parent=50 // pred_check_branch
          %2805 = sbr.rel (%p2803) target = $region59
        $region58: #{net_forward.13} parent=50 // pred_region
          %s2806 = smul.u32 4, %s21
        $region59: #{net_forward.13} parent=50 // pred_fallthru
          _
      $region51: #{net_forward.13} parent=5 // pred_fallthru
        _
      %p2807 = scmp.le.s32.totalorder 2, %s9
      // Predicated region
      $region60: #{net_forward.13} parent=5 // pred_check
        %p2808 = pneg %p2807
      $region61: #{net_forward.13} parent=5 // pred_check_branch
        %2810 = sbr.rel (%p2808) target = $region63
      $region62: #{net_forward.13} parent=5 // pred_region
        %s2811 = ssub.s32 %s9, 2
        // Predicated region
        $region64: #{net_forward.13} parent=62 // pred_check
          %p2812 = pneg %p145
        $region65: #{net_forward.13} parent=62 // pred_check_branch
          %2814 = sbr.rel (%p2812) target = $region67
        $region66: #{net_forward.13} parent=62 // pred_region
          %s2815 = smul.u32 4, %s24
          %p2816 = scmp.lt.s32.totalorder %s22, 1
          %s2817 = scalar_select %p2816, %s22, 1
          %p2818 = scmp.lt.s32.totalorder %s23, 0
          %s2819 = scalar_select %p2818, %s23, 0
          %p2820 = scmp.lt.s32.totalorder %s2815, 15
          %s2821 = scalar_select %p2820, %s2815, 15
          %s2822 = smul.addr %s2819, 16
          %s2823 = sadd.s32 %s2821, %s2822
          %s2824 = smul.addr %s2817, 16
          %s2825 = sadd.s32 %s2823, %s2824
          %s2826 = scalar_lea.vmem %s3, %s2825
        $region67: #{net_forward.13} parent=62 // pred_fallthru
          _
      $region63: #{net_forward.13} parent=5 // pred_fallthru
        _
    $region6: #{net_forward.13} parent=1 // loop_footer
      %s13 = sadd.s32 1, %s9
    $region7: #{net_forward.13} parent=1 // loop_footer_branch
      %8 = sbr.rel target = $region3
    $region8: #{net_forward.13} parent=1 // loop_exit
      _

// kernel: net_forward.15
$region0: #{net_forward.15}
  #allocation0 [shape = 'u32[]', space=smem, size = 0x4, offset = 0x4, fixed_abs, tag = 'smem constant byte address 0x4 - core index']
  #allocation1 [shape = 'u32[144,128]{1,0:T(1,128)}', space=vmem, size = 0x12000, scoped, tag = 'internal scratch']
  %s0 = inlined_call_operand.vmem [shape: bf16[1,2,4096], index: 0, kind: input, shape index: {}]
  %s1 = inlined_call_operand.vmem [shape: bf16[1,4096,128], index: 1, kind: input, shape index: {}]
  %s2 = inlined_call_operand.vmem [shape: f32[1,1,128], index: 2, kind: input, shape index: {}]
  %s3 = inlined_call_operand.hbm [shape: f32[1,2,128], index: 3, kind: output, shape index: {}]
  %s4 = sld [smem:[#allocation0]]
  $region22: #{net_forward.15} parent=0
    _
  %s6 = ssub.s32 1, %s4
  %s7 = scalar_select 0, %s6, %s4
  $region1: #{net_forward.15} parent=0
    #allocation2 [shape = 'u8[1024]{0}', space=vmem, size = 0x400, scoped, tag = 'output window, operand 0, single buffered']
    #allocation3 [shape = 's32[1]{0}', space=sflag, size = 0x4, scoped, tag = 'scoped memory for net_forward.15']
    %8 = vsyncpa [#allocation3], 0
    // Predicated region
    $region2: #{net_forward.15} parent=1 // pred_check
      _
    $region3: #{net_forward.15} parent=1 // pred_check_branch
      %10 = sbr.rel (0) target = $region5
    $region4: #{net_forward.15} parent=1 // pred_region
      _
    $region5: #{net_forward.15} parent=1 // pred_fallthru
      _
    // Predicated region
    $region6: #{net_forward.15} parent=1 // pred_check
      _
    $region7: #{net_forward.15} parent=1 // pred_check_branch
      %12 = sbr.rel (0) target = $region9
    $region8: #{net_forward.15} parent=1 // pred_region
      _
    $region9: #{net_forward.15} parent=1 // pred_fallthru
      _
    // Predicated region
    $region10: #{net_forward.15} parent=1 // pred_check
      _
    $region11: #{net_forward.15} parent=1 // pred_check_branch
      %14 = sbr.rel (0) target = $region13
    $region12: #{net_forward.15} parent=1 // pred_region
      _
    $region13: #{net_forward.15} parent=1 // pred_fallthru
      _
    %v16 = vld [vmem:[%s0] sm:$0xff]
    %v17 = vld [vmem:[%s0 + $0x8] sm:$0xff]
    %v18 = vld [vmem:[%s0 + $0x10] sm:$0xff]
    %v19 = vld [vmem:[%s0 + $0x18] sm:$0xff]
    %v20 = vld [vmem:[%s1] sm:$0xf]
    %v21 = vld [vmem:[%s1 + $0x4] sm:$0xf]
    %v22 = vld [vmem:[%s1 + $0x8] sm:$0xf]
    %v23 = vld [vmem:[%s1 + $0xc] sm:$0xf]
    %v24 = vld [vmem:[%s1 + $0x10] sm:$0xf]
    %v25 = vld [vmem:[%s1 + $0x14] sm:$0xf]
    %v26 = vld [vmem:[%s1 + $0x18] sm:$0xf]
    %v27 = vld [vmem:[%s1 + $0x1c] sm:$0xf]
    %v28 = vld [vmem:[%s1 + $0x20] sm:$0xf]
    %v29 = vld [vmem:[%s1 + $0x24] sm:$0xf]
    %v30 = vld [vmem:[%s1 + $0x28] sm:$0xf]
    %v31 = vld [vmem:[%s1 + $0x2c] sm:$0xf]
    %v32 = vld [vmem:[%s1 + $0x30] sm:$0xf]
    %v33 = vld [vmem:[%s1 + $0x34] sm:$0xf]
    %v34 = vld [vmem:[%s1 + $0x38] sm:$0xf]
    %v35 = vld [vmem:[%s1 + $0x3c] sm:$0xf]
    %v36 = vld [vmem:[%s1 + $0x40] sm:$0xf]
    %v37 = vld [vmem:[%s1 + $0x44] sm:$0xf]
    %v38 = vld [vmem:[%s1 + $0x48] sm:$0xf]
    %v39 = vld [vmem:[%s1 + $0x4c] sm:$0xf]
    %v40 = vld [vmem:[%s1 + $0x50] sm:$0xf]
    %v41 = vld [vmem:[%s1 + $0x54] sm:$0xf]
    %v42 = vld [vmem:[%s1 + $0x58] sm:$0xf]
    %v43 = vld [vmem:[%s1 + $0x5c] sm:$0xf]
    %v44 = vld [vmem:[%s1 + $0x60] sm:$0xf]
    %v45 = vld [vmem:[%s1 + $0x64] sm:$0xf]
    %v46 = vld [vmem:[%s1 + $0x68] sm:$0xf]
    %v47 = vld [vmem:[%s1 + $0x6c] sm:$0xf]
    %v48 = vld [vmem:[%s1 + $0x70] sm:$0xf]
    %v49 = vld [vmem:[%s1 + $0x74] sm:$0xf]
    %v50 = vld [vmem:[%s1 + $0x78] sm:$0xf]
    %v51 = vld [vmem:[%s1 + $0x7c] sm:$0xf]
    %v52 = vld [vmem:[%s1 + $0x80] sm:$0xf]
    %v53 = vld [vmem:[%s1 + $0x84] sm:$0xf]
    %v54 = vld [vmem:[%s1 + $0x88] sm:$0xf]
    %v55 = vld [vmem:[%s1 + $0x8c] sm:$0xf]
    %v56 = vld [vmem:[%s1 + $0x90] sm:$0xf]
    %v57 = vld [vmem:[%s1 + $0x94] sm:$0xf]
    %v58 = vld [vmem:[%s1 + $0x98] sm:$0xf]
    %v59 = vld [vmem:[%s1 + $0x9c] sm:$0xf]
    %v60 = vld [vmem:[%s1 + $0xa0] sm:$0xf]
    %v61 = vld [vmem:[%s1 + $0xa4] sm:$0xf]
    %v62 = vld [vmem:[%s1 + $0xa8] sm:$0xf]
    %v63 = vld [vmem:[%s1 + $0xac] sm:$0xf]
    %v64 = vld [vmem:[%s1 + $0xb0] sm:$0xf]
    %v65 = vld [vmem:[%s1 + $0xb4] sm:$0xf]
    %v66 = vld [vmem:[%s1 + $0xb8] sm:$0xf]
    %v67 = vld [vmem:[%s1 + $0xbc] sm:$0xf]
    %v68 = vld [vmem:[%s1 + $0xc0] sm:$0xf]
    %v69 = vld [vmem:[%s1 + $0xc4] sm:$0xf]
    %v70 = vld [vmem:[%s1 + $0xc8] sm:$0xf]
    %v71 = vld [vmem:[%s1 + $0xcc] sm:$0xf]
    %v72 = vld [vmem:[%s1 + $0xd0] sm:$0xf]
    %v73 = vld [vmem:[%s1 + $0xd4] sm:$0xf]
    %v74 = vld [vmem:[%s1 + $0xd8] sm:$0xf]
    %v75 = vld [vmem:[%s1 + $0xdc] sm:$0xf]
    %v76 = vld [vmem:[%s1 + $0xe0] sm:$0xf]
    %v77 = vld [vmem:[%s1 + $0xe4] sm:$0xf]
    %v78 = vld [vmem:[%s1 + $0xe8] sm:$0xf]
    %v79 = vld [vmem:[%s1 + $0xec] sm:$0xf]
    %v80 = vld [vmem:[%s1 + $0xf0] sm:$0xf]
    %v81 = vld [vmem:[%s1 + $0xf4] sm:$0xf]
    %v82 = vld [vmem:[%s1 + $0xf8] sm:$0xf]
    %v83 = vld [vmem:[%s1 + $0xfc] sm:$0xf]
    %v84 = vld [vmem:[%s1 + $0x100] sm:$0xf]
    %v85 = vld [vmem:[%s1 + $0x104] sm:$0xf]
    %v86 = vld [vmem:[%s1 + $0x108] sm:$0xf]
    %v87 = vld [vmem:[%s1 + $0x10c] sm:$0xf]
    %v88 = vld [vmem:[%s1 + $0x110] sm:$0xf]
    %v89 = vld [vmem:[%s1 + $0x114] sm:$0xf]
    %v90 = vld [vmem:[%s1 + $0x118] sm:$0xf]
    %v91 = vld [vmem:[%s1 + $0x11c] sm:$0xf]
    %v92 = vld [vmem:[%s1 + $0x120] sm:$0xf]
    %v93 = vld [vmem:[%s1 + $0x124] sm:$0xf]
    %v94 = vld [vmem:[%s1 + $0x128] sm:$0xf]
    %v95 = vld [vmem:[%s1 + $0x12c] sm:$0xf]
    %v96 = vld [vmem:[%s1 + $0x130] sm:$0xf]
    %v97 = vld [vmem:[%s1 + $0x134] sm:$0xf]
    %v98 = vld [vmem:[%s1 + $0x138] sm:$0xf]
    %v99 = vld [vmem:[%s1 + $0x13c] sm:$0xf]
    %v100 = vld [vmem:[%s1 + $0x140] sm:$0xf]
    %v101 = vld [vmem:[%s1 + $0x144] sm:$0xf]
    %v102 = vld [vmem:[%s1 + $0x148] sm:$0xf]
    %v103 = vld [vmem:[%s1 + $0x14c] sm:$0xf]
    %v104 = vld [vmem:[%s1 + $0x150] sm:$0xf]
    %v105 = vld [vmem:[%s1 + $0x154] sm:$0xf]
    %v106 = vld [vmem:[%s1 + $0x158] sm:$0xf]
    %v107 = vld [vmem:[%s1 + $0x15c] sm:$0xf]
    %v108 = vld [vmem:[%s1 + $0x160] sm:$0xf]
    %v109 = vld [vmem:[%s1 + $0x164] sm:$0xf]
    %v110 = vld [vmem:[%s1 + $0x168] sm:$0xf]
    %v111 = vld [vmem:[%s1 + $0x16c] sm:$0xf]
    %v112 = vld [vmem:[%s1 + $0x170] sm:$0xf]
    %v113 = vld [vmem:[%s1 + $0x174] sm:$0xf]
    %v114 = vld [vmem:[%s1 + $0x178] sm:$0xf]
    %v115 = vld [vmem:[%s1 + $0x17c] sm:$0xf]
    %v116 = vld [vmem:[%s1 + $0x180] sm:$0xf]
    %v117 = vld [vmem:[%s1 + $0x184] sm:$0xf]
    %v118 = vld [vmem:[%s1 + $0x188] sm:$0xf]
    %v119 = vld [vmem:[%s1 + $0x18c] sm:$0xf]
    %v120 = vld [vmem:[%s1 + $0x190] sm:$0xf]
    %v121 = vld [vmem:[%s1 + $0x194] sm:$0xf]
    %v122 = vld [vmem:[%s1 + $0x198] sm:$0xf]
    %v123 = vld [vmem:[%s1 + $0x19c] sm:$0xf]
    %v124 = vld [vmem:[%s1 + $0x1a0] sm:$0xf]
    %v125 = vld [vmem:[%s1 + $0x1a4] sm:$0xf]
    %v126 = vld [vmem:[%s1 + $0x1a8] sm:$0xf]
    %v127 = vld [vmem:[%s1 + $0x1ac] sm:$0xf]
    %v128 = vld [vmem:[%s1 + $0x1b0] sm:$0xf]
    %v129 = vld [vmem:[%s1 + $0x1b4] sm:$0xf]
    %v130 = vld [vmem:[%s1 + $0x1b8] sm:$0xf]
    %v131 = vld [vmem:[%s1 + $0x1bc] sm:$0xf]
    %v132 = vld [vmem:[%s1 + $0x1c0] sm:$0xf]
    %v133 = vld [vmem:[%s1 + $0x1c4] sm:$0xf]
    %v134 = vld [vmem:[%s1 + $0x1c8] sm:$0xf]
    %v135 = vld [vmem:[%s1 + $0x1cc] sm:$0xf]
    %v136 = vld [vmem:[%s1 + $0x1d0] sm:$0xf]
    %v137 = vld [vmem:[%s1 + $0x1d4] sm:$0xf]
    %v138 = vld [vmem:[%s1 + $0x1d8] sm:$0xf]
    %v139 = vld [vmem:[%s1 + $0x1dc] sm:$0xf]
    %v140 = vld [vmem:[%s1 + $0x1e0] sm:$0xf]
    %v141 = vld [vmem:[%s1 + $0x1e4] sm:$0xf]
    %v142 = vld [vmem:[%s1 + $0x1e8] sm:$0xf]
    %v143 = vld [vmem:[%s1 + $0x1ec] sm:$0xf]
    %v144 = vld [vmem:[%s1 + $0x1f0] sm:$0xf]
    %v145 = vld [vmem:[%s1 + $0x1f4] sm:$0xf]
    %v146 = vld [vmem:[%s1 + $0x1f8] sm:$0xf]
    %v147 = vld [vmem:[%s1 + $0x1fc] sm:$0xf]
    %v148 = vld [vmem:[%s1 + $0x200] sm:$0xf]
    %v149 = vld [vmem:[%s1 + $0x204] sm:$0xf]
    %v150 = vld [vmem:[%s1 + $0x208] sm:$0xf]
    %v151 = vld [vmem:[%s1 + $0x20c] sm:$0xf]
    %v152 = vld [vmem:[%s1 + $0x210] sm:$0xf]
    %v153 = vld [vmem:[%s1 + $0x214] sm:$0xf]
    %v154 = vld [vmem:[%s1 + $0x218] sm:$0xf]
    %v155 = vld [vmem:[%s1 + $0x21c] sm:$0xf]
    %v156 = vld [vmem:[%s1 + $0x220] sm:$0xf]
    %v157 = vld [vmem:[%s1 + $0x224] sm:$0xf]
    %v158 = vld [vmem:[%s1 + $0x228] sm:$0xf]
    %v159 = vld [vmem:[%s1 + $0x22c] sm:$0xf]
    %v160 = vld [vmem:[%s1 + $0x230] sm:$0xf]
    %v161 = vld [vmem:[%s1 + $0x234] sm:$0xf]
    %v162 = vld [vmem:[%s1 + $0x238] sm:$0xf]
    %v163 = vld [vmem:[%s1 + $0x23c] sm:$0xf]
    %v164 = vld [vmem:[%s1 + $0x240] sm:$0xf]
    %v165 = vld [vmem:[%s1 + $0x244] sm:$0xf]
    %v166 = vld [vmem:[%s1 + $0x248] sm:$0xf]
    %v167 = vld [vmem:[%s1 + $0x24c] sm:$0xf]
    %v168 = vld [vmem:[%s1 + $0x250] sm:$0xf]
    %v169 = vld [vmem:[%s1 + $0x254] sm:$0xf]
    %v170 = vld [vmem:[%s1 + $0x258] sm:$0xf]
    %v171 = vld [vmem:[%s1 + $0x25c] sm:$0xf]
    %v172 = vld [vmem:[%s1 + $0x260] sm:$0xf]
    %v173 = vld [vmem:[%s1 + $0x264] sm:$0xf]
    %v174 = vld [vmem:[%s1 + $0x268] sm:$0xf]
    %v175 = vld [vmem:[%s1 + $0x26c] sm:$0xf]
    %v176 = vld [vmem:[%s1 + $0x270] sm:$0xf]
    %v177 = vld [vmem:[%s1 + $0x274] sm:$0xf]
    %v178 = vld [vmem:[%s1 + $0x278] sm:$0xf]
    %v179 = vld [vmem:[%s1 + $0x27c] sm:$0xf]
    %v180 = vld [vmem:[%s1 + $0x280] sm:$0xf]
    %v181 = vld [vmem:[%s1 + $0x284] sm:$0xf]
    %v182 = vld [vmem:[%s1 + $0x288] sm:$0xf]
    %v183 = vld [vmem:[%s1 + $0x28c] sm:$0xf]
    %v184 = vld [vmem:[%s1 + $0x290] sm:$0xf]
    %v185 = vld [vmem:[%s1 + $0x294] sm:$0xf]
    %v186 = vld [vmem:[%s1 + $0x298] sm:$0xf]
    %v187 = vld [vmem:[%s1 + $0x29c] sm:$0xf]
    %v188 = vld [vmem:[%s1 + $0x2a0] sm:$0xf]
    %v189 = vld [vmem:[%s1 + $0x2a4] sm:$0xf]
    %v190 = vld [vmem:[%s1 + $0x2a8] sm:$0xf]
    %v191 = vld [vmem:[%s1 + $0x2ac] sm:$0xf]
    %v192 = vld [vmem:[%s1 + $0x2b0] sm:$0xf]
    %v193 = vld [vmem:[%s1 + $0x2b4] sm:$0xf]
    %v194 = vld [vmem:[%s1 + $0x2b8] sm:$0xf]
    %v195 = vld [vmem:[%s1 + $0x2bc] sm:$0xf]
    %v196 = vld [vmem:[%s1 + $0x2c0] sm:$0xf]
    %v197 = vld [vmem:[%s1 + $0x2c4] sm:$0xf]
    %v198 = vld [vmem:[%s1 + $0x2c8] sm:$0xf]
    %v199 = vld [vmem:[%s1 + $0x2cc] sm:$0xf]
    %v200 = vld [vmem:[%s1 + $0x2d0] sm:$0xf]
    %v201 = vld [vmem:[%s1 + $0x2d4] sm:$0xf]
    %v202 = vld [vmem:[%s1 + $0x2d8] sm:$0xf]
    %v203 = vld [vmem:[%s1 + $0x2dc] sm:$0xf]
    %v204 = vld [vmem:[%s1 + $0x2e0] sm:$0xf]
    %v205 = vld [vmem:[%s1 + $0x2e4] sm:$0xf]
    %v206 = vld [vmem:[%s1 + $0x2e8] sm:$0xf]
    %v207 = vld [vmem:[%s1 + $0x2ec] sm:$0xf]
    %v208 = vld [vmem:[%s1 + $0x2f0] sm:$0xf]
    %v209 = vld [vmem:[%s1 + $0x2f4] sm:$0xf]
    %v210 = vld [vmem:[%s1 + $0x2f8] sm:$0xf]
    %v211 = vld [vmem:[%s1 + $0x2fc] sm:$0xf]
    %v212 = vld [vmem:[%s1 + $0x300] sm:$0xf]
    %v213 = vld [vmem:[%s1 + $0x304] sm:$0xf]
    %v214 = vld [vmem:[%s1 + $0x308] sm:$0xf]
    %v215 = vld [vmem:[%s1 + $0x30c] sm:$0xf]
    %v216 = vld [vmem:[%s1 + $0x310] sm:$0xf]
    %v217 = vld [vmem:[%s1 + $0x314] sm:$0xf]
    %v218 = vld [vmem:[%s1 + $0x318] sm:$0xf]
    %v219 = vld [vmem:[%s1 + $0x31c] sm:$0xf]
    %v220 = vld [vmem:[%s1 + $0x320] sm:$0xf]
    %v221 = vld [vmem:[%s1 + $0x324] sm:$0xf]
    %v222 = vld [vmem:[%s1 + $0x328] sm:$0xf]
    %v223 = vld [vmem:[%s1 + $0x32c] sm:$0xf]
    %v224 = vld [vmem:[%s1 + $0x330] sm:$0xf]
    %v225 = vld [vmem:[%s1 + $0x334] sm:$0xf]
    %v226 = vld [vmem:[%s1 + $0x338] sm:$0xf]
    %v227 = vld [vmem:[%s1 + $0x33c] sm:$0xf]
    %v228 = vld [vmem:[%s1 + $0x340] sm:$0xf]
    %v229 = vld [vmem:[%s1 + $0x344] sm:$0xf]
    %v230 = vld [vmem:[%s1 + $0x348] sm:$0xf]
    %v231 = vld [vmem:[%s1 + $0x34c] sm:$0xf]
    %v232 = vld [vmem:[%s1 + $0x350] sm:$0xf]
    %v233 = vld [vmem:[%s1 + $0x354] sm:$0xf]
    %v234 = vld [vmem:[%s1 + $0x358] sm:$0xf]
    %v235 = vld [vmem:[%s1 + $0x35c] sm:$0xf]
    %v236 = vld [vmem:[%s1 + $0x360] sm:$0xf]
    %v237 = vld [vmem:[%s1 + $0x364] sm:$0xf]
    %v238 = vld [vmem:[%s1 + $0x368] sm:$0xf]
    %v239 = vld [vmem:[%s1 + $0x36c] sm:$0xf]
    %v240 = vld [vmem:[%s1 + $0x370] sm:$0xf]
    %v241 = vld [vmem:[%s1 + $0x374] sm:$0xf]
    %v242 = vld [vmem:[%s1 + $0x378] sm:$0xf]
    %v243 = vld [vmem:[%s1 + $0x37c] sm:$0xf]
    %v244 = vld [vmem:[%s1 + $0x380] sm:$0xf]
    %v245 = vld [vmem:[%s1 + $0x384] sm:$0xf]
    %v246 = vld [vmem:[%s1 + $0x388] sm:$0xf]
    %v247 = vld [vmem:[%s1 + $0x38c] sm:$0xf]
    %v248 = vld [vmem:[%s1 + $0x390] sm:$0xf]
    %v249 = vld [vmem:[%s1 + $0x394] sm:$0xf]
    %v250 = vld [vmem:[%s1 + $0x398] sm:$0xf]
    %v251 = vld [vmem:[%s1 + $0x39c] sm:$0xf]
    %v252 = vld [vmem:[%s1 + $0x3a0] sm:$0xf]
    %v253 = vld [vmem:[%s1 + $0x3a4] sm:$0xf]
    %v254 = vld [vmem:[%s1 + $0x3a8] sm:$0xf]
    %v255 = vld [vmem:[%s1 + $0x3ac] sm:$0xf]
    %v256 = vld [vmem:[%s1 + $0x3b0] sm:$0xf]
    %v257 = vld [vmem:[%s1 + $0x3b4] sm:$0xf]
    %v258 = vld [vmem:[%s1 + $0x3b8] sm:$0xf]
    %v259 = vld [vmem:[%s1 + $0x3bc] sm:$0xf]
    %v260 = vld [vmem:[%s1 + $0x3c0] sm:$0xf]
    %v261 = vld [vmem:[%s1 + $0x3c4] sm:$0xf]
    %v262 = vld [vmem:[%s1 + $0x3c8] sm:$0xf]
    %v263 = vld [vmem:[%s1 + $0x3cc] sm:$0xf]
    %v264 = vld [vmem:[%s1 + $0x3d0] sm:$0xf]
    %v265 = vld [vmem:[%s1 + $0x3d4] sm:$0xf]
    %v266 = vld [vmem:[%s1 + $0x3d8] sm:$0xf]
    %v267 = vld [vmem:[%s1 + $0x3dc] sm:$0xf]
    %v268 = vld [vmem:[%s1 + $0x3e0] sm:$0xf]
    %v269 = vld [vmem:[%s1 + $0x3e4] sm:$0xf]
    %v270 = vld [vmem:[%s1 + $0x3e8] sm:$0xf]
    %v271 = vld [vmem:[%s1 + $0x3ec] sm:$0xf]
    %v272 = vld [vmem:[%s1 + $0x3f0] sm:$0xf]
    %v273 = vld [vmem:[%s1 + $0x3f4] sm:$0xf]
    %v274 = vld [vmem:[%s1 + $0x3f8] sm:$0xf]
    %v275 = vld [vmem:[%s1 + $0x3fc] sm:$0xf]
    %v276 = vld [vmem:[%s1 + $0x400] sm:$0xf]
    %v277 = vld [vmem:[%s1 + $0x404] sm:$0xf]
    %v278 = vld [vmem:[%s1 + $0x408] sm:$0xf]
    %v279 = vld [vmem:[%s1 + $0x40c] sm:$0xf]
    %v280 = vld [vmem:[%s1 + $0x410] sm:$0xf]
    %v281 = vld [vmem:[%s1 + $0x414] sm:$0xf]
    %v282 = vld [vmem:[%s1 + $0x418] sm:$0xf]
    %v283 = vld [vmem:[%s1 + $0x41c] sm:$0xf]
    %v284 = vld [vmem:[%s1 + $0x420] sm:$0xf]
    %v285 = vld [vmem:[%s1 + $0x424] sm:$0xf]
    %v286 = vld [vmem:[%s1 + $0x428] sm:$0xf]
    %v287 = vld [vmem:[%s1 + $0x42c] sm:$0xf]
    %v288 = vld [vmem:[%s1 + $0x430] sm:$0xf]
    %v289 = vld [vmem:[%s1 + $0x434] sm:$0xf]
    %v290 = vld [vmem:[%s1 + $0x438] sm:$0xf]
    %v291 = vld [vmem:[%s1 + $0x43c] sm:$0xf]
    %v292 = vld [vmem:[%s1 + $0x440] sm:$0xf]
    %v293 = vld [vmem:[%s1 + $0x444] sm:$0xf]
    %v294 = vld [vmem:[%s1 + $0x448] sm:$0xf]
    %v295 = vld [vmem:[%s1 + $0x44c] sm:$0xf]
    %v296 = vld [vmem:[%s1 + $0x450] sm:$0xf]
    %v297 = vld [vmem:[%s1 + $0x454] sm:$0xf]
    %v298 = vld [vmem:[%s1 + $0x458] sm:$0xf]
    %v299 = vld [vmem:[%s1 + $0x45c] sm:$0xf]
    %v300 = vld [vmem:[%s1 + $0x460] sm:$0xf]
    %v301 = vld [vmem:[%s1 + $0x464] sm:$0xf]
    %v302 = vld [vmem:[%s1 + $0x468] sm:$0xf]
    %v303 = vld [vmem:[%s1 + $0x46c] sm:$0xf]
    %v304 = vld [vmem:[%s1 + $0x470] sm:$0xf]
    %v305 = vld [vmem:[%s1 + $0x474] sm:$0xf]
    %v306 = vld [vmem:[%s1 + $0x478] sm:$0xf]
    %v307 = vld [vmem:[%s1 + $0x47c] sm:$0xf]
    %v308 = vld [vmem:[%s1 + $0x480] sm:$0xf]
    %v309 = vld [vmem:[%s1 + $0x484] sm:$0xf]
    %v310 = vld [vmem:[%s1 + $0x488] sm:$0xf]
    %v311 = vld [vmem:[%s1 + $0x48c] sm:$0xf]
    %v312 = vld [vmem:[%s1 + $0x490] sm:$0xf]
    %v313 = vld [vmem:[%s1 + $0x494] sm:$0xf]
    %v314 = vld [vmem:[%s1 + $0x498] sm:$0xf]
    %v315 = vld [vmem:[%s1 + $0x49c] sm:$0xf]
    %v316 = vld [vmem:[%s1 + $0x4a0] sm:$0xf]
    %v317 = vld [vmem:[%s1 + $0x4a4] sm:$0xf]
    %v318 = vld [vmem:[%s1 + $0x4a8] sm:$0xf]
    %v319 = vld [vmem:[%s1 + $0x4ac] sm:$0xf]
    %v320 = vld [vmem:[%s1 + $0x4b0] sm:$0xf]
    %v321 = vld [vmem:[%s1 + $0x4b4] sm:$0xf]
    %v322 = vld [vmem:[%s1 + $0x4b8] sm:$0xf]
    %v323 = vld [vmem:[%s1 + $0x4bc] sm:$0xf]
    %v324 = vld [vmem:[%s1 + $0x4c0] sm:$0xf]
    %v325 = vld [vmem:[%s1 + $0x4c4] sm:$0xf]
    %v326 = vld [vmem:[%s1 + $0x4c8] sm:$0xf]
    %v327 = vld [vmem:[%s1 + $0x4cc] sm:$0xf]
    %v328 = vld [vmem:[%s1 + $0x4d0] sm:$0xf]
    %v329 = vld [vmem:[%s1 + $0x4d4] sm:$0xf]
    %v330 = vld [vmem:[%s1 + $0x4d8] sm:$0xf]
    %v331 = vld [vmem:[%s1 + $0x4dc] sm:$0xf]
    %v332 = vld [vmem:[%s1 + $0x4e0] sm:$0xf]
    %v333 = vld [vmem:[%s1 + $0x4e4] sm:$0xf]
    %v334 = vld [vmem:[%s1 + $0x4e8] sm:$0xf]
    %v335 = vld [vmem:[%s1 + $0x4ec] sm:$0xf]
    %v336 = vld [vmem:[%s1 + $0x4f0] sm:$0xf]
    %v337 = vld [vmem:[%s1 + $0x4f4] sm:$0xf]
    %v338 = vld [vmem:[%s1 + $0x4f8] sm:$0xf]
    %v339 = vld [vmem:[%s1 + $0x4fc] sm:$0xf]
    %v340 = vld [vmem:[%s1 + $0x500] sm:$0xf]
    %v341 = vld [vmem:[%s1 + $0x504] sm:$0xf]
    %v342 = vld [vmem:[%s1 + $0x508] sm:$0xf]
    %v343 = vld [vmem:[%s1 + $0x50c] sm:$0xf]
    %v344 = vld [vmem:[%s1 + $0x510] sm:$0xf]
    %v345 = vld [vmem:[%s1 + $0x514] sm:$0xf]
    %v346 = vld [vmem:[%s1 + $0x518] sm:$0xf]
    %v347 = vld [vmem:[%s1 + $0x51c] sm:$0xf]
    %v348 = vld [vmem:[%s1 + $0x520] sm:$0xf]
    %v349 = vld [vmem:[%s1 + $0x524] sm:$0xf]
    %v350 = vld [vmem:[%s1 + $0x528] sm:$0xf]
    %v351 = vld [vmem:[%s1 + $0x52c] sm:$0xf]
    %v352 = vld [vmem:[%s1 + $0x530] sm:$0xf]
    %v353 = vld [vmem:[%s1 + $0x534] sm:$0xf]
    %v354 = vld [vmem:[%s1 + $0x538] sm:$0xf]
    %v355 = vld [vmem:[%s1 + $0x53c] sm:$0xf]
    %v356 = vld [vmem:[%s1 + $0x540] sm:$0xf]
    %v357 = vld [vmem:[%s1 + $0x544] sm:$0xf]
    %v358 = vld [vmem:[%s1 + $0x548] sm:$0xf]
    %v359 = vld [vmem:[%s1 + $0x54c] sm:$0xf]
    %v360 = vld [vmem:[%s1 + $0x550] sm:$0xf]
    %v361 = vld [vmem:[%s1 + $0x554] sm:$0xf]
    %v362 = vld [vmem:[%s1 + $0x558] sm:$0xf]
    %v363 = vld [vmem:[%s1 + $0x55c] sm:$0xf]
    %v364 = vld [vmem:[%s1 + $0x560] sm:$0xf]
    %v365 = vld [vmem:[%s1 + $0x564] sm:$0xf]
    %v366 = vld [vmem:[%s1 + $0x568] sm:$0xf]
    %v367 = vld [vmem:[%s1 + $0x56c] sm:$0xf]
    %v368 = vld [vmem:[%s1 + $0x570] sm:$0xf]
    %v369 = vld [vmem:[%s1 + $0x574] sm:$0xf]
    %v370 = vld [vmem:[%s1 + $0x578] sm:$0xf]
    %v371 = vld [vmem:[%s1 + $0x57c] sm:$0xf]
    %v372 = vld [vmem:[%s1 + $0x580] sm:$0xf]
    %v373 = vld [vmem:[%s1 + $0x584] sm:$0xf]
    %v374 = vld [vmem:[%s1 + $0x588] sm:$0xf]
    %v375 = vld [vmem:[%s1 + $0x58c] sm:$0xf]
    %v376 = vld [vmem:[%s1 + $0x590] sm:$0xf]
    %v377 = vld [vmem:[%s1 + $0x594] sm:$0xf]
    %v378 = vld [vmem:[%s1 + $0x598] sm:$0xf]
    %v379 = vld [vmem:[%s1 + $0x59c] sm:$0xf]
    %v380 = vld [vmem:[%s1 + $0x5a0] sm:$0xf]
    %v381 = vld [vmem:[%s1 + $0x5a4] sm:$0xf]
    %v382 = vld [vmem:[%s1 + $0x5a8] sm:$0xf]
    %v383 = vld [vmem:[%s1 + $0x5ac] sm:$0xf]
    %v384 = vld [vmem:[%s1 + $0x5b0] sm:$0xf]
    %v385 = vld [vmem:[%s1 + $0x5b4] sm:$0xf]
    %v386 = vld [vmem:[%s1 + $0x5b8] sm:$0xf]
    %v387 = vld [vmem:[%s1 + $0x5bc] sm:$0xf]
    %v388 = vld [vmem:[%s1 + $0x5c0] sm:$0xf]
    %v389 = vld [vmem:[%s1 + $0x5c4] sm:$0xf]
    %v390 = vld [vmem:[%s1 + $0x5c8] sm:$0xf]
    %v391 = vld [vmem:[%s1 + $0x5cc] sm:$0xf]
    %v392 = vld [vmem:[%s1 + $0x5d0] sm:$0xf]
    %v393 = vld [vmem:[%s1 + $0x5d4] sm:$0xf]
    %v394 = vld [vmem:[%s1 + $0x5d8] sm:$0xf]
    %v395 = vld [vmem:[%s1 + $0x5dc] sm:$0xf]
    %v396 = vld [vmem:[%s1 + $0x5e0] sm:$0xf]
    %v397 = vld [vmem:[%s1 + $0x5e4] sm:$0xf]
    %v398 = vld [vmem:[%s1 + $0x5e8] sm:$0xf]
    %v399 = vld [vmem:[%s1 + $0x5ec] sm:$0xf]
    %v400 = vld [vmem:[%s1 + $0x5f0] sm:$0xf]
    %v401 = vld [vmem:[%s1 + $0x5f4] sm:$0xf]
    %v402 = vld [vmem:[%s1 + $0x5f8] sm:$0xf]
    %v403 = vld [vmem:[%s1 + $0x5fc] sm:$0xf]
    %v404 = vld [vmem:[%s1 + $0x600] sm:$0xf]
    %v405 = vld [vmem:[%s1 + $0x604] sm:$0xf]
    %v406 = vld [vmem:[%s1 + $0x608] sm:$0xf]
    %v407 = vld [vmem:[%s1 + $0x60c] sm:$0xf]
    %v408 = vld [vmem:[%s1 + $0x610] sm:$0xf]
    %v409 = vld [vmem:[%s1 + $0x614] sm:$0xf]
    %v410 = vld [vmem:[%s1 + $0x618] sm:$0xf]
    %v411 = vld [vmem:[%s1 + $0x61c] sm:$0xf]
    %v412 = vld [vmem:[%s1 + $0x620] sm:$0xf]
    %v413 = vld [vmem:[%s1 + $0x624] sm:$0xf]
    %v414 = vld [vmem:[%s1 + $0x628] sm:$0xf]
    %v415 = vld [vmem:[%s1 + $0x62c] sm:$0xf]
    %v416 = vld [vmem:[%s1 + $0x630] sm:$0xf]
    %v417 = vld [vmem:[%s1 + $0x634] sm:$0xf]
    %v418 = vld [vmem:[%s1 + $0x638] sm:$0xf]
    %v419 = vld [vmem:[%s1 + $0x63c] sm:$0xf]
    %v420 = vld [vmem:[%s1 + $0x640] sm:$0xf]
    %v421 = vld [vmem:[%s1 + $0x644] sm:$0xf]
    %v422 = vld [vmem:[%s1 + $0x648] sm:$0xf]
    %v423 = vld [vmem:[%s1 + $0x64c] sm:$0xf]
    %v424 = vld [vmem:[%s1 + $0x650] sm:$0xf]
    %v425 = vld [vmem:[%s1 + $0x654] sm:$0xf]
    %v426 = vld [vmem:[%s1 + $0x658] sm:$0xf]
    %v427 = vld [vmem:[%s1 + $0x65c] sm:$0xf]
    %v428 = vld [vmem:[%s1 + $0x660] sm:$0xf]
    %v429 = vld [vmem:[%s1 + $0x664] sm:$0xf]
    %v430 = vld [vmem:[%s1 + $0x668] sm:$0xf]
    %v431 = vld [vmem:[%s1 + $0x66c] sm:$0xf]
    %v432 = vld [vmem:[%s1 + $0x670] sm:$0xf]
    %v433 = vld [vmem:[%s1 + $0x674] sm:$0xf]
    %v434 = vld [vmem:[%s1 + $0x678] sm:$0xf]
    %v435 = vld [vmem:[%s1 + $0x67c] sm:$0xf]
    %v436 = vld [vmem:[%s1 + $0x680] sm:$0xf]
    %v437 = vld [vmem:[%s1 + $0x684] sm:$0xf]
    %v438 = vld [vmem:[%s1 + $0x688] sm:$0xf]
    %v439 = vld [vmem:[%s1 + $0x68c] sm:$0xf]
    %v440 = vld [vmem:[%s1 + $0x690] sm:$0xf]
    %v441 = vld [vmem:[%s1 + $0x694] sm:$0xf]
    %v442 = vld [vmem:[%s1 + $0x698] sm:$0xf]
    %v443 = vld [vmem:[%s1 + $0x69c] sm:$0xf]
    %v444 = vld [vmem:[%s1 + $0x6a0] sm:$0xf]
    %v445 = vld [vmem:[%s1 + $0x6a4] sm:$0xf]
    %v446 = vld [vmem:[%s1 + $0x6a8] sm:$0xf]
    %v447 = vld [vmem:[%s1 + $0x6ac] sm:$0xf]
    %v448 = vld [vmem:[%s1 + $0x6b0] sm:$0xf]
    %v449 = vld [vmem:[%s1 + $0x6b4] sm:$0xf]
    %v450 = vld [vmem:[%s1 + $0x6b8] sm:$0xf]
    %v451 = vld [vmem:[%s1 + $0x6bc] sm:$0xf]
    %v452 = vld [vmem:[%s1 + $0x6c0] sm:$0xf]
    %v453 = vld [vmem:[%s1 + $0x6c4] sm:$0xf]
    %v454 = vld [vmem:[%s1 + $0x6c8] sm:$0xf]
    %v455 = vld [vmem:[%s1 + $0x6cc] sm:$0xf]
    %v456 = vld [vmem:[%s1 + $0x6d0] sm:$0xf]
    %v457 = vld [vmem:[%s1 + $0x6d4] sm:$0xf]
    %v458 = vld [vmem:[%s1 + $0x6d8] sm:$0xf]
    %v459 = vld [vmem:[%s1 + $0x6dc] sm:$0xf]
    %v460 = vld [vmem:[%s1 + $0x6e0] sm:$0xf]
    %v461 = vld [vmem:[%s1 + $0x6e4] sm:$0xf]
    %v462 = vld [vmem:[%s1 + $0x6e8] sm:$0xf]
    %v463 = vld [vmem:[%s1 + $0x6ec] sm:$0xf]
    %v464 = vld [vmem:[%s1 + $0x6f0] sm:$0xf]
    %v465 = vld [vmem:[%s1 + $0x6f4] sm:$0xf]
    %v466 = vld [vmem:[%s1 + $0x6f8] sm:$0xf]
    %v467 = vld [vmem:[%s1 + $0x6fc] sm:$0xf]
    %v468 = vld [vmem:[%s1 + $0x700] sm:$0xf]
    %v469 = vld [vmem:[%s1 + $0x704] sm:$0xf]
    %v470 = vld [vmem:[%s1 + $0x708] sm:$0xf]
    %v471 = vld [vmem:[%s1 + $0x70c] sm:$0xf]
    %v472 = vld [vmem:[%s1 + $0x710] sm:$0xf]
    %v473 = vld [vmem:[%s1 + $0x714] sm:$0xf]
    %v474 = vld [vmem:[%s1 + $0x718] sm:$0xf]
    %v475 = vld [vmem:[%s1 + $0x71c] sm:$0xf]
    %v476 = vld [vmem:[%s1 + $0x720] sm:$0xf]
    %v477 = vld [vmem:[%s1 + $0x724] sm:$0xf]
    %v478 = vld [vmem:[%s1 + $0x728] sm:$0xf]
    %v479 = vld [vmem:[%s1 + $0x72c] sm:$0xf]
    %v480 = vld [vmem:[%s1 + $0x730] sm:$0xf]
    %v481 = vld [vmem:[%s1 + $0x734] sm:$0xf]
    %v482 = vld [vmem:[%s1 + $0x738] sm:$0xf]
    %v483 = vld [vmem:[%s1 + $0x73c] sm:$0xf]
    %v484 = vld [vmem:[%s1 + $0x740] sm:$0xf]
    %v485 = vld [vmem:[%s1 + $0x744] sm:$0xf]
    %v486 = vld [vmem:[%s1 + $0x748] sm:$0xf]
    %v487 = vld [vmem:[%s1 + $0x74c] sm:$0xf]
    %v488 = vld [vmem:[%s1 + $0x750] sm:$0xf]
    %v489 = vld [vmem:[%s1 + $0x754] sm:$0xf]
    %v490 = vld [vmem:[%s1 + $0x758] sm:$0xf]
    %v491 = vld [vmem:[%s1 + $0x75c] sm:$0xf]
    %v492 = vld [vmem:[%s1 + $0x760] sm:$0xf]
    %v493 = vld [vmem:[%s1 + $0x764] sm:$0xf]
    %v494 = vld [vmem:[%s1 + $0x768] sm:$0xf]
    %v495 = vld [vmem:[%s1 + $0x76c] sm:$0xf]
    %v496 = vld [vmem:[%s1 + $0x770] sm:$0xf]
    %v497 = vld [vmem:[%s1 + $0x774] sm:$0xf]
    %v498 = vld [vmem:[%s1 + $0x778] sm:$0xf]
    %v499 = vld [vmem:[%s1 + $0x77c] sm:$0xf]
    %v500 = vld [vmem:[%s1 + $0x780] sm:$0xf]
    %v501 = vld [vmem:[%s1 + $0x784] sm:$0xf]
    %v502 = vld [vmem:[%s1 + $0x788] sm:$0xf]
    %v503 = vld [vmem:[%s1 + $0x78c] sm:$0xf]
    %v504 = vld [vmem:[%s1 + $0x790] sm:$0xf]
    %v505 = vld [vmem:[%s1 + $0x794] sm:$0xf]
    %v506 = vld [vmem:[%s1 + $0x798] sm:$0xf]
    %v507 = vld [vmem:[%s1 + $0x79c] sm:$0xf]
    %v508 = vld [vmem:[%s1 + $0x7a0] sm:$0xf]
    %v509 = vld [vmem:[%s1 + $0x7a4] sm:$0xf]
    %v510 = vld [vmem:[%s1 + $0x7a8] sm:$0xf]
    %v511 = vld [vmem:[%s1 + $0x7ac] sm:$0xf]
    %v512 = vld [vmem:[%s1 + $0x7b0] sm:$0xf]
    %v513 = vld [vmem:[%s1 + $0x7b4] sm:$0xf]
    %v514 = vld [vmem:[%s1 + $0x7b8] sm:$0xf]
    %v515 = vld [vmem:[%s1 + $0x7bc] sm:$0xf]
    %v516 = vld [vmem:[%s1 + $0x7c0] sm:$0xf]
    %v517 = vld [vmem:[%s1 + $0x7c4] sm:$0xf]
    %v518 = vld [vmem:[%s1 + $0x7c8] sm:$0xf]
    %v519 = vld [vmem:[%s1 + $0x7cc] sm:$0xf]
    %v520 = vld [vmem:[%s1 + $0x7d0] sm:$0xf]
    %v521 = vld [vmem:[%s1 + $0x7d4] sm:$0xf]
    %v522 = vld [vmem:[%s1 + $0x7d8] sm:$0xf]
    %v523 = vld [vmem:[%s1 + $0x7dc] sm:$0xf]
    %v524 = vld [vmem:[%s1 + $0x7e0] sm:$0xf]
    %v525 = vld [vmem:[%s1 + $0x7e4] sm:$0xf]
    %v526 = vld [vmem:[%s1 + $0x7e8] sm:$0xf]
    %v527 = vld [vmem:[%s1 + $0x7ec] sm:$0xf]
    %v528 = vld [vmem:[%s1 + $0x7f0] sm:$0xf]
    %v529 = vld [vmem:[%s1 + $0x7f4] sm:$0xf]
    %v530 = vld [vmem:[%s1 + $0x7f8] sm:$0xf]
    %v531 = vld [vmem:[%s1 + $0x7fc] sm:$0xf]
    %v532 = vld [vmem:[%s2] sm:$0x1]
    %v534 = vlaneseq
    %v535 = vshrl.u32 %v534, 7
    %v536 = vsub.s32 0, %v535
    %v537 = vrot.slane %v532, %v536
    %v543 = vcombine.high %v16, %v16
    %v545 = vunpack.c.l.s4 1966171168
    %v546 = vunpack.c.0.s8 %v545
    %v547 = vlaneseq
    %v548 = vshrl.u32 %v547, 7
    %v549 = vsub.s32 %v546, %v548
    %v550 = vrot.slane %v16, %v549
    %v552 = vunpack.c.l.s4 1966171168
    %v553 = vunpack.c.0.s8 %v552
    %v554 = vlaneseq
    %v555 = vshrl.u32 %v554, 7
    %v556 = vsub.s32 %v553, %v555
    %v557 = vrot.slane %v543, %v556
    %v558 = vcombine.high %v550, %v550
    %v559 = vcombine.high %v557, %v557
    %v561 = vunpack.c.l.s4 1966171168
    %v562 = vunpack.c.0.s8 %v561
    %v563 = vlaneseq
    %v564 = vshrl.u32 %v563, 7
    %v565 = vsub.s32 %v562, %v564
    %v566 = vrot.slane %v550, %v565
    %v568 = vunpack.c.l.s4 1966171168
    %v569 = vunpack.c.0.s8 %v568
    %v570 = vlaneseq
    %v571 = vshrl.u32 %v570, 7
    %v572 = vsub.s32 %v569, %v571
    %v573 = vrot.slane %v557, %v572
    %v575 = vunpack.c.l.s4 1966171168
    %v576 = vunpack.c.0.s8 %v575
    %v577 = vlaneseq
    %v578 = vshrl.u32 %v577, 7
    %v579 = vsub.s32 %v576, %v578
    %v580 = vrot.slane %v558, %v579
    %v582 = vunpack.c.l.s4 1966171168
    %v583 = vunpack.c.0.s8 %v582
    %v584 = vlaneseq
    %v585 = vshrl.u32 %v584, 7
    %v586 = vsub.s32 %v583, %v585
    %v587 = vrot.slane %v559, %v586
    %v588 = vcombine.high %v566, %v566
    %v589 = vcombine.high %v573, %v573
    %v590 = vcombine.high %v580, %v580
    %v591 = vcombine.high %v587, %v587
    %v592 = vcombine.high %v17, %v17
    %v594 = vunpack.c.l.s4 1966171168
    %v595 = vunpack.c.0.s8 %v594
    %v596 = vlaneseq
    %v597 = vshrl.u32 %v596, 7
    %v598 = vsub.s32 %v595, %v597
    %v599 = vrot.slane %v17, %v598
    %v601 = vunpack.c.l.s4 1966171168
    %v602 = vunpack.c.0.s8 %v601
    %v603 = vlaneseq
    %v604 = vshrl.u32 %v603, 7
    %v605 = vsub.s32 %v602, %v604
    %v606 = vrot.slane %v592, %v605
    %v607 = vcombine.high %v599, %v599
    %v608 = vcombine.high %v606, %v606
    %v610 = vunpack.c.l.s4 1966171168
    %v611 = vunpack.c.0.s8 %v610
    %v612 = vlaneseq
    %v613 = vshrl.u32 %v612, 7
    %v614 = vsub.s32 %v611, %v613
    %v615 = vrot.slane %v599, %v614
    %v617 = vunpack.c.l.s4 1966171168
    %v618 = vunpack.c.0.s8 %v617
    %v619 = vlaneseq
    %v620 = vshrl.u32 %v619, 7
    %v621 = vsub.s32 %v618, %v620
    %v622 = vrot.slane %v606, %v621
    %v624 = vunpack.c.l.s4 1966171168
    %v625 = vunpack.c.0.s8 %v624
    %v626 = vlaneseq
    %v627 = vshrl.u32 %v626, 7
    %v628 = vsub.s32 %v625, %v627
    %v629 = vrot.slane %v607, %v628
    %v631 = vunpack.c.l.s4 1966171168
    %v632 = vunpack.c.0.s8 %v631
    %v633 = vlaneseq
    %v634 = vshrl.u32 %v633, 7
    %v635 = vsub.s32 %v632, %v634
    %v636 = vrot.slane %v608, %v635
    %v637 = vcombine.high %v615, %v615
    %v638 = vcombine.high %v622, %v622
    %v639 = vcombine.high %v629, %v629
    %v640 = vcombine.high %v636, %v636
    %v641 = vcombine.high %v18, %v18
    %v643 = vunpack.c.l.s4 1966171168
    %v644 = vunpack.c.0.s8 %v643
    %v645 = vlaneseq
    %v646 = vshrl.u32 %v645, 7
    %v647 = vsub.s32 %v644, %v646
    %v648 = vrot.slane %v18, %v647
    %v650 = vunpack.c.l.s4 1966171168
    %v651 = vunpack.c.0.s8 %v650
    %v652 = vlaneseq
    %v653 = vshrl.u32 %v652, 7
    %v654 = vsub.s32 %v651, %v653
    %v655 = vrot.slane %v641, %v654
    %v656 = vcombine.high %v648, %v648
    %v657 = vcombine.high %v655, %v655
    %v659 = vunpack.c.l.s4 1966171168
    %v660 = vunpack.c.0.s8 %v659
    %v661 = vlaneseq
    %v662 = vshrl.u32 %v661, 7
    %v663 = vsub.s32 %v660, %v662
    %v664 = vrot.slane %v648, %v663
    %v666 = vunpack.c.l.s4 1966171168
    %v667 = vunpack.c.0.s8 %v666
    %v668 = vlaneseq
    %v669 = vshrl.u32 %v668, 7
    %v670 = vsub.s32 %v667, %v669
    %v671 = vrot.slane %v655, %v670
    %v673 = vunpack.c.l.s4 1966171168
    %v674 = vunpack.c.0.s8 %v673
    %v675 = vlaneseq
    %v676 = vshrl.u32 %v675, 7
    %v677 = vsub.s32 %v674, %v676
    %v678 = vrot.slane %v656, %v677
    %v680 = vunpack.c.l.s4 1966171168
    %v681 = vunpack.c.0.s8 %v680
    %v682 = vlaneseq
    %v683 = vshrl.u32 %v682, 7
    %v684 = vsub.s32 %v681, %v683
    %v685 = vrot.slane %v657, %v684
    %v686 = vcombine.high %v664, %v664
    %v687 = vcombine.high %v671, %v671
    %v688 = vcombine.high %v678, %v678
    %v689 = vcombine.high %v685, %v685
    %v690 = vcombine.high %v19, %v19
    %v692 = vunpack.c.l.s4 1966171168
    %v693 = vunpack.c.0.s8 %v692
    %v694 = vlaneseq
    %v695 = vshrl.u32 %v694, 7
    %v696 = vsub.s32 %v693, %v695
    %v697 = vrot.slane %v19, %v696
    %v699 = vunpack.c.l.s4 1966171168
    %v700 = vunpack.c.0.s8 %v699
    %v701 = vlaneseq
    %v702 = vshrl.u32 %v701, 7
    %v703 = vsub.s32 %v700, %v702
    %v704 = vrot.slane %v690, %v703
    %v705 = vcombine.high %v697, %v697
    %v706 = vcombine.high %v704, %v704
    %v708 = vunpack.c.l.s4 1966171168
    %v709 = vunpack.c.0.s8 %v708
    %v710 = vlaneseq
    %v711 = vshrl.u32 %v710, 7
    %v712 = vsub.s32 %v709, %v711
    %v713 = vrot.slane %v697, %v712
    %v715 = vunpack.c.l.s4 1966171168
    %v716 = vunpack.c.0.s8 %v715
    %v717 = vlaneseq
    %v718 = vshrl.u32 %v717, 7
    %v719 = vsub.s32 %v716, %v718
    %v720 = vrot.slane %v704, %v719
    %v722 = vunpack.c.l.s4 1966171168
    %v723 = vunpack.c.0.s8 %v722
    %v724 = vlaneseq
    %v725 = vshrl.u32 %v724, 7
    %v726 = vsub.s32 %v723, %v725
    %v727 = vrot.slane %v705, %v726
    %v729 = vunpack.c.l.s4 1966171168
    %v730 = vunpack.c.0.s8 %v729
    %v731 = vlaneseq
    %v732 = vshrl.u32 %v731, 7
    %v733 = vsub.s32 %v730, %v732
    %v734 = vrot.slane %v706, %v733
    %v735 = vcombine.high %v713, %v713
    %v736 = vcombine.high %v720, %v720
    %v737 = vcombine.high %v727, %v727
    %v738 = vcombine.high %v734, %v734
    %v1283 = vunpack.c.l.b16 %v20
    %v1284 = vunpack.c.l.b16 %v21
    %v1285 = vunpack.c.l.b16 %v22
    %v1286 = vunpack.c.l.b16 %v23
    %v1287 = vunpack.c.l.b16 %v24
    %v1288 = vunpack.c.l.b16 %v25
    %v1289 = vunpack.c.l.b16 %v26
    %v1290 = vunpack.c.l.b16 %v27
    %v1291 = vunpack.c.l.b16 %v28
    %v1292 = vunpack.c.l.b16 %v29
    %v1293 = vunpack.c.l.b16 %v30
    %v1294 = vunpack.c.l.b16 %v31
    %v1295 = vunpack.c.l.b16 %v32
    %v1296 = vunpack.c.l.b16 %v33
    %v1297 = vunpack.c.l.b16 %v34
    %v1298 = vunpack.c.l.b16 %v35
    %v1299 = vunpack.c.l.b16 %v36
    %v1300 = vunpack.c.l.b16 %v37
    %v1301 = vunpack.c.l.b16 %v38
    %v1302 = vunpack.c.l.b16 %v39
    %v1303 = vunpack.c.l.b16 %v40
    %v1304 = vunpack.c.l.b16 %v41
    %v1305 = vunpack.c.l.b16 %v42
    %v1306 = vunpack.c.l.b16 %v43
    %v1307 = vunpack.c.l.b16 %v44
    %v1308 = vunpack.c.l.b16 %v45
    %v1309 = vunpack.c.l.b16 %v46
    %v1310 = vunpack.c.l.b16 %v47
    %v1311 = vunpack.c.l.b16 %v48
    %v1312 = vunpack.c.l.b16 %v49
    %v1313 = vunpack.c.l.b16 %v50
    %v1314 = vunpack.c.l.b16 %v51
    %v1315 = vunpack.c.l.b16 %v52
    %v1316 = vunpack.c.l.b16 %v53
    %v1317 = vunpack.c.l.b16 %v54
    %v1318 = vunpack.c.l.b16 %v55
    %v1319 = vunpack.c.l.b16 %v56
    %v1320 = vunpack.c.l.b16 %v57
    %v1321 = vunpack.c.l.b16 %v58
    %v1322 = vunpack.c.l.b16 %v59
    %v1323 = vunpack.c.l.b16 %v60
    %v1324 = vunpack.c.l.b16 %v61
    %v1325 = vunpack.c.l.b16 %v62
    %v1326 = vunpack.c.l.b16 %v63
    %v1327 = vunpack.c.l.b16 %v64
    %v1328 = vunpack.c.l.b16 %v65
    %v1329 = vunpack.c.l.b16 %v66
    %v1330 = vunpack.c.l.b16 %v67
    %v1331 = vunpack.c.l.b16 %v68
    %v1332 = vunpack.c.l.b16 %v69
    %v1333 = vunpack.c.l.b16 %v70
    %v1334 = vunpack.c.l.b16 %v71
    %v1335 = vunpack.c.l.b16 %v72
    %v1336 = vunpack.c.l.b16 %v73
    %v1337 = vunpack.c.l.b16 %v74
    %v1338 = vunpack.c.l.b16 %v75
    %v1339 = vunpack.c.l.b16 %v76
    %v1340 = vunpack.c.l.b16 %v77
    %v1341 = vunpack.c.l.b16 %v78
    %v1342 = vunpack.c.l.b16 %v79
    %v1343 = vunpack.c.l.b16 %v80
    %v1344 = vunpack.c.l.b16 %v81
    %v1345 = vunpack.c.l.b16 %v82
    %v1346 = vunpack.c.l.b16 %v83
    %v1347 = vunpack.c.l.b16 %v84
    %v1348 = vunpack.c.l.b16 %v85
    %v1349 = vunpack.c.l.b16 %v86
    %v1350 = vunpack.c.l.b16 %v87
    %v1351 = vunpack.c.l.b16 %v88
    %v1352 = vunpack.c.l.b16 %v89
    %v1353 = vunpack.c.l.b16 %v90
    %v1354 = vunpack.c.l.b16 %v91
    %v1355 = vunpack.c.l.b16 %v92
    %v1356 = vunpack.c.l.b16 %v93
    %v1357 = vunpack.c.l.b16 %v94
    %v1358 = vunpack.c.l.b16 %v95
    %v1359 = vunpack.c.l.b16 %v96
    %v1360 = vunpack.c.l.b16 %v97
    %v1361 = vunpack.c.l.b16 %v98
    %v1362 = vunpack.c.l.b16 %v99
    %v1363 = vunpack.c.l.b16 %v100
    %v1364 = vunpack.c.l.b16 %v101
    %v1365 = vunpack.c.l.b16 %v102
    %v1366 = vunpack.c.l.b16 %v103
    %v1367 = vunpack.c.l.b16 %v104
    %v1368 = vunpack.c.l.b16 %v105
    %v1369 = vunpack.c.l.b16 %v106
    %v1370 = vunpack.c.l.b16 %v107
    %v1371 = vunpack.c.l.b16 %v108
    %v1372 = vunpack.c.l.b16 %v109
    %v1373 = vunpack.c.l.b16 %v110
    %v1374 = vunpack.c.l.b16 %v111
    %v1375 = vunpack.c.l.b16 %v112
    %v1376 = vunpack.c.l.b16 %v113
    %v1377 = vunpack.c.l.b16 %v114
    %v1378 = vunpack.c.l.b16 %v115
    %v1379 = vunpack.c.l.b16 %v116
    %v1380 = vunpack.c.l.b16 %v117
    %v1381 = vunpack.c.l.b16 %v118
    %v1382 = vunpack.c.l.b16 %v119
    %v1383 = vunpack.c.l.b16 %v120
    %v1384 = vunpack.c.l.b16 %v121
    %v1385 = vunpack.c.l.b16 %v122
    %v1386 = vunpack.c.l.b16 %v123
    %v1387 = vunpack.c.l.b16 %v124
    %v1388 = vunpack.c.l.b16 %v125
    %v1389 = vunpack.c.l.b16 %v126
    %v1390 = vunpack.c.l.b16 %v127
    %v1391 = vunpack.c.l.b16 %v128
    %v1392 = vunpack.c.l.b16 %v129
    %v1393 = vunpack.c.l.b16 %v130
    %v1394 = vunpack.c.l.b16 %v131
    %v1395 = vunpack.c.l.b16 %v132
    %v1396 = vunpack.c.l.b16 %v133
    %v1397 = vunpack.c.l.b16 %v134
    %v1398 = vunpack.c.l.b16 %v135
    %v1399 = vunpack.c.l.b16 %v136
    %v1400 = vunpack.c.l.b16 %v137
    %v1401 = vunpack.c.l.b16 %v138
    %v1402 = vunpack.c.l.b16 %v139
    %v1403 = vunpack.c.l.b16 %v140
    %v1404 = vunpack.c.l.b16 %v141
    %v1405 = vunpack.c.l.b16 %v142
    %v1406 = vunpack.c.l.b16 %v143
    %v1407 = vunpack.c.l.b16 %v144
    %v1408 = vunpack.c.l.b16 %v145
    %v1409 = vunpack.c.l.b16 %v146
    %v1410 = vunpack.c.l.b16 %v147
    %v1411 = vunpack.c.l.b16 %v148
    %v1412 = vunpack.c.l.b16 %v149
    %v1413 = vunpack.c.l.b16 %v150
    %v1414 = vunpack.c.l.b16 %v151
    %v1415 = vunpack.c.l.b16 %v152
    %v1416 = vunpack.c.l.b16 %v153
    %v1417 = vunpack.c.l.b16 %v154
    %v1418 = vunpack.c.l.b16 %v155
    %v1419 = vunpack.c.l.b16 %v156
    %v1420 = vunpack.c.l.b16 %v157
    %v1421 = vunpack.c.l.b16 %v158
    %v1422 = vunpack.c.l.b16 %v159
    %v1423 = vunpack.c.l.b16 %v160
    %v1424 = vunpack.c.l.b16 %v161
    %v1425 = vunpack.c.l.b16 %v162
    %v1426 = vunpack.c.l.b16 %v163
    %v1427 = vunpack.c.l.b16 %v164
    %v1428 = vunpack.c.l.b16 %v165
    %v1429 = vunpack.c.l.b16 %v166
    %v1430 = vunpack.c.l.b16 %v167
    %v1431 = vunpack.c.l.b16 %v168
    %v1432 = vunpack.c.l.b16 %v169
    %v1433 = vunpack.c.l.b16 %v170
    %v1434 = vunpack.c.l.b16 %v171
    %v1435 = vunpack.c.l.b16 %v172
    %v1436 = vunpack.c.l.b16 %v173
    %v1437 = vunpack.c.l.b16 %v174
    %v1438 = vunpack.c.l.b16 %v175
    %v1439 = vunpack.c.l.b16 %v176
    %v1440 = vunpack.c.l.b16 %v177
    %v1441 = vunpack.c.l.b16 %v178
    %v1442 = vunpack.c.l.b16 %v179
    %v1443 = vunpack.c.l.b16 %v180
    %v1444 = vunpack.c.l.b16 %v181
    %v1445 = vunpack.c.l.b16 %v182
    %v1446 = vunpack.c.l.b16 %v183
    %v1447 = vunpack.c.l.b16 %v184
    %v1448 = vunpack.c.l.b16 %v185
    %v1449 = vunpack.c.l.b16 %v186
    %v1450 = vunpack.c.l.b16 %v187
    %v1451 = vunpack.c.l.b16 %v188
    %v1452 = vunpack.c.l.b16 %v189
    %v1453 = vunpack.c.l.b16 %v190
    %v1454 = vunpack.c.l.b16 %v191
    %v1455 = vunpack.c.l.b16 %v192
    %v1456 = vunpack.c.l.b16 %v193
    %v1457 = vunpack.c.l.b16 %v194
    %v1458 = vunpack.c.l.b16 %v195
    %v1459 = vunpack.c.l.b16 %v196
    %v1460 = vunpack.c.l.b16 %v197
    %v1461 = vunpack.c.l.b16 %v198
    %v1462 = vunpack.c.l.b16 %v199
    %v1463 = vunpack.c.l.b16 %v200
    %v1464 = vunpack.c.l.b16 %v201
    %v1465 = vunpack.c.l.b16 %v202
    %v1466 = vunpack.c.l.b16 %v203
    %v1467 = vunpack.c.l.b16 %v204
    %v1468 = vunpack.c.l.b16 %v205
    %v1469 = vunpack.c.l.b16 %v206
    %v1470 = vunpack.c.l.b16 %v207
    %v1471 = vunpack.c.l.b16 %v208
    %v1472 = vunpack.c.l.b16 %v209
    %v1473 = vunpack.c.l.b16 %v210
    %v1474 = vunpack.c.l.b16 %v211
    %v1475 = vunpack.c.l.b16 %v212
    %v1476 = vunpack.c.l.b16 %v213
    %v1477 = vunpack.c.l.b16 %v214
    %v1478 = vunpack.c.l.b16 %v215
    %v1479 = vunpack.c.l.b16 %v216
    %v1480 = vunpack.c.l.b16 %v217
    %v1481 = vunpack.c.l.b16 %v218
    %v1482 = vunpack.c.l.b16 %v219
    %v1483 = vunpack.c.l.b16 %v220
    %v1484 = vunpack.c.l.b16 %v221
    %v1485 = vunpack.c.l.b16 %v222
    %v1486 = vunpack.c.l.b16 %v223
    %v1487 = vunpack.c.l.b16 %v224
    %v1488 = vunpack.c.l.b16 %v225
    %v1489 = vunpack.c.l.b16 %v226
    %v1490 = vunpack.c.l.b16 %v227
    %v1491 = vunpack.c.l.b16 %v228
    %v1492 = vunpack.c.l.b16 %v229
    %v1493 = vunpack.c.l.b16 %v230
    %v1494 = vunpack.c.l.b16 %v231
    %v1495 = vunpack.c.l.b16 %v232
    %v1496 = vunpack.c.l.b16 %v233
    %v1497 = vunpack.c.l.b16 %v234
    %v1498 = vunpack.c.l.b16 %v235
    %v1499 = vunpack.c.l.b16 %v236
    %v1500 = vunpack.c.l.b16 %v237
    %v1501 = vunpack.c.l.b16 %v238
    %v1502 = vunpack.c.l.b16 %v239
    %v1503 = vunpack.c.l.b16 %v240
    %v1504 = vunpack.c.l.b16 %v241
    %v1505 = vunpack.c.l.b16 %v242
    %v1506 = vunpack.c.l.b16 %v243
    %v1507 = vunpack.c.l.b16 %v244
    %v1508 = vunpack.c.l.b16 %v245
    %v1509 = vunpack.c.l.b16 %v246
    %v1510 = vunpack.c.l.b16 %v247
    %v1511 = vunpack.c.l.b16 %v248
    %v1512 = vunpack.c.l.b16 %v249
    %v1513 = vunpack.c.l.b16 %v250
    %v1514 = vunpack.c.l.b16 %v251
    %v1515 = vunpack.c.l.b16 %v252
    %v1516 = vunpack.c.l.b16 %v253
    %v1517 = vunpack.c.l.b16 %v254
    %v1518 = vunpack.c.l.b16 %v255
    %v1519 = vunpack.c.l.b16 %v256
    %v1520 = vunpack.c.l.b16 %v257
    %v1521 = vunpack.c.l.b16 %v258
    %v1522 = vunpack.c.l.b16 %v259
    %v1523 = vunpack.c.l.b16 %v260
    %v1524 = vunpack.c.l.b16 %v261
    %v1525 = vunpack.c.l.b16 %v262
    %v1526 = vunpack.c.l.b16 %v263
    %v1527 = vunpack.c.l.b16 %v264
    %v1528 = vunpack.c.l.b16 %v265
    %v1529 = vunpack.c.l.b16 %v266
    %v1530 = vunpack.c.l.b16 %v267
    %v1531 = vunpack.c.l.b16 %v268
    %v1532 = vunpack.c.l.b16 %v269
    %v1533 = vunpack.c.l.b16 %v270
    %v1534 = vunpack.c.l.b16 %v271
    %v1535 = vunpack.c.l.b16 %v272
    %v1536 = vunpack.c.l.b16 %v273
    %v1537 = vunpack.c.l.b16 %v274
    %v1538 = vunpack.c.l.b16 %v275
    %v1539 = vunpack.c.l.b16 %v276
    %v1540 = vunpack.c.l.b16 %v277
    %v1541 = vunpack.c.l.b16 %v278
    %v1542 = vunpack.c.l.b16 %v279
    %v1543 = vunpack.c.l.b16 %v280
    %v1544 = vunpack.c.l.b16 %v281
    %v1545 = vunpack.c.l.b16 %v282
    %v1546 = vunpack.c.l.b16 %v283
    %v1547 = vunpack.c.l.b16 %v284
    %v1548 = vunpack.c.l.b16 %v285
    %v1549 = vunpack.c.l.b16 %v286
    %v1550 = vunpack.c.l.b16 %v287
    %v1551 = vunpack.c.l.b16 %v288
    %v1552 = vunpack.c.l.b16 %v289
    %v1553 = vunpack.c.l.b16 %v290
    %v1554 = vunpack.c.l.b16 %v291
    %v1555 = vunpack.c.l.b16 %v292
    %v1556 = vunpack.c.l.b16 %v293
    %v1557 = vunpack.c.l.b16 %v294
    %v1558 = vunpack.c.l.b16 %v295
    %v1559 = vunpack.c.l.b16 %v296
    %v1560 = vunpack.c.l.b16 %v297
    %v1561 = vunpack.c.l.b16 %v298
    %v1562 = vunpack.c.l.b16 %v299
    %v1563 = vunpack.c.l.b16 %v300
    %v1564 = vunpack.c.l.b16 %v301
    %v1565 = vunpack.c.l.b16 %v302
    %v1566 = vunpack.c.l.b16 %v303
    %v1567 = vunpack.c.l.b16 %v304
    %v1568 = vunpack.c.l.b16 %v305
    %v1569 = vunpack.c.l.b16 %v306
    %v1570 = vunpack.c.l.b16 %v307
    %v1571 = vunpack.c.l.b16 %v308
    %v1572 = vunpack.c.l.b16 %v309
    %v1573 = vunpack.c.l.b16 %v310
    %v1574 = vunpack.c.l.b16 %v311
    %v1575 = vunpack.c.l.b16 %v312
    %v1576 = vunpack.c.l.b16 %v313
    %v1577 = vunpack.c.l.b16 %v314
    %v1578 = vunpack.c.l.b16 %v315
    %v1579 = vunpack.c.l.b16 %v316
    %v1580 = vunpack.c.l.b16 %v317
    %v1581 = vunpack.c.l.b16 %v318
    %v1582 = vunpack.c.l.b16 %v319
    %v1583 = vunpack.c.l.b16 %v320
    %v1584 = vunpack.c.l.b16 %v321
    %v1585 = vunpack.c.l.b16 %v322
    %v1586 = vunpack.c.l.b16 %v323
    %v1587 = vunpack.c.l.b16 %v324
    %v1588 = vunpack.c.l.b16 %v325
    %v1589 = vunpack.c.l.b16 %v326
    %v1590 = vunpack.c.l.b16 %v327
    %v1591 = vunpack.c.l.b16 %v328
    %v1592 = vunpack.c.l.b16 %v329
    %v1593 = vunpack.c.l.b16 %v330
    %v1594 = vunpack.c.l.b16 %v331
    %v1595 = vunpack.c.l.b16 %v332
    %v1596 = vunpack.c.l.b16 %v333
    %v1597 = vunpack.c.l.b16 %v334
    %v1598 = vunpack.c.l.b16 %v335
    %v1599 = vunpack.c.l.b16 %v336
    %v1600 = vunpack.c.l.b16 %v337
    %v1601 = vunpack.c.l.b16 %v338
    %v1602 = vunpack.c.l.b16 %v339
    %v1603 = vunpack.c.l.b16 %v340
    %v1604 = vunpack.c.l.b16 %v341
    %v1605 = vunpack.c.l.b16 %v342
    %v1606 = vunpack.c.l.b16 %v343
    %v1607 = vunpack.c.l.b16 %v344
    %v1608 = vunpack.c.l.b16 %v345
    %v1609 = vunpack.c.l.b16 %v346
    %v1610 = vunpack.c.l.b16 %v347
    %v1611 = vunpack.c.l.b16 %v348
    %v1612 = vunpack.c.l.b16 %v349
    %v1613 = vunpack.c.l.b16 %v350
    %v1614 = vunpack.c.l.b16 %v351
    %v1615 = vunpack.c.l.b16 %v352
    %v1616 = vunpack.c.l.b16 %v353
    %v1617 = vunpack.c.l.b16 %v354
    %v1618 = vunpack.c.l.b16 %v355
    %v1619 = vunpack.c.l.b16 %v356
    %v1620 = vunpack.c.l.b16 %v357
    %v1621 = vunpack.c.l.b16 %v358
    %v1622 = vunpack.c.l.b16 %v359
    %v1623 = vunpack.c.l.b16 %v360
    %v1624 = vunpack.c.l.b16 %v361
    %v1625 = vunpack.c.l.b16 %v362
    %v1626 = vunpack.c.l.b16 %v363
    %v1627 = vunpack.c.l.b16 %v364
    %v1628 = vunpack.c.l.b16 %v365
    %v1629 = vunpack.c.l.b16 %v366
    %v1630 = vunpack.c.l.b16 %v367
    %v1631 = vunpack.c.l.b16 %v368
    %v1632 = vunpack.c.l.b16 %v369
    %v1633 = vunpack.c.l.b16 %v370
    %v1634 = vunpack.c.l.b16 %v371
    %v1635 = vunpack.c.l.b16 %v372
    %v1636 = vunpack.c.l.b16 %v373
    %v1637 = vunpack.c.l.b16 %v374
    %v1638 = vunpack.c.l.b16 %v375
    %v1639 = vunpack.c.l.b16 %v376
    %v1640 = vunpack.c.l.b16 %v377
    %v1641 = vunpack.c.l.b16 %v378
    %v1642 = vunpack.c.l.b16 %v379
    %v1643 = vunpack.c.l.b16 %v380
    %v1644 = vunpack.c.l.b16 %v381
    %v1645 = vunpack.c.l.b16 %v382
    %v1646 = vunpack.c.l.b16 %v383
    %v1647 = vunpack.c.l.b16 %v384
    %v1648 = vunpack.c.l.b16 %v385
    %v1649 = vunpack.c.l.b16 %v386
    %v1650 = vunpack.c.l.b16 %v387
    %v1651 = vunpack.c.l.b16 %v388
    %v1652 = vunpack.c.l.b16 %v389
    %v1653 = vunpack.c.l.b16 %v390
    %v1654 = vunpack.c.l.b16 %v391
    %v1655 = vunpack.c.l.b16 %v392
    %v1656 = vunpack.c.l.b16 %v393
    %v1657 = vunpack.c.l.b16 %v394
    %v1658 = vunpack.c.l.b16 %v395
    %v1659 = vunpack.c.l.b16 %v396
    %v1660 = vunpack.c.l.b16 %v397
    %v1661 = vunpack.c.l.b16 %v398
    %v1662 = vunpack.c.l.b16 %v399
    %v1663 = vunpack.c.l.b16 %v400
    %v1664 = vunpack.c.l.b16 %v401
    %v1665 = vunpack.c.l.b16 %v402
    %v1666 = vunpack.c.l.b16 %v403
    %v1667 = vunpack.c.l.b16 %v404
    %v1668 = vunpack.c.l.b16 %v405
    %v1669 = vunpack.c.l.b16 %v406
    %v1670 = vunpack.c.l.b16 %v407
    %v1671 = vunpack.c.l.b16 %v408
    %v1672 = vunpack.c.l.b16 %v409
    %v1673 = vunpack.c.l.b16 %v410
    %v1674 = vunpack.c.l.b16 %v411
    %v1675 = vunpack.c.l.b16 %v412
    %v1676 = vunpack.c.l.b16 %v413
    %v1677 = vunpack.c.l.b16 %v414
    %v1678 = vunpack.c.l.b16 %v415
    %v1679 = vunpack.c.l.b16 %v416
    %v1680 = vunpack.c.l.b16 %v417
    %v1681 = vunpack.c.l.b16 %v418
    %v1682 = vunpack.c.l.b16 %v419
    %v1683 = vunpack.c.l.b16 %v420
    %v1684 = vunpack.c.l.b16 %v421
    %v1685 = vunpack.c.l.b16 %v422
    %v1686 = vunpack.c.l.b16 %v423
    %v1687 = vunpack.c.l.b16 %v424
    %v1688 = vunpack.c.l.b16 %v425
    %v1689 = vunpack.c.l.b16 %v426
    %v1690 = vunpack.c.l.b16 %v427
    %v1691 = vunpack.c.l.b16 %v428
    %v1692 = vunpack.c.l.b16 %v429
    %v1693 = vunpack.c.l.b16 %v430
    %v1694 = vunpack.c.l.b16 %v431
    %v1695 = vunpack.c.l.b16 %v432
    %v1696 = vunpack.c.l.b16 %v433
    %v1697 = vunpack.c.l.b16 %v434
    %v1698 = vunpack.c.l.b16 %v435
    %v1699 = vunpack.c.l.b16 %v436
    %v1700 = vunpack.c.l.b16 %v437
    %v1701 = vunpack.c.l.b16 %v438
    %v1702 = vunpack.c.l.b16 %v439
    %v1703 = vunpack.c.l.b16 %v440
    %v1704 = vunpack.c.l.b16 %v441
    %v1705 = vunpack.c.l.b16 %v442
    %v1706 = vunpack.c.l.b16 %v443
    %v1707 = vunpack.c.l.b16 %v444
    %v1708 = vunpack.c.l.b16 %v445
    %v1709 = vunpack.c.l.b16 %v446
    %v1710 = vunpack.c.l.b16 %v447
    %v1711 = vunpack.c.l.b16 %v448
    %v1712 = vunpack.c.l.b16 %v449
    %v1713 = vunpack.c.l.b16 %v450
    %v1714 = vunpack.c.l.b16 %v451
    %v1715 = vunpack.c.l.b16 %v452
    %v1716 = vunpack.c.l.b16 %v453
    %v1717 = vunpack.c.l.b16 %v454
    %v1718 = vunpack.c.l.b16 %v455
    %v1719 = vunpack.c.l.b16 %v456
    %v1720 = vunpack.c.l.b16 %v457
    %v1721 = vunpack.c.l.b16 %v458
    %v1722 = vunpack.c.l.b16 %v459
    %v1723 = vunpack.c.l.b16 %v460
    %v1724 = vunpack.c.l.b16 %v461
    %v1725 = vunpack.c.l.b16 %v462
    %v1726 = vunpack.c.l.b16 %v463
    %v1727 = vunpack.c.l.b16 %v464
    %v1728 = vunpack.c.l.b16 %v465
    %v1729 = vunpack.c.l.b16 %v466
    %v1730 = vunpack.c.l.b16 %v467
    %v1731 = vunpack.c.l.b16 %v468
    %v1732 = vunpack.c.l.b16 %v469
    %v1733 = vunpack.c.l.b16 %v470
    %v1734 = vunpack.c.l.b16 %v471
    %v1735 = vunpack.c.l.b16 %v472
    %v1736 = vunpack.c.l.b16 %v473
    %v1737 = vunpack.c.l.b16 %v474
    %v1738 = vunpack.c.l.b16 %v475
    %v1739 = vunpack.c.l.b16 %v476
    %v1740 = vunpack.c.l.b16 %v477
    %v1741 = vunpack.c.l.b16 %v478
    %v1742 = vunpack.c.l.b16 %v479
    %v1743 = vunpack.c.l.b16 %v480
    %v1744 = vunpack.c.l.b16 %v481
    %v1745 = vunpack.c.l.b16 %v482
    %v1746 = vunpack.c.l.b16 %v483
    %v1747 = vunpack.c.l.b16 %v484
    %v1748 = vunpack.c.l.b16 %v485
    %v1749 = vunpack.c.l.b16 %v486
    %v1750 = vunpack.c.l.b16 %v487
    %v1751 = vunpack.c.l.b16 %v488
    %v1752 = vunpack.c.l.b16 %v489
    %v1753 = vunpack.c.l.b16 %v490
    %v1754 = vunpack.c.l.b16 %v491
    %v1755 = vunpack.c.l.b16 %v492
    %v1756 = vunpack.c.l.b16 %v493
    %v1757 = vunpack.c.l.b16 %v494
    %v1758 = vunpack.c.l.b16 %v495
    %v1759 = vunpack.c.l.b16 %v496
    %v1760 = vunpack.c.l.b16 %v497
    %v1761 = vunpack.c.l.b16 %v498
    %v1762 = vunpack.c.l.b16 %v499
    %v1763 = vunpack.c.l.b16 %v500
    %v1764 = vunpack.c.l.b16 %v501
    %v1765 = vunpack.c.l.b16 %v502
    %v1766 = vunpack.c.l.b16 %v503
    %v1767 = vunpack.c.l.b16 %v504
    %v1768 = vunpack.c.l.b16 %v505
    %v1769 = vunpack.c.l.b16 %v506
    %v1770 = vunpack.c.l.b16 %v507
    %v1771 = vunpack.c.l.b16 %v508
    %v1772 = vunpack.c.l.b16 %v509
    %v1773 = vunpack.c.l.b16 %v510
    %v1774 = vunpack.c.l.b16 %v511
    %v1775 = vunpack.c.l.b16 %v512
    %v1776 = vunpack.c.l.b16 %v513
    %v1777 = vunpack.c.l.b16 %v514
    %v1778 = vunpack.c.l.b16 %v515
    %v1779 = vunpack.c.l.b16 %v516
    %v1780 = vunpack.c.l.b16 %v517
    %v1781 = vunpack.c.l.b16 %v518
    %v1782 = vunpack.c.l.b16 %v519
    %v1783 = vunpack.c.l.b16 %v520
    %v1784 = vunpack.c.l.b16 %v521
    %v1785 = vunpack.c.l.b16 %v522
    %v1786 = vunpack.c.l.b16 %v523
    %v1787 = vunpack.c.l.b16 %v524
    %v1788 = vunpack.c.l.b16 %v525
    %v1789 = vunpack.c.l.b16 %v526
    %v1790 = vunpack.c.l.b16 %v527
    %v1791 = vunpack.c.l.b16 %v528
    %v1792 = vunpack.c.l.b16 %v529
    %v1793 = vunpack.c.l.b16 %v530
    %v1794 = vunpack.c.l.b16 %v531
    %v1795 = vpack.c.b16 %v1284, %v1283
    %v1796 = vpack.c.b16 %v1286, %v1285
    %v1797 = vpack.c.b16 %v1288, %v1287
    %v1798 = vpack.c.b16 %v1290, %v1289
    %v1799 = vpack.c.b16 %v1292, %v1291
    %v1800 = vpack.c.b16 %v1294, %v1293
    %v1801 = vpack.c.b16 %v1296, %v1295
    %v1802 = vpack.c.b16 %v1298, %v1297
    %v1803 = vpack.c.b16 %v1300, %v1299
    %v1804 = vpack.c.b16 %v1302, %v1301
    %v1805 = vpack.c.b16 %v1304, %v1303
    %v1806 = vpack.c.b16 %v1306, %v1305
    %v1807 = vpack.c.b16 %v1308, %v1307
    %v1808 = vpack.c.b16 %v1310, %v1309
    %v1809 = vpack.c.b16 %v1312, %v1311
    %v1810 = vpack.c.b16 %v1314, %v1313
    %v1811 = vpack.c.b16 %v1316, %v1315
    %v1812 = vpack.c.b16 %v1318, %v1317
    %v1813 = vpack.c.b16 %v1320, %v1319
    %v1814 = vpack.c.b16 %v1322, %v1321
    %v1815 = vpack.c.b16 %v1324, %v1323
    %v1816 = vpack.c.b16 %v1326, %v1325
    %v1817 = vpack.c.b16 %v1328, %v1327
    %v1818 = vpack.c.b16 %v1330, %v1329
    %v1819 = vpack.c.b16 %v1332, %v1331
    %v1820 = vpack.c.b16 %v1334, %v1333
    %v1821 = vpack.c.b16 %v1336, %v1335
    %v1822 = vpack.c.b16 %v1338, %v1337
    %v1823 = vpack.c.b16 %v1340, %v1339
    %v1824 = vpack.c.b16 %v1342, %v1341
    %v1825 = vpack.c.b16 %v1344, %v1343
    %v1826 = vpack.c.b16 %v1346, %v1345
    %v1827 = vpack.c.b16 %v1348, %v1347
    %v1828 = vpack.c.b16 %v1350, %v1349
    %v1829 = vpack.c.b16 %v1352, %v1351
    %v1830 = vpack.c.b16 %v1354, %v1353
    %v1831 = vpack.c.b16 %v1356, %v1355
    %v1832 = vpack.c.b16 %v1358, %v1357
    %v1833 = vpack.c.b16 %v1360, %v1359
    %v1834 = vpack.c.b16 %v1362, %v1361
    %v1835 = vpack.c.b16 %v1364, %v1363
    %v1836 = vpack.c.b16 %v1366, %v1365
    %v1837 = vpack.c.b16 %v1368, %v1367
    %v1838 = vpack.c.b16 %v1370, %v1369
    %v1839 = vpack.c.b16 %v1372, %v1371
    %v1840 = vpack.c.b16 %v1374, %v1373
    %v1841 = vpack.c.b16 %v1376, %v1375
    %v1842 = vpack.c.b16 %v1378, %v1377
    %v1843 = vpack.c.b16 %v1380, %v1379
    %v1844 = vpack.c.b16 %v1382, %v1381
    %v1845 = vpack.c.b16 %v1384, %v1383
    %v1846 = vpack.c.b16 %v1386, %v1385
    %v1847 = vpack.c.b16 %v1388, %v1387
    %v1848 = vpack.c.b16 %v1390, %v1389
    %v1849 = vpack.c.b16 %v1392, %v1391
    %v1850 = vpack.c.b16 %v1394, %v1393
    %v1851 = vpack.c.b16 %v1396, %v1395
    %v1852 = vpack.c.b16 %v1398, %v1397
    %v1853 = vpack.c.b16 %v1400, %v1399
    %v1854 = vpack.c.b16 %v1402, %v1401
    %v1855 = vpack.c.b16 %v1404, %v1403
    %v1856 = vpack.c.b16 %v1406, %v1405
    %v1857 = vpack.c.b16 %v1408, %v1407
    %v1858 = vpack.c.b16 %v1410, %v1409
    %v1859 = vpack.c.b16 %v1412, %v1411
    %v1860 = vpack.c.b16 %v1414, %v1413
    %v1861 = vpack.c.b16 %v1416, %v1415
    %v1862 = vpack.c.b16 %v1418, %v1417
    %v1863 = vpack.c.b16 %v1420, %v1419
    %v1864 = vpack.c.b16 %v1422, %v1421
    %v1865 = vpack.c.b16 %v1424, %v1423
    %v1866 = vpack.c.b16 %v1426, %v1425
    %v1867 = vpack.c.b16 %v1428, %v1427
    %v1868 = vpack.c.b16 %v1430, %v1429
    %v1869 = vpack.c.b16 %v1432, %v1431
    %v1870 = vpack.c.b16 %v1434, %v1433
    %v1871 = vpack.c.b16 %v1436, %v1435
    %v1872 = vpack.c.b16 %v1438, %v1437
    %v1873 = vpack.c.b16 %v1440, %v1439
    %v1874 = vpack.c.b16 %v1442, %v1441
    %v1875 = vpack.c.b16 %v1444, %v1443
    %v1876 = vpack.c.b16 %v1446, %v1445
    %v1877 = vpack.c.b16 %v1448, %v1447
    %v1878 = vpack.c.b16 %v1450, %v1449
    %v1879 = vpack.c.b16 %v1452, %v1451
    %v1880 = vpack.c.b16 %v1454, %v1453
    %v1881 = vpack.c.b16 %v1456, %v1455
    %v1882 = vpack.c.b16 %v1458, %v1457
    %v1883 = vpack.c.b16 %v1460, %v1459
    %v1884 = vpack.c.b16 %v1462, %v1461
    %v1885 = vpack.c.b16 %v1464, %v1463
    %v1886 = vpack.c.b16 %v1466, %v1465
    %v1887 = vpack.c.b16 %v1468, %v1467
    %v1888 = vpack.c.b16 %v1470, %v1469
    %v1889 = vpack.c.b16 %v1472, %v1471
    %v1890 = vpack.c.b16 %v1474, %v1473
    %v1891 = vpack.c.b16 %v1476, %v1475
    %v1892 = vpack.c.b16 %v1478, %v1477
    %v1893 = vpack.c.b16 %v1480, %v1479
    %v1894 = vpack.c.b16 %v1482, %v1481
    %v1895 = vpack.c.b16 %v1484, %v1483
    %v1896 = vpack.c.b16 %v1486, %v1485
    %v1897 = vpack.c.b16 %v1488, %v1487
    %v1898 = vpack.c.b16 %v1490, %v1489
    %v1899 = vpack.c.b16 %v1492, %v1491
    %v1900 = vpack.c.b16 %v1494, %v1493
    %v1901 = vpack.c.b16 %v1496, %v1495
    %v1902 = vpack.c.b16 %v1498, %v1497
    %v1903 = vpack.c.b16 %v1500, %v1499
    %v1904 = vpack.c.b16 %v1502, %v1501
    %v1905 = vpack.c.b16 %v1504, %v1503
    %v1906 = vpack.c.b16 %v1506, %v1505
    %v1907 = vpack.c.b16 %v1508, %v1507
    %v1908 = vpack.c.b16 %v1510, %v1509
    %v1909 = vpack.c.b16 %v1512, %v1511
    %v1910 = vpack.c.b16 %v1514, %v1513
    %v1911 = vpack.c.b16 %v1516, %v1515
    %v1912 = vpack.c.b16 %v1518, %v1517
    %v1913 = vpack.c.b16 %v1520, %v1519
    %v1914 = vpack.c.b16 %v1522, %v1521
    %v1915 = vpack.c.b16 %v1524, %v1523
    %v1916 = vpack.c.b16 %v1526, %v1525
    %v1917 = vpack.c.b16 %v1528, %v1527
    %v1918 = vpack.c.b16 %v1530, %v1529
    %v1919 = vpack.c.b16 %v1532, %v1531
    %v1920 = vpack.c.b16 %v1534, %v1533
    %v1921 = vpack.c.b16 %v1536, %v1535
    %v1922 = vpack.c.b16 %v1538, %v1537
    %v1923 = vpack.c.b16 %v1540, %v1539
    %v1924 = vpack.c.b16 %v1542, %v1541
    %v1925 = vpack.c.b16 %v1544, %v1543
    %v1926 = vpack.c.b16 %v1546, %v1545
    %v1927 = vpack.c.b16 %v1548, %v1547
    %v1928 = vpack.c.b16 %v1550, %v1549
    %v1929 = vpack.c.b16 %v1552, %v1551
    %v1930 = vpack.c.b16 %v1554, %v1553
    %v1931 = vpack.c.b16 %v1556, %v1555
    %v1932 = vpack.c.b16 %v1558, %v1557
    %v1933 = vpack.c.b16 %v1560, %v1559
    %v1934 = vpack.c.b16 %v1562, %v1561
    %v1935 = vpack.c.b16 %v1564, %v1563
    %v1936 = vpack.c.b16 %v1566, %v1565
    %v1937 = vpack.c.b16 %v1568, %v1567
    %v1938 = vpack.c.b16 %v1570, %v1569
    %v1939 = vpack.c.b16 %v1572, %v1571
    %v1940 = vpack.c.b16 %v1574, %v1573
    %v1941 = vpack.c.b16 %v1576, %v1575
    %v1942 = vpack.c.b16 %v1578, %v1577
    %v1943 = vpack.c.b16 %v1580, %v1579
    %v1944 = vpack.c.b16 %v1582, %v1581
    %v1945 = vpack.c.b16 %v1584, %v1583
    %v1946 = vpack.c.b16 %v1586, %v1585
    %v1947 = vpack.c.b16 %v1588, %v1587
    %v1948 = vpack.c.b16 %v1590, %v1589
    %v1949 = vpack.c.b16 %v1592, %v1591
    %v1950 = vpack.c.b16 %v1594, %v1593
    %v1951 = vpack.c.b16 %v1596, %v1595
    %v1952 = vpack.c.b16 %v1598, %v1597
    %v1953 = vpack.c.b16 %v1600, %v1599
    %v1954 = vpack.c.b16 %v1602, %v1601
    %v1955 = vpack.c.b16 %v1604, %v1603
    %v1956 = vpack.c.b16 %v1606, %v1605
    %v1957 = vpack.c.b16 %v1608, %v1607
    %v1958 = vpack.c.b16 %v1610, %v1609
    %v1959 = vpack.c.b16 %v1612, %v1611
    %v1960 = vpack.c.b16 %v1614, %v1613
    %v1961 = vpack.c.b16 %v1616, %v1615
    %v1962 = vpack.c.b16 %v1618, %v1617
    %v1963 = vpack.c.b16 %v1620, %v1619
    %v1964 = vpack.c.b16 %v1622, %v1621
    %v1965 = vpack.c.b16 %v1624, %v1623
    %v1966 = vpack.c.b16 %v1626, %v1625
    %v1967 = vpack.c.b16 %v1628, %v1627
    %v1968 = vpack.c.b16 %v1630, %v1629
    %v1969 = vpack.c.b16 %v1632, %v1631
    %v1970 = vpack.c.b16 %v1634, %v1633
    %v1971 = vpack.c.b16 %v1636, %v1635
    %v1972 = vpack.c.b16 %v1638, %v1637
    %v1973 = vpack.c.b16 %v1640, %v1639
    %v1974 = vpack.c.b16 %v1642, %v1641
    %v1975 = vpack.c.b16 %v1644, %v1643
    %v1976 = vpack.c.b16 %v1646, %v1645
    %v1977 = vpack.c.b16 %v1648, %v1647
    %v1978 = vpack.c.b16 %v1650, %v1649
    %v1979 = vpack.c.b16 %v1652, %v1651
    %v1980 = vpack.c.b16 %v1654, %v1653
    %v1981 = vpack.c.b16 %v1656, %v1655
    %v1982 = vpack.c.b16 %v1658, %v1657
    %v1983 = vpack.c.b16 %v1660, %v1659
    %v1984 = vpack.c.b16 %v1662, %v1661
    %v1985 = vpack.c.b16 %v1664, %v1663
    %v1986 = vpack.c.b16 %v1666, %v1665
    %v1987 = vpack.c.b16 %v1668, %v1667
    %v1988 = vpack.c.b16 %v1670, %v1669
    %v1989 = vpack.c.b16 %v1672, %v1671
    %v1990 = vpack.c.b16 %v1674, %v1673
    %v1991 = vpack.c.b16 %v1676, %v1675
    %v1992 = vpack.c.b16 %v1678, %v1677
    %v1993 = vpack.c.b16 %v1680, %v1679
    %v1994 = vpack.c.b16 %v1682, %v1681
    %v1995 = vpack.c.b16 %v1684, %v1683
    %v1996 = vpack.c.b16 %v1686, %v1685
    %v1997 = vpack.c.b16 %v1688, %v1687
    %v1998 = vpack.c.b16 %v1690, %v1689
    %v1999 = vpack.c.b16 %v1692, %v1691
    %v2000 = vpack.c.b16 %v1694, %v1693
    %v2001 = vpack.c.b16 %v1696, %v1695
    %v2002 = vpack.c.b16 %v1698, %v1697
    %v2003 = vpack.c.b16 %v1700, %v1699
    %v2004 = vpack.c.b16 %v1702, %v1701
    %v2005 = vpack.c.b16 %v1704, %v1703
    %v2006 = vpack.c.b16 %v1706, %v1705
    %v2007 = vpack.c.b16 %v1708, %v1707
    %v2008 = vpack.c.b16 %v1710, %v1709
    %v2009 = vpack.c.b16 %v1712, %v1711
    %v2010 = vpack.c.b16 %v1714, %v1713
    %v2011 = vpack.c.b16 %v1716, %v1715
    %v2012 = vpack.c.b16 %v1718, %v1717
    %v2013 = vpack.c.b16 %v1720, %v1719
    %v2014 = vpack.c.b16 %v1722, %v1721
    %v2015 = vpack.c.b16 %v1724, %v1723
    %v2016 = vpack.c.b16 %v1726, %v1725
    %v2017 = vpack.c.b16 %v1728, %v1727
    %v2018 = vpack.c.b16 %v1730, %v1729
    %v2019 = vpack.c.b16 %v1732, %v1731
    %v2020 = vpack.c.b16 %v1734, %v1733
    %v2021 = vpack.c.b16 %v1736, %v1735
    %v2022 = vpack.c.b16 %v1738, %v1737
    %v2023 = vpack.c.b16 %v1740, %v1739
    %v2024 = vpack.c.b16 %v1742, %v1741
    %v2025 = vpack.c.b16 %v1744, %v1743
    %v2026 = vpack.c.b16 %v1746, %v1745
    %v2027 = vpack.c.b16 %v1748, %v1747
    %v2028 = vpack.c.b16 %v1750, %v1749
    %v2029 = vpack.c.b16 %v1752, %v1751
    %v2030 = vpack.c.b16 %v1754, %v1753
    %v2031 = vpack.c.b16 %v1756, %v1755
    %v2032 = vpack.c.b16 %v1758, %v1757
    %v2033 = vpack.c.b16 %v1760, %v1759
    %v2034 = vpack.c.b16 %v1762, %v1761
    %v2035 = vpack.c.b16 %v1764, %v1763
    %v2036 = vpack.c.b16 %v1766, %v1765
    %v2037 = vpack.c.b16 %v1768, %v1767
    %v2038 = vpack.c.b16 %v1770, %v1769
    %v2039 = vpack.c.b16 %v1772, %v1771
    %v2040 = vpack.c.b16 %v1774, %v1773
    %v2041 = vpack.c.b16 %v1776, %v1775
    %v2042 = vpack.c.b16 %v1778, %v1777
    %v2043 = vpack.c.b16 %v1780, %v1779
    %v2044 = vpack.c.b16 %v1782, %v1781
    %v2045 = vpack.c.b16 %v1784, %v1783
    %v2046 = vpack.c.b16 %v1786, %v1785
    %v2047 = vpack.c.b16 %v1788, %v1787
    %v2048 = vpack.c.b16 %v1790, %v1789
    %v2049 = vpack.c.b16 %v1792, %v1791
    %v2050 = vpack.c.b16 %v1794, %v1793
    %2307 = vmatprep.subr.bf16.mxu0 0
    %2308 = vmatpush1.bf16.msra.mxu0 %v1802
    %2309 = vmatprep.subr.bf16.mxu0 0
    %2310 = vmatpush1.bf16.msra.mxu0 %v1801
    %2311 = vmatprep.subr.bf16.mxu0 0
    %2312 = vmatpush1.bf16.msra.mxu0 %v1800
    %2313 = vmatprep.subr.bf16.mxu0 0
    %2314 = vmatpush1.bf16.msra.mxu0 %v1799
    %2315 = vmatprep.subr.bf16.mxu0 0
    %2316 = vmatpush1.bf16.msra.mxu0 %v1798
    %2317 = vmatprep.subr.bf16.mxu0 0
    %2318 = vmatpush1.bf16.msra.mxu0 %v1797
    %2319 = vmatprep.subr.bf16.mxu0 0
    %2320 = vmatpush1.bf16.msra.mxu0 %v1796
    %2321 = vmatprep.subr.bf16.mxu0 0
    %2322 = vmatpush1.bf16.msra.mxu0 %v1795
    %2323 = vmatprep.subr.bf16.mxu0 0
    %2324 = vmatpush2.bf16.msra.mxu0 %v1810
    %2325 = vmatprep.subr.bf16.mxu0 0
    %2326 = vmatpush2.bf16.msra.mxu0 %v1809
    %2327 = vmatprep.subr.bf16.mxu0 0
    %2328 = vmatpush2.bf16.msra.mxu0 %v1808
    %2329 = vmatprep.subr.bf16.mxu0 0
    %2330 = vmatpush2.bf16.msra.mxu0 %v1807
    %2331 = vmatprep.subr.bf16.mxu0 0
    %2332 = vmatpush2.bf16.msra.mxu0 %v1806
    %2333 = vmatprep.subr.bf16.mxu0 0
    %2334 = vmatpush2.bf16.msra.mxu0 %v1805
    %2335 = vmatprep.subr.bf16.mxu0 0
    %2336 = vmatpush2.bf16.msra.mxu0 %v1804
    %2337 = vmatprep.subr.bf16.mxu0 0
    %2338 = vmatpush2.bf16.msra.mxu0 %v1803
    %2339 = vmatprep.mubr.bf16.mxu0 %v580
    %2340 = vmatmul.mubr.bf16.gmra.mxu0 %v566
    %v2341 = vpop.f32.mrf.mxu0
    %v2342 = vadd.f32 %v537, %v2341
    %v2343 = vpop.f32.mrf.mxu0
    %v2344 = vpop.f32.mrf.mxu0
    %v2345 = vpop.f32.mrf.mxu0
    %2346 = vdwg.mxu0
    %2347 = vmatprep.subr.bf16.mxu0 0
    %2348 = vmatpush1.bf16.msra.mxu0 %v1818
    %2349 = vmatprep.subr.bf16.mxu0 0
    %2350 = vmatpush1.bf16.msra.mxu0 %v1817
    %2351 = vmatprep.subr.bf16.mxu0 0
    %2352 = vmatpush1.bf16.msra.mxu0 %v1816
    %2353 = vmatprep.subr.bf16.mxu0 0
    %2354 = vmatpush1.bf16.msra.mxu0 %v1815
    %2355 = vmatprep.subr.bf16.mxu0 0
    %2356 = vmatpush1.bf16.msra.mxu0 %v1814
    %2357 = vmatprep.subr.bf16.mxu0 0
    %2358 = vmatpush1.bf16.msra.mxu0 %v1813
    %2359 = vmatprep.subr.bf16.mxu0 0
    %2360 = vmatpush1.bf16.msra.mxu0 %v1812
    %2361 = vmatprep.subr.bf16.mxu0 0
    %2362 = vmatpush1.bf16.msra.mxu0 %v1811
    %2363 = vmatprep.subr.bf16.mxu0 0
    %2364 = vmatpush2.bf16.msra.mxu0 %v1826
    %2365 = vmatprep.subr.bf16.mxu0 0
    %2366 = vmatpush2.bf16.msra.mxu0 %v1825
    %2367 = vmatprep.subr.bf16.mxu0 0
    %2368 = vmatpush2.bf16.msra.mxu0 %v1824
    %2369 = vmatprep.subr.bf16.mxu0 0
    %2370 = vmatpush2.bf16.msra.mxu0 %v1823
    %2371 = vmatprep.subr.bf16.mxu0 0
    %2372 = vmatpush2.bf16.msra.mxu0 %v1822
    %2373 = vmatprep.subr.bf16.mxu0 0
    %2374 = vmatpush2.bf16.msra.mxu0 %v1821
    %2375 = vmatprep.subr.bf16.mxu0 0
    %2376 = vmatpush2.bf16.msra.mxu0 %v1820
    %2377 = vmatprep.subr.bf16.mxu0 0
    %2378 = vmatpush2.bf16.msra.mxu0 %v1819
    %2379 = vmatprep.mubr.bf16.mxu0 %v590
    %2380 = vmatmul.mubr.bf16.gmra.mxu0 %v588
    %v2381 = vpop.f32.mrf.mxu0
    %v2382 = vadd.f32 %v2342, %v2381
    %v2383 = vpop.f32.mrf.mxu0
    %v2384 = vpop.f32.mrf.mxu0
    %v2385 = vpop.f32.mrf.mxu0
    %2386 = vdwg.mxu0
    %2387 = vmatprep.subr.bf16.mxu0 0
    %2388 = vmatpush1.bf16.msra.mxu0 %v1834
    %2389 = vmatprep.subr.bf16.mxu0 0
    %2390 = vmatpush1.bf16.msra.mxu0 %v1833
    %2391 = vmatprep.subr.bf16.mxu0 0
    %2392 = vmatpush1.bf16.msra.mxu0 %v1832
    %2393 = vmatprep.subr.bf16.mxu0 0
    %2394 = vmatpush1.bf16.msra.mxu0 %v1831
    %2395 = vmatprep.subr.bf16.mxu0 0
    %2396 = vmatpush1.bf16.msra.mxu0 %v1830
    %2397 = vmatprep.subr.bf16.mxu0 0
    %2398 = vmatpush1.bf16.msra.mxu0 %v1829
    %2399 = vmatprep.subr.bf16.mxu0 0
    %2400 = vmatpush1.bf16.msra.mxu0 %v1828
    %2401 = vmatprep.subr.bf16.mxu0 0
    %2402 = vmatpush1.bf16.msra.mxu0 %v1827
    %2403 = vmatprep.subr.bf16.mxu0 0
    %2404 = vmatpush2.bf16.msra.mxu0 %v1842
    %2405 = vmatprep.subr.bf16.mxu0 0
    %2406 = vmatpush2.bf16.msra.mxu0 %v1841
    %2407 = vmatprep.subr.bf16.mxu0 0
    %2408 = vmatpush2.bf16.msra.mxu0 %v1840
    %2409 = vmatprep.subr.bf16.mxu0 0
    %2410 = vmatpush2.bf16.msra.mxu0 %v1839
    %2411 = vmatprep.subr.bf16.mxu0 0
    %2412 = vmatpush2.bf16.msra.mxu0 %v1838
    %2413 = vmatprep.subr.bf16.mxu0 0
    %2414 = vmatpush2.bf16.msra.mxu0 %v1837
    %2415 = vmatprep.subr.bf16.mxu0 0
    %2416 = vmatpush2.bf16.msra.mxu0 %v1836
    %2417 = vmatprep.subr.bf16.mxu0 0
    %2418 = vmatpush2.bf16.msra.mxu0 %v1835
    %2419 = vmatprep.mubr.bf16.mxu0 %v587
    %2420 = vmatmul.mubr.bf16.gmra.mxu0 %v573
    %v2421 = vpop.f32.mrf.mxu0
    %v2422 = vadd.f32 %v2382, %v2421
    %v2423 = vpop.f32.mrf.mxu0
    %v2424 = vpop.f32.mrf.mxu0
    %v2425 = vpop.f32.mrf.mxu0
    %2426 = vdwg.mxu0
    %2427 = vmatprep.subr.bf16.mxu0 0
    %2428 = vmatpush1.bf16.msra.mxu0 %v1850
    %2429 = vmatprep.subr.bf16.mxu0 0
    %2430 = vmatpush1.bf16.msra.mxu0 %v1849
    %2431 = vmatprep.subr.bf16.mxu0 0
    %2432 = vmatpush1.bf16.msra.mxu0 %v1848
    %2433 = vmatprep.subr.bf16.mxu0 0
    %2434 = vmatpush1.bf16.msra.mxu0 %v1847
    %2435 = vmatprep.subr.bf16.mxu0 0
    %2436 = vmatpush1.bf16.msra.mxu0 %v1846
    %2437 = vmatprep.subr.bf16.mxu0 0
    %2438 = vmatpush1.bf16.msra.mxu0 %v1845
    %2439 = vmatprep.subr.bf16.mxu0 0
    %2440 = vmatpush1.bf16.msra.mxu0 %v1844
    %2441 = vmatprep.subr.bf16.mxu0 0
    %2442 = vmatpush1.bf16.msra.mxu0 %v1843
    %2443 = vmatprep.subr.bf16.mxu0 0
    %2444 = vmatpush2.bf16.msra.mxu0 %v1858
    %2445 = vmatprep.subr.bf16.mxu0 0
    %2446 = vmatpush2.bf16.msra.mxu0 %v1857
    %2447 = vmatprep.subr.bf16.mxu0 0
    %2448 = vmatpush2.bf16.msra.mxu0 %v1856
    %2449 = vmatprep.subr.bf16.mxu0 0
    %2450 = vmatpush2.bf16.msra.mxu0 %v1855
    %2451 = vmatprep.subr.bf16.mxu0 0
    %2452 = vmatpush2.bf16.msra.mxu0 %v1854
    %2453 = vmatprep.subr.bf16.mxu0 0
    %2454 = vmatpush2.bf16.msra.mxu0 %v1853
    %2455 = vmatprep.subr.bf16.mxu0 0
    %2456 = vmatpush2.bf16.msra.mxu0 %v1852
    %2457 = vmatprep.subr.bf16.mxu0 0
    %2458 = vmatpush2.bf16.msra.mxu0 %v1851
    %2459 = vmatprep.mubr.bf16.mxu0 %v591
    %2460 = vmatmul.mubr.bf16.gmra.mxu0 %v589
    %v2461 = vpop.f32.mrf.mxu0
    %v2462 = vadd.f32 %v2422, %v2461
    %v2463 = vpop.f32.mrf.mxu0
    %v2464 = vpop.f32.mrf.mxu0
    %v2465 = vpop.f32.mrf.mxu0
    %2466 = vdwg.mxu0
    %2467 = vmatprep.subr.bf16.mxu0 0
    %2468 = vmatpush1.bf16.msra.mxu0 %v1866
    %2469 = vmatprep.subr.bf16.mxu0 0
    %2470 = vmatpush1.bf16.msra.mxu0 %v1865
    %2471 = vmatprep.subr.bf16.mxu0 0
    %2472 = vmatpush1.bf16.msra.mxu0 %v1864
    %2473 = vmatprep.subr.bf16.mxu0 0
    %2474 = vmatpush1.bf16.msra.mxu0 %v1863
    %2475 = vmatprep.subr.bf16.mxu0 0
    %2476 = vmatpush1.bf16.msra.mxu0 %v1862
    %2477 = vmatprep.subr.bf16.mxu0 0
    %2478 = vmatpush1.bf16.msra.mxu0 %v1861
    %2479 = vmatprep.subr.bf16.mxu0 0
    %2480 = vmatpush1.bf16.msra.mxu0 %v1860
    %2481 = vmatprep.subr.bf16.mxu0 0
    %2482 = vmatpush1.bf16.msra.mxu0 %v1859
    %2483 = vmatprep.subr.bf16.mxu0 0
    %2484 = vmatpush2.bf16.msra.mxu0 %v1874
    %2485 = vmatprep.subr.bf16.mxu0 0
    %2486 = vmatpush2.bf16.msra.mxu0 %v1873
    %2487 = vmatprep.subr.bf16.mxu0 0
    %2488 = vmatpush2.bf16.msra.mxu0 %v1872
    %2489 = vmatprep.subr.bf16.mxu0 0
    %2490 = vmatpush2.bf16.msra.mxu0 %v1871
    %2491 = vmatprep.subr.bf16.mxu0 0
    %2492 = vmatpush2.bf16.msra.mxu0 %v1870
    %2493 = vmatprep.subr.bf16.mxu0 0
    %2494 = vmatpush2.bf16.msra.mxu0 %v1869
    %2495 = vmatprep.subr.bf16.mxu0 0
    %2496 = vmatpush2.bf16.msra.mxu0 %v1868
    %2497 = vmatprep.subr.bf16.mxu0 0
    %2498 = vmatpush2.bf16.msra.mxu0 %v1867
    %2499 = vmatprep.mubr.bf16.mxu0 %v629
    %2500 = vmatmul.mubr.bf16.gmra.mxu0 %v615
    %v2501 = vpop.f32.mrf.mxu0
    %v2502 = vadd.f32 %v2462, %v2501
    %v2503 = vpop.f32.mrf.mxu0
    %v2504 = vpop.f32.mrf.mxu0
    %v2505 = vpop.f32.mrf.mxu0
    %2506 = vdwg.mxu0
    %2507 = vmatprep.subr.bf16.mxu0 0
    %2508 = vmatpush1.bf16.msra.mxu0 %v1882
    %2509 = vmatprep.subr.bf16.mxu0 0
    %2510 = vmatpush1.bf16.msra.mxu0 %v1881
    %2511 = vmatprep.subr.bf16.mxu0 0
    %2512 = vmatpush1.bf16.msra.mxu0 %v1880
    %2513 = vmatprep.subr.bf16.mxu0 0
    %2514 = vmatpush1.bf16.msra.mxu0 %v1879
    %2515 = vmatprep.subr.bf16.mxu0 0
    %2516 = vmatpush1.bf16.msra.mxu0 %v1878
    %2517 = vmatprep.subr.bf16.mxu0 0
    %2518 = vmatpush1.bf16.msra.mxu0 %v1877
    %2519 = vmatprep.subr.bf16.mxu0 0
    %2520 = vmatpush1.bf16.msra.mxu0 %v1876
    %2521 = vmatprep.subr.bf16.mxu0 0
    %2522 = vmatpush1.bf16.msra.mxu0 %v1875
    %2523 = vmatprep.subr.bf16.mxu0 0
    %2524 = vmatpush2.bf16.msra.mxu0 %v1890
    %2525 = vmatprep.subr.bf16.mxu0 0
    %2526 = vmatpush2.bf16.msra.mxu0 %v1889
    %2527 = vmatprep.subr.bf16.mxu0 0
    %2528 = vmatpush2.bf16.msra.mxu0 %v1888
    %2529 = vmatprep.subr.bf16.mxu0 0
    %2530 = vmatpush2.bf16.msra.mxu0 %v1887
    %2531 = vmatprep.subr.bf16.mxu0 0
    %2532 = vmatpush2.bf16.msra.mxu0 %v1886
    %2533 = vmatprep.subr.bf16.mxu0 0
    %2534 = vmatpush2.bf16.msra.mxu0 %v1885
    %2535 = vmatprep.subr.bf16.mxu0 0
    %2536 = vmatpush2.bf16.msra.mxu0 %v1884
    %2537 = vmatprep.subr.bf16.mxu0 0
    %2538 = vmatpush2.bf16.msra.mxu0 %v1883
    %2539 = vmatprep.mubr.bf16.mxu0 %v639
    %2540 = vmatmul.mubr.bf16.gmra.mxu0 %v637
    %v2541 = vpop.f32.mrf.mxu0
    %v2542 = vadd.f32 %v2502, %v2541
    %v2543 = vpop.f32.mrf.mxu0
    %v2544 = vpop.f32.mrf.mxu0
    %v2545 = vpop.f32.mrf.mxu0
    %2546 = vdwg.mxu0
    %2547 = vmatprep.subr.bf16.mxu0 0
    %2548 = vmatpush1.bf16.msra.mxu0 %v1898
    %2549 = vmatprep.subr.bf16.mxu0 0
    %2550 = vmatpush1.bf16.msra.mxu0 %v1897
    %2551 = vmatprep.subr.bf16.mxu0 0
    %2552 = vmatpush1.bf16.msra.mxu0 %v1896
    %2553 = vmatprep.subr.bf16.mxu0 0
    %2554 = vmatpush1.bf16.msra.mxu0 %v1895
    %2555 = vmatprep.subr.bf16.mxu0 0
    %2556 = vmatpush1.bf16.msra.mxu0 %v1894
    %2557 = vmatprep.subr.bf16.mxu0 0
    %2558 = vmatpush1.bf16.msra.mxu0 %v1893
    %2559 = vmatprep.subr.bf16.mxu0 0
    %2560 = vmatpush1.bf16.msra.mxu0 %v1892
    %2561 = vmatprep.subr.bf16.mxu0 0
    %2562 = vmatpush1.bf16.msra.mxu0 %v1891
    %2563 = vmatprep.subr.bf16.mxu0 0
    %2564 = vmatpush2.bf16.msra.mxu0 %v1906
    %2565 = vmatprep.subr.bf16.mxu0 0
    %2566 = vmatpush2.bf16.msra.mxu0 %v1905
    %2567 = vmatprep.subr.bf16.mxu0 0
    %2568 = vmatpush2.bf16.msra.mxu0 %v1904
    %2569 = vmatprep.subr.bf16.mxu0 0
    %2570 = vmatpush2.bf16.msra.mxu0 %v1903
    %2571 = vmatprep.subr.bf16.mxu0 0
    %2572 = vmatpush2.bf16.msra.mxu0 %v1902
    %2573 = vmatprep.subr.bf16.mxu0 0
    %2574 = vmatpush2.bf16.msra.mxu0 %v1901
    %2575 = vmatprep.subr.bf16.mxu0 0
    %2576 = vmatpush2.bf16.msra.mxu0 %v1900
    %2577 = vmatprep.subr.bf16.mxu0 0
    %2578 = vmatpush2.bf16.msra.mxu0 %v1899
    %2579 = vmatprep.mubr.bf16.mxu0 %v636
    %2580 = vmatmul.mubr.bf16.gmra.mxu0 %v622
    %v2581 = vpop.f32.mrf.mxu0
    %v2582 = vadd.f32 %v2542, %v2581
    %v2583 = vpop.f32.mrf.mxu0
    %v2584 = vpop.f32.mrf.mxu0
    %v2585 = vpop.f32.mrf.mxu0
    %2586 = vdwg.mxu0
    %2587 = vmatprep.subr.bf16.mxu0 0
    %2588 = vmatpush1.bf16.msra.mxu0 %v1914
    %2589 = vmatprep.subr.bf16.mxu0 0
    %2590 = vmatpush1.bf16.msra.mxu0 %v1913
    %2591 = vmatprep.subr.bf16.mxu0 0
    %2592 = vmatpush1.bf16.msra.mxu0 %v1912
    %2593 = vmatprep.subr.bf16.mxu0 0
    %2594 = vmatpush1.bf16.msra.mxu0 %v1911
    %2595 = vmatprep.subr.bf16.mxu0 0
    %2596 = vmatpush1.bf16.msra.mxu0 %v1910
    %2597 = vmatprep.subr.bf16.mxu0 0
    %2598 = vmatpush1.bf16.msra.mxu0 %v1909
    %2599 = vmatprep.subr.bf16.mxu0 0
    %2600 = vmatpush1.bf16.msra.mxu0 %v1908
    %2601 = vmatprep.subr.bf16.mxu0 0
    %2602 = vmatpush1.bf16.msra.mxu0 %v1907
    %2603 = vmatprep.subr.bf16.mxu0 0
    %2604 = vmatpush2.bf16.msra.mxu0 %v1922
    %2605 = vmatprep.subr.bf16.mxu0 0
    %2606 = vmatpush2.bf16.msra.mxu0 %v1921
    %2607 = vmatprep.subr.bf16.mxu0 0
    %2608 = vmatpush2.bf16.msra.mxu0 %v1920
    %2609 = vmatprep.subr.bf16.mxu0 0
    %2610 = vmatpush2.bf16.msra.mxu0 %v1919
    %2611 = vmatprep.subr.bf16.mxu0 0
    %2612 = vmatpush2.bf16.msra.mxu0 %v1918
    %2613 = vmatprep.subr.bf16.mxu0 0
    %2614 = vmatpush2.bf16.msra.mxu0 %v1917
    %2615 = vmatprep.subr.bf16.mxu0 0
    %2616 = vmatpush2.bf16.msra.mxu0 %v1916
    %2617 = vmatprep.subr.bf16.mxu0 0
    %2618 = vmatpush2.bf16.msra.mxu0 %v1915
    %2619 = vmatprep.mubr.bf16.mxu0 %v640
    %2620 = vmatmul.mubr.bf16.gmra.mxu0 %v638
    %v2621 = vpop.f32.mrf.mxu0
    %v2622 = vadd.f32 %v2582, %v2621
    %v2623 = vpop.f32.mrf.mxu0
    %v2624 = vpop.f32.mrf.mxu0
    %v2625 = vpop.f32.mrf.mxu0
    %2626 = vdwg.mxu0
    %2627 = vmatprep.subr.bf16.mxu0 0
    %2628 = vmatpush1.bf16.msra.mxu0 %v1930
    %2629 = vmatprep.subr.bf16.mxu0 0
    %2630 = vmatpush1.bf16.msra.mxu0 %v1929
    %2631 = vmatprep.subr.bf16.mxu0 0
    %2632 = vmatpush1.bf16.msra.mxu0 %v1928
    %2633 = vmatprep.subr.bf16.mxu0 0
    %2634 = vmatpush1.bf16.msra.mxu0 %v1927
    %2635 = vmatprep.subr.bf16.mxu0 0
    %2636 = vmatpush1.bf16.msra.mxu0 %v1926
    %2637 = vmatprep.subr.bf16.mxu0 0
    %2638 = vmatpush1.bf16.msra.mxu0 %v1925
    %2639 = vmatprep.subr.bf16.mxu0 0
    %2640 = vmatpush1.bf16.msra.mxu0 %v1924
    %2641 = vmatprep.subr.bf16.mxu0 0
    %2642 = vmatpush1.bf16.msra.mxu0 %v1923
    %2643 = vmatprep.subr.bf16.mxu0 0
    %2644 = vmatpush2.bf16.msra.mxu0 %v1938
    %2645 = vmatprep.subr.bf16.mxu0 0
    %2646 = vmatpush2.bf16.msra.mxu0 %v1937
    %2647 = vmatprep.subr.bf16.mxu0 0
    %2648 = vmatpush2.bf16.msra.mxu0 %v1936
    %2649 = vmatprep.subr.bf16.mxu0 0
    %2650 = vmatpush2.bf16.msra.mxu0 %v1935
    %2651 = vmatprep.subr.bf16.mxu0 0
    %2652 = vmatpush2.bf16.msra.mxu0 %v1934
    %2653 = vmatprep.subr.bf16.mxu0 0
    %2654 = vmatpush2.bf16.msra.mxu0 %v1933
    %2655 = vmatprep.subr.bf16.mxu0 0
    %2656 = vmatpush2.bf16.msra.mxu0 %v1932
    %2657 = vmatprep.subr.bf16.mxu0 0
    %2658 = vmatpush2.bf16.msra.mxu0 %v1931
    %2659 = vmatprep.mubr.bf16.mxu0 %v678
    %2660 = vmatmul.mubr.bf16.gmra.mxu0 %v664
    %v2661 = vpop.f32.mrf.mxu0
    %v2662 = vadd.f32 %v2622, %v2661
    %v2663 = vpop.f32.mrf.mxu0
    %v2664 = vpop.f32.mrf.mxu0
    %v2665 = vpop.f32.mrf.mxu0
    %2666 = vdwg.mxu0
    %2667 = vmatprep.subr.bf16.mxu0 0
    %2668 = vmatpush1.bf16.msra.mxu0 %v1946
    %2669 = vmatprep.subr.bf16.mxu0 0
    %2670 = vmatpush1.bf16.msra.mxu0 %v1945
    %2671 = vmatprep.subr.bf16.mxu0 0
    %2672 = vmatpush1.bf16.msra.mxu0 %v1944
    %2673 = vmatprep.subr.bf16.mxu0 0
    %2674 = vmatpush1.bf16.msra.mxu0 %v1943
    %2675 = vmatprep.subr.bf16.mxu0 0
    %2676 = vmatpush1.bf16.msra.mxu0 %v1942
    %2677 = vmatprep.subr.bf16.mxu0 0
    %2678 = vmatpush1.bf16.msra.mxu0 %v1941
    %2679 = vmatprep.subr.bf16.mxu0 0
    %2680 = vmatpush1.bf16.msra.mxu0 %v1940
    %2681 = vmatprep.subr.bf16.mxu0 0
    %2682 = vmatpush1.bf16.msra.mxu0 %v1939
    %2683 = vmatprep.subr.bf16.mxu0 0
    %2684 = vmatpush2.bf16.msra.mxu0 %v1954
    %2685 = vmatprep.subr.bf16.mxu0 0
    %2686 = vmatpush2.bf16.msra.mxu0 %v1953
    %2687 = vmatprep.subr.bf16.mxu0 0
    %2688 = vmatpush2.bf16.msra.mxu0 %v1952
    %2689 = vmatprep.subr.bf16.mxu0 0
    %2690 = vmatpush2.bf16.msra.mxu0 %v1951
    %2691 = vmatprep.subr.bf16.mxu0 0
    %2692 = vmatpush2.bf16.msra.mxu0 %v1950
    %2693 = vmatprep.subr.bf16.mxu0 0
    %2694 = vmatpush2.bf16.msra.mxu0 %v1949
    %2695 = vmatprep.subr.bf16.mxu0 0
    %2696 = vmatpush2.bf16.msra.mxu0 %v1948
    %2697 = vmatprep.subr.bf16.mxu0 0
    %2698 = vmatpush2.bf16.msra.mxu0 %v1947
    %2699 = vmatprep.mubr.bf16.mxu0 %v688
    %2700 = vmatmul.mubr.bf16.gmra.mxu0 %v686
    %v2701 = vpop.f32.mrf.mxu0
    %v2702 = vadd.f32 %v2662, %v2701
    %v2703 = vpop.f32.mrf.mxu0
    %v2704 = vpop.f32.mrf.mxu0
    %v2705 = vpop.f32.mrf.mxu0
    %2706 = vdwg.mxu0
    %2707 = vmatprep.subr.bf16.mxu0 0
    %2708 = vmatpush1.bf16.msra.mxu0 %v1962
    %2709 = vmatprep.subr.bf16.mxu0 0
    %2710 = vmatpush1.bf16.msra.mxu0 %v1961
    %2711 = vmatprep.subr.bf16.mxu0 0
    %2712 = vmatpush1.bf16.msra.mxu0 %v1960
    %2713 = vmatprep.subr.bf16.mxu0 0
    %2714 = vmatpush1.bf16.msra.mxu0 %v1959
    %2715 = vmatprep.subr.bf16.mxu0 0
    %2716 = vmatpush1.bf16.msra.mxu0 %v1958
    %2717 = vmatprep.subr.bf16.mxu0 0
    %2718 = vmatpush1.bf16.msra.mxu0 %v1957
    %2719 = vmatprep.subr.bf16.mxu0 0
    %2720 = vmatpush1.bf16.msra.mxu0 %v1956
    %2721 = vmatprep.subr.bf16.mxu0 0
    %2722 = vmatpush1.bf16.msra.mxu0 %v1955
    %2723 = vmatprep.subr.bf16.mxu0 0
    %2724 = vmatpush2.bf16.msra.mxu0 %v1970
    %2725 = vmatprep.subr.bf16.mxu0 0
    %2726 = vmatpush2.bf16.msra.mxu0 %v1969
    %2727 = vmatprep.subr.bf16.mxu0 0
    %2728 = vmatpush2.bf16.msra.mxu0 %v1968
    %2729 = vmatprep.subr.bf16.mxu0 0
    %2730 = vmatpush2.bf16.msra.mxu0 %v1967
    %2731 = vmatprep.subr.bf16.mxu0 0
    %2732 = vmatpush2.bf16.msra.mxu0 %v1966
    %2733 = vmatprep.subr.bf16.mxu0 0
    %2734 = vmatpush2.bf16.msra.mxu0 %v1965
    %2735 = vmatprep.subr.bf16.mxu0 0
    %2736 = vmatpush2.bf16.msra.mxu0 %v1964
    %2737 = vmatprep.subr.bf16.mxu0 0
    %2738 = vmatpush2.bf16.msra.mxu0 %v1963
    %2739 = vmatprep.mubr.bf16.mxu0 %v685
    %2740 = vmatmul.mubr.bf16.gmra.mxu0 %v671
    %v2741 = vpop.f32.mrf.mxu0
    %v2742 = vadd.f32 %v2702, %v2741
    %v2743 = vpop.f32.mrf.mxu0
    %v2744 = vpop.f32.mrf.mxu0
    %v2745 = vpop.f32.mrf.mxu0
    %2746 = vdwg.mxu0
    %2747 = vmatprep.subr.bf16.mxu0 0
    %2748 = vmatpush1.bf16.msra.mxu0 %v1978
    %2749 = vmatprep.subr.bf16.mxu0 0
    %2750 = vmatpush1.bf16.msra.mxu0 %v1977
    %2751 = vmatprep.subr.bf16.mxu0 0
    %2752 = vmatpush1.bf16.msra.mxu0 %v1976
    %2753 = vmatprep.subr.bf16.mxu0 0
    %2754 = vmatpush1.bf16.msra.mxu0 %v1975
    %2755 = vmatprep.subr.bf16.mxu0 0
    %2756 = vmatpush1.bf16.msra.mxu0 %v1974
    %2757 = vmatprep.subr.bf16.mxu0 0
    %2758 = vmatpush1.bf16.msra.mxu0 %v1973
    %2759 = vmatprep.subr.bf16.mxu0 0
    %2760 = vmatpush1.bf16.msra.mxu0 %v1972
    %2761 = vmatprep.subr.bf16.mxu0 0
    %2762 = vmatpush1.bf16.msra.mxu0 %v1971
    %2763 = vmatprep.subr.bf16.mxu0 0
    %2764 = vmatpush2.bf16.msra.mxu0 %v1986
    %2765 = vmatprep.subr.bf16.mxu0 0
    %2766 = vmatpush2.bf16.msra.mxu0 %v1985
    %2767 = vmatprep.subr.bf16.mxu0 0
    %2768 = vmatpush2.bf16.msra.mxu0 %v1984
    %2769 = vmatprep.subr.bf16.mxu0 0
    %2770 = vmatpush2.bf16.msra.mxu0 %v1983
    %2771 = vmatprep.subr.bf16.mxu0 0
    %2772 = vmatpush2.bf16.msra.mxu0 %v1982
    %2773 = vmatprep.subr.bf16.mxu0 0
    %2774 = vmatpush2.bf16.msra.mxu0 %v1981
    %2775 = vmatprep.subr.bf16.mxu0 0
    %2776 = vmatpush2.bf16.msra.mxu0 %v1980
    %2777 = vmatprep.subr.bf16.mxu0 0
    %2778 = vmatpush2.bf16.msra.mxu0 %v1979
    %2779 = vmatprep.mubr.bf16.mxu0 %v689
    %2780 = vmatmul.mubr.bf16.gmra.mxu0 %v687
    %v2781 = vpop.f32.mrf.mxu0
    %v2782 = vadd.f32 %v2742, %v2781
    %v2783 = vpop.f32.mrf.mxu0
    %v2784 = vpop.f32.mrf.mxu0
    %v2785 = vpop.f32.mrf.mxu0
    %2786 = vdwg.mxu0
    %2787 = vmatprep.subr.bf16.mxu0 0
    %2788 = vmatpush1.bf16.msra.mxu0 %v1994
    %2789 = vmatprep.subr.bf16.mxu0 0
    %2790 = vmatpush1.bf16.msra.mxu0 %v1993
    %2791 = vmatprep.subr.bf16.mxu0 0
    %2792 = vmatpush1.bf16.msra.mxu0 %v1992
    %2793 = vmatprep.subr.bf16.mxu0 0
    %2794 = vmatpush1.bf16.msra.mxu0 %v1991
    %2795 = vmatprep.subr.bf16.mxu0 0
    %2796 = vmatpush1.bf16.msra.mxu0 %v1990
    %2797 = vmatprep.subr.bf16.mxu0 0
    %2798 = vmatpush1.bf16.msra.mxu0 %v1989
    %2799 = vmatprep.subr.bf16.mxu0 0
    %2800 = vmatpush1.bf16.msra.mxu0 %v1988
    %2801 = vmatprep.subr.bf16.mxu0 0
    %2802 = vmatpush1.bf16.msra.mxu0 %v1987
    %2803 = vmatprep.subr.bf16.mxu0 0
    %2804 = vmatpush2.bf16.msra.mxu0 %v2002
    %2805 = vmatprep.subr.bf16.mxu0 0
    %2806 = vmatpush2.bf16.msra.mxu0 %v2001
    %2807 = vmatprep.subr.bf16.mxu0 0
    %2808 = vmatpush2.bf16.msra.mxu0 %v2000
    %2809 = vmatprep.subr.bf16.mxu0 0
    %2810 = vmatpush2.bf16.msra.mxu0 %v1999
    %2811 = vmatprep.subr.bf16.mxu0 0
    %2812 = vmatpush2.bf16.msra.mxu0 %v1998
    %2813 = vmatprep.subr.bf16.mxu0 0
    %2814 = vmatpush2.bf16.msra.mxu0 %v1997
    %2815 = vmatprep.subr.bf16.mxu0 0
    %2816 = vmatpush2.bf16.msra.mxu0 %v1996
    %2817 = vmatprep.subr.bf16.mxu0 0
    %2818 = vmatpush2.bf16.msra.mxu0 %v1995
    %2819 = vmatprep.mubr.bf16.mxu0 %v727
    %2820 = vmatmul.mubr.bf16.gmra.mxu0 %v713
    %v2821 = vpop.f32.mrf.mxu0
    %v2822 = vadd.f32 %v2782, %v2821
    %v2823 = vpop.f32.mrf.mxu0
    %v2824 = vpop.f32.mrf.mxu0
    %v2825 = vpop.f32.mrf.mxu0
    %2826 = vdwg.mxu0
    %2827 = vmatprep.subr.bf16.mxu0 0
    %2828 = vmatpush1.bf16.msra.mxu0 %v2010
    %2829 = vmatprep.subr.bf16.mxu0 0
    %2830 = vmatpush1.bf16.msra.mxu0 %v2009
    %2831 = vmatprep.subr.bf16.mxu0 0
    %2832 = vmatpush1.bf16.msra.mxu0 %v2008
    %2833 = vmatprep.subr.bf16.mxu0 0
    %2834 = vmatpush1.bf16.msra.mxu0 %v2007
    %2835 = vmatprep.subr.bf16.mxu0 0
    %2836 = vmatpush1.bf16.msra.mxu0 %v2006
    %2837 = vmatprep.subr.bf16.mxu0 0
    %2838 = vmatpush1.bf16.msra.mxu0 %v2005
    %2839 = vmatprep.subr.bf16.mxu0 0
    %2840 = vmatpush1.bf16.msra.mxu0 %v2004
    %2841 = vmatprep.subr.bf16.mxu0 0
    %2842 = vmatpush1.bf16.msra.mxu0 %v2003
    %2843 = vmatprep.subr.bf16.mxu0 0
    %2844 = vmatpush2.bf16.msra.mxu0 %v2018
    %2845 = vmatprep.subr.bf16.mxu0 0
    %2846 = vmatpush2.bf16.msra.mxu0 %v2017
    %2847 = vmatprep.subr.bf16.mxu0 0
    %2848 = vmatpush2.bf16.msra.mxu0 %v2016
    %2849 = vmatprep.subr.bf16.mxu0 0
    %2850 = vmatpush2.bf16.msra.mxu0 %v2015
    %2851 = vmatprep.subr.bf16.mxu0 0
    %2852 = vmatpush2.bf16.msra.mxu0 %v2014
    %2853 = vmatprep.subr.bf16.mxu0 0
    %2854 = vmatpush2.bf16.msra.mxu0 %v2013
    %2855 = vmatprep.subr.bf16.mxu0 0
    %2856 = vmatpush2.bf16.msra.mxu0 %v2012
    %2857 = vmatprep.subr.bf16.mxu0 0
    %2858 = vmatpush2.bf16.msra.mxu0 %v2011
    %2859 = vmatprep.mubr.bf16.mxu0 %v737
    %2860 = vmatmul.mubr.bf16.gmra.mxu0 %v735
    %v2861 = vpop.f32.mrf.mxu0
    %v2862 = vadd.f32 %v2822, %v2861
    %v2863 = vpop.f32.mrf.mxu0
    %v2864 = vpop.f32.mrf.mxu0
    %v2865 = vpop.f32.mrf.mxu0
    %2866 = vdwg.mxu0
    %2867 = vmatprep.subr.bf16.mxu0 0
    %2868 = vmatpush1.bf16.msra.mxu0 %v2026
    %2869 = vmatprep.subr.bf16.mxu0 0
    %2870 = vmatpush1.bf16.msra.mxu0 %v2025
    %2871 = vmatprep.subr.bf16.mxu0 0
    %2872 = vmatpush1.bf16.msra.mxu0 %v2024
    %2873 = vmatprep.subr.bf16.mxu0 0
    %2874 = vmatpush1.bf16.msra.mxu0 %v2023
    %2875 = vmatprep.subr.bf16.mxu0 0
    %2876 = vmatpush1.bf16.msra.mxu0 %v2022
    %2877 = vmatprep.subr.bf16.mxu0 0
    %2878 = vmatpush1.bf16.msra.mxu0 %v2021
    %2879 = vmatprep.subr.bf16.mxu0 0
    %2880 = vmatpush1.bf16.msra.mxu0 %v2020
    %2881 = vmatprep.subr.bf16.mxu0 0
    %2882 = vmatpush1.bf16.msra.mxu0 %v2019
    %2883 = vmatprep.subr.bf16.mxu0 0
    %2884 = vmatpush2.bf16.msra.mxu0 %v2034
    %2885 = vmatprep.subr.bf16.mxu0 0
    %2886 = vmatpush2.bf16.msra.mxu0 %v2033
    %2887 = vmatprep.subr.bf16.mxu0 0
    %2888 = vmatpush2.bf16.msra.mxu0 %v2032
    %2889 = vmatprep.subr.bf16.mxu0 0
    %2890 = vmatpush2.bf16.msra.mxu0 %v2031
    %2891 = vmatprep.subr.bf16.mxu0 0
    %2892 = vmatpush2.bf16.msra.mxu0 %v2030
    %2893 = vmatprep.subr.bf16.mxu0 0
    %2894 = vmatpush2.bf16.msra.mxu0 %v2029
    %2895 = vmatprep.subr.bf16.mxu0 0
    %2896 = vmatpush2.bf16.msra.mxu0 %v2028
    %2897 = vmatprep.subr.bf16.mxu0 0
    %2898 = vmatpush2.bf16.msra.mxu0 %v2027
    %2899 = vmatprep.mubr.bf16.mxu0 %v734
    %2900 = vmatmul.mubr.bf16.gmra.mxu0 %v720
    %v2901 = vpop.f32.mrf.mxu0
    %v2902 = vadd.f32 %v2862, %v2901
    %v2903 = vpop.f32.mrf.mxu0
    %v2904 = vpop.f32.mrf.mxu0
    %v2905 = vpop.f32.mrf.mxu0
    %2906 = vdwg.mxu0
    %2907 = vmatprep.subr.bf16.mxu0 0
    %2908 = vmatpush1.bf16.msra.mxu0 %v2042
    %2909 = vmatprep.subr.bf16.mxu0 0
    %2910 = vmatpush1.bf16.msra.mxu0 %v2041
    %2911 = vmatprep.subr.bf16.mxu0 0
    %2912 = vmatpush1.bf16.msra.mxu0 %v2040
    %2913 = vmatprep.subr.bf16.mxu0 0
    %2914 = vmatpush1.bf16.msra.mxu0 %v2039
    %2915 = vmatprep.subr.bf16.mxu0 0
    %2916 = vmatpush1.bf16.msra.mxu0 %v2038
    %2917 = vmatprep.subr.bf16.mxu0 0
    %2918 = vmatpush1.bf16.msra.mxu0 %v2037
    %2919 = vmatprep.subr.bf16.mxu0 0
    %2920 = vmatpush1.bf16.msra.mxu0 %v2036
    %2921 = vmatprep.subr.bf16.mxu0 0
    %2922 = vmatpush1.bf16.msra.mxu0 %v2035
    %2923 = vmatprep.subr.bf16.mxu0 0
    %2924 = vmatpush2.bf16.msra.mxu0 %v2050
    %2925 = vmatprep.subr.bf16.mxu0 0
    %2926 = vmatpush2.bf16.msra.mxu0 %v2049
    %2927 = vmatprep.subr.bf16.mxu0 0
    %2928 = vmatpush2.bf16.msra.mxu0 %v2048
    %2929 = vmatprep.subr.bf16.mxu0 0
    %2930 = vmatpush2.bf16.msra.mxu0 %v2047
    %2931 = vmatprep.subr.bf16.mxu0 0
    %2932 = vmatpush2.bf16.msra.mxu0 %v2046
    %2933 = vmatprep.subr.bf16.mxu0 0
    %2934 = vmatpush2.bf16.msra.mxu0 %v2045
    %2935 = vmatprep.subr.bf16.mxu0 0
    %2936 = vmatpush2.bf16.msra.mxu0 %v2044
    %2937 = vmatprep.subr.bf16.mxu0 0
    %2938 = vmatpush2.bf16.msra.mxu0 %v2043
    %2939 = vmatprep.mubr.bf16.mxu0 %v738
    %2940 = vmatmul.mubr.bf16.gmra.mxu0 %v736
    %v2941 = vpop.f32.mrf.mxu0
    %v2942 = vadd.f32 %v2902, %v2941
    %v2943 = vpop.f32.mrf.mxu0
    %v2944 = vpop.f32.mrf.mxu0
    %v2945 = vpop.f32.mrf.mxu0
    %2946 = vdwg.mxu0
    %2947 = vst [vmem:[#allocation2] sm:$0x3] %v2942
    // Predicated region
    $region14: #{net_forward.15} parent=1 // pred_check
      _
    $region15: #{net_forward.15} parent=1 // pred_check_branch
      %2949 = sbr.rel (0) target = $region17
    $region16: #{net_forward.15} parent=1 // pred_region
      %s2951 = ssub.s32 32, 32
      %2952 = vsyncadd [#allocation3], %s2951
      %s2954 = sshll.u32 [#allocation2], 4
      %s2955 = int_to_ptr.vmem [resolvable:$true] %s2954
      %2957 = dma.vmem_to_hbm [thread:$0]  %s2955, 32, %s3, [#allocation3]
    $region17: #{net_forward.15} parent=1 // pred_fallthru
      _
    // Predicated region
    $region18: #{net_forward.15} parent=1 // pred_check
      _
    $region19: #{net_forward.15} parent=1 // pred_check_branch
      %2959 = sbr.rel (0) target = $region21
    $region20: #{net_forward.15} parent=1 // pred_region
      %2960 = dma.done [#allocation3], 32
    $region21: #{net_forward.15} parent=1 // pred_fallthru
      _
    %2961 = vsyncpa [#allocation3], 1

</llo_original>
